<compile_context>
chip_gen: v7x
topology: tpu7x:2x2x1
jax: 0.10.0
libtpu: 0.0.40
codegen_flags: <defaults>
</compile_context>

<pallas_src>
import functools
import math

import jax
import jax.numpy as jnp
from jax.experimental import pallas as pl
from jax.experimental.pallas import tpu as pltpu


# ----------------------------------------------------------------------------
# Kernel A: fused relative-position multi-head attention block
#   out = LayerNorm( x*mask + out_proj( rel_attn( qkv(x*mask) ) ) )
# ----------------------------------------------------------------------------

def _attn_block_kernel(len_ref, x_ref,
                       wq_ref, wk_ref, wv_ref, wo_ref,
                       bq_ref, bk_ref, bv_ref, bo_ref,
                       ek_ref, ev_ref, g_ref, bln_ref,
                       o_ref, *, heads, dk, window, eps):
    T, C = x_ref.shape[1], x_ref.shape[2]
    length = len_ref[pl.program_id(0)]
    scale = 1.0 / math.sqrt(dk)

    x = x_ref[0]                                              # [T, C] f32
    t_ids = jax.lax.broadcasted_iota(jnp.int32, (T, 1), 0)
    seq_mask = (t_ids < length).astype(jnp.float32)           # [T, 1]
    xm = x * seq_mask                                         # masked input (== residual)
    xm_b = xm.astype(jnp.bfloat16)

    row = jax.lax.broadcasted_iota(jnp.int32, (T, T), 0)
    col = jax.lax.broadcasted_iota(jnp.int32, (T, T), 1)
    attn_valid = jnp.logical_and(row < length, col < length)  # [T, T]
    diff = col - row
    # 0/1 masks for each relative offset inside the window (shared across heads).
    bands = [(diff == d).astype(jnp.float32) for d in range(-window, window + 1)]

    ek_b = ek_ref[...].astype(jnp.bfloat16)                   # [2W+1, dk]
    ev = ev_ref[...]                                          # [2W+1, dk] f32

    y = jnp.zeros((T, C), jnp.float32)
    for h in range(heads):
        q = jnp.dot(xm_b, wq_ref[h], preferred_element_type=jnp.float32) + bq_ref[h]
        k = jnp.dot(xm_b, wk_ref[h], preferred_element_type=jnp.float32) + bk_ref[h]
        v = jnp.dot(xm_b, wv_ref[h], preferred_element_type=jnp.float32) + bv_ref[h]

        qs = (q * scale).astype(jnp.bfloat16)
        kb = k.astype(jnp.bfloat16)
        # content logits: [T, T] on the MXU (contract last dims, no transpose op)
        scores = jax.lax.dot_general(qs, kb, (((1,), (1,)), ((), ())),
                                     preferred_element_type=jnp.float32)
        # relative-key logits: tiny [T, 2W+1] MXU matmul, scattered onto the band
        qe = jax.lax.dot_general(qs, ek_b, (((1,), (1,)), ((), ())),
                                 preferred_element_type=jnp.float32)
        for i, band in enumerate(bands):
            scores = scores + qe[:, i:i + 1] * band

        scores = jnp.where(attn_valid, scores, jnp.float32(-1e4))
        scores = scores - jnp.max(scores, axis=-1, keepdims=True)
        p = jnp.exp(scores)
        p = p * pl.reciprocal(jnp.sum(p, axis=-1, keepdims=True), approx=True)

        ctx = jnp.dot(p.astype(jnp.bfloat16), v.astype(jnp.bfloat16),
                      preferred_element_type=jnp.float32)     # [T, dk]
        # relative-value contribution (banded): sum_d diag_d(p) * E_v[d+W]
        for i, band in enumerate(bands):
            w_d = jnp.sum(p * band, axis=-1, keepdims=True)   # [T, 1]
            ctx = ctx + w_d * ev[i:i + 1, :]

        y = y + jnp.dot(ctx.astype(jnp.bfloat16), wo_ref[h],
                        preferred_element_type=jnp.float32)   # [T, C]

    y = y + bo_ref[...]
    r = xm + y
    mu = jnp.mean(r, axis=-1, keepdims=True)
    var = jnp.mean(jnp.square(r - mu), axis=-1, keepdims=True)
    o_ref[0] = (r - mu) * jax.lax.rsqrt(var + eps) * g_ref[...] + bln_ref[...]


# ----------------------------------------------------------------------------
# Kernel B: fused FFN block
#   out = LayerNorm( x + mask * conv2( pad( mask * relu(conv1(pad(mask * x))) ) ) )
# ----------------------------------------------------------------------------

def _ffn_block_kernel(len_ref, x_ref, w1_ref, b1_ref, w2_ref, b2_ref,
                      g_ref, bln_ref, o_ref, xpad_ref, midpad_ref,
                      *, kernel_size, eps):
    T, C = x_ref.shape[1], x_ref.shape[2]
    Cf = midpad_ref.shape[-1]
    K = kernel_size
    pad_l = (K - 1) // 2
    pad_r = K // 2
    length = len_ref[pl.program_id(0)]

    x = x_ref[0]                                              # [T, C] (unmasked LN1 output)
    t_ids = jax.lax.broadcasted_iota(jnp.int32, (T, 1), 0)
    seq_mask = (t_ids < length).astype(jnp.float32)           # [T, 1]
    xm = x * seq_mask

    # conv1 — "same" padding handled with a VMEM halo buffer
    if pad_l > 0:
        xpad_ref[0:pad_l, :] = jnp.zeros((pad_l, C), jnp.float32)
    if pad_r > 0:
        xpad_ref[pad_l + T:pad_l + T + pad_r, :] = jnp.zeros((pad_r, C), jnp.float32)
    xpad_ref[pad_l:pad_l + T, :] = xm

    acc1 = jnp.zeros((T, Cf), jnp.float32)
    for k in range(K):
        acc1 = acc1 + jnp.dot(xpad_ref[k:k + T, :].astype(jnp.bfloat16), w1_ref[k],
                              preferred_element_type=jnp.float32)
    mid = jnp.maximum(acc1 + b1_ref[...], 0.0) * seq_mask     # relu, mask before conv2

    # conv2 — the [T, Cffn] intermediate never leaves VMEM
    if pad_l > 0:
        midpad_ref[0:pad_l, :] = jnp.zeros((pad_l, Cf), jnp.float32)
    if pad_r > 0:
        midpad_ref[pad_l + T:pad_l + T + pad_r, :] = jnp.zeros((pad_r, Cf), jnp.float32)
    midpad_ref[pad_l:pad_l + T, :] = mid

    acc2 = jnp.zeros((T, C), jnp.float32)
    for k in range(K):
        acc2 = acc2 + jnp.dot(midpad_ref[k:k + T, :].astype(jnp.bfloat16), w2_ref[k],
                              preferred_element_type=jnp.float32)
    ffn = (acc2 + b2_ref[...]) * seq_mask                     # FFN returns conv2_out * mask

    r = x + ffn                                               # residual uses unmasked LN1 output
    mu = jnp.mean(r, axis=-1, keepdims=True)
    var = jnp.mean(jnp.square(r - mu), axis=-1, keepdims=True)
    o_ref[0] = (r - mu) * jax.lax.rsqrt(var + eps) * g_ref[...] + bln_ref[...]


# ----------------------------------------------------------------------------
# Kernel C: final mask + 1x1 projection + mask
# ----------------------------------------------------------------------------

def _proj_kernel(len_ref, x_ref, w_ref, b_ref, ox_ref, os_ref):
    T = x_ref.shape[1]
    length = len_ref[pl.program_id(0)]
    t_ids = jax.lax.broadcasted_iota(jnp.int32, (T, 1), 0)
    seq_mask = (t_ids < length).astype(jnp.float32)
    xm = x_ref[0] * seq_mask
    ox_ref[0] = xm
    stats = jnp.dot(xm.astype(jnp.bfloat16), w_ref[...],
                    preferred_element_type=jnp.float32) + b_ref[...]
    os_ref[0] = stats * seq_mask


# ----------------------------------------------------------------------------
# pallas_call wrappers
# ----------------------------------------------------------------------------

def _const_spec(shape):
    # Whole-array block, resident across grid steps (index_map gets the
    # scalar-prefetch ref as trailing arg).
    return pl.BlockSpec(shape, lambda b, lens: (0,) * len(shape))


def attn_block(x, x_lengths, layer, *, heads, window, eps=1e-5):
    B, T, C = x.shape
    dk = C // heads
    W = window
    kern = functools.partial(_attn_block_kernel, heads=heads, dk=dk,
                             window=W, eps=eps)
    act_spec = pl.BlockSpec((1, T, C), lambda b, lens: (b, 0, 0))
    return pl.pallas_call(
        kern,
        out_shape=jax.ShapeDtypeStruct((B, T, C), jnp.float32),
        grid_spec=pltpu.PrefetchScalarGridSpec(
            num_scalar_prefetch=1,
            grid=(B,),
            in_specs=[
                act_spec,
                _const_spec((heads, C, dk)),    # wq (bf16)
                _const_spec((heads, C, dk)),    # wk (bf16)
                _const_spec((heads, C, dk)),    # wv (bf16)
                _const_spec((heads, dk, C)),    # wo (bf16)
                _const_spec((heads, 1, dk)),    # bq
                _const_spec((heads, 1, dk)),    # bk
                _const_spec((heads, 1, dk)),    # bv
                _const_spec((1, C)),            # bo
                _const_spec((2 * W + 1, dk)),   # emb_rel_k
                _const_spec((2 * W + 1, dk)),   # emb_rel_v
                _const_spec((1, C)),            # LN gamma
                _const_spec((1, C)),            # LN beta
            ],
            out_specs=act_spec,
        ),
        compiler_params=pltpu.CompilerParams(dimension_semantics=("parallel",)),
    )(x_lengths, x,
      layer["wq"], layer["wk"], layer["wv"], layer["wo"],
      layer["bq"], layer["bk"], layer["bv"], layer["bo"],
      layer["emb_rel_k"], layer["emb_rel_v"], layer["g1"], layer["b1"])


def ffn_block(x, x_lengths, layer, *, kernel_size, eps=1e-5):
    B, T, C = x.shape
    K = kernel_size
    Cf = layer["w_ffn1"].shape[-1]
    kern = functools.partial(_ffn_block_kernel, kernel_size=K, eps=eps)
    act_spec = pl.BlockSpec((1, T, C), lambda b, lens: (b, 0, 0))
    return pl.pallas_call(
        kern,
        out_shape=jax.ShapeDtypeStruct((B, T, C), jnp.float32),
        grid_spec=pltpu.PrefetchScalarGridSpec(
            num_scalar_prefetch=1,
            grid=(B,),
            in_specs=[
                act_spec,
                _const_spec((K, C, Cf)),        # w_ffn1 (bf16)
                _const_spec((1, Cf)),           # b_ffn1
                _const_spec((K, Cf, C)),        # w_ffn2 (bf16)
                _const_spec((1, C)),            # b_ffn2
                _const_spec((1, C)),            # LN gamma
                _const_spec((1, C)),            # LN beta
            ],
            out_specs=act_spec,
            scratch_shapes=[
                pltpu.VMEM((T + K - 1, C), jnp.float32),    # padded conv1 input
                pltpu.VMEM((T + K - 1, Cf), jnp.float32),   # padded conv2 input
            ],
        ),
        compiler_params=pltpu.CompilerParams(dimension_semantics=("parallel",)),
    )(x_lengths, x, layer["w_ffn1"], layer["b_ffn1"],
      layer["w_ffn2"], layer["b_ffn2"], layer["g2"], layer["b2"])


def final_proj(x, x_lengths, w, b):
    B, T, C = x.shape
    P = w.shape[-1]
    act_spec = pl.BlockSpec((1, T, C), lambda bb, lens: (bb, 0, 0))
    out_spec = pl.BlockSpec((1, T, P), lambda bb, lens: (bb, 0, 0))
    return pl.pallas_call(
        _proj_kernel,
        out_shape=(jax.ShapeDtypeStruct((B, T, C), jnp.float32),
                   jax.ShapeDtypeStruct((B, T, P), jnp.float32)),
        grid_spec=pltpu.PrefetchScalarGridSpec(
            num_scalar_prefetch=1,
            grid=(B,),
            in_specs=[act_spec, _const_spec((C, P)), _const_spec((1, P))],
            out_specs=(act_spec, out_spec),
        ),
        compiler_params=pltpu.CompilerParams(dimension_semantics=("parallel",)),
    )(x_lengths, x, w, b)


# ----------------------------------------------------------------------------
# Full forward pass
# ----------------------------------------------------------------------------

def text_encoder_forward(params, x, x_lengths):
    """x: [B, T, C] float32, x_lengths: [B] int32.
    Returns (x_enc [B,T,C], m [B,T,out], logs [B,T,out], x_mask [B,1,T])."""
    B, T, C = x.shape
    heads = params["num_heads"]
    window = params["rel_window"]
    K = params["kernel_size"]
    x_lengths = x_lengths.astype(jnp.int32)

    h = x
    for layer in params["layers"]:
        h = attn_block(h, x_lengths, layer, heads=heads, window=window)
        h = ffn_block(h, x_lengths, layer, kernel_size=K)

    x_enc, stats = final_proj(h, x_lengths, params["w_proj"], params["b_proj"])
    m_out, logs = jnp.split(stats, 2, axis=-1)
    x_mask = (jnp.arange(T)[None, :] < x_lengths[:, None]).astype(jnp.float32)[:, None, :]
    return x_enc, m_out, logs, x_mask


# ----------------------------------------------------------------------------
# Deterministic parameter init (synthetic — kernel-ready layout of the module's
# parameters; MXU weights stored in bf16, biases / LN / rel-emb in f32)
# ----------------------------------------------------------------------------

def init_params(key, hidden, hidden_ffn, heads, num_layers, kernel_size,
                out_channels, window=4):
    dk = hidden // heads
    params = {"num_heads": heads, "rel_window": window,
              "kernel_size": kernel_size, "layers": []}
    bf = jnp.bfloat16

    def nrm(k, shape, scale, dtype=jnp.float32):
        return (scale * jax.random.normal(k, shape, jnp.float32)).astype(dtype)

    keys = jax.random.split(key, num_layers + 1)
    for i in range(num_layers):
        ks = jax.random.split(keys[i], 14)
        layer = dict(
            # torch conv1d(1x1) weights [Cout, Cin, 1] re-laid out per head:
            #   wq/wk/wv: [H, Cin, dk],  wo: [H, dk, Cout]
            wq=nrm(ks[0], (heads, hidden, dk), 0.05, bf),
            bq=nrm(ks[1], (heads, 1, dk), 0.01),
            wk=nrm(ks[2], (heads, hidden, dk), 0.05, bf),
            bk=nrm(ks[3], (heads, 1, dk), 0.01),
            wv=nrm(ks[4], (heads, hidden, dk), 0.05, bf),
            bv=nrm(ks[5], (heads, 1, dk), 0.01),
            wo=nrm(ks[6], (heads, dk, hidden), 0.05, bf),
            bo=nrm(ks[7], (1, hidden), 0.01),
            # heads_share=True -> one shared relative-embedding table per layer
            emb_rel_k=nrm(ks[8], (2 * window + 1, dk), dk ** -0.5),
            emb_rel_v=nrm(ks[9], (2 * window + 1, dk), dk ** -0.5),
            g1=jnp.ones((1, hidden), jnp.float32),
            b1=jnp.zeros((1, hidden), jnp.float32),
            # FFN conv weights: torch [Cout, Cin, K] -> [K, Cin, Cout]
            w_ffn1=nrm(ks[10], (kernel_size, hidden, hidden_ffn), 0.05, bf),
            b_ffn1=nrm(ks[11], (1, hidden_ffn), 0.01),
            w_ffn2=nrm(ks[12], (kernel_size, hidden_ffn, hidden), 0.05, bf),
            b_ffn2=nrm(ks[13], (1, hidden), 0.01),
            g2=jnp.ones((1, hidden), jnp.float32),
            b2=jnp.zeros((1, hidden), jnp.float32),
        )
        params["layers"].append(layer)

    kp = jax.random.split(keys[-1], 2)
    params["w_proj"] = nrm(kp[0], (hidden, 2 * out_channels), 0.05, bf)
    params["b_proj"] = nrm(kp[1], (1, 2 * out_channels), 0.01)
    return params


# ----------------------------------------------------------------------------

if __name__ == "__main__":
    B, T = 2, 16
    hidden_channels = 32          # no language_emb_dim -> encoder width = hidden
    out_channels = 16
    hidden_channels_ffn = 64
    num_heads = 2
    num_layers = 2
    kernel_size = 3

    key = jax.random.PRNGKey(0)
    kx, kp = jax.random.split(key)
    x = jax.random.normal(kx, (B, T, hidden_channels), jnp.float32)   # [B, T, C]
    x_lengths = jnp.array([16, 11], jnp.int32)

    params = init_params(kp, hidden_channels, hidden_channels_ffn, num_heads,
                         num_layers, kernel_size, out_channels, window=4)

    fwd = jax.jit(lambda xx, ll: text_encoder_forward(params, xx, ll))
    x_enc, m, logs, x_mask = jax.block_until_ready(fwd(x, x_lengths))

    assert x_enc.shape == (B, T, hidden_channels)
    assert m.shape == (B, T, out_channels)
    assert logs.shape == (B, T, out_channels)
    assert x_mask.shape == (B, 1, T)
    for t in (x_enc, m, logs):
        assert bool(jnp.all(jnp.isfinite(t)))
    print("KERNEL_OK")
</pallas_src>

<mosaic_0001>
module attributes {stable_mosaic.version = 11 : i64} {
  func.func @_ffn_block_kernel(%arg0: i32, %arg1: memref<2xi32, #tpu.memory_space<smem>>, %arg2: memref<1x16x32xf32, #tpu.memory_space<vmem>>, %arg3: memref<3x32x64xbf16, #tpu.memory_space<vmem>>, %arg4: memref<1x64xf32, #tpu.memory_space<vmem>>, %arg5: memref<3x64x32xbf16, #tpu.memory_space<vmem>>, %arg6: memref<1x32xf32, #tpu.memory_space<vmem>>, %arg7: memref<1x32xf32, #tpu.memory_space<vmem>>, %arg8: memref<1x32xf32, #tpu.memory_space<vmem>>, %arg9: memref<1x16x32xf32, #tpu.memory_space<vmem>>, %arg10: memref<18x32xf32, #tpu.memory_space<vmem>>, %arg11: memref<18x64xf32, #tpu.memory_space<vmem>>) attributes {dimension_semantics = [#tpu.dimension_semantics<parallel>], iteration_bounds = array<i64: 2>, scalar_prefetch = 1 : i64, scratch_operands = 2 : i64, tpu.core_type = #tpu.core_type<tc>, window_params = [{transform_indices = @transform_0, window_bounds = array<i64: 1, 16, 32>}, {pipeline_mode = #tpu.pipeline_mode<synchronous>, transform_indices = @transform_1, window_bounds = array<i64: 3, 32, 64>}, {pipeline_mode = #tpu.pipeline_mode<synchronous>, transform_indices = @transform_2, window_bounds = array<i64: 1, 64>}, {pipeline_mode = #tpu.pipeline_mode<synchronous>, transform_indices = @transform_3, window_bounds = array<i64: 3, 64, 32>}, {pipeline_mode = #tpu.pipeline_mode<synchronous>, transform_indices = @transform_4, window_bounds = array<i64: 1, 32>}, {pipeline_mode = #tpu.pipeline_mode<synchronous>, transform_indices = @transform_5, window_bounds = array<i64: 1, 32>}, {pipeline_mode = #tpu.pipeline_mode<synchronous>, transform_indices = @transform_6, window_bounds = array<i64: 1, 32>}, {transform_indices = @transform_7, window_bounds = array<i64: 1, 16, 32>}]} {
    %0 = arith.index_cast %arg0 : i32 to index
    %1 = memref.load %arg1[%0] : memref<2xi32, #tpu.memory_space<smem>>
    %c0 = arith.constant 0 : index
    %c0_0 = arith.constant 0 : index
    %c0_1 = arith.constant 0 : index
    %2 = vector.load %arg2[%c0, %c0_0, %c0_1] : memref<1x16x32xf32, #tpu.memory_space<vmem>>, vector<1x16x32xf32>
    %3 = vector.shape_cast %2 : vector<1x16x32xf32> to vector<16x32xf32>
    %4 = tpu.iota {dimensions = array<i32: 0>} : vector<16x1xi32>
    %5 = vector.broadcast %1 : i32 to vector<16x1xi32>
    %6 = arith.cmpi slt, %4, %5 : vector<16x1xi32>
    %7 = arith.extui %6 : vector<16x1xi1> to vector<16x1xi32>
    %8 = arith.sitofp %7 : vector<16x1xi32> to vector<16x1xf32>
    %9 = vector.broadcast %8 : vector<16x1xf32> to vector<16x32xf32>
    %10 = arith.mulf %3, %9 : vector<16x32xf32>
    %cst = arith.constant 0.000000e+00 : f32
    %11 = vector.broadcast %cst : f32 to vector<1x32xf32>
    %c0_2 = arith.constant 0 : index
    %c0_3 = arith.constant 0 : index
    %12 = vector.load %arg10[%c0_2, %c0_3] : memref<18x32xf32, #tpu.memory_space<vmem>>, vector<1x32xf32>
    tpu.vector_store %arg10[%c0_2, %c0_3], %11 {strides = array<i32>} : memref<18x32xf32, #tpu.memory_space<vmem>>, vector<1x32xf32>,
    %cst_4 = arith.constant 0.000000e+00 : f32
    %13 = vector.broadcast %cst_4 : f32 to vector<1x32xf32>
    %c17 = arith.constant 17 : index
    %c0_5 = arith.constant 0 : index
    %14 = vector.load %arg10[%c17, %c0_5] : memref<18x32xf32, #tpu.memory_space<vmem>>, vector<1x32xf32>
    tpu.vector_store %arg10[%c17, %c0_5], %13 {strides = array<i32>} : memref<18x32xf32, #tpu.memory_space<vmem>>, vector<1x32xf32>,
    %c1 = arith.constant 1 : index
    %c0_6 = arith.constant 0 : index
    %15 = vector.load %arg10[%c1, %c0_6] : memref<18x32xf32, #tpu.memory_space<vmem>>, vector<16x32xf32>
    tpu.vector_store %arg10[%c1, %c0_6], %10 {strides = array<i32>} : memref<18x32xf32, #tpu.memory_space<vmem>>, vector<16x32xf32>,
    %cst_7 = arith.constant 0.000000e+00 : f32
    %16 = vector.broadcast %cst_7 : f32 to vector<16x64xf32>
    %c0_8 = arith.constant 0 : index
    %c0_9 = arith.constant 0 : index
    %17 = vector.load %arg10[%c0_8, %c0_9] : memref<18x32xf32, #tpu.memory_space<vmem>>, vector<16x32xf32>
    %18 = arith.truncf %17 : vector<16x32xf32> to vector<16x32xbf16>
    %c0_10 = arith.constant 0 : index
    %c0_11 = arith.constant 0 : index
    %c0_12 = arith.constant 0 : index
    %19 = vector.load %arg3[%c0_10, %c0_11, %c0_12] : memref<3x32x64xbf16, #tpu.memory_space<vmem>>, vector<1x32x64xbf16>
    %20 = vector.shape_cast %19 : vector<1x32x64xbf16> to vector<32x64xbf16>
    %cst_13 = arith.constant dense<0.000000e+00> : vector<16x64xf32>
    %21 = tpu.matmul %18, %20, %cst_13 {dimension_numbers = #tpu.dot_dimension_numbers<[1], [0], [0], [1], [0, 0, 1, 1], [], []>} : vector<16x32xbf16>, vector<32x64xbf16>, vector<16x64xf32> -> vector<16x64xf32>
    %22 = arith.addf %16, %21 : vector<16x64xf32>
    %c1_14 = arith.constant 1 : index
    %c0_15 = arith.constant 0 : index
    %23 = vector.load %arg10[%c1_14, %c0_15] : memref<18x32xf32, #tpu.memory_space<vmem>>, vector<16x32xf32>
    %24 = arith.truncf %23 : vector<16x32xf32> to vector<16x32xbf16>
    %c1_16 = arith.constant 1 : index
    %c0_17 = arith.constant 0 : index
    %c0_18 = arith.constant 0 : index
    %25 = vector.load %arg3[%c1_16, %c0_17, %c0_18] : memref<3x32x64xbf16, #tpu.memory_space<vmem>>, vector<1x32x64xbf16>
    %26 = vector.shape_cast %25 : vector<1x32x64xbf16> to vector<32x64xbf16>
    %cst_19 = arith.constant dense<0.000000e+00> : vector<16x64xf32>
    %27 = tpu.matmul %24, %26, %cst_19 {dimension_numbers = #tpu.dot_dimension_numbers<[1], [0], [0], [1], [0, 0, 1, 1], [], []>} : vector<16x32xbf16>, vector<32x64xbf16>, vector<16x64xf32> -> vector<16x64xf32>
    %28 = arith.addf %22, %27 : vector<16x64xf32>
    %c2 = arith.constant 2 : index
    %c0_20 = arith.constant 0 : index
    %29 = vector.load %arg10[%c2, %c0_20] : memref<18x32xf32, #tpu.memory_space<vmem>>, vector<16x32xf32>
    %30 = arith.truncf %29 : vector<16x32xf32> to vector<16x32xbf16>
    %c2_21 = arith.constant 2 : index
    %c0_22 = arith.constant 0 : index
    %c0_23 = arith.constant 0 : index
    %31 = vector.load %arg3[%c2_21, %c0_22, %c0_23] : memref<3x32x64xbf16, #tpu.memory_space<vmem>>, vector<1x32x64xbf16>
    %32 = vector.shape_cast %31 : vector<1x32x64xbf16> to vector<32x64xbf16>
    %cst_24 = arith.constant dense<0.000000e+00> : vector<16x64xf32>
    %33 = tpu.matmul %30, %32, %cst_24 {dimension_numbers = #tpu.dot_dimension_numbers<[1], [0], [0], [1], [0, 0, 1, 1], [], []>} : vector<16x32xbf16>, vector<32x64xbf16>, vector<16x64xf32> -> vector<16x64xf32>
    %34 = arith.addf %28, %33 : vector<16x64xf32>
    %c0_25 = arith.constant 0 : index
    %c0_26 = arith.constant 0 : index
    %35 = vector.load %arg4[%c0_25, %c0_26] : memref<1x64xf32, #tpu.memory_space<vmem>>, vector<1x64xf32>
    %36 = vector.broadcast %35 : vector<1x64xf32> to vector<16x64xf32>
    %37 = arith.addf %34, %36 : vector<16x64xf32>
    %cst_27 = arith.constant 0.000000e+00 : f32
    %38 = vector.broadcast %cst_27 : f32 to vector<16x64xf32>
    %39 = arith.maximumf %37, %38 : vector<16x64xf32>
    %40 = vector.broadcast %8 : vector<16x1xf32> to vector<16x64xf32>
    %41 = arith.mulf %39, %40 : vector<16x64xf32>
    %cst_28 = arith.constant 0.000000e+00 : f32
    %42 = vector.broadcast %cst_28 : f32 to vector<1x64xf32>
    %c0_29 = arith.constant 0 : index
    %c0_30 = arith.constant 0 : index
    %43 = vector.load %arg11[%c0_29, %c0_30] : memref<18x64xf32, #tpu.memory_space<vmem>>, vector<1x64xf32>
    tpu.vector_store %arg11[%c0_29, %c0_30], %42 {strides = array<i32>} : memref<18x64xf32, #tpu.memory_space<vmem>>, vector<1x64xf32>,
    %cst_31 = arith.constant 0.000000e+00 : f32
    %44 = vector.broadcast %cst_31 : f32 to vector<1x64xf32>
    %c17_32 = arith.constant 17 : index
    %c0_33 = arith.constant 0 : index
    %45 = vector.load %arg11[%c17_32, %c0_33] : memref<18x64xf32, #tpu.memory_space<vmem>>, vector<1x64xf32>
    tpu.vector_store %arg11[%c17_32, %c0_33], %44 {strides = array<i32>} : memref<18x64xf32, #tpu.memory_space<vmem>>, vector<1x64xf32>,
    %c1_34 = arith.constant 1 : index
    %c0_35 = arith.constant 0 : index
    %46 = vector.load %arg11[%c1_34, %c0_35] : memref<18x64xf32, #tpu.memory_space<vmem>>, vector<16x64xf32>
    tpu.vector_store %arg11[%c1_34, %c0_35], %41 {strides = array<i32>} : memref<18x64xf32, #tpu.memory_space<vmem>>, vector<16x64xf32>,
    %cst_36 = arith.constant 0.000000e+00 : f32
    %47 = vector.broadcast %cst_36 : f32 to vector<16x32xf32>
    %c0_37 = arith.constant 0 : index
    %c0_38 = arith.constant 0 : index
    %48 = vector.load %arg11[%c0_37, %c0_38] : memref<18x64xf32, #tpu.memory_space<vmem>>, vector<16x64xf32>
    %49 = arith.truncf %48 : vector<16x64xf32> to vector<16x64xbf16>
    %c0_39 = arith.constant 0 : index
    %c0_40 = arith.constant 0 : index
    %c0_41 = arith.constant 0 : index
    %50 = vector.load %arg5[%c0_39, %c0_40, %c0_41] : memref<3x64x32xbf16, #tpu.memory_space<vmem>>, vector<1x64x32xbf16>
    %51 = vector.shape_cast %50 : vector<1x64x32xbf16> to vector<64x32xbf16>
    %cst_42 = arith.constant dense<0.000000e+00> : vector<16x32xf32>
    %52 = tpu.matmul %49, %51, %cst_42 {dimension_numbers = #tpu.dot_dimension_numbers<[1], [0], [0], [1], [0, 0, 1, 1], [], []>} : vector<16x64xbf16>, vector<64x32xbf16>, vector<16x32xf32> -> vector<16x32xf32>
    %53 = arith.addf %47, %52 : vector<16x32xf32>
    %c1_43 = arith.constant 1 : index
    %c0_44 = arith.constant 0 : index
    %54 = vector.load %arg11[%c1_43, %c0_44] : memref<18x64xf32, #tpu.memory_space<vmem>>, vector<16x64xf32>
    %55 = arith.truncf %54 : vector<16x64xf32> to vector<16x64xbf16>
    %c1_45 = arith.constant 1 : index
    %c0_46 = arith.constant 0 : index
    %c0_47 = arith.constant 0 : index
    %56 = vector.load %arg5[%c1_45, %c0_46, %c0_47] : memref<3x64x32xbf16, #tpu.memory_space<vmem>>, vector<1x64x32xbf16>
    %57 = vector.shape_cast %56 : vector<1x64x32xbf16> to vector<64x32xbf16>
    %cst_48 = arith.constant dense<0.000000e+00> : vector<16x32xf32>
    %58 = tpu.matmul %55, %57, %cst_48 {dimension_numbers = #tpu.dot_dimension_numbers<[1], [0], [0], [1], [0, 0, 1, 1], [], []>} : vector<16x64xbf16>, vector<64x32xbf16>, vector<16x32xf32> -> vector<16x32xf32>
    %59 = arith.addf %53, %58 : vector<16x32xf32>
    %c2_49 = arith.constant 2 : index
    %c0_50 = arith.constant 0 : index
    %60 = vector.load %arg11[%c2_49, %c0_50] : memref<18x64xf32, #tpu.memory_space<vmem>>, vector<16x64xf32>
    %61 = arith.truncf %60 : vector<16x64xf32> to vector<16x64xbf16>
    %c2_51 = arith.constant 2 : index
    %c0_52 = arith.constant 0 : index
    %c0_53 = arith.constant 0 : index
    %62 = vector.load %arg5[%c2_51, %c0_52, %c0_53] : memref<3x64x32xbf16, #tpu.memory_space<vmem>>, vector<1x64x32xbf16>
    %63 = vector.shape_cast %62 : vector<1x64x32xbf16> to vector<64x32xbf16>
    %cst_54 = arith.constant dense<0.000000e+00> : vector<16x32xf32>
    %64 = tpu.matmul %61, %63, %cst_54 {dimension_numbers = #tpu.dot_dimension_numbers<[1], [0], [0], [1], [0, 0, 1, 1], [], []>} : vector<16x64xbf16>, vector<64x32xbf16>, vector<16x32xf32> -> vector<16x32xf32>
    %65 = arith.addf %59, %64 : vector<16x32xf32>
    %c0_55 = arith.constant 0 : index
    %c0_56 = arith.constant 0 : index
    %66 = vector.load %arg6[%c0_55, %c0_56] : memref<1x32xf32, #tpu.memory_space<vmem>>, vector<1x32xf32>
    %67 = vector.broadcast %66 : vector<1x32xf32> to vector<16x32xf32>
    %68 = arith.addf %65, %67 : vector<16x32xf32>
    %69 = vector.broadcast %8 : vector<16x1xf32> to vector<16x32xf32>
    %70 = arith.mulf %68, %69 : vector<16x32xf32>
    %71 = arith.addf %3, %70 : vector<16x32xf32>
    %cst_57 = arith.constant dense<0.000000e+00> : vector<16xf32>
    %72 = vector.multi_reduction <add>, %71, %cst_57 [1] : vector<16x32xf32> to vector<16xf32>
    %73 = vector.shape_cast %72 : vector<16xf32> to vector<16x1xf32>
    %cst_58 = arith.constant 3.200000e+01 : f32
    %74 = vector.broadcast %cst_58 : f32 to vector<16x1xf32>
    %75 = arith.divf %73, %74 : vector<16x1xf32>
    %76 = vector.broadcast %75 : vector<16x1xf32> to vector<16x32xf32>
    %77 = arith.subf %71, %76 : vector<16x32xf32>
    %78 = arith.mulf %77, %77 : vector<16x32xf32>
    %cst_59 = arith.constant dense<0.000000e+00> : vector<16xf32>
    %79 = vector.multi_reduction <add>, %78, %cst_59 [1] : vector<16x32xf32> to vector<16xf32>
    %80 = vector.shape_cast %79 : vector<16xf32> to vector<16x1xf32>
    %cst_60 = arith.constant 3.200000e+01 : f32
    %81 = vector.broadcast %cst_60 : f32 to vector<16x1xf32>
    %82 = arith.divf %80, %81 : vector<16x1xf32>
    %83 = vector.broadcast %75 : vector<16x1xf32> to vector<16x32xf32>
    %84 = arith.subf %71, %83 : vector<16x32xf32>
    %cst_61 = arith.constant 9.99999974E-6 : f32
    %85 = vector.broadcast %cst_61 : f32 to vector<16x1xf32>
    %86 = arith.addf %82, %85 : vector<16x1xf32>
    %87 = math.rsqrt %86 : vector<16x1xf32>
    %88 = vector.broadcast %87 : vector<16x1xf32> to vector<16x32xf32>
    %89 = arith.mulf %84, %88 : vector<16x32xf32>
    %c0_62 = arith.constant 0 : index
    %c0_63 = arith.constant 0 : index
    %90 = vector.load %arg7[%c0_62, %c0_63] : memref<1x32xf32, #tpu.memory_space<vmem>>, vector<1x32xf32>
    %91 = vector.broadcast %90 : vector<1x32xf32> to vector<16x32xf32>
    %92 = arith.mulf %89, %91 : vector<16x32xf32>
    %c0_64 = arith.constant 0 : index
    %c0_65 = arith.constant 0 : index
    %93 = vector.load %arg8[%c0_64, %c0_65] : memref<1x32xf32, #tpu.memory_space<vmem>>, vector<1x32xf32>
    %94 = vector.broadcast %93 : vector<1x32xf32> to vector<16x32xf32>
    %95 = arith.addf %92, %94 : vector<16x32xf32>
    %c0_66 = arith.constant 0 : index
    %c0_67 = arith.constant 0 : index
    %c0_68 = arith.constant 0 : index
    %96 = vector.load %arg9[%c0_66, %c0_67, %c0_68] : memref<1x16x32xf32, #tpu.memory_space<vmem>>, vector<1x16x32xf32>
    %97 = vector.shape_cast %96 : vector<1x16x32xf32> to vector<16x32xf32>
    %98 = vector.shape_cast %95 : vector<16x32xf32> to vector<1x16x32xf32>
    tpu.vector_store %arg9[%c0_66, %c0_67, %c0_68], %98 {strides = array<i32>} : memref<1x16x32xf32, #tpu.memory_space<vmem>>, vector<1x16x32xf32>,
    return
  }
  func.func @transform_0(%arg0: i32, %arg1: memref<2xi32, #tpu.memory_space<smem>>) -> (i32, i32, i32) {
    %c0_i32 = arith.constant 0 : i32
    %c0_i32_0 = arith.constant 0 : i32
    %c0_i32_1 = arith.constant 0 : i32
    return %arg0, %c0_i32, %c0_i32_0 : i32, i32, i32
  }
  func.func @transform_1(%arg0: i32, %arg1: memref<2xi32, #tpu.memory_space<smem>>) -> (i32, i32, i32) {
    %c0_i32 = arith.constant 0 : i32
    %c0_i32_0 = arith.constant 0 : i32
    %c0_i32_1 = arith.constant 0 : i32
    %c0_i32_2 = arith.constant 0 : i32
    return %c0_i32, %c0_i32_0, %c0_i32_1 : i32, i32, i32
  }
  func.func @transform_2(%arg0: i32, %arg1: memref<2xi32, #tpu.memory_space<smem>>) -> (i32, i32) {
    %c0_i32 = arith.constant 0 : i32
    %c0_i32_0 = arith.constant 0 : i32
    %c0_i32_1 = arith.constant 0 : i32
    return %c0_i32, %c0_i32_0 : i32, i32
  }
  func.func @transform_3(%arg0: i32, %arg1: memref<2xi32, #tpu.memory_space<smem>>) -> (i32, i32, i32) {
    %c0_i32 = arith.constant 0 : i32
    %c0_i32_0 = arith.constant 0 : i32
    %c0_i32_1 = arith.constant 0 : i32
    %c0_i32_2 = arith.constant 0 : i32
    return %c0_i32, %c0_i32_0, %c0_i32_1 : i32, i32, i32
  }
  func.func @transform_4(%arg0: i32, %arg1: memref<2xi32, #tpu.memory_space<smem>>) -> (i32, i32) {
    %c0_i32 = arith.constant 0 : i32
    %c0_i32_0 = arith.constant 0 : i32
    %c0_i32_1 = arith.constant 0 : i32
    return %c0_i32, %c0_i32_0 : i32, i32
  }
  func.func @transform_5(%arg0: i32, %arg1: memref<2xi32, #tpu.memory_space<smem>>) -> (i32, i32) {
    %c0_i32 = arith.constant 0 : i32
    %c0_i32_0 = arith.constant 0 : i32
    %c0_i32_1 = arith.constant 0 : i32
    return %c0_i32, %c0_i32_0 : i32, i32
  }
  func.func @transform_6(%arg0: i32, %arg1: memref<2xi32, #tpu.memory_space<smem>>) -> (i32, i32) {
    %c0_i32 = arith.constant 0 : i32
    %c0_i32_0 = arith.constant 0 : i32
    %c0_i32_1 = arith.constant 0 : i32
    return %c0_i32, %c0_i32_0 : i32, i32
  }
  func.func @transform_7(%arg0: i32, %arg1: memref<2xi32, #tpu.memory_space<smem>>) -> (i32, i32, i32) {
    %c0_i32 = arith.constant 0 : i32
    %c0_i32_0 = arith.constant 0 : i32
    %c0_i32_1 = arith.constant 0 : i32
    return %arg0, %c0_i32, %c0_i32_0 : i32, i32, i32
  }
}

module attributes {stable_mosaic.version = 11 : i64} {
  func.func @_attn_block_kernel(%arg0: i32, %arg1: memref<2xi32, #tpu.memory_space<smem>>, %arg2: memref<1x16x32xf32, #tpu.memory_space<vmem>>, %arg3: memref<2x32x16xbf16, #tpu.memory_space<vmem>>, %arg4: memref<2x32x16xbf16, #tpu.memory_space<vmem>>, %arg5: memref<2x32x16xbf16, #tpu.memory_space<vmem>>, %arg6: memref<2x16x32xbf16, #tpu.memory_space<vmem>>, %arg7: memref<2x1x16xf32, #tpu.memory_space<vmem>>, %arg8: memref<2x1x16xf32, #tpu.memory_space<vmem>>, %arg9: memref<2x1x16xf32, #tpu.memory_space<vmem>>, %arg10: memref<1x32xf32, #tpu.memory_space<vmem>>, %arg11: memref<9x16xf32, #tpu.memory_space<vmem>>, %arg12: memref<9x16xf32, #tpu.memory_space<vmem>>, %arg13: memref<1x32xf32, #tpu.memory_space<vmem>>, %arg14: memref<1x32xf32, #tpu.memory_space<vmem>>, %arg15: memref<1x16x32xf32, #tpu.memory_space<vmem>>) attributes {dimension_semantics = [#tpu.dimension_semantics<parallel>], iteration_bounds = array<i64: 2>, scalar_prefetch = 1 : i64, scratch_operands = 0 : i64, tpu.core_type = #tpu.core_type<tc>, window_params = [{transform_indices = @transform_0, window_bounds = array<i64: 1, 16, 32>}, {pipeline_mode = #tpu.pipeline_mode<synchronous>, transform_indices = @transform_1, window_bounds = array<i64: 2, 32, 16>}, {pipeline_mode = #tpu.pipeline_mode<synchronous>, transform_indices = @transform_2, window_bounds = array<i64: 2, 32, 16>}, {pipeline_mode = #tpu.pipeline_mode<synchronous>, transform_indices = @transform_3, window_bounds = array<i64: 2, 32, 16>}, {pipeline_mode = #tpu.pipeline_mode<synchronous>, transform_indices = @transform_4, window_bounds = array<i64: 2, 16, 32>}, {pipeline_mode = #tpu.pipeline_mode<synchronous>, transform_indices = @transform_5, window_bounds = array<i64: 2, 1, 16>}, {pipeline_mode = #tpu.pipeline_mode<synchronous>, transform_indices = @transform_6, window_bounds = array<i64: 2, 1, 16>}, {pipeline_mode = #tpu.pipeline_mode<synchronous>, transform_indices = @transform_7, window_bounds = array<i64: 2, 1, 16>}, {pipeline_mode = #tpu.pipeline_mode<synchronous>, transform_indices = @transform_8, window_bounds = array<i64: 1, 32>}, {pipeline_mode = #tpu.pipeline_mode<synchronous>, transform_indices = @transform_9, window_bounds = array<i64: 9, 16>}, {pipeline_mode = #tpu.pipeline_mode<synchronous>, transform_indices = @transform_10, window_bounds = array<i64: 9, 16>}, {pipeline_mode = #tpu.pipeline_mode<synchronous>, transform_indices = @transform_11, window_bounds = array<i64: 1, 32>}, {pipeline_mode = #tpu.pipeline_mode<synchronous>, transform_indices = @transform_12, window_bounds = array<i64: 1, 32>}, {transform_indices = @transform_13, window_bounds = array<i64: 1, 16, 32>}]} {
    %0 = arith.index_cast %arg0 : i32 to index
    %1 = memref.load %arg1[%0] : memref<2xi32, #tpu.memory_space<smem>>
    %c0 = arith.constant 0 : index
    %c0_0 = arith.constant 0 : index
    %c0_1 = arith.constant 0 : index
    %2 = vector.load %arg2[%c0, %c0_0, %c0_1] : memref<1x16x32xf32, #tpu.memory_space<vmem>>, vector<1x16x32xf32>
    %3 = vector.shape_cast %2 : vector<1x16x32xf32> to vector<16x32xf32>
    %4 = tpu.iota {dimensions = array<i32: 0>} : vector<16x1xi32>
    %5 = vector.broadcast %1 : i32 to vector<16x1xi32>
    %6 = arith.cmpi slt, %4, %5 : vector<16x1xi32>
    %7 = arith.extui %6 : vector<16x1xi1> to vector<16x1xi32>
    %8 = arith.sitofp %7 : vector<16x1xi32> to vector<16x1xf32>
    %9 = vector.broadcast %8 : vector<16x1xf32> to vector<16x32xf32>
    %10 = arith.mulf %3, %9 : vector<16x32xf32>
    %11 = arith.truncf %10 : vector<16x32xf32> to vector<16x32xbf16>
    %12 = tpu.iota {dimensions = array<i32: 0>} : vector<16x16xi32>
    %13 = tpu.iota {dimensions = array<i32: 1>} : vector<16x16xi32>
    %14 = vector.broadcast %1 : i32 to vector<16x16xi32>
    %15 = arith.cmpi slt, %12, %14 : vector<16x16xi32>
    %16 = vector.broadcast %1 : i32 to vector<16x16xi32>
    %17 = arith.cmpi slt, %13, %16 : vector<16x16xi32>
    %18 = arith.andi %15, %17 : vector<16x16xi1>
    %19 = arith.subi %13, %12 : vector<16x16xi32>
    %c-4_i32 = arith.constant -4 : i32
    %20 = vector.broadcast %c-4_i32 : i32 to vector<16x16xi32>
    %21 = arith.cmpi eq, %19, %20 : vector<16x16xi32>
    %22 = arith.extui %21 : vector<16x16xi1> to vector<16x16xi32>
    %23 = arith.sitofp %22 : vector<16x16xi32> to vector<16x16xf32>
    %c-3_i32 = arith.constant -3 : i32
    %24 = vector.broadcast %c-3_i32 : i32 to vector<16x16xi32>
    %25 = arith.cmpi eq, %19, %24 : vector<16x16xi32>
    %26 = arith.extui %25 : vector<16x16xi1> to vector<16x16xi32>
    %27 = arith.sitofp %26 : vector<16x16xi32> to vector<16x16xf32>
    %c-2_i32 = arith.constant -2 : i32
    %28 = vector.broadcast %c-2_i32 : i32 to vector<16x16xi32>
    %29 = arith.cmpi eq, %19, %28 : vector<16x16xi32>
    %30 = arith.extui %29 : vector<16x16xi1> to vector<16x16xi32>
    %31 = arith.sitofp %30 : vector<16x16xi32> to vector<16x16xf32>
    %c-1_i32 = arith.constant -1 : i32
    %32 = vector.broadcast %c-1_i32 : i32 to vector<16x16xi32>
    %33 = arith.cmpi eq, %19, %32 : vector<16x16xi32>
    %34 = arith.extui %33 : vector<16x16xi1> to vector<16x16xi32>
    %35 = arith.sitofp %34 : vector<16x16xi32> to vector<16x16xf32>
    %c0_i32 = arith.constant 0 : i32
    %36 = vector.broadcast %c0_i32 : i32 to vector<16x16xi32>
    %37 = arith.cmpi eq, %19, %36 : vector<16x16xi32>
    %38 = arith.extui %37 : vector<16x16xi1> to vector<16x16xi32>
    %39 = arith.sitofp %38 : vector<16x16xi32> to vector<16x16xf32>
    %c1_i32 = arith.constant 1 : i32
    %40 = vector.broadcast %c1_i32 : i32 to vector<16x16xi32>
    %41 = arith.cmpi eq, %19, %40 : vector<16x16xi32>
    %42 = arith.extui %41 : vector<16x16xi1> to vector<16x16xi32>
    %43 = arith.sitofp %42 : vector<16x16xi32> to vector<16x16xf32>
    %c2_i32 = arith.constant 2 : i32
    %44 = vector.broadcast %c2_i32 : i32 to vector<16x16xi32>
    %45 = arith.cmpi eq, %19, %44 : vector<16x16xi32>
    %46 = arith.extui %45 : vector<16x16xi1> to vector<16x16xi32>
    %47 = arith.sitofp %46 : vector<16x16xi32> to vector<16x16xf32>
    %c3_i32 = arith.constant 3 : i32
    %48 = vector.broadcast %c3_i32 : i32 to vector<16x16xi32>
    %49 = arith.cmpi eq, %19, %48 : vector<16x16xi32>
    %50 = arith.extui %49 : vector<16x16xi1> to vector<16x16xi32>
    %51 = arith.sitofp %50 : vector<16x16xi32> to vector<16x16xf32>
    %c4_i32 = arith.constant 4 : i32
    %52 = vector.broadcast %c4_i32 : i32 to vector<16x16xi32>
    %53 = arith.cmpi eq, %19, %52 : vector<16x16xi32>
    %54 = arith.extui %53 : vector<16x16xi1> to vector<16x16xi32>
    %55 = arith.sitofp %54 : vector<16x16xi32> to vector<16x16xf32>
    %c0_2 = arith.constant 0 : index
    %c0_3 = arith.constant 0 : index
    %56 = vector.load %arg11[%c0_2, %c0_3] : memref<9x16xf32, #tpu.memory_space<vmem>>, vector<9x16xf32>
    %57 = arith.truncf %56 : vector<9x16xf32> to vector<9x16xbf16>
    %c0_4 = arith.constant 0 : index
    %c0_5 = arith.constant 0 : index
    %58 = vector.load %arg12[%c0_4, %c0_5] : memref<9x16xf32, #tpu.memory_space<vmem>>, vector<9x16xf32>
    %cst = arith.constant 0.000000e+00 : f32
    %59 = vector.broadcast %cst : f32 to vector<16x32xf32>
    %c0_6 = arith.constant 0 : index
    %c0_7 = arith.constant 0 : index
    %c0_8 = arith.constant 0 : index
    %60 = vector.load %arg3[%c0_6, %c0_7, %c0_8] : memref<2x32x16xbf16, #tpu.memory_space<vmem>>, vector<1x32x16xbf16>
    %61 = vector.shape_cast %60 : vector<1x32x16xbf16> to vector<32x16xbf16>
    %cst_9 = arith.constant dense<0.000000e+00> : vector<16x16xf32>
    %62 = tpu.matmul %11, %61, %cst_9 {dimension_numbers = #tpu.dot_dimension_numbers<[1], [0], [0], [1], [0, 0, 1, 1], [], []>} : vector<16x32xbf16>, vector<32x16xbf16>, vector<16x16xf32> -> vector<16x16xf32>
    %c0_10 = arith.constant 0 : index
    %c0_11 = arith.constant 0 : index
    %c0_12 = arith.constant 0 : index
    %63 = vector.load %arg7[%c0_10, %c0_11, %c0_12] : memref<2x1x16xf32, #tpu.memory_space<vmem>>, vector<1x1x16xf32>
    %64 = vector.shape_cast %63 : vector<1x1x16xf32> to vector<1x16xf32>
    %65 = vector.broadcast %64 : vector<1x16xf32> to vector<16x16xf32>
    %66 = arith.addf %62, %65 : vector<16x16xf32>
    %c0_13 = arith.constant 0 : index
    %c0_14 = arith.constant 0 : index
    %c0_15 = arith.constant 0 : index
    %67 = vector.load %arg4[%c0_13, %c0_14, %c0_15] : memref<2x32x16xbf16, #tpu.memory_space<vmem>>, vector<1x32x16xbf16>
    %68 = vector.shape_cast %67 : vector<1x32x16xbf16> to vector<32x16xbf16>
    %cst_16 = arith.constant dense<0.000000e+00> : vector<16x16xf32>
    %69 = tpu.matmul %11, %68, %cst_16 {dimension_numbers = #tpu.dot_dimension_numbers<[1], [0], [0], [1], [0, 0, 1, 1], [], []>} : vector<16x32xbf16>, vector<32x16xbf16>, vector<16x16xf32> -> vector<16x16xf32>
    %c0_17 = arith.constant 0 : index
    %c0_18 = arith.constant 0 : index
    %c0_19 = arith.constant 0 : index
    %70 = vector.load %arg8[%c0_17, %c0_18, %c0_19] : memref<2x1x16xf32, #tpu.memory_space<vmem>>, vector<1x1x16xf32>
    %71 = vector.shape_cast %70 : vector<1x1x16xf32> to vector<1x16xf32>
    %72 = vector.broadcast %71 : vector<1x16xf32> to vector<16x16xf32>
    %73 = arith.addf %69, %72 : vector<16x16xf32>
    %c0_20 = arith.constant 0 : index
    %c0_21 = arith.constant 0 : index
    %c0_22 = arith.constant 0 : index
    %74 = vector.load %arg5[%c0_20, %c0_21, %c0_22] : memref<2x32x16xbf16, #tpu.memory_space<vmem>>, vector<1x32x16xbf16>
    %75 = vector.shape_cast %74 : vector<1x32x16xbf16> to vector<32x16xbf16>
    %cst_23 = arith.constant dense<0.000000e+00> : vector<16x16xf32>
    %76 = tpu.matmul %11, %75, %cst_23 {dimension_numbers = #tpu.dot_dimension_numbers<[1], [0], [0], [1], [0, 0, 1, 1], [], []>} : vector<16x32xbf16>, vector<32x16xbf16>, vector<16x16xf32> -> vector<16x16xf32>
    %c0_24 = arith.constant 0 : index
    %c0_25 = arith.constant 0 : index
    %c0_26 = arith.constant 0 : index
    %77 = vector.load %arg9[%c0_24, %c0_25, %c0_26] : memref<2x1x16xf32, #tpu.memory_space<vmem>>, vector<1x1x16xf32>
    %78 = vector.shape_cast %77 : vector<1x1x16xf32> to vector<1x16xf32>
    %79 = vector.broadcast %78 : vector<1x16xf32> to vector<16x16xf32>
    %80 = arith.addf %76, %79 : vector<16x16xf32>
    %cst_27 = arith.constant 2.500000e-01 : f32
    %81 = vector.broadcast %cst_27 : f32 to vector<16x16xf32>
    %82 = arith.mulf %66, %81 : vector<16x16xf32>
    %83 = arith.truncf %82 : vector<16x16xf32> to vector<16x16xbf16>
    %84 = arith.truncf %73 : vector<16x16xf32> to vector<16x16xbf16>
    %cst_28 = arith.constant dense<0.000000e+00> : vector<16x16xf32>
    %85 = tpu.matmul %83, %84, %cst_28 {dimension_numbers = #tpu.dot_dimension_numbers<[1], [1], [0], [0], [0, 0, 1, 0], [], []>} : vector<16x16xbf16>, vector<16x16xbf16>, vector<16x16xf32> -> vector<16x16xf32>
    %cst_29 = arith.constant dense<0.000000e+00> : vector<16x9xf32>
    %86 = tpu.matmul %83, %57, %cst_29 {dimension_numbers = #tpu.dot_dimension_numbers<[1], [1], [0], [0], [0, 0, 1, 0], [], []>} : vector<16x16xbf16>, vector<9x16xbf16>, vector<16x9xf32> -> vector<16x9xf32>
    %87 = vector.extract_strided_slice %86 {offsets = [0, 0], sizes = [16, 1], strides = [1, 1]} : vector<16x9xf32> to vector<16x1xf32>
    %88 = vector.broadcast %87 : vector<16x1xf32> to vector<16x16xf32>
    %89 = arith.mulf %88, %23 : vector<16x16xf32>
    %90 = arith.addf %85, %89 : vector<16x16xf32>
    %91 = vector.extract_strided_slice %86 {offsets = [0, 1], sizes = [16, 1], strides = [1, 1]} : vector<16x9xf32> to vector<16x1xf32>
    %92 = vector.broadcast %91 : vector<16x1xf32> to vector<16x16xf32>
    %93 = arith.mulf %92, %27 : vector<16x16xf32>
    %94 = arith.addf %90, %93 : vector<16x16xf32>
    %95 = vector.extract_strided_slice %86 {offsets = [0, 2], sizes = [16, 1], strides = [1, 1]} : vector<16x9xf32> to vector<16x1xf32>
    %96 = vector.broadcast %95 : vector<16x1xf32> to vector<16x16xf32>
    %97 = arith.mulf %96, %31 : vector<16x16xf32>
    %98 = arith.addf %94, %97 : vector<16x16xf32>
    %99 = vector.extract_strided_slice %86 {offsets = [0, 3], sizes = [16, 1], strides = [1, 1]} : vector<16x9xf32> to vector<16x1xf32>
    %100 = vector.broadcast %99 : vector<16x1xf32> to vector<16x16xf32>
    %101 = arith.mulf %100, %35 : vector<16x16xf32>
    %102 = arith.addf %98, %101 : vector<16x16xf32>
    %103 = vector.extract_strided_slice %86 {offsets = [0, 4], sizes = [16, 1], strides = [1, 1]} : vector<16x9xf32> to vector<16x1xf32>
    %104 = vector.broadcast %103 : vector<16x1xf32> to vector<16x16xf32>
    %105 = arith.mulf %104, %39 : vector<16x16xf32>
    %106 = arith.addf %102, %105 : vector<16x16xf32>
    %107 = vector.extract_strided_slice %86 {offsets = [0, 5], sizes = [16, 1], strides = [1, 1]} : vector<16x9xf32> to vector<16x1xf32>
    %108 = vector.broadcast %107 : vector<16x1xf32> to vector<16x16xf32>
    %109 = arith.mulf %108, %43 : vector<16x16xf32>
    %110 = arith.addf %106, %109 : vector<16x16xf32>
    %111 = vector.extract_strided_slice %86 {offsets = [0, 6], sizes = [16, 1], strides = [1, 1]} : vector<16x9xf32> to vector<16x1xf32>
    %112 = vector.broadcast %111 : vector<16x1xf32> to vector<16x16xf32>
    %113 = arith.mulf %112, %47 : vector<16x16xf32>
    %114 = arith.addf %110, %113 : vector<16x16xf32>
    %115 = vector.extract_strided_slice %86 {offsets = [0, 7], sizes = [16, 1], strides = [1, 1]} : vector<16x9xf32> to vector<16x1xf32>
    %116 = vector.broadcast %115 : vector<16x1xf32> to vector<16x16xf32>
    %117 = arith.mulf %116, %51 : vector<16x16xf32>
    %118 = arith.addf %114, %117 : vector<16x16xf32>
    %119 = vector.extract_strided_slice %86 {offsets = [0, 8], sizes = [16, 1], strides = [1, 1]} : vector<16x9xf32> to vector<16x1xf32>
    %120 = vector.broadcast %119 : vector<16x1xf32> to vector<16x16xf32>
    %121 = arith.mulf %120, %55 : vector<16x16xf32>
    %122 = arith.addf %118, %121 : vector<16x16xf32>
    %cst_30 = arith.constant -1.000000e+04 : f32
    %123 = vector.broadcast %cst_30 : f32 to vector<16x16xf32>
    %124 = arith.select %18, %122, %123 : vector<16x16xi1>, vector<16x16xf32>
    %cst_31 = arith.constant dense<0xFF800000> : vector<16xf32>
    %125 = vector.multi_reduction <maximumf>, %124, %cst_31 [1] : vector<16x16xf32> to vector<16xf32>
    %126 = vector.shape_cast %125 : vector<16xf32> to vector<16x1xf32>
    %127 = vector.broadcast %126 : vector<16x1xf32> to vector<16x16xf32>
    %128 = arith.subf %124, %127 : vector<16x16xf32>
    %129 = math.exp %128 : vector<16x16xf32>
    %cst_32 = arith.constant dense<0.000000e+00> : vector<16xf32>
    %130 = vector.multi_reduction <add>, %129, %cst_32 [1] : vector<16x16xf32> to vector<16xf32>
    %131 = vector.shape_cast %130 : vector<16xf32> to vector<16x1xf32>
    %132 = tpu.reciprocal %131 {approx = true} : vector<16x1xf32> -> vector<16x1xf32>
    %133 = vector.broadcast %132 : vector<16x1xf32> to vector<16x16xf32>
    %134 = arith.mulf %129, %133 : vector<16x16xf32>
    %135 = arith.truncf %134 : vector<16x16xf32> to vector<16x16xbf16>
    %136 = arith.truncf %80 : vector<16x16xf32> to vector<16x16xbf16>
    %cst_33 = arith.constant dense<0.000000e+00> : vector<16x16xf32>
    %137 = tpu.matmul %135, %136, %cst_33 {dimension_numbers = #tpu.dot_dimension_numbers<[1], [0], [0], [1], [0, 0, 1, 1], [], []>} : vector<16x16xbf16>, vector<16x16xbf16>, vector<16x16xf32> -> vector<16x16xf32>
    %138 = arith.mulf %134, %23 : vector<16x16xf32>
    %cst_34 = arith.constant dense<0.000000e+00> : vector<16xf32>
    %139 = vector.multi_reduction <add>, %138, %cst_34 [1] : vector<16x16xf32> to vector<16xf32>
    %140 = vector.shape_cast %139 : vector<16xf32> to vector<16x1xf32>
    %141 = vector.extract_strided_slice %58 {offsets = [0, 0], sizes = [1, 16], strides = [1, 1]} : vector<9x16xf32> to vector<1x16xf32>
    %142 = vector.broadcast %140 : vector<16x1xf32> to vector<16x16xf32>
    %143 = vector.broadcast %141 : vector<1x16xf32> to vector<16x16xf32>
    %144 = arith.mulf %142, %143 : vector<16x16xf32>
    %145 = arith.addf %137, %144 : vector<16x16xf32>
    %146 = arith.mulf %134, %27 : vector<16x16xf32>
    %cst_35 = arith.constant dense<0.000000e+00> : vector<16xf32>
    %147 = vector.multi_reduction <add>, %146, %cst_35 [1] : vector<16x16xf32> to vector<16xf32>
    %148 = vector.shape_cast %147 : vector<16xf32> to vector<16x1xf32>
    %149 = vector.extract_strided_slice %58 {offsets = [1, 0], sizes = [1, 16], strides = [1, 1]} : vector<9x16xf32> to vector<1x16xf32>
    %150 = vector.broadcast %148 : vector<16x1xf32> to vector<16x16xf32>
    %151 = vector.broadcast %149 : vector<1x16xf32> to vector<16x16xf32>
    %152 = arith.mulf %150, %151 : vector<16x16xf32>
    %153 = arith.addf %145, %152 : vector<16x16xf32>
    %154 = arith.mulf %134, %31 : vector<16x16xf32>
    %cst_36 = arith.constant dense<0.000000e+00> : vector<16xf32>
    %155 = vector.multi_reduction <add>, %154, %cst_36 [1] : vector<16x16xf32> to vector<16xf32>
    %156 = vector.shape_cast %155 : vector<16xf32> to vector<16x1xf32>
    %157 = vector.extract_strided_slice %58 {offsets = [2, 0], sizes = [1, 16], strides = [1, 1]} : vector<9x16xf32> to vector<1x16xf32>
    %158 = vector.broadcast %156 : vector<16x1xf32> to vector<16x16xf32>
    %159 = vector.broadcast %157 : vector<1x16xf32> to vector<16x16xf32>
    %160 = arith.mulf %158, %159 : vector<16x16xf32>
    %161 = arith.addf %153, %160 : vector<16x16xf32>
    %162 = arith.mulf %134, %35 : vector<16x16xf32>
    %cst_37 = arith.constant dense<0.000000e+00> : vector<16xf32>
    %163 = vector.multi_reduction <add>, %162, %cst_37 [1] : vector<16x16xf32> to vector<16xf32>
    %164 = vector.shape_cast %163 : vector<16xf32> to vector<16x1xf32>
    %165 = vector.extract_strided_slice %58 {offsets = [3, 0], sizes = [1, 16], strides = [1, 1]} : vector<9x16xf32> to vector<1x16xf32>
    %166 = vector.broadcast %164 : vector<16x1xf32> to vector<16x16xf32>
    %167 = vector.broadcast %165 : vector<1x16xf32> to vector<16x16xf32>
    %168 = arith.mulf %166, %167 : vector<16x16xf32>
    %169 = arith.addf %161, %168 : vector<16x16xf32>
    %170 = arith.mulf %134, %39 : vector<16x16xf32>
    %cst_38 = arith.constant dense<0.000000e+00> : vector<16xf32>
    %171 = vector.multi_reduction <add>, %170, %cst_38 [1] : vector<16x16xf32> to vector<16xf32>
    %172 = vector.shape_cast %171 : vector<16xf32> to vector<16x1xf32>
    %173 = vector.extract_strided_slice %58 {offsets = [4, 0], sizes = [1, 16], strides = [1, 1]} : vector<9x16xf32> to vector<1x16xf32>
    %174 = vector.broadcast %172 : vector<16x1xf32> to vector<16x16xf32>
    %175 = vector.broadcast %173 : vector<1x16xf32> to vector<16x16xf32>
    %176 = arith.mulf %174, %175 : vector<16x16xf32>
    %177 = arith.addf %169, %176 : vector<16x16xf32>
    %178 = arith.mulf %134, %43 : vector<16x16xf32>
    %cst_39 = arith.constant dense<0.000000e+00> : vector<16xf32>
    %179 = vector.multi_reduction <add>, %178, %cst_39 [1] : vector<16x16xf32> to vector<16xf32>
    %180 = vector.shape_cast %179 : vector<16xf32> to vector<16x1xf32>
    %181 = vector.extract_strided_slice %58 {offsets = [5, 0], sizes = [1, 16], strides = [1, 1]} : vector<9x16xf32> to vector<1x16xf32>
    %182 = vector.broadcast %180 : vector<16x1xf32> to vector<16x16xf32>
    %183 = vector.broadcast %181 : vector<1x16xf32> to vector<16x16xf32>
    %184 = arith.mulf %182, %183 : vector<16x16xf32>
    %185 = arith.addf %177, %184 : vector<16x16xf32>
    %186 = arith.mulf %134, %47 : vector<16x16xf32>
    %cst_40 = arith.constant dense<0.000000e+00> : vector<16xf32>
    %187 = vector.multi_reduction <add>, %186, %cst_40 [1] : vector<16x16xf32> to vector<16xf32>
    %188 = vector.shape_cast %187 : vector<16xf32> to vector<16x1xf32>
    %189 = vector.extract_strided_slice %58 {offsets = [6, 0], sizes = [1, 16], strides = [1, 1]} : vector<9x16xf32> to vector<1x16xf32>
    %190 = vector.broadcast %188 : vector<16x1xf32> to vector<16x16xf32>
    %191 = vector.broadcast %189 : vector<1x16xf32> to vector<16x16xf32>
    %192 = arith.mulf %190, %191 : vector<16x16xf32>
    %193 = arith.addf %185, %192 : vector<16x16xf32>
    %194 = arith.mulf %134, %51 : vector<16x16xf32>
    %cst_41 = arith.constant dense<0.000000e+00> : vector<16xf32>
    %195 = vector.multi_reduction <add>, %194, %cst_41 [1] : vector<16x16xf32> to vector<16xf32>
    %196 = vector.shape_cast %195 : vector<16xf32> to vector<16x1xf32>
    %197 = vector.extract_strided_slice %58 {offsets = [7, 0], sizes = [1, 16], strides = [1, 1]} : vector<9x16xf32> to vector<1x16xf32>
    %198 = vector.broadcast %196 : vector<16x1xf32> to vector<16x16xf32>
    %199 = vector.broadcast %197 : vector<1x16xf32> to vector<16x16xf32>
    %200 = arith.mulf %198, %199 : vector<16x16xf32>
    %201 = arith.addf %193, %200 : vector<16x16xf32>
    %202 = arith.mulf %134, %55 : vector<16x16xf32>
    %cst_42 = arith.constant dense<0.000000e+00> : vector<16xf32>
    %203 = vector.multi_reduction <add>, %202, %cst_42 [1] : vector<16x16xf32> to vector<16xf32>
    %204 = vector.shape_cast %203 : vector<16xf32> to vector<16x1xf32>
    %205 = vector.extract_strided_slice %58 {offsets = [8, 0], sizes = [1, 16], strides = [1, 1]} : vector<9x16xf32> to vector<1x16xf32>
    %206 = vector.broadcast %204 : vector<16x1xf32> to vector<16x16xf32>
    %207 = vector.broadcast %205 : vector<1x16xf32> to vector<16x16xf32>
    %208 = arith.mulf %206, %207 : vector<16x16xf32>
    %209 = arith.addf %201, %208 : vector<16x16xf32>
    %210 = arith.truncf %209 : vector<16x16xf32> to vector<16x16xbf16>
    %c0_43 = arith.constant 0 : index
    %c0_44 = arith.constant 0 : index
    %c0_45 = arith.constant 0 : index
    %211 = vector.load %arg6[%c0_43, %c0_44, %c0_45] : memref<2x16x32xbf16, #tpu.memory_space<vmem>>, vector<1x16x32xbf16>
    %212 = vector.shape_cast %211 : vector<1x16x32xbf16> to vector<16x32xbf16>
    %cst_46 = arith.constant dense<0.000000e+00> : vector<16x32xf32>
    %213 = tpu.matmul %210, %212, %cst_46 {dimension_numbers = #tpu.dot_dimension_numbers<[1], [0], [0], [1], [0, 0, 1, 1], [], []>} : vector<16x16xbf16>, vector<16x32xbf16>, vector<16x32xf32> -> vector<16x32xf32>
    %214 = arith.addf %59, %213 : vector<16x32xf32>
    %c1 = arith.constant 1 : index
    %c0_47 = arith.constant 0 : index
    %c0_48 = arith.constant 0 : index
    %215 = vector.load %arg3[%c1, %c0_47, %c0_48] : memref<2x32x16xbf16, #tpu.memory_space<vmem>>, vector<1x32x16xbf16>
    %216 = vector.shape_cast %215 : vector<1x32x16xbf16> to vector<32x16xbf16>
    %cst_49 = arith.constant dense<0.000000e+00> : vector<16x16xf32>
    %217 = tpu.matmul %11, %216, %cst_49 {dimension_numbers = #tpu.dot_dimension_numbers<[1], [0], [0], [1], [0, 0, 1, 1], [], []>} : vector<16x32xbf16>, vector<32x16xbf16>, vector<16x16xf32> -> vector<16x16xf32>
    %c1_50 = arith.constant 1 : index
    %c0_51 = arith.constant 0 : index
    %c0_52 = arith.constant 0 : index
    %218 = vector.load %arg7[%c1_50, %c0_51, %c0_52] : memref<2x1x16xf32, #tpu.memory_space<vmem>>, vector<1x1x16xf32>
    %219 = vector.shape_cast %218 : vector<1x1x16xf32> to vector<1x16xf32>
    %220 = vector.broadcast %219 : vector<1x16xf32> to vector<16x16xf32>
    %221 = arith.addf %217, %220 : vector<16x16xf32>
    %c1_53 = arith.constant 1 : index
    %c0_54 = arith.constant 0 : index
    %c0_55 = arith.constant 0 : index
    %222 = vector.load %arg4[%c1_53, %c0_54, %c0_55] : memref<2x32x16xbf16, #tpu.memory_space<vmem>>, vector<1x32x16xbf16>
    %223 = vector.shape_cast %222 : vector<1x32x16xbf16> to vector<32x16xbf16>
    %cst_56 = arith.constant dense<0.000000e+00> : vector<16x16xf32>
    %224 = tpu.matmul %11, %223, %cst_56 {dimension_numbers = #tpu.dot_dimension_numbers<[1], [0], [0], [1], [0, 0, 1, 1], [], []>} : vector<16x32xbf16>, vector<32x16xbf16>, vector<16x16xf32> -> vector<16x16xf32>
    %c1_57 = arith.constant 1 : index
    %c0_58 = arith.constant 0 : index
    %c0_59 = arith.constant 0 : index
    %225 = vector.load %arg8[%c1_57, %c0_58, %c0_59] : memref<2x1x16xf32, #tpu.memory_space<vmem>>, vector<1x1x16xf32>
    %226 = vector.shape_cast %225 : vector<1x1x16xf32> to vector<1x16xf32>
    %227 = vector.broadcast %226 : vector<1x16xf32> to vector<16x16xf32>
    %228 = arith.addf %224, %227 : vector<16x16xf32>
    %c1_60 = arith.constant 1 : index
    %c0_61 = arith.constant 0 : index
    %c0_62 = arith.constant 0 : index
    %229 = vector.load %arg5[%c1_60, %c0_61, %c0_62] : memref<2x32x16xbf16, #tpu.memory_space<vmem>>, vector<1x32x16xbf16>
    %230 = vector.shape_cast %229 : vector<1x32x16xbf16> to vector<32x16xbf16>
    %cst_63 = arith.constant dense<0.000000e+00> : vector<16x16xf32>
    %231 = tpu.matmul %11, %230, %cst_63 {dimension_numbers = #tpu.dot_dimension_numbers<[1], [0], [0], [1], [0, 0, 1, 1], [], []>} : vector<16x32xbf16>, vector<32x16xbf16>, vector<16x16xf32> -> vector<16x16xf32>
    %c1_64 = arith.constant 1 : index
    %c0_65 = arith.constant 0 : index
    %c0_66 = arith.constant 0 : index
    %232 = vector.load %arg9[%c1_64, %c0_65, %c0_66] : memref<2x1x16xf32, #tpu.memory_space<vmem>>, vector<1x1x16xf32>
    %233 = vector.shape_cast %232 : vector<1x1x16xf32> to vector<1x16xf32>
    %234 = vector.broadcast %233 : vector<1x16xf32> to vector<16x16xf32>
    %235 = arith.addf %231, %234 : vector<16x16xf32>
    %cst_67 = arith.constant 2.500000e-01 : f32
    %236 = vector.broadcast %cst_67 : f32 to vector<16x16xf32>
    %237 = arith.mulf %221, %236 : vector<16x16xf32>
    %238 = arith.truncf %237 : vector<16x16xf32> to vector<16x16xbf16>
    %239 = arith.truncf %228 : vector<16x16xf32> to vector<16x16xbf16>
    %cst_68 = arith.constant dense<0.000000e+00> : vector<16x16xf32>
    %240 = tpu.matmul %238, %239, %cst_68 {dimension_numbers = #tpu.dot_dimension_numbers<[1], [1], [0], [0], [0, 0, 1, 0], [], []>} : vector<16x16xbf16>, vector<16x16xbf16>, vector<16x16xf32> -> vector<16x16xf32>
    %cst_69 = arith.constant dense<0.000000e+00> : vector<16x9xf32>
    %241 = tpu.matmul %238, %57, %cst_69 {dimension_numbers = #tpu.dot_dimension_numbers<[1], [1], [0], [0], [0, 0, 1, 0], [], []>} : vector<16x16xbf16>, vector<9x16xbf16>, vector<16x9xf32> -> vector<16x9xf32>
    %242 = vector.extract_strided_slice %241 {offsets = [0, 0], sizes = [16, 1], strides = [1, 1]} : vector<16x9xf32> to vector<16x1xf32>
    %243 = vector.broadcast %242 : vector<16x1xf32> to vector<16x16xf32>
    %244 = arith.mulf %243, %23 : vector<16x16xf32>
    %245 = arith.addf %240, %244 : vector<16x16xf32>
    %246 = vector.extract_strided_slice %241 {offsets = [0, 1], sizes = [16, 1], strides = [1, 1]} : vector<16x9xf32> to vector<16x1xf32>
    %247 = vector.broadcast %246 : vector<16x1xf32> to vector<16x16xf32>
    %248 = arith.mulf %247, %27 : vector<16x16xf32>
    %249 = arith.addf %245, %248 : vector<16x16xf32>
    %250 = vector.extract_strided_slice %241 {offsets = [0, 2], sizes = [16, 1], strides = [1, 1]} : vector<16x9xf32> to vector<16x1xf32>
    %251 = vector.broadcast %250 : vector<16x1xf32> to vector<16x16xf32>
    %252 = arith.mulf %251, %31 : vector<16x16xf32>
    %253 = arith.addf %249, %252 : vector<16x16xf32>
    %254 = vector.extract_strided_slice %241 {offsets = [0, 3], sizes = [16, 1], strides = [1, 1]} : vector<16x9xf32> to vector<16x1xf32>
    %255 = vector.broadcast %254 : vector<16x1xf32> to vector<16x16xf32>
    %256 = arith.mulf %255, %35 : vector<16x16xf32>
    %257 = arith.addf %253, %256 : vector<16x16xf32>
    %258 = vector.extract_strided_slice %241 {offsets = [0, 4], sizes = [16, 1], strides = [1, 1]} : vector<16x9xf32> to vector<16x1xf32>
    %259 = vector.broadcast %258 : vector<16x1xf32> to vector<16x16xf32>
    %260 = arith.mulf %259, %39 : vector<16x16xf32>
    %261 = arith.addf %257, %260 : vector<16x16xf32>
    %262 = vector.extract_strided_slice %241 {offsets = [0, 5], sizes = [16, 1], strides = [1, 1]} : vector<16x9xf32> to vector<16x1xf32>
    %263 = vector.broadcast %262 : vector<16x1xf32> to vector<16x16xf32>
    %264 = arith.mulf %263, %43 : vector<16x16xf32>
    %265 = arith.addf %261, %264 : vector<16x16xf32>
    %266 = vector.extract_strided_slice %241 {offsets = [0, 6], sizes = [16, 1], strides = [1, 1]} : vector<16x9xf32> to vector<16x1xf32>
    %267 = vector.broadcast %266 : vector<16x1xf32> to vector<16x16xf32>
    %268 = arith.mulf %267, %47 : vector<16x16xf32>
    %269 = arith.addf %265, %268 : vector<16x16xf32>
    %270 = vector.extract_strided_slice %241 {offsets = [0, 7], sizes = [16, 1], strides = [1, 1]} : vector<16x9xf32> to vector<16x1xf32>
    %271 = vector.broadcast %270 : vector<16x1xf32> to vector<16x16xf32>
    %272 = arith.mulf %271, %51 : vector<16x16xf32>
    %273 = arith.addf %269, %272 : vector<16x16xf32>
    %274 = vector.extract_strided_slice %241 {offsets = [0, 8], sizes = [16, 1], strides = [1, 1]} : vector<16x9xf32> to vector<16x1xf32>
    %275 = vector.broadcast %274 : vector<16x1xf32> to vector<16x16xf32>
    %276 = arith.mulf %275, %55 : vector<16x16xf32>
    %277 = arith.addf %273, %276 : vector<16x16xf32>
    %cst_70 = arith.constant -1.000000e+04 : f32
    %278 = vector.broadcast %cst_70 : f32 to vector<16x16xf32>
    %279 = arith.select %18, %277, %278 : vector<16x16xi1>, vector<16x16xf32>
    %cst_71 = arith.constant dense<0xFF800000> : vector<16xf32>
    %280 = vector.multi_reduction <maximumf>, %279, %cst_71 [1] : vector<16x16xf32> to vector<16xf32>
    %281 = vector.shape_cast %280 : vector<16xf32> to vector<16x1xf32>
    %282 = vector.broadcast %281 : vector<16x1xf32> to vector<16x16xf32>
    %283 = arith.subf %279, %282 : vector<16x16xf32>
    %284 = math.exp %283 : vector<16x16xf32>
    %cst_72 = arith.constant dense<0.000000e+00> : vector<16xf32>
    %285 = vector.multi_reduction <add>, %284, %cst_72 [1] : vector<16x16xf32> to vector<16xf32>
    %286 = vector.shape_cast %285 : vector<16xf32> to vector<16x1xf32>
    %287 = tpu.reciprocal %286 {approx = true} : vector<16x1xf32> -> vector<16x1xf32>
    %288 = vector.broadcast %287 : vector<16x1xf32> to vector<16x16xf32>
    %289 = arith.mulf %284, %288 : vector<16x16xf32>
    %290 = arith.truncf %289 : vector<16x16xf32> to vector<16x16xbf16>
    %291 = arith.truncf %235 : vector<16x16xf32> to vector<16x16xbf16>
    %cst_73 = arith.constant dense<0.000000e+00> : vector<16x16xf32>
    %292 = tpu.matmul %290, %291, %cst_73 {dimension_numbers = #tpu.dot_dimension_numbers<[1], [0], [0], [1], [0, 0, 1, 1], [], []>} : vector<16x16xbf16>, vector<16x16xbf16>, vector<16x16xf32> -> vector<16x16xf32>
    %293 = arith.mulf %289, %23 : vector<16x16xf32>
    %cst_74 = arith.constant dense<0.000000e+00> : vector<16xf32>
    %294 = vector.multi_reduction <add>, %293, %cst_74 [1] : vector<16x16xf32> to vector<16xf32>
    %295 = vector.shape_cast %294 : vector<16xf32> to vector<16x1xf32>
    %296 = vector.extract_strided_slice %58 {offsets = [0, 0], sizes = [1, 16], strides = [1, 1]} : vector<9x16xf32> to vector<1x16xf32>
    %297 = vector.broadcast %295 : vector<16x1xf32> to vector<16x16xf32>
    %298 = vector.broadcast %296 : vector<1x16xf32> to vector<16x16xf32>
    %299 = arith.mulf %297, %298 : vector<16x16xf32>
    %300 = arith.addf %292, %299 : vector<16x16xf32>
    %301 = arith.mulf %289, %27 : vector<16x16xf32>
    %cst_75 = arith.constant dense<0.000000e+00> : vector<16xf32>
    %302 = vector.multi_reduction <add>, %301, %cst_75 [1] : vector<16x16xf32> to vector<16xf32>
    %303 = vector.shape_cast %302 : vector<16xf32> to vector<16x1xf32>
    %304 = vector.extract_strided_slice %58 {offsets = [1, 0], sizes = [1, 16], strides = [1, 1]} : vector<9x16xf32> to vector<1x16xf32>
    %305 = vector.broadcast %303 : vector<16x1xf32> to vector<16x16xf32>
    %306 = vector.broadcast %304 : vector<1x16xf32> to vector<16x16xf32>
    %307 = arith.mulf %305, %306 : vector<16x16xf32>
    %308 = arith.addf %300, %307 : vector<16x16xf32>
    %309 = arith.mulf %289, %31 : vector<16x16xf32>
    %cst_76 = arith.constant dense<0.000000e+00> : vector<16xf32>
    %310 = vector.multi_reduction <add>, %309, %cst_76 [1] : vector<16x16xf32> to vector<16xf32>
    %311 = vector.shape_cast %310 : vector<16xf32> to vector<16x1xf32>
    %312 = vector.extract_strided_slice %58 {offsets = [2, 0], sizes = [1, 16], strides = [1, 1]} : vector<9x16xf32> to vector<1x16xf32>
    %313 = vector.broadcast %311 : vector<16x1xf32> to vector<16x16xf32>
    %314 = vector.broadcast %312 : vector<1x16xf32> to vector<16x16xf32>
    %315 = arith.mulf %313, %314 : vector<16x16xf32>
    %316 = arith.addf %308, %315 : vector<16x16xf32>
    %317 = arith.mulf %289, %35 : vector<16x16xf32>
    %cst_77 = arith.constant dense<0.000000e+00> : vector<16xf32>
    %318 = vector.multi_reduction <add>, %317, %cst_77 [1] : vector<16x16xf32> to vector<16xf32>
    %319 = vector.shape_cast %318 : vector<16xf32> to vector<16x1xf32>
    %320 = vector.extract_strided_slice %58 {offsets = [3, 0], sizes = [1, 16], strides = [1, 1]} : vector<9x16xf32> to vector<1x16xf32>
    %321 = vector.broadcast %319 : vector<16x1xf32> to vector<16x16xf32>
    %322 = vector.broadcast %320 : vector<1x16xf32> to vector<16x16xf32>
    %323 = arith.mulf %321, %322 : vector<16x16xf32>
    %324 = arith.addf %316, %323 : vector<16x16xf32>
    %325 = arith.mulf %289, %39 : vector<16x16xf32>
    %cst_78 = arith.constant dense<0.000000e+00> : vector<16xf32>
    %326 = vector.multi_reduction <add>, %325, %cst_78 [1] : vector<16x16xf32> to vector<16xf32>
    %327 = vector.shape_cast %326 : vector<16xf32> to vector<16x1xf32>
    %328 = vector.extract_strided_slice %58 {offsets = [4, 0], sizes = [1, 16], strides = [1, 1]} : vector<9x16xf32> to vector<1x16xf32>
    %329 = vector.broadcast %327 : vector<16x1xf32> to vector<16x16xf32>
    %330 = vector.broadcast %328 : vector<1x16xf32> to vector<16x16xf32>
    %331 = arith.mulf %329, %330 : vector<16x16xf32>
    %332 = arith.addf %324, %331 : vector<16x16xf32>
    %333 = arith.mulf %289, %43 : vector<16x16xf32>
    %cst_79 = arith.constant dense<0.000000e+00> : vector<16xf32>
    %334 = vector.multi_reduction <add>, %333, %cst_79 [1] : vector<16x16xf32> to vector<16xf32>
    %335 = vector.shape_cast %334 : vector<16xf32> to vector<16x1xf32>
    %336 = vector.extract_strided_slice %58 {offsets = [5, 0], sizes = [1, 16], strides = [1, 1]} : vector<9x16xf32> to vector<1x16xf32>
    %337 = vector.broadcast %335 : vector<16x1xf32> to vector<16x16xf32>
    %338 = vector.broadcast %336 : vector<1x16xf32> to vector<16x16xf32>
    %339 = arith.mulf %337, %338 : vector<16x16xf32>
    %340 = arith.addf %332, %339 : vector<16x16xf32>
    %341 = arith.mulf %289, %47 : vector<16x16xf32>
    %cst_80 = arith.constant dense<0.000000e+00> : vector<16xf32>
    %342 = vector.multi_reduction <add>, %341, %cst_80 [1] : vector<16x16xf32> to vector<16xf32>
    %343 = vector.shape_cast %342 : vector<16xf32> to vector<16x1xf32>
    %344 = vector.extract_strided_slice %58 {offsets = [6, 0], sizes = [1, 16], strides = [1, 1]} : vector<9x16xf32> to vector<1x16xf32>
    %345 = vector.broadcast %343 : vector<16x1xf32> to vector<16x16xf32>
    %346 = vector.broadcast %344 : vector<1x16xf32> to vector<16x16xf32>
    %347 = arith.mulf %345, %346 : vector<16x16xf32>
    %348 = arith.addf %340, %347 : vector<16x16xf32>
    %349 = arith.mulf %289, %51 : vector<16x16xf32>
    %cst_81 = arith.constant dense<0.000000e+00> : vector<16xf32>
    %350 = vector.multi_reduction <add>, %349, %cst_81 [1] : vector<16x16xf32> to vector<16xf32>
    %351 = vector.shape_cast %350 : vector<16xf32> to vector<16x1xf32>
    %352 = vector.extract_strided_slice %58 {offsets = [7, 0], sizes = [1, 16], strides = [1, 1]} : vector<9x16xf32> to vector<1x16xf32>
    %353 = vector.broadcast %351 : vector<16x1xf32> to vector<16x16xf32>
    %354 = vector.broadcast %352 : vector<1x16xf32> to vector<16x16xf32>
    %355 = arith.mulf %353, %354 : vector<16x16xf32>
    %356 = arith.addf %348, %355 : vector<16x16xf32>
    %357 = arith.mulf %289, %55 : vector<16x16xf32>
    %cst_82 = arith.constant dense<0.000000e+00> : vector<16xf32>
    %358 = vector.multi_reduction <add>, %357, %cst_82 [1] : vector<16x16xf32> to vector<16xf32>
    %359 = vector.shape_cast %358 : vector<16xf32> to vector<16x1xf32>
    %360 = vector.extract_strided_slice %58 {offsets = [8, 0], sizes = [1, 16], strides = [1, 1]} : vector<9x16xf32> to vector<1x16xf32>
    %361 = vector.broadcast %359 : vector<16x1xf32> to vector<16x16xf32>
    %362 = vector.broadcast %360 : vector<1x16xf32> to vector<16x16xf32>
    %363 = arith.mulf %361, %362 : vector<16x16xf32>
    %364 = arith.addf %356, %363 : vector<16x16xf32>
    %365 = arith.truncf %364 : vector<16x16xf32> to vector<16x16xbf16>
    %c1_83 = arith.constant 1 : index
    %c0_84 = arith.constant 0 : index
    %c0_85 = arith.constant 0 : index
    %366 = vector.load %arg6[%c1_83, %c0_84, %c0_85] : memref<2x16x32xbf16, #tpu.memory_space<vmem>>, vector<1x16x32xbf16>
    %367 = vector.shape_cast %366 : vector<1x16x32xbf16> to vector<16x32xbf16>
    %cst_86 = arith.constant dense<0.000000e+00> : vector<16x32xf32>
    %368 = tpu.matmul %365, %367, %cst_86 {dimension_numbers = #tpu.dot_dimension_numbers<[1], [0], [0], [1], [0, 0, 1, 1], [], []>} : vector<16x16xbf16>, vector<16x32xbf16>, vector<16x32xf32> -> vector<16x32xf32>
    %369 = arith.addf %214, %368 : vector<16x32xf32>
    %c0_87 = arith.constant 0 : index
    %c0_88 = arith.constant 0 : index
    %370 = vector.load %arg10[%c0_87, %c0_88] : memref<1x32xf32, #tpu.memory_space<vmem>>, vector<1x32xf32>
    %371 = vector.broadcast %370 : vector<1x32xf32> to vector<16x32xf32>
    %372 = arith.addf %369, %371 : vector<16x32xf32>
    %373 = arith.addf %10, %372 : vector<16x32xf32>
    %cst_89 = arith.constant dense<0.000000e+00> : vector<16xf32>
    %374 = vector.multi_reduction <add>, %373, %cst_89 [1] : vector<16x32xf32> to vector<16xf32>
    %375 = vector.shape_cast %374 : vector<16xf32> to vector<16x1xf32>
    %cst_90 = arith.constant 3.200000e+01 : f32
    %376 = vector.broadcast %cst_90 : f32 to vector<16x1xf32>
    %377 = arith.divf %375, %376 : vector<16x1xf32>
    %378 = vector.broadcast %377 : vector<16x1xf32> to vector<16x32xf32>
    %379 = arith.subf %373, %378 : vector<16x32xf32>
    %380 = arith.mulf %379, %379 : vector<16x32xf32>
    %cst_91 = arith.constant dense<0.000000e+00> : vector<16xf32>
    %381 = vector.multi_reduction <add>, %380, %cst_91 [1] : vector<16x32xf32> to vector<16xf32>
    %382 = vector.shape_cast %381 : vector<16xf32> to vector<16x1xf32>
    %cst_92 = arith.constant 3.200000e+01 : f32
    %383 = vector.broadcast %cst_92 : f32 to vector<16x1xf32>
    %384 = arith.divf %382, %383 : vector<16x1xf32>
    %385 = vector.broadcast %377 : vector<16x1xf32> to vector<16x32xf32>
    %386 = arith.subf %373, %385 : vector<16x32xf32>
    %cst_93 = arith.constant 9.99999974E-6 : f32
    %387 = vector.broadcast %cst_93 : f32 to vector<16x1xf32>
    %388 = arith.addf %384, %387 : vector<16x1xf32>
    %389 = math.rsqrt %388 : vector<16x1xf32>
    %390 = vector.broadcast %389 : vector<16x1xf32> to vector<16x32xf32>
    %391 = arith.mulf %386, %390 : vector<16x32xf32>
    %c0_94 = arith.constant 0 : index
    %c0_95 = arith.constant 0 : index
    %392 = vector.load %arg13[%c0_94, %c0_95] : memref<1x32xf32, #tpu.memory_space<vmem>>, vector<1x32xf32>
    %393 = vector.broadcast %392 : vector<1x32xf32> to vector<16x32xf32>
    %394 = arith.mulf %391, %393 : vector<16x32xf32>
    %c0_96 = arith.constant 0 : index
    %c0_97 = arith.constant 0 : index
    %395 = vector.load %arg14[%c0_96, %c0_97] : memref<1x32xf32, #tpu.memory_space<vmem>>, vector<1x32xf32>
    %396 = vector.broadcast %395 : vector<1x32xf32> to vector<16x32xf32>
    %397 = arith.addf %394, %396 : vector<16x32xf32>
    %c0_98 = arith.constant 0 : index
    %c0_99 = arith.constant 0 : index
    %c0_100 = arith.constant 0 : index
    %398 = vector.load %arg15[%c0_98, %c0_99, %c0_100] : memref<1x16x32xf32, #tpu.memory_space<vmem>>, vector<1x16x32xf32>
    %399 = vector.shape_cast %398 : vector<1x16x32xf32> to vector<16x32xf32>
    %400 = vector.shape_cast %397 : vector<16x32xf32> to vector<1x16x32xf32>
    tpu.vector_store %arg15[%c0_98, %c0_99, %c0_100], %400 {strides = array<i32>} : memref<1x16x32xf32, #tpu.memory_space<vmem>>, vector<1x16x32xf32>,
    return
  }
  func.func @transform_0(%arg0: i32, %arg1: memref<2xi32, #tpu.memory_space<smem>>) -> (i32, i32, i32) {
    %c0_i32 = arith.constant 0 : i32
    %c0_i32_0 = arith.constant 0 : i32
    %c0_i32_1 = arith.constant 0 : i32
    return %arg0, %c0_i32, %c0_i32_0 : i32, i32, i32
  }
  func.func @transform_1(%arg0: i32, %arg1: memref<2xi32, #tpu.memory_space<smem>>) -> (i32, i32, i32) {
    %c0_i32 = arith.constant 0 : i32
    %c0_i32_0 = arith.constant 0 : i32
    %c0_i32_1 = arith.constant 0 : i32
    %c0_i32_2 = arith.constant 0 : i32
    return %c0_i32, %c0_i32_0, %c0_i32_1 : i32, i32, i32
  }
  func.func @transform_2(%arg0: i32, %arg1: memref<2xi32, #tpu.memory_space<smem>>) -> (i32, i32, i32) {
    %c0_i32 = arith.constant 0 : i32
    %c0_i32_0 = arith.constant 0 : i32
    %c0_i32_1 = arith.constant 0 : i32
    %c0_i32_2 = arith.constant 0 : i32
    return %c0_i32, %c0_i32_0, %c0_i32_1 : i32, i32, i32
  }
  func.func @transform_3(%arg0: i32, %arg1: memref<2xi32, #tpu.memory_space<smem>>) -> (i32, i32, i32) {
    %c0_i32 = arith.constant 0 : i32
    %c0_i32_0 = arith.constant 0 : i32
    %c0_i32_1 = arith.constant 0 : i32
    %c0_i32_2 = arith.constant 0 : i32
    return %c0_i32, %c0_i32_0, %c0_i32_1 : i32, i32, i32
  }
  func.func @transform_4(%arg0: i32, %arg1: memref<2xi32, #tpu.memory_space<smem>>) -> (i32, i32, i32) {
    %c0_i32 = arith.constant 0 : i32
    %c0_i32_0 = arith.constant 0 : i32
    %c0_i32_1 = arith.constant 0 : i32
    %c0_i32_2 = arith.constant 0 : i32
    return %c0_i32, %c0_i32_0, %c0_i32_1 : i32, i32, i32
  }
  func.func @transform_5(%arg0: i32, %arg1: memref<2xi32, #tpu.memory_space<smem>>) -> (i32, i32, i32) {
    %c0_i32 = arith.constant 0 : i32
    %c0_i32_0 = arith.constant 0 : i32
    %c0_i32_1 = arith.constant 0 : i32
    %c0_i32_2 = arith.constant 0 : i32
    return %c0_i32, %c0_i32_0, %c0_i32_1 : i32, i32, i32
  }
  func.func @transform_6(%arg0: i32, %arg1: memref<2xi32, #tpu.memory_space<smem>>) -> (i32, i32, i32) {
    %c0_i32 = arith.constant 0 : i32
    %c0_i32_0 = arith.constant 0 : i32
    %c0_i32_1 = arith.constant 0 : i32
    %c0_i32_2 = arith.constant 0 : i32
    return %c0_i32, %c0_i32_0, %c0_i32_1 : i32, i32, i32
  }
  func.func @transform_7(%arg0: i32, %arg1: memref<2xi32, #tpu.memory_space<smem>>) -> (i32, i32, i32) {
    %c0_i32 = arith.constant 0 : i32
    %c0_i32_0 = arith.constant 0 : i32
    %c0_i32_1 = arith.constant 0 : i32
    %c0_i32_2 = arith.constant 0 : i32
    return %c0_i32, %c0_i32_0, %c0_i32_1 : i32, i32, i32
  }
  func.func @transform_8(%arg0: i32, %arg1: memref<2xi32, #tpu.memory_space<smem>>) -> (i32, i32) {
    %c0_i32 = arith.constant 0 : i32
    %c0_i32_0 = arith.constant 0 : i32
    %c0_i32_1 = arith.constant 0 : i32
    return %c0_i32, %c0_i32_0 : i32, i32
  }
  func.func @transform_9(%arg0: i32, %arg1: memref<2xi32, #tpu.memory_space<smem>>) -> (i32, i32) {
    %c0_i32 = arith.constant 0 : i32
    %c0_i32_0 = arith.constant 0 : i32
    %c0_i32_1 = arith.constant 0 : i32
    return %c0_i32, %c0_i32_0 : i32, i32
  }
  func.func @transform_10(%arg0: i32, %arg1: memref<2xi32, #tpu.memory_space<smem>>) -> (i32, i32) {
    %c0_i32 = arith.constant 0 : i32
    %c0_i32_0 = arith.constant 0 : i32
    %c0_i32_1 = arith.constant 0 : i32
    return %c0_i32, %c0_i32_0 : i32, i32
  }
  func.func @transform_11(%arg0: i32, %arg1: memref<2xi32, #tpu.memory_space<smem>>) -> (i32, i32) {
    %c0_i32 = arith.constant 0 : i32
    %c0_i32_0 = arith.constant 0 : i32
    %c0_i32_1 = arith.constant 0 : i32
    return %c0_i32, %c0_i32_0 : i32, i32
  }
  func.func @transform_12(%arg0: i32, %arg1: memref<2xi32, #tpu.memory_space<smem>>) -> (i32, i32) {
    %c0_i32 = arith.constant 0 : i32
    %c0_i32_0 = arith.constant 0 : i32
    %c0_i32_1 = arith.constant 0 : i32
    return %c0_i32, %c0_i32_0 : i32, i32
  }
  func.func @transform_13(%arg0: i32, %arg1: memref<2xi32, #tpu.memory_space<smem>>) -> (i32, i32, i32) {
    %c0_i32 = arith.constant 0 : i32
    %c0_i32_0 = arith.constant 0 : i32
    %c0_i32_1 = arith.constant 0 : i32
    return %arg0, %c0_i32, %c0_i32_0 : i32, i32, i32
  }
}

module attributes {stable_mosaic.version = 11 : i64} {
  func.func @_attn_block_kernel(%arg0: i32, %arg1: memref<2xi32, #tpu.memory_space<smem>>, %arg2: memref<1x16x32xf32, #tpu.memory_space<vmem>>, %arg3: memref<2x32x16xbf16, #tpu.memory_space<vmem>>, %arg4: memref<2x32x16xbf16, #tpu.memory_space<vmem>>, %arg5: memref<2x32x16xbf16, #tpu.memory_space<vmem>>, %arg6: memref<2x16x32xbf16, #tpu.memory_space<vmem>>, %arg7: memref<2x1x16xf32, #tpu.memory_space<vmem>>, %arg8: memref<2x1x16xf32, #tpu.memory_space<vmem>>, %arg9: memref<2x1x16xf32, #tpu.memory_space<vmem>>, %arg10: memref<1x32xf32, #tpu.memory_space<vmem>>, %arg11: memref<9x16xf32, #tpu.memory_space<vmem>>, %arg12: memref<9x16xf32, #tpu.memory_space<vmem>>, %arg13: memref<1x32xf32, #tpu.memory_space<vmem>>, %arg14: memref<1x32xf32, #tpu.memory_space<vmem>>, %arg15: memref<1x16x32xf32, #tpu.memory_space<vmem>>) attributes {dimension_semantics = [#tpu.dimension_semantics<parallel>], iteration_bounds = array<i64: 2>, scalar_prefetch = 1 : i64, scratch_operands = 0 : i64, tpu.core_type = #tpu.core_type<tc>, window_params = [{transform_indices = @transform_0, window_bounds = array<i64: 1, 16, 32>}, {pipeline_mode = #tpu.pipeline_mode<synchronous>, transform_indices = @transform_1, window_bounds = array<i64: 2, 32, 16>}, {pipeline_mode = #tpu.pipeline_mode<synchronous>, transform_indices = @transform_2, window_bounds = array<i64: 2, 32, 16>}, {pipeline_mode = #tpu.pipeline_mode<synchronous>, transform_indices = @transform_3, window_bounds = array<i64: 2, 32, 16>}, {pipeline_mode = #tpu.pipeline_mode<synchronous>, transform_indices = @transform_4, window_bounds = array<i64: 2, 16, 32>}, {pipeline_mode = #tpu.pipeline_mode<synchronous>, transform_indices = @transform_5, window_bounds = array<i64: 2, 1, 16>}, {pipeline_mode = #tpu.pipeline_mode<synchronous>, transform_indices = @transform_6, window_bounds = array<i64: 2, 1, 16>}, {pipeline_mode = #tpu.pipeline_mode<synchronous>, transform_indices = @transform_7, window_bounds = array<i64: 2, 1, 16>}, {pipeline_mode = #tpu.pipeline_mode<synchronous>, transform_indices = @transform_8, window_bounds = array<i64: 1, 32>}, {pipeline_mode = #tpu.pipeline_mode<synchronous>, transform_indices = @transform_9, window_bounds = array<i64: 9, 16>}, {pipeline_mode = #tpu.pipeline_mode<synchronous>, transform_indices = @transform_10, window_bounds = array<i64: 9, 16>}, {pipeline_mode = #tpu.pipeline_mode<synchronous>, transform_indices = @transform_11, window_bounds = array<i64: 1, 32>}, {pipeline_mode = #tpu.pipeline_mode<synchronous>, transform_indices = @transform_12, window_bounds = array<i64: 1, 32>}, {transform_indices = @transform_13, window_bounds = array<i64: 1, 16, 32>}]} {
    %0 = arith.index_cast %arg0 : i32 to index
    %1 = memref.load %arg1[%0] : memref<2xi32, #tpu.memory_space<smem>>
    %c0 = arith.constant 0 : index
    %c0_0 = arith.constant 0 : index
    %c0_1 = arith.constant 0 : index
    %2 = vector.load %arg2[%c0, %c0_0, %c0_1] : memref<1x16x32xf32, #tpu.memory_space<vmem>>, vector<1x16x32xf32>
    %3 = vector.shape_cast %2 : vector<1x16x32xf32> to vector<16x32xf32>
    %4 = tpu.iota {dimensions = array<i32: 0>} : vector<16x1xi32>
    %5 = vector.broadcast %1 : i32 to vector<16x1xi32>
    %6 = arith.cmpi slt, %4, %5 : vector<16x1xi32>
    %7 = arith.extui %6 : vector<16x1xi1> to vector<16x1xi32>
    %8 = arith.sitofp %7 : vector<16x1xi32> to vector<16x1xf32>
    %9 = vector.broadcast %8 : vector<16x1xf32> to vector<16x32xf32>
    %10 = arith.mulf %3, %9 : vector<16x32xf32>
    %11 = arith.truncf %10 : vector<16x32xf32> to vector<16x32xbf16>
    %12 = tpu.iota {dimensions = array<i32: 0>} : vector<16x16xi32>
    %13 = tpu.iota {dimensions = array<i32: 1>} : vector<16x16xi32>
    %14 = vector.broadcast %1 : i32 to vector<16x16xi32>
    %15 = arith.cmpi slt, %12, %14 : vector<16x16xi32>
    %16 = vector.broadcast %1 : i32 to vector<16x16xi32>
    %17 = arith.cmpi slt, %13, %16 : vector<16x16xi32>
    %18 = arith.andi %15, %17 : vector<16x16xi1>
    %19 = arith.subi %13, %12 : vector<16x16xi32>
    %c-4_i32 = arith.constant -4 : i32
    %20 = vector.broadcast %c-4_i32 : i32 to vector<16x16xi32>
    %21 = arith.cmpi eq, %19, %20 : vector<16x16xi32>
    %22 = arith.extui %21 : vector<16x16xi1> to vector<16x16xi32>
    %23 = arith.sitofp %22 : vector<16x16xi32> to vector<16x16xf32>
    %c-3_i32 = arith.constant -3 : i32
    %24 = vector.broadcast %c-3_i32 : i32 to vector<16x16xi32>
    %25 = arith.cmpi eq, %19, %24 : vector<16x16xi32>
    %26 = arith.extui %25 : vector<16x16xi1> to vector<16x16xi32>
    %27 = arith.sitofp %26 : vector<16x16xi32> to vector<16x16xf32>
    %c-2_i32 = arith.constant -2 : i32
    %28 = vector.broadcast %c-2_i32 : i32 to vector<16x16xi32>
    %29 = arith.cmpi eq, %19, %28 : vector<16x16xi32>
    %30 = arith.extui %29 : vector<16x16xi1> to vector<16x16xi32>
    %31 = arith.sitofp %30 : vector<16x16xi32> to vector<16x16xf32>
    %c-1_i32 = arith.constant -1 : i32
    %32 = vector.broadcast %c-1_i32 : i32 to vector<16x16xi32>
    %33 = arith.cmpi eq, %19, %32 : vector<16x16xi32>
    %34 = arith.extui %33 : vector<16x16xi1> to vector<16x16xi32>
    %35 = arith.sitofp %34 : vector<16x16xi32> to vector<16x16xf32>
    %c0_i32 = arith.constant 0 : i32
    %36 = vector.broadcast %c0_i32 : i32 to vector<16x16xi32>
    %37 = arith.cmpi eq, %19, %36 : vector<16x16xi32>
    %38 = arith.extui %37 : vector<16x16xi1> to vector<16x16xi32>
    %39 = arith.sitofp %38 : vector<16x16xi32> to vector<16x16xf32>
    %c1_i32 = arith.constant 1 : i32
    %40 = vector.broadcast %c1_i32 : i32 to vector<16x16xi32>
    %41 = arith.cmpi eq, %19, %40 : vector<16x16xi32>
    %42 = arith.extui %41 : vector<16x16xi1> to vector<16x16xi32>
    %43 = arith.sitofp %42 : vector<16x16xi32> to vector<16x16xf32>
    %c2_i32 = arith.constant 2 : i32
    %44 = vector.broadcast %c2_i32 : i32 to vector<16x16xi32>
    %45 = arith.cmpi eq, %19, %44 : vector<16x16xi32>
    %46 = arith.extui %45 : vector<16x16xi1> to vector<16x16xi32>
    %47 = arith.sitofp %46 : vector<16x16xi32> to vector<16x16xf32>
    %c3_i32 = arith.constant 3 : i32
    %48 = vector.broadcast %c3_i32 : i32 to vector<16x16xi32>
    %49 = arith.cmpi eq, %19, %48 : vector<16x16xi32>
    %50 = arith.extui %49 : vector<16x16xi1> to vector<16x16xi32>
    %51 = arith.sitofp %50 : vector<16x16xi32> to vector<16x16xf32>
    %c4_i32 = arith.constant 4 : i32
    %52 = vector.broadcast %c4_i32 : i32 to vector<16x16xi32>
    %53 = arith.cmpi eq, %19, %52 : vector<16x16xi32>
    %54 = arith.extui %53 : vector<16x16xi1> to vector<16x16xi32>
    %55 = arith.sitofp %54 : vector<16x16xi32> to vector<16x16xf32>
    %c0_2 = arith.constant 0 : index
    %c0_3 = arith.constant 0 : index
    %56 = vector.load %arg11[%c0_2, %c0_3] : memref<9x16xf32, #tpu.memory_space<vmem>>, vector<9x16xf32>
    %57 = arith.truncf %56 : vector<9x16xf32> to vector<9x16xbf16>
    %c0_4 = arith.constant 0 : index
    %c0_5 = arith.constant 0 : index
    %58 = vector.load %arg12[%c0_4, %c0_5] : memref<9x16xf32, #tpu.memory_space<vmem>>, vector<9x16xf32>
    %cst = arith.constant 0.000000e+00 : f32
    %59 = vector.broadcast %cst : f32 to vector<16x32xf32>
    %c0_6 = arith.constant 0 : index
    %c0_7 = arith.constant 0 : index
    %c0_8 = arith.constant 0 : index
    %60 = vector.load %arg3[%c0_6, %c0_7, %c0_8] : memref<2x32x16xbf16, #tpu.memory_space<vmem>>, vector<1x32x16xbf16>
    %61 = vector.shape_cast %60 : vector<1x32x16xbf16> to vector<32x16xbf16>
    %cst_9 = arith.constant dense<0.000000e+00> : vector<16x16xf32>
    %62 = tpu.matmul %11, %61, %cst_9 {dimension_numbers = #tpu.dot_dimension_numbers<[1], [0], [0], [1], [0, 0, 1, 1], [], []>} : vector<16x32xbf16>, vector<32x16xbf16>, vector<16x16xf32> -> vector<16x16xf32>
    %c0_10 = arith.constant 0 : index
    %c0_11 = arith.constant 0 : index
    %c0_12 = arith.constant 0 : index
    %63 = vector.load %arg7[%c0_10, %c0_11, %c0_12] : memref<2x1x16xf32, #tpu.memory_space<vmem>>, vector<1x1x16xf32>
    %64 = vector.shape_cast %63 : vector<1x1x16xf32> to vector<1x16xf32>
    %65 = vector.broadcast %64 : vector<1x16xf32> to vector<16x16xf32>
    %66 = arith.addf %62, %65 : vector<16x16xf32>
    %c0_13 = arith.constant 0 : index
    %c0_14 = arith.constant 0 : index
    %c0_15 = arith.constant 0 : index
    %67 = vector.load %arg4[%c0_13, %c0_14, %c0_15] : memref<2x32x16xbf16, #tpu.memory_space<vmem>>, vector<1x32x16xbf16>
    %68 = vector.shape_cast %67 : vector<1x32x16xbf16> to vector<32x16xbf16>
    %cst_16 = arith.constant dense<0.000000e+00> : vector<16x16xf32>
    %69 = tpu.matmul %11, %68, %cst_16 {dimension_numbers = #tpu.dot_dimension_numbers<[1], [0], [0], [1], [0, 0, 1, 1], [], []>} : vector<16x32xbf16>, vector<32x16xbf16>, vector<16x16xf32> -> vector<16x16xf32>
    %c0_17 = arith.constant 0 : index
    %c0_18 = arith.constant 0 : index
    %c0_19 = arith.constant 0 : index
    %70 = vector.load %arg8[%c0_17, %c0_18, %c0_19] : memref<2x1x16xf32, #tpu.memory_space<vmem>>, vector<1x1x16xf32>
    %71 = vector.shape_cast %70 : vector<1x1x16xf32> to vector<1x16xf32>
    %72 = vector.broadcast %71 : vector<1x16xf32> to vector<16x16xf32>
    %73 = arith.addf %69, %72 : vector<16x16xf32>
    %c0_20 = arith.constant 0 : index
    %c0_21 = arith.constant 0 : index
    %c0_22 = arith.constant 0 : index
    %74 = vector.load %arg5[%c0_20, %c0_21, %c0_22] : memref<2x32x16xbf16, #tpu.memory_space<vmem>>, vector<1x32x16xbf16>
    %75 = vector.shape_cast %74 : vector<1x32x16xbf16> to vector<32x16xbf16>
    %cst_23 = arith.constant dense<0.000000e+00> : vector<16x16xf32>
    %76 = tpu.matmul %11, %75, %cst_23 {dimension_numbers = #tpu.dot_dimension_numbers<[1], [0], [0], [1], [0, 0, 1, 1], [], []>} : vector<16x32xbf16>, vector<32x16xbf16>, vector<16x16xf32> -> vector<16x16xf32>
    %c0_24 = arith.constant 0 : index
    %c0_25 = arith.constant 0 : index
    %c0_26 = arith.constant 0 : index
    %77 = vector.load %arg9[%c0_24, %c0_25, %c0_26] : memref<2x1x16xf32, #tpu.memory_space<vmem>>, vector<1x1x16xf32>
    %78 = vector.shape_cast %77 : vector<1x1x16xf32> to vector<1x16xf32>
    %79 = vector.broadcast %78 : vector<1x16xf32> to vector<16x16xf32>
    %80 = arith.addf %76, %79 : vector<16x16xf32>
    %cst_27 = arith.constant 2.500000e-01 : f32
    %81 = vector.broadcast %cst_27 : f32 to vector<16x16xf32>
    %82 = arith.mulf %66, %81 : vector<16x16xf32>
    %83 = arith.truncf %82 : vector<16x16xf32> to vector<16x16xbf16>
    %84 = arith.truncf %73 : vector<16x16xf32> to vector<16x16xbf16>
    %cst_28 = arith.constant dense<0.000000e+00> : vector<16x16xf32>
    %85 = tpu.matmul %83, %84, %cst_28 {dimension_numbers = #tpu.dot_dimension_numbers<[1], [1], [0], [0], [0, 0, 1, 0], [], []>} : vector<16x16xbf16>, vector<16x16xbf16>, vector<16x16xf32> -> vector<16x16xf32>
    %cst_29 = arith.constant dense<0.000000e+00> : vector<16x9xf32>
    %86 = tpu.matmul %83, %57, %cst_29 {dimension_numbers = #tpu.dot_dimension_numbers<[1], [1], [0], [0], [0, 0, 1, 0], [], []>} : vector<16x16xbf16>, vector<9x16xbf16>, vector<16x9xf32> -> vector<16x9xf32>
    %87 = vector.extract_strided_slice %86 {offsets = [0, 0], sizes = [16, 1], strides = [1, 1]} : vector<16x9xf32> to vector<16x1xf32>
    %88 = vector.broadcast %87 : vector<16x1xf32> to vector<16x16xf32>
    %89 = arith.mulf %88, %23 : vector<16x16xf32>
    %90 = arith.addf %85, %89 : vector<16x16xf32>
    %91 = vector.extract_strided_slice %86 {offsets = [0, 1], sizes = [16, 1], strides = [1, 1]} : vector<16x9xf32> to vector<16x1xf32>
    %92 = vector.broadcast %91 : vector<16x1xf32> to vector<16x16xf32>
    %93 = arith.mulf %92, %27 : vector<16x16xf32>
    %94 = arith.addf %90, %93 : vector<16x16xf32>
    %95 = vector.extract_strided_slice %86 {offsets = [0, 2], sizes = [16, 1], strides = [1, 1]} : vector<16x9xf32> to vector<16x1xf32>
    %96 = vector.broadcast %95 : vector<16x1xf32> to vector<16x16xf32>
    %97 = arith.mulf %96, %31 : vector<16x16xf32>
    %98 = arith.addf %94, %97 : vector<16x16xf32>
    %99 = vector.extract_strided_slice %86 {offsets = [0, 3], sizes = [16, 1], strides = [1, 1]} : vector<16x9xf32> to vector<16x1xf32>
    %100 = vector.broadcast %99 : vector<16x1xf32> to vector<16x16xf32>
    %101 = arith.mulf %100, %35 : vector<16x16xf32>
    %102 = arith.addf %98, %101 : vector<16x16xf32>
    %103 = vector.extract_strided_slice %86 {offsets = [0, 4], sizes = [16, 1], strides = [1, 1]} : vector<16x9xf32> to vector<16x1xf32>
    %104 = vector.broadcast %103 : vector<16x1xf32> to vector<16x16xf32>
    %105 = arith.mulf %104, %39 : vector<16x16xf32>
    %106 = arith.addf %102, %105 : vector<16x16xf32>
    %107 = vector.extract_strided_slice %86 {offsets = [0, 5], sizes = [16, 1], strides = [1, 1]} : vector<16x9xf32> to vector<16x1xf32>
    %108 = vector.broadcast %107 : vector<16x1xf32> to vector<16x16xf32>
    %109 = arith.mulf %108, %43 : vector<16x16xf32>
    %110 = arith.addf %106, %109 : vector<16x16xf32>
    %111 = vector.extract_strided_slice %86 {offsets = [0, 6], sizes = [16, 1], strides = [1, 1]} : vector<16x9xf32> to vector<16x1xf32>
    %112 = vector.broadcast %111 : vector<16x1xf32> to vector<16x16xf32>
    %113 = arith.mulf %112, %47 : vector<16x16xf32>
    %114 = arith.addf %110, %113 : vector<16x16xf32>
    %115 = vector.extract_strided_slice %86 {offsets = [0, 7], sizes = [16, 1], strides = [1, 1]} : vector<16x9xf32> to vector<16x1xf32>
    %116 = vector.broadcast %115 : vector<16x1xf32> to vector<16x16xf32>
    %117 = arith.mulf %116, %51 : vector<16x16xf32>
    %118 = arith.addf %114, %117 : vector<16x16xf32>
    %119 = vector.extract_strided_slice %86 {offsets = [0, 8], sizes = [16, 1], strides = [1, 1]} : vector<16x9xf32> to vector<16x1xf32>
    %120 = vector.broadcast %119 : vector<16x1xf32> to vector<16x16xf32>
    %121 = arith.mulf %120, %55 : vector<16x16xf32>
    %122 = arith.addf %118, %121 : vector<16x16xf32>
    %cst_30 = arith.constant -1.000000e+04 : f32
    %123 = vector.broadcast %cst_30 : f32 to vector<16x16xf32>
    %124 = arith.select %18, %122, %123 : vector<16x16xi1>, vector<16x16xf32>
    %cst_31 = arith.constant dense<0xFF800000> : vector<16xf32>
    %125 = vector.multi_reduction <maximumf>, %124, %cst_31 [1] : vector<16x16xf32> to vector<16xf32>
    %126 = vector.shape_cast %125 : vector<16xf32> to vector<16x1xf32>
    %127 = vector.broadcast %126 : vector<16x1xf32> to vector<16x16xf32>
    %128 = arith.subf %124, %127 : vector<16x16xf32>
    %129 = math.exp %128 : vector<16x16xf32>
    %cst_32 = arith.constant dense<0.000000e+00> : vector<16xf32>
    %130 = vector.multi_reduction <add>, %129, %cst_32 [1] : vector<16x16xf32> to vector<16xf32>
    %131 = vector.shape_cast %130 : vector<16xf32> to vector<16x1xf32>
    %132 = tpu.reciprocal %131 {approx = true} : vector<16x1xf32> -> vector<16x1xf32>
    %133 = vector.broadcast %132 : vector<16x1xf32> to vector<16x16xf32>
    %134 = arith.mulf %129, %133 : vector<16x16xf32>
    %135 = arith.truncf %134 : vector<16x16xf32> to vector<16x16xbf16>
    %136 = arith.truncf %80 : vector<16x16xf32> to vector<16x16xbf16>
    %cst_33 = arith.constant dense<0.000000e+00> : vector<16x16xf32>
    %137 = tpu.matmul %135, %136, %cst_33 {dimension_numbers = #tpu.dot_dimension_numbers<[1], [0], [0], [1], [0, 0, 1, 1], [], []>} : vector<16x16xbf16>, vector<16x16xbf16>, vector<16x16xf32> -> vector<16x16xf32>
    %138 = arith.mulf %134, %23 : vector<16x16xf32>
    %cst_34 = arith.constant dense<0.000000e+00> : vector<16xf32>
    %139 = vector.multi_reduction <add>, %138, %cst_34 [1] : vector<16x16xf32> to vector<16xf32>
    %140 = vector.shape_cast %139 : vector<16xf32> to vector<16x1xf32>
    %141 = vector.extract_strided_slice %58 {offsets = [0, 0], sizes = [1, 16], strides = [1, 1]} : vector<9x16xf32> to vector<1x16xf32>
    %142 = vector.broadcast %140 : vector<16x1xf32> to vector<16x16xf32>
    %143 = vector.broadcast %141 : vector<1x16xf32> to vector<16x16xf32>
    %144 = arith.mulf %142, %143 : vector<16x16xf32>
    %145 = arith.addf %137, %144 : vector<16x16xf32>
    %146 = arith.mulf %134, %27 : vector<16x16xf32>
    %cst_35 = arith.constant dense<0.000000e+00> : vector<16xf32>
    %147 = vector.multi_reduction <add>, %146, %cst_35 [1] : vector<16x16xf32> to vector<16xf32>
    %148 = vector.shape_cast %147 : vector<16xf32> to vector<16x1xf32>
    %149 = vector.extract_strided_slice %58 {offsets = [1, 0], sizes = [1, 16], strides = [1, 1]} : vector<9x16xf32> to vector<1x16xf32>
    %150 = vector.broadcast %148 : vector<16x1xf32> to vector<16x16xf32>
    %151 = vector.broadcast %149 : vector<1x16xf32> to vector<16x16xf32>
    %152 = arith.mulf %150, %151 : vector<16x16xf32>
    %153 = arith.addf %145, %152 : vector<16x16xf32>
    %154 = arith.mulf %134, %31 : vector<16x16xf32>
    %cst_36 = arith.constant dense<0.000000e+00> : vector<16xf32>
    %155 = vector.multi_reduction <add>, %154, %cst_36 [1] : vector<16x16xf32> to vector<16xf32>
    %156 = vector.shape_cast %155 : vector<16xf32> to vector<16x1xf32>
    %157 = vector.extract_strided_slice %58 {offsets = [2, 0], sizes = [1, 16], strides = [1, 1]} : vector<9x16xf32> to vector<1x16xf32>
    %158 = vector.broadcast %156 : vector<16x1xf32> to vector<16x16xf32>
    %159 = vector.broadcast %157 : vector<1x16xf32> to vector<16x16xf32>
    %160 = arith.mulf %158, %159 : vector<16x16xf32>
    %161 = arith.addf %153, %160 : vector<16x16xf32>
    %162 = arith.mulf %134, %35 : vector<16x16xf32>
    %cst_37 = arith.constant dense<0.000000e+00> : vector<16xf32>
    %163 = vector.multi_reduction <add>, %162, %cst_37 [1] : vector<16x16xf32> to vector<16xf32>
    %164 = vector.shape_cast %163 : vector<16xf32> to vector<16x1xf32>
    %165 = vector.extract_strided_slice %58 {offsets = [3, 0], sizes = [1, 16], strides = [1, 1]} : vector<9x16xf32> to vector<1x16xf32>
    %166 = vector.broadcast %164 : vector<16x1xf32> to vector<16x16xf32>
    %167 = vector.broadcast %165 : vector<1x16xf32> to vector<16x16xf32>
    %168 = arith.mulf %166, %167 : vector<16x16xf32>
    %169 = arith.addf %161, %168 : vector<16x16xf32>
    %170 = arith.mulf %134, %39 : vector<16x16xf32>
    %cst_38 = arith.constant dense<0.000000e+00> : vector<16xf32>
    %171 = vector.multi_reduction <add>, %170, %cst_38 [1] : vector<16x16xf32> to vector<16xf32>
    %172 = vector.shape_cast %171 : vector<16xf32> to vector<16x1xf32>
    %173 = vector.extract_strided_slice %58 {offsets = [4, 0], sizes = [1, 16], strides = [1, 1]} : vector<9x16xf32> to vector<1x16xf32>
    %174 = vector.broadcast %172 : vector<16x1xf32> to vector<16x16xf32>
    %175 = vector.broadcast %173 : vector<1x16xf32> to vector<16x16xf32>
    %176 = arith.mulf %174, %175 : vector<16x16xf32>
    %177 = arith.addf %169, %176 : vector<16x16xf32>
    %178 = arith.mulf %134, %43 : vector<16x16xf32>
    %cst_39 = arith.constant dense<0.000000e+00> : vector<16xf32>
    %179 = vector.multi_reduction <add>, %178, %cst_39 [1] : vector<16x16xf32> to vector<16xf32>
    %180 = vector.shape_cast %179 : vector<16xf32> to vector<16x1xf32>
    %181 = vector.extract_strided_slice %58 {offsets = [5, 0], sizes = [1, 16], strides = [1, 1]} : vector<9x16xf32> to vector<1x16xf32>
    %182 = vector.broadcast %180 : vector<16x1xf32> to vector<16x16xf32>
    %183 = vector.broadcast %181 : vector<1x16xf32> to vector<16x16xf32>
    %184 = arith.mulf %182, %183 : vector<16x16xf32>
    %185 = arith.addf %177, %184 : vector<16x16xf32>
    %186 = arith.mulf %134, %47 : vector<16x16xf32>
    %cst_40 = arith.constant dense<0.000000e+00> : vector<16xf32>
    %187 = vector.multi_reduction <add>, %186, %cst_40 [1] : vector<16x16xf32> to vector<16xf32>
    %188 = vector.shape_cast %187 : vector<16xf32> to vector<16x1xf32>
    %189 = vector.extract_strided_slice %58 {offsets = [6, 0], sizes = [1, 16], strides = [1, 1]} : vector<9x16xf32> to vector<1x16xf32>
    %190 = vector.broadcast %188 : vector<16x1xf32> to vector<16x16xf32>
    %191 = vector.broadcast %189 : vector<1x16xf32> to vector<16x16xf32>
    %192 = arith.mulf %190, %191 : vector<16x16xf32>
    %193 = arith.addf %185, %192 : vector<16x16xf32>
    %194 = arith.mulf %134, %51 : vector<16x16xf32>
    %cst_41 = arith.constant dense<0.000000e+00> : vector<16xf32>
    %195 = vector.multi_reduction <add>, %194, %cst_41 [1] : vector<16x16xf32> to vector<16xf32>
    %196 = vector.shape_cast %195 : vector<16xf32> to vector<16x1xf32>
    %197 = vector.extract_strided_slice %58 {offsets = [7, 0], sizes = [1, 16], strides = [1, 1]} : vector<9x16xf32> to vector<1x16xf32>
    %198 = vector.broadcast %196 : vector<16x1xf32> to vector<16x16xf32>
    %199 = vector.broadcast %197 : vector<1x16xf32> to vector<16x16xf32>
    %200 = arith.mulf %198, %199 : vector<16x16xf32>
    %201 = arith.addf %193, %200 : vector<16x16xf32>
    %202 = arith.mulf %134, %55 : vector<16x16xf32>
    %cst_42 = arith.constant dense<0.000000e+00> : vector<16xf32>
    %203 = vector.multi_reduction <add>, %202, %cst_42 [1] : vector<16x16xf32> to vector<16xf32>
    %204 = vector.shape_cast %203 : vector<16xf32> to vector<16x1xf32>
    %205 = vector.extract_strided_slice %58 {offsets = [8, 0], sizes = [1, 16], strides = [1, 1]} : vector<9x16xf32> to vector<1x16xf32>
    %206 = vector.broadcast %204 : vector<16x1xf32> to vector<16x16xf32>
    %207 = vector.broadcast %205 : vector<1x16xf32> to vector<16x16xf32>
    %208 = arith.mulf %206, %207 : vector<16x16xf32>
    %209 = arith.addf %201, %208 : vector<16x16xf32>
    %210 = arith.truncf %209 : vector<16x16xf32> to vector<16x16xbf16>
    %c0_43 = arith.constant 0 : index
    %c0_44 = arith.constant 0 : index
    %c0_45 = arith.constant 0 : index
    %211 = vector.load %arg6[%c0_43, %c0_44, %c0_45] : memref<2x16x32xbf16, #tpu.memory_space<vmem>>, vector<1x16x32xbf16>
    %212 = vector.shape_cast %211 : vector<1x16x32xbf16> to vector<16x32xbf16>
    %cst_46 = arith.constant dense<0.000000e+00> : vector<16x32xf32>
    %213 = tpu.matmul %210, %212, %cst_46 {dimension_numbers = #tpu.dot_dimension_numbers<[1], [0], [0], [1], [0, 0, 1, 1], [], []>} : vector<16x16xbf16>, vector<16x32xbf16>, vector<16x32xf32> -> vector<16x32xf32>
    %214 = arith.addf %59, %213 : vector<16x32xf32>
    %c1 = arith.constant 1 : index
    %c0_47 = arith.constant 0 : index
    %c0_48 = arith.constant 0 : index
    %215 = vector.load %arg3[%c1, %c0_47, %c0_48] : memref<2x32x16xbf16, #tpu.memory_space<vmem>>, vector<1x32x16xbf16>
    %216 = vector.shape_cast %215 : vector<1x32x16xbf16> to vector<32x16xbf16>
    %cst_49 = arith.constant dense<0.000000e+00> : vector<16x16xf32>
    %217 = tpu.matmul %11, %216, %cst_49 {dimension_numbers = #tpu.dot_dimension_numbers<[1], [0], [0], [1], [0, 0, 1, 1], [], []>} : vector<16x32xbf16>, vector<32x16xbf16>, vector<16x16xf32> -> vector<16x16xf32>
    %c1_50 = arith.constant 1 : index
    %c0_51 = arith.constant 0 : index
    %c0_52 = arith.constant 0 : index
    %218 = vector.load %arg7[%c1_50, %c0_51, %c0_52] : memref<2x1x16xf32, #tpu.memory_space<vmem>>, vector<1x1x16xf32>
    %219 = vector.shape_cast %218 : vector<1x1x16xf32> to vector<1x16xf32>
    %220 = vector.broadcast %219 : vector<1x16xf32> to vector<16x16xf32>
    %221 = arith.addf %217, %220 : vector<16x16xf32>
    %c1_53 = arith.constant 1 : index
    %c0_54 = arith.constant 0 : index
    %c0_55 = arith.constant 0 : index
    %222 = vector.load %arg4[%c1_53, %c0_54, %c0_55] : memref<2x32x16xbf16, #tpu.memory_space<vmem>>, vector<1x32x16xbf16>
    %223 = vector.shape_cast %222 : vector<1x32x16xbf16> to vector<32x16xbf16>
    %cst_56 = arith.constant dense<0.000000e+00> : vector<16x16xf32>
    %224 = tpu.matmul %11, %223, %cst_56 {dimension_numbers = #tpu.dot_dimension_numbers<[1], [0], [0], [1], [0, 0, 1, 1], [], []>} : vector<16x32xbf16>, vector<32x16xbf16>, vector<16x16xf32> -> vector<16x16xf32>
    %c1_57 = arith.constant 1 : index
    %c0_58 = arith.constant 0 : index
    %c0_59 = arith.constant 0 : index
    %225 = vector.load %arg8[%c1_57, %c0_58, %c0_59] : memref<2x1x16xf32, #tpu.memory_space<vmem>>, vector<1x1x16xf32>
    %226 = vector.shape_cast %225 : vector<1x1x16xf32> to vector<1x16xf32>
    %227 = vector.broadcast %226 : vector<1x16xf32> to vector<16x16xf32>
    %228 = arith.addf %224, %227 : vector<16x16xf32>
    %c1_60 = arith.constant 1 : index
    %c0_61 = arith.constant 0 : index
    %c0_62 = arith.constant 0 : index
    %229 = vector.load %arg5[%c1_60, %c0_61, %c0_62] : memref<2x32x16xbf16, #tpu.memory_space<vmem>>, vector<1x32x16xbf16>
    %230 = vector.shape_cast %229 : vector<1x32x16xbf16> to vector<32x16xbf16>
    %cst_63 = arith.constant dense<0.000000e+00> : vector<16x16xf32>
    %231 = tpu.matmul %11, %230, %cst_63 {dimension_numbers = #tpu.dot_dimension_numbers<[1], [0], [0], [1], [0, 0, 1, 1], [], []>} : vector<16x32xbf16>, vector<32x16xbf16>, vector<16x16xf32> -> vector<16x16xf32>
    %c1_64 = arith.constant 1 : index
    %c0_65 = arith.constant 0 : index
    %c0_66 = arith.constant 0 : index
    %232 = vector.load %arg9[%c1_64, %c0_65, %c0_66] : memref<2x1x16xf32, #tpu.memory_space<vmem>>, vector<1x1x16xf32>
    %233 = vector.shape_cast %232 : vector<1x1x16xf32> to vector<1x16xf32>
    %234 = vector.broadcast %233 : vector<1x16xf32> to vector<16x16xf32>
    %235 = arith.addf %231, %234 : vector<16x16xf32>
    %cst_67 = arith.constant 2.500000e-01 : f32
    %236 = vector.broadcast %cst_67 : f32 to vector<16x16xf32>
    %237 = arith.mulf %221, %236 : vector<16x16xf32>
    %238 = arith.truncf %237 : vector<16x16xf32> to vector<16x16xbf16>
    %239 = arith.truncf %228 : vector<16x16xf32> to vector<16x16xbf16>
    %cst_68 = arith.constant dense<0.000000e+00> : vector<16x16xf32>
    %240 = tpu.matmul %238, %239, %cst_68 {dimension_numbers = #tpu.dot_dimension_numbers<[1], [1], [0], [0], [0, 0, 1, 0], [], []>} : vector<16x16xbf16>, vector<16x16xbf16>, vector<16x16xf32> -> vector<16x16xf32>
    %cst_69 = arith.constant dense<0.000000e+00> : vector<16x9xf32>
    %241 = tpu.matmul %238, %57, %cst_69 {dimension_numbers = #tpu.dot_dimension_numbers<[1], [1], [0], [0], [0, 0, 1, 0], [], []>} : vector<16x16xbf16>, vector<9x16xbf16>, vector<16x9xf32> -> vector<16x9xf32>
    %242 = vector.extract_strided_slice %241 {offsets = [0, 0], sizes = [16, 1], strides = [1, 1]} : vector<16x9xf32> to vector<16x1xf32>
    %243 = vector.broadcast %242 : vector<16x1xf32> to vector<16x16xf32>
    %244 = arith.mulf %243, %23 : vector<16x16xf32>
    %245 = arith.addf %240, %244 : vector<16x16xf32>
    %246 = vector.extract_strided_slice %241 {offsets = [0, 1], sizes = [16, 1], strides = [1, 1]} : vector<16x9xf32> to vector<16x1xf32>
    %247 = vector.broadcast %246 : vector<16x1xf32> to vector<16x16xf32>
    %248 = arith.mulf %247, %27 : vector<16x16xf32>
    %249 = arith.addf %245, %248 : vector<16x16xf32>
    %250 = vector.extract_strided_slice %241 {offsets = [0, 2], sizes = [16, 1], strides = [1, 1]} : vector<16x9xf32> to vector<16x1xf32>
    %251 = vector.broadcast %250 : vector<16x1xf32> to vector<16x16xf32>
    %252 = arith.mulf %251, %31 : vector<16x16xf32>
    %253 = arith.addf %249, %252 : vector<16x16xf32>
    %254 = vector.extract_strided_slice %241 {offsets = [0, 3], sizes = [16, 1], strides = [1, 1]} : vector<16x9xf32> to vector<16x1xf32>
    %255 = vector.broadcast %254 : vector<16x1xf32> to vector<16x16xf32>
    %256 = arith.mulf %255, %35 : vector<16x16xf32>
    %257 = arith.addf %253, %256 : vector<16x16xf32>
    %258 = vector.extract_strided_slice %241 {offsets = [0, 4], sizes = [16, 1], strides = [1, 1]} : vector<16x9xf32> to vector<16x1xf32>
    %259 = vector.broadcast %258 : vector<16x1xf32> to vector<16x16xf32>
    %260 = arith.mulf %259, %39 : vector<16x16xf32>
    %261 = arith.addf %257, %260 : vector<16x16xf32>
    %262 = vector.extract_strided_slice %241 {offsets = [0, 5], sizes = [16, 1], strides = [1, 1]} : vector<16x9xf32> to vector<16x1xf32>
    %263 = vector.broadcast %262 : vector<16x1xf32> to vector<16x16xf32>
    %264 = arith.mulf %263, %43 : vector<16x16xf32>
    %265 = arith.addf %261, %264 : vector<16x16xf32>
    %266 = vector.extract_strided_slice %241 {offsets = [0, 6], sizes = [16, 1], strides = [1, 1]} : vector<16x9xf32> to vector<16x1xf32>
    %267 = vector.broadcast %266 : vector<16x1xf32> to vector<16x16xf32>
    %268 = arith.mulf %267, %47 : vector<16x16xf32>
    %269 = arith.addf %265, %268 : vector<16x16xf32>
    %270 = vector.extract_strided_slice %241 {offsets = [0, 7], sizes = [16, 1], strides = [1, 1]} : vector<16x9xf32> to vector<16x1xf32>
    %271 = vector.broadcast %270 : vector<16x1xf32> to vector<16x16xf32>
    %272 = arith.mulf %271, %51 : vector<16x16xf32>
    %273 = arith.addf %269, %272 : vector<16x16xf32>
    %274 = vector.extract_strided_slice %241 {offsets = [0, 8], sizes = [16, 1], strides = [1, 1]} : vector<16x9xf32> to vector<16x1xf32>
    %275 = vector.broadcast %274 : vector<16x1xf32> to vector<16x16xf32>
    %276 = arith.mulf %275, %55 : vector<16x16xf32>
    %277 = arith.addf %273, %276 : vector<16x16xf32>
    %cst_70 = arith.constant -1.000000e+04 : f32
    %278 = vector.broadcast %cst_70 : f32 to vector<16x16xf32>
    %279 = arith.select %18, %277, %278 : vector<16x16xi1>, vector<16x16xf32>
    %cst_71 = arith.constant dense<0xFF800000> : vector<16xf32>
    %280 = vector.multi_reduction <maximumf>, %279, %cst_71 [1] : vector<16x16xf32> to vector<16xf32>
    %281 = vector.shape_cast %280 : vector<16xf32> to vector<16x1xf32>
    %282 = vector.broadcast %281 : vector<16x1xf32> to vector<16x16xf32>
    %283 = arith.subf %279, %282 : vector<16x16xf32>
    %284 = math.exp %283 : vector<16x16xf32>
    %cst_72 = arith.constant dense<0.000000e+00> : vector<16xf32>
    %285 = vector.multi_reduction <add>, %284, %cst_72 [1] : vector<16x16xf32> to vector<16xf32>
    %286 = vector.shape_cast %285 : vector<16xf32> to vector<16x1xf32>
    %287 = tpu.reciprocal %286 {approx = true} : vector<16x1xf32> -> vector<16x1xf32>
    %288 = vector.broadcast %287 : vector<16x1xf32> to vector<16x16xf32>
    %289 = arith.mulf %284, %288 : vector<16x16xf32>
    %290 = arith.truncf %289 : vector<16x16xf32> to vector<16x16xbf16>
    %291 = arith.truncf %235 : vector<16x16xf32> to vector<16x16xbf16>
    %cst_73 = arith.constant dense<0.000000e+00> : vector<16x16xf32>
    %292 = tpu.matmul %290, %291, %cst_73 {dimension_numbers = #tpu.dot_dimension_numbers<[1], [0], [0], [1], [0, 0, 1, 1], [], []>} : vector<16x16xbf16>, vector<16x16xbf16>, vector<16x16xf32> -> vector<16x16xf32>
    %293 = arith.mulf %289, %23 : vector<16x16xf32>
    %cst_74 = arith.constant dense<0.000000e+00> : vector<16xf32>
    %294 = vector.multi_reduction <add>, %293, %cst_74 [1] : vector<16x16xf32> to vector<16xf32>
    %295 = vector.shape_cast %294 : vector<16xf32> to vector<16x1xf32>
    %296 = vector.extract_strided_slice %58 {offsets = [0, 0], sizes = [1, 16], strides = [1, 1]} : vector<9x16xf32> to vector<1x16xf32>
    %297 = vector.broadcast %295 : vector<16x1xf32> to vector<16x16xf32>
    %298 = vector.broadcast %296 : vector<1x16xf32> to vector<16x16xf32>
    %299 = arith.mulf %297, %298 : vector<16x16xf32>
    %300 = arith.addf %292, %299 : vector<16x16xf32>
    %301 = arith.mulf %289, %27 : vector<16x16xf32>
    %cst_75 = arith.constant dense<0.000000e+00> : vector<16xf32>
    %302 = vector.multi_reduction <add>, %301, %cst_75 [1] : vector<16x16xf32> to vector<16xf32>
    %303 = vector.shape_cast %302 : vector<16xf32> to vector<16x1xf32>
    %304 = vector.extract_strided_slice %58 {offsets = [1, 0], sizes = [1, 16], strides = [1, 1]} : vector<9x16xf32> to vector<1x16xf32>
    %305 = vector.broadcast %303 : vector<16x1xf32> to vector<16x16xf32>
    %306 = vector.broadcast %304 : vector<1x16xf32> to vector<16x16xf32>
    %307 = arith.mulf %305, %306 : vector<16x16xf32>
    %308 = arith.addf %300, %307 : vector<16x16xf32>
    %309 = arith.mulf %289, %31 : vector<16x16xf32>
    %cst_76 = arith.constant dense<0.000000e+00> : vector<16xf32>
    %310 = vector.multi_reduction <add>, %309, %cst_76 [1] : vector<16x16xf32> to vector<16xf32>
    %311 = vector.shape_cast %310 : vector<16xf32> to vector<16x1xf32>
    %312 = vector.extract_strided_slice %58 {offsets = [2, 0], sizes = [1, 16], strides = [1, 1]} : vector<9x16xf32> to vector<1x16xf32>
    %313 = vector.broadcast %311 : vector<16x1xf32> to vector<16x16xf32>
    %314 = vector.broadcast %312 : vector<1x16xf32> to vector<16x16xf32>
    %315 = arith.mulf %313, %314 : vector<16x16xf32>
    %316 = arith.addf %308, %315 : vector<16x16xf32>
    %317 = arith.mulf %289, %35 : vector<16x16xf32>
    %cst_77 = arith.constant dense<0.000000e+00> : vector<16xf32>
    %318 = vector.multi_reduction <add>, %317, %cst_77 [1] : vector<16x16xf32> to vector<16xf32>
    %319 = vector.shape_cast %318 : vector<16xf32> to vector<16x1xf32>
    %320 = vector.extract_strided_slice %58 {offsets = [3, 0], sizes = [1, 16], strides = [1, 1]} : vector<9x16xf32> to vector<1x16xf32>
    %321 = vector.broadcast %319 : vector<16x1xf32> to vector<16x16xf32>
    %322 = vector.broadcast %320 : vector<1x16xf32> to vector<16x16xf32>
    %323 = arith.mulf %321, %322 : vector<16x16xf32>
    %324 = arith.addf %316, %323 : vector<16x16xf32>
    %325 = arith.mulf %289, %39 : vector<16x16xf32>
    %cst_78 = arith.constant dense<0.000000e+00> : vector<16xf32>
    %326 = vector.multi_reduction <add>, %325, %cst_78 [1] : vector<16x16xf32> to vector<16xf32>
    %327 = vector.shape_cast %326 : vector<16xf32> to vector<16x1xf32>
    %328 = vector.extract_strided_slice %58 {offsets = [4, 0], sizes = [1, 16], strides = [1, 1]} : vector<9x16xf32> to vector<1x16xf32>
    %329 = vector.broadcast %327 : vector<16x1xf32> to vector<16x16xf32>
    %330 = vector.broadcast %328 : vector<1x16xf32> to vector<16x16xf32>
    %331 = arith.mulf %329, %330 : vector<16x16xf32>
    %332 = arith.addf %324, %331 : vector<16x16xf32>
    %333 = arith.mulf %289, %43 : vector<16x16xf32>
    %cst_79 = arith.constant dense<0.000000e+00> : vector<16xf32>
    %334 = vector.multi_reduction <add>, %333, %cst_79 [1] : vector<16x16xf32> to vector<16xf32>
    %335 = vector.shape_cast %334 : vector<16xf32> to vector<16x1xf32>
    %336 = vector.extract_strided_slice %58 {offsets = [5, 0], sizes = [1, 16], strides = [1, 1]} : vector<9x16xf32> to vector<1x16xf32>
    %337 = vector.broadcast %335 : vector<16x1xf32> to vector<16x16xf32>
    %338 = vector.broadcast %336 : vector<1x16xf32> to vector<16x16xf32>
    %339 = arith.mulf %337, %338 : vector<16x16xf32>
    %340 = arith.addf %332, %339 : vector<16x16xf32>
    %341 = arith.mulf %289, %47 : vector<16x16xf32>
    %cst_80 = arith.constant dense<0.000000e+00> : vector<16xf32>
    %342 = vector.multi_reduction <add>, %341, %cst_80 [1] : vector<16x16xf32> to vector<16xf32>
    %343 = vector.shape_cast %342 : vector<16xf32> to vector<16x1xf32>
    %344 = vector.extract_strided_slice %58 {offsets = [6, 0], sizes = [1, 16], strides = [1, 1]} : vector<9x16xf32> to vector<1x16xf32>
    %345 = vector.broadcast %343 : vector<16x1xf32> to vector<16x16xf32>
    %346 = vector.broadcast %344 : vector<1x16xf32> to vector<16x16xf32>
    %347 = arith.mulf %345, %346 : vector<16x16xf32>
    %348 = arith.addf %340, %347 : vector<16x16xf32>
    %349 = arith.mulf %289, %51 : vector<16x16xf32>
    %cst_81 = arith.constant dense<0.000000e+00> : vector<16xf32>
    %350 = vector.multi_reduction <add>, %349, %cst_81 [1] : vector<16x16xf32> to vector<16xf32>
    %351 = vector.shape_cast %350 : vector<16xf32> to vector<16x1xf32>
    %352 = vector.extract_strided_slice %58 {offsets = [7, 0], sizes = [1, 16], strides = [1, 1]} : vector<9x16xf32> to vector<1x16xf32>
    %353 = vector.broadcast %351 : vector<16x1xf32> to vector<16x16xf32>
    %354 = vector.broadcast %352 : vector<1x16xf32> to vector<16x16xf32>
    %355 = arith.mulf %353, %354 : vector<16x16xf32>
    %356 = arith.addf %348, %355 : vector<16x16xf32>
    %357 = arith.mulf %289, %55 : vector<16x16xf32>
    %cst_82 = arith.constant dense<0.000000e+00> : vector<16xf32>
    %358 = vector.multi_reduction <add>, %357, %cst_82 [1] : vector<16x16xf32> to vector<16xf32>
    %359 = vector.shape_cast %358 : vector<16xf32> to vector<16x1xf32>
    %360 = vector.extract_strided_slice %58 {offsets = [8, 0], sizes = [1, 16], strides = [1, 1]} : vector<9x16xf32> to vector<1x16xf32>
    %361 = vector.broadcast %359 : vector<16x1xf32> to vector<16x16xf32>
    %362 = vector.broadcast %360 : vector<1x16xf32> to vector<16x16xf32>
    %363 = arith.mulf %361, %362 : vector<16x16xf32>
    %364 = arith.addf %356, %363 : vector<16x16xf32>
    %365 = arith.truncf %364 : vector<16x16xf32> to vector<16x16xbf16>
    %c1_83 = arith.constant 1 : index
    %c0_84 = arith.constant 0 : index
    %c0_85 = arith.constant 0 : index
    %366 = vector.load %arg6[%c1_83, %c0_84, %c0_85] : memref<2x16x32xbf16, #tpu.memory_space<vmem>>, vector<1x16x32xbf16>
    %367 = vector.shape_cast %366 : vector<1x16x32xbf16> to vector<16x32xbf16>
    %cst_86 = arith.constant dense<0.000000e+00> : vector<16x32xf32>
    %368 = tpu.matmul %365, %367, %cst_86 {dimension_numbers = #tpu.dot_dimension_numbers<[1], [0], [0], [1], [0, 0, 1, 1], [], []>} : vector<16x16xbf16>, vector<16x32xbf16>, vector<16x32xf32> -> vector<16x32xf32>
    %369 = arith.addf %214, %368 : vector<16x32xf32>
    %c0_87 = arith.constant 0 : index
    %c0_88 = arith.constant 0 : index
    %370 = vector.load %arg10[%c0_87, %c0_88] : memref<1x32xf32, #tpu.memory_space<vmem>>, vector<1x32xf32>
    %371 = vector.broadcast %370 : vector<1x32xf32> to vector<16x32xf32>
    %372 = arith.addf %369, %371 : vector<16x32xf32>
    %373 = arith.addf %10, %372 : vector<16x32xf32>
    %cst_89 = arith.constant dense<0.000000e+00> : vector<16xf32>
    %374 = vector.multi_reduction <add>, %373, %cst_89 [1] : vector<16x32xf32> to vector<16xf32>
    %375 = vector.shape_cast %374 : vector<16xf32> to vector<16x1xf32>
    %cst_90 = arith.constant 3.200000e+01 : f32
    %376 = vector.broadcast %cst_90 : f32 to vector<16x1xf32>
    %377 = arith.divf %375, %376 : vector<16x1xf32>
    %378 = vector.broadcast %377 : vector<16x1xf32> to vector<16x32xf32>
    %379 = arith.subf %373, %378 : vector<16x32xf32>
    %380 = arith.mulf %379, %379 : vector<16x32xf32>
    %cst_91 = arith.constant dense<0.000000e+00> : vector<16xf32>
    %381 = vector.multi_reduction <add>, %380, %cst_91 [1] : vector<16x32xf32> to vector<16xf32>
    %382 = vector.shape_cast %381 : vector<16xf32> to vector<16x1xf32>
    %cst_92 = arith.constant 3.200000e+01 : f32
    %383 = vector.broadcast %cst_92 : f32 to vector<16x1xf32>
    %384 = arith.divf %382, %383 : vector<16x1xf32>
    %385 = vector.broadcast %377 : vector<16x1xf32> to vector<16x32xf32>
    %386 = arith.subf %373, %385 : vector<16x32xf32>
    %cst_93 = arith.constant 9.99999974E-6 : f32
    %387 = vector.broadcast %cst_93 : f32 to vector<16x1xf32>
    %388 = arith.addf %384, %387 : vector<16x1xf32>
    %389 = math.rsqrt %388 : vector<16x1xf32>
    %390 = vector.broadcast %389 : vector<16x1xf32> to vector<16x32xf32>
    %391 = arith.mulf %386, %390 : vector<16x32xf32>
    %c0_94 = arith.constant 0 : index
    %c0_95 = arith.constant 0 : index
    %392 = vector.load %arg13[%c0_94, %c0_95] : memref<1x32xf32, #tpu.memory_space<vmem>>, vector<1x32xf32>
    %393 = vector.broadcast %392 : vector<1x32xf32> to vector<16x32xf32>
    %394 = arith.mulf %391, %393 : vector<16x32xf32>
    %c0_96 = arith.constant 0 : index
    %c0_97 = arith.constant 0 : index
    %395 = vector.load %arg14[%c0_96, %c0_97] : memref<1x32xf32, #tpu.memory_space<vmem>>, vector<1x32xf32>
    %396 = vector.broadcast %395 : vector<1x32xf32> to vector<16x32xf32>
    %397 = arith.addf %394, %396 : vector<16x32xf32>
    %c0_98 = arith.constant 0 : index
    %c0_99 = arith.constant 0 : index
    %c0_100 = arith.constant 0 : index
    %398 = vector.load %arg15[%c0_98, %c0_99, %c0_100] : memref<1x16x32xf32, #tpu.memory_space<vmem>>, vector<1x16x32xf32>
    %399 = vector.shape_cast %398 : vector<1x16x32xf32> to vector<16x32xf32>
    %400 = vector.shape_cast %397 : vector<16x32xf32> to vector<1x16x32xf32>
    tpu.vector_store %arg15[%c0_98, %c0_99, %c0_100], %400 {strides = array<i32>} : memref<1x16x32xf32, #tpu.memory_space<vmem>>, vector<1x16x32xf32>,
    return
  }
  func.func @transform_0(%arg0: i32, %arg1: memref<2xi32, #tpu.memory_space<smem>>) -> (i32, i32, i32) {
    %c0_i32 = arith.constant 0 : i32
    %c0_i32_0 = arith.constant 0 : i32
    %c0_i32_1 = arith.constant 0 : i32
    return %arg0, %c0_i32, %c0_i32_0 : i32, i32, i32
  }
  func.func @transform_1(%arg0: i32, %arg1: memref<2xi32, #tpu.memory_space<smem>>) -> (i32, i32, i32) {
    %c0_i32 = arith.constant 0 : i32
    %c0_i32_0 = arith.constant 0 : i32
    %c0_i32_1 = arith.constant 0 : i32
    %c0_i32_2 = arith.constant 0 : i32
    return %c0_i32, %c0_i32_0, %c0_i32_1 : i32, i32, i32
  }
  func.func @transform_2(%arg0: i32, %arg1: memref<2xi32, #tpu.memory_space<smem>>) -> (i32, i32, i32) {
    %c0_i32 = arith.constant 0 : i32
    %c0_i32_0 = arith.constant 0 : i32
    %c0_i32_1 = arith.constant 0 : i32
    %c0_i32_2 = arith.constant 0 : i32
    return %c0_i32, %c0_i32_0, %c0_i32_1 : i32, i32, i32
  }
  func.func @transform_3(%arg0: i32, %arg1: memref<2xi32, #tpu.memory_space<smem>>) -> (i32, i32, i32) {
    %c0_i32 = arith.constant 0 : i32
    %c0_i32_0 = arith.constant 0 : i32
    %c0_i32_1 = arith.constant 0 : i32
    %c0_i32_2 = arith.constant 0 : i32
    return %c0_i32, %c0_i32_0, %c0_i32_1 : i32, i32, i32
  }
  func.func @transform_4(%arg0: i32, %arg1: memref<2xi32, #tpu.memory_space<smem>>) -> (i32, i32, i32) {
    %c0_i32 = arith.constant 0 : i32
    %c0_i32_0 = arith.constant 0 : i32
    %c0_i32_1 = arith.constant 0 : i32
    %c0_i32_2 = arith.constant 0 : i32
    return %c0_i32, %c0_i32_0, %c0_i32_1 : i32, i32, i32
  }
  func.func @transform_5(%arg0: i32, %arg1: memref<2xi32, #tpu.memory_space<smem>>) -> (i32, i32, i32) {
    %c0_i32 = arith.constant 0 : i32
    %c0_i32_0 = arith.constant 0 : i32
    %c0_i32_1 = arith.constant 0 : i32
    %c0_i32_2 = arith.constant 0 : i32
    return %c0_i32, %c0_i32_0, %c0_i32_1 : i32, i32, i32
  }
  func.func @transform_6(%arg0: i32, %arg1: memref<2xi32, #tpu.memory_space<smem>>) -> (i32, i32, i32) {
    %c0_i32 = arith.constant 0 : i32
    %c0_i32_0 = arith.constant 0 : i32
    %c0_i32_1 = arith.constant 0 : i32
    %c0_i32_2 = arith.constant 0 : i32
    return %c0_i32, %c0_i32_0, %c0_i32_1 : i32, i32, i32
  }
  func.func @transform_7(%arg0: i32, %arg1: memref<2xi32, #tpu.memory_space<smem>>) -> (i32, i32, i32) {
    %c0_i32 = arith.constant 0 : i32
    %c0_i32_0 = arith.constant 0 : i32
    %c0_i32_1 = arith.constant 0 : i32
    %c0_i32_2 = arith.constant 0 : i32
    return %c0_i32, %c0_i32_0, %c0_i32_1 : i32, i32, i32
  }
  func.func @transform_8(%arg0: i32, %arg1: memref<2xi32, #tpu.memory_space<smem>>) -> (i32, i32) {
    %c0_i32 = arith.constant 0 : i32
    %c0_i32_0 = arith.constant 0 : i32
    %c0_i32_1 = arith.constant 0 : i32
    return %c0_i32, %c0_i32_0 : i32, i32
  }
  func.func @transform_9(%arg0: i32, %arg1: memref<2xi32, #tpu.memory_space<smem>>) -> (i32, i32) {
    %c0_i32 = arith.constant 0 : i32
    %c0_i32_0 = arith.constant 0 : i32
    %c0_i32_1 = arith.constant 0 : i32
    return %c0_i32, %c0_i32_0 : i32, i32
  }
  func.func @transform_10(%arg0: i32, %arg1: memref<2xi32, #tpu.memory_space<smem>>) -> (i32, i32) {
    %c0_i32 = arith.constant 0 : i32
    %c0_i32_0 = arith.constant 0 : i32
    %c0_i32_1 = arith.constant 0 : i32
    return %c0_i32, %c0_i32_0 : i32, i32
  }
  func.func @transform_11(%arg0: i32, %arg1: memref<2xi32, #tpu.memory_space<smem>>) -> (i32, i32) {
    %c0_i32 = arith.constant 0 : i32
    %c0_i32_0 = arith.constant 0 : i32
    %c0_i32_1 = arith.constant 0 : i32
    return %c0_i32, %c0_i32_0 : i32, i32
  }
  func.func @transform_12(%arg0: i32, %arg1: memref<2xi32, #tpu.memory_space<smem>>) -> (i32, i32) {
    %c0_i32 = arith.constant 0 : i32
    %c0_i32_0 = arith.constant 0 : i32
    %c0_i32_1 = arith.constant 0 : i32
    return %c0_i32, %c0_i32_0 : i32, i32
  }
  func.func @transform_13(%arg0: i32, %arg1: memref<2xi32, #tpu.memory_space<smem>>) -> (i32, i32, i32) {
    %c0_i32 = arith.constant 0 : i32
    %c0_i32_0 = arith.constant 0 : i32
    %c0_i32_1 = arith.constant 0 : i32
    return %arg0, %c0_i32, %c0_i32_0 : i32, i32, i32
  }
}

module attributes {stable_mosaic.version = 11 : i64} {
  func.func @_proj_kernel(%arg0: i32, %arg1: memref<2xi32, #tpu.memory_space<smem>>, %arg2: memref<1x16x32xf32, #tpu.memory_space<vmem>>, %arg3: memref<32x32xbf16, #tpu.memory_space<vmem>>, %arg4: memref<1x32xf32, #tpu.memory_space<vmem>>, %arg5: memref<1x16x32xf32, #tpu.memory_space<vmem>>, %arg6: memref<1x16x32xf32, #tpu.memory_space<vmem>>) attributes {dimension_semantics = [#tpu.dimension_semantics<parallel>], iteration_bounds = array<i64: 2>, scalar_prefetch = 1 : i64, scratch_operands = 0 : i64, tpu.core_type = #tpu.core_type<tc>, window_params = [{transform_indices = @transform_0, window_bounds = array<i64: 1, 16, 32>}, {pipeline_mode = #tpu.pipeline_mode<synchronous>, transform_indices = @transform_1, window_bounds = array<i64: 32, 32>}, {pipeline_mode = #tpu.pipeline_mode<synchronous>, transform_indices = @transform_2, window_bounds = array<i64: 1, 32>}, {transform_indices = @transform_3, window_bounds = array<i64: 1, 16, 32>}, {transform_indices = @transform_4, window_bounds = array<i64: 1, 16, 32>}]} {
    %0 = arith.index_cast %arg0 : i32 to index
    %1 = memref.load %arg1[%0] : memref<2xi32, #tpu.memory_space<smem>>
    %2 = tpu.iota {dimensions = array<i32: 0>} : vector<16x1xi32>
    %3 = vector.broadcast %1 : i32 to vector<16x1xi32>
    %4 = arith.cmpi slt, %2, %3 : vector<16x1xi32>
    %5 = arith.extui %4 : vector<16x1xi1> to vector<16x1xi32>
    %6 = arith.sitofp %5 : vector<16x1xi32> to vector<16x1xf32>
    %c0 = arith.constant 0 : index
    %c0_0 = arith.constant 0 : index
    %c0_1 = arith.constant 0 : index
    %7 = vector.load %arg2[%c0, %c0_0, %c0_1] : memref<1x16x32xf32, #tpu.memory_space<vmem>>, vector<1x16x32xf32>
    %8 = vector.shape_cast %7 : vector<1x16x32xf32> to vector<16x32xf32>
    %9 = vector.broadcast %6 : vector<16x1xf32> to vector<16x32xf32>
    %10 = arith.mulf %8, %9 : vector<16x32xf32>
    %c0_2 = arith.constant 0 : index
    %c0_3 = arith.constant 0 : index
    %c0_4 = arith.constant 0 : index
    %11 = vector.load %arg5[%c0_2, %c0_3, %c0_4] : memref<1x16x32xf32, #tpu.memory_space<vmem>>, vector<1x16x32xf32>
    %12 = vector.shape_cast %11 : vector<1x16x32xf32> to vector<16x32xf32>
    %13 = vector.shape_cast %10 : vector<16x32xf32> to vector<1x16x32xf32>
    tpu.vector_store %arg5[%c0_2, %c0_3, %c0_4], %13 {strides = array<i32>} : memref<1x16x32xf32, #tpu.memory_space<vmem>>, vector<1x16x32xf32>,
    %14 = arith.truncf %10 : vector<16x32xf32> to vector<16x32xbf16>
    %c0_5 = arith.constant 0 : index
    %c0_6 = arith.constant 0 : index
    %15 = vector.load %arg3[%c0_5, %c0_6] : memref<32x32xbf16, #tpu.memory_space<vmem>>, vector<32x32xbf16>
    %cst = arith.constant dense<0.000000e+00> : vector<16x32xf32>
    %16 = tpu.matmul %14, %15, %cst {dimension_numbers = #tpu.dot_dimension_numbers<[1], [0], [0], [1], [0, 0, 1, 1], [], []>} : vector<16x32xbf16>, vector<32x32xbf16>, vector<16x32xf32> -> vector<16x32xf32>
    %c0_7 = arith.constant 0 : index
    %c0_8 = arith.constant 0 : index
    %17 = vector.load %arg4[%c0_7, %c0_8] : memref<1x32xf32, #tpu.memory_space<vmem>>, vector<1x32xf32>
    %18 = vector.broadcast %17 : vector<1x32xf32> to vector<16x32xf32>
    %19 = arith.addf %16, %18 : vector<16x32xf32>
    %20 = vector.broadcast %6 : vector<16x1xf32> to vector<16x32xf32>
    %21 = arith.mulf %19, %20 : vector<16x32xf32>
    %c0_9 = arith.constant 0 : index
    %c0_10 = arith.constant 0 : index
    %c0_11 = arith.constant 0 : index
    %22 = vector.load %arg6[%c0_9, %c0_10, %c0_11] : memref<1x16x32xf32, #tpu.memory_space<vmem>>, vector<1x16x32xf32>
    %23 = vector.shape_cast %22 : vector<1x16x32xf32> to vector<16x32xf32>
    %24 = vector.shape_cast %21 : vector<16x32xf32> to vector<1x16x32xf32>
    tpu.vector_store %arg6[%c0_9, %c0_10, %c0_11], %24 {strides = array<i32>} : memref<1x16x32xf32, #tpu.memory_space<vmem>>, vector<1x16x32xf32>,
    return
  }
  func.func @transform_0(%arg0: i32, %arg1: memref<2xi32, #tpu.memory_space<smem>>) -> (i32, i32, i32) {
    %c0_i32 = arith.constant 0 : i32
    %c0_i32_0 = arith.constant 0 : i32
    %c0_i32_1 = arith.constant 0 : i32
    return %arg0, %c0_i32, %c0_i32_0 : i32, i32, i32
  }
  func.func @transform_1(%arg0: i32, %arg1: memref<2xi32, #tpu.memory_space<smem>>) -> (i32, i32) {
    %c0_i32 = arith.constant 0 : i32
    %c0_i32_0 = arith.constant 0 : i32
    %c0_i32_1 = arith.constant 0 : i32
    return %c0_i32, %c0_i32_0 : i32, i32
  }
  func.func @transform_2(%arg0: i32, %arg1: memref<2xi32, #tpu.memory_space<smem>>) -> (i32, i32) {
    %c0_i32 = arith.constant 0 : i32
    %c0_i32_0 = arith.constant 0 : i32
    %c0_i32_1 = arith.constant 0 : i32
    return %c0_i32, %c0_i32_0 : i32, i32
  }
  func.func @transform_3(%arg0: i32, %arg1: memref<2xi32, #tpu.memory_space<smem>>) -> (i32, i32, i32) {
    %c0_i32 = arith.constant 0 : i32
    %c0_i32_0 = arith.constant 0 : i32
    %c0_i32_1 = arith.constant 0 : i32
    return %arg0, %c0_i32, %c0_i32_0 : i32, i32, i32
  }
  func.func @transform_4(%arg0: i32, %arg1: memref<2xi32, #tpu.memory_space<smem>>) -> (i32, i32, i32) {
    %c0_i32 = arith.constant 0 : i32
    %c0_i32_0 = arith.constant 0 : i32
    %c0_i32_1 = arith.constant 0 : i32
    return %arg0, %c0_i32, %c0_i32_0 : i32, i32, i32
  }
}

</mosaic_0001>

<llo_original>
// kernel: _lambda_.9
$region0: #{_lambda_.9}
  #allocation0 [shape = 'u32[]', space=smem, size = 0x4, offset = 0x4, fixed_abs, tag = 'smem constant byte address 0x4 - core index']
  #allocation1 [shape = 'u32[144,128]{1,0:T(1,128)}', space=vmem, size = 0x12000, scoped, tag = 'internal scratch']
  #allocation2 [shape = 's32[1]{0}', space=sflag, size = 0x4, scoped, tag = 'scoped memory for _lambda_.9']
  #allocation3 [shape = 'u8[512]{0}', space=smem, size = 0x200, scoped, tag = 'prefetched SMEM operand 0']
  %s0 = inlined_call_operand.vmem [shape: s32[2], index: 0, kind: input, shape index: {}]
  %s1 = inlined_call_operand.vmem [shape: f32[2,16,32], index: 1, kind: input, shape index: {}]
  %s2 = inlined_call_operand.vmem [shape: bf16[32,32], index: 2, kind: input, shape index: {}]
  %s3 = inlined_call_operand.vmem [shape: f32[1,32], index: 3, kind: input, shape index: {}]
  %s4 = inlined_call_operand.hbm [shape: f32[2,16,32], index: 4, kind: output, shape index: {0}]
  %s5 = inlined_call_operand.vmem [shape: f32[2,16,32], index: 5, kind: output, shape index: {1}]
  %6 = xla_tuple %s4, %s5
  %s7 = sld [smem:[#allocation0]]
  $region53: #{_lambda_.9} parent=0
    _
  %s9 = ssub.s32 1, %s7
  %s10 = scalar_select 0, %s9, %s7
  %s11 = sshll.u32 %s0, 4
  %s12 = int_to_ptr.vmem [resolvable:$true] %s11
  %14 = dma.vmem_to_smem %s12, 16, [#allocation3], [#allocation2]
  %15 = dma.done [#allocation2], 16
  %16 = sfence
  $region1: #{_lambda_.9} parent=0
    #allocation4 [shape = 'u8[16384]{0}', space=vmem, size = 0x4000, scoped, tag = 'output window, operand 0']
    #allocation5 [shape = 's32[2]{0}', space=sflag, size = 0x8, scoped, tag = 'scoped memory for _lambda_.9']
    %17 = vsyncpa [#allocation5], 0
    %s18 = scalar_lea.sflag [#allocation5], 1
    %19 = vsyncpa %s18, 0
    loop: start=0, step=1, limit=4
    $region2: #{_lambda_.9} parent=1 // loop_pre_header
      _
    $region3: #{_lambda_.9} parent=1 // loop_header
      %s21 = sphi 0, %s25
      %p22 = scmp.ge.s32.totalorder %s21, 4
      %s31 = sphi 0, %s33
      %s34 = sphi 0, %s31
      %s35 = sphi 0, %s34
      %s51 = sphi 0, %s35
      %s55 = sphi 0, %s55
      %s57 = sphi 0, %s55
      %s58 = sphi 0, %s57
      %s72 = sphi 0, %s58
      %s76 = sphi 0, %s76
      %s78 = sphi 0, %s76
      %s79 = sphi 0, %s78
      %s93 = sphi 0, %s79
      %s99 = sphi 0, %s101
      %s102 = sphi 0, %s99
      %s103 = sphi 0, %s102
      %s119 = sphi 0, %s103
      %s125 = sphi 0, %s127
      %s128 = sphi 0, %s125
      %s129 = sphi 0, %s128
      %s145 = sphi 0, %s129
    $region4: #{_lambda_.9} parent=1 // loop_header_branch
      %24 = sbr.rel (%p22) target = $region8
    $region5: #{_lambda_.9} parent=1 // loop_body
      %s26 = ssub.s32 %s21, 1
      %s27 = ssub.s32 %s21, 2
      %s28 = sadd.s32 %s21, 1
      %s29 = ssub.s32 %s21, %s28
      %p30 = scmp.eq.s32.totalorder %s29, 0
      %s32 = sadd.s32 %s31, 1
      %s33 = scalar_select %p30, %s31, %s32
      %p36 = pneg %p30
      %p37 = scmp.eq.s32.totalorder %s21, 1
      %p38 = por %p36, %p37
      %p39 = scmp.ne.s32.totalorder %s31, %s34
      %p40 = scmp.eq.s32.totalorder %s21, 0
      %p41 = por %p39, %p40
      %p42 = scmp.ne.s32.totalorder %s31, %s34
      %p43 = scmp.eq.s32.totalorder %s26, 1
      %p44 = por %p42, %p43
      %p45 = scmp.ne.s32.totalorder %s34, %s35
      %p46 = scmp.eq.s32.totalorder %s26, 0
      %p47 = por %p45, %p46
      %p48 = scmp.ne.s32.totalorder %s34, %s35
      %p49 = scmp.eq.s32.totalorder %s27, 1
      %p50 = por %p48, %p49
      %p52 = scmp.ne.s32.totalorder %s35, %s51
      %p53 = scmp.eq.s32.totalorder %s27, 0
      %p54 = por %p52, %p53
      %s56 = sadd.s32 %s55, 1
      %p59 = scmp.eq.s32.totalorder %s21, 1
      %p60 = scmp.ne.s32.totalorder %s55, %s57
      %p61 = scmp.eq.s32.totalorder %s21, 0
      %p62 = por %p60, %p61
      %p63 = scmp.ne.s32.totalorder %s55, %s57
      %p64 = scmp.eq.s32.totalorder %s26, 1
      %p65 = por %p63, %p64
      %p66 = scmp.ne.s32.totalorder %s57, %s58
      %p67 = scmp.eq.s32.totalorder %s26, 0
      %p68 = por %p66, %p67
      %p69 = scmp.ne.s32.totalorder %s57, %s58
      %p70 = scmp.eq.s32.totalorder %s27, 1
      %p71 = por %p69, %p70
      %p73 = scmp.ne.s32.totalorder %s58, %s72
      %p74 = scmp.eq.s32.totalorder %s27, 0
      %p75 = por %p73, %p74
      %s77 = sadd.s32 %s76, 1
      %p80 = scmp.eq.s32.totalorder %s21, 1
      %p81 = scmp.ne.s32.totalorder %s76, %s78
      %p82 = scmp.eq.s32.totalorder %s21, 0
      %p83 = por %p81, %p82
      %p84 = scmp.ne.s32.totalorder %s76, %s78
      %p85 = scmp.eq.s32.totalorder %s26, 1
      %p86 = por %p84, %p85
      %p87 = scmp.ne.s32.totalorder %s78, %s79
      %p88 = scmp.eq.s32.totalorder %s26, 0
      %p89 = por %p87, %p88
      %p90 = scmp.ne.s32.totalorder %s78, %s79
      %p91 = scmp.eq.s32.totalorder %s27, 1
      %p92 = por %p90, %p91
      %p94 = scmp.ne.s32.totalorder %s79, %s93
      %p95 = scmp.eq.s32.totalorder %s27, 0
      %p96 = por %p94, %p95
      %s97 = ssub.s32 %s21, %s28
      %p98 = scmp.eq.s32.totalorder %s97, 0
      %s100 = sadd.s32 %s99, 1
      %s101 = scalar_select %p98, %s99, %s100
      %p104 = pneg %p98
      %p105 = scmp.eq.s32.totalorder %s21, 1
      %p106 = por %p104, %p105
      %p107 = scmp.ne.s32.totalorder %s99, %s102
      %p108 = scmp.eq.s32.totalorder %s21, 0
      %p109 = por %p107, %p108
      %p110 = scmp.ne.s32.totalorder %s99, %s102
      %p111 = scmp.eq.s32.totalorder %s26, 1
      %p112 = por %p110, %p111
      %p113 = scmp.ne.s32.totalorder %s102, %s103
      %p114 = scmp.eq.s32.totalorder %s26, 0
      %p115 = por %p113, %p114
      %p116 = scmp.ne.s32.totalorder %s102, %s103
      %p117 = scmp.eq.s32.totalorder %s27, 1
      %p118 = por %p116, %p117
      %p120 = scmp.ne.s32.totalorder %s103, %s119
      %p121 = scmp.eq.s32.totalorder %s27, 0
      %p122 = por %p120, %p121
      %s123 = ssub.s32 %s21, %s28
      %p124 = scmp.eq.s32.totalorder %s123, 0
      %s126 = sadd.s32 %s125, 1
      %s127 = scalar_select %p124, %s125, %s126
      %p130 = pneg %p124
      %p131 = scmp.eq.s32.totalorder %s21, 1
      %p132 = por %p130, %p131
      %p133 = scmp.ne.s32.totalorder %s125, %s128
      %p134 = scmp.eq.s32.totalorder %s21, 0
      %p135 = por %p133, %p134
      %p136 = scmp.ne.s32.totalorder %s125, %s128
      %p137 = scmp.eq.s32.totalorder %s26, 1
      %p138 = por %p136, %p137
      %p139 = scmp.ne.s32.totalorder %s128, %s129
      %p140 = scmp.eq.s32.totalorder %s26, 0
      %p141 = por %p139, %p140
      %p142 = scmp.ne.s32.totalorder %s128, %s129
      %p143 = scmp.eq.s32.totalorder %s27, 1
      %p144 = por %p142, %p143
      %p146 = scmp.ne.s32.totalorder %s129, %s145
      %p147 = scmp.eq.s32.totalorder %s27, 0
      %p148 = por %p146, %p147
      %p149 = scmp.le.s32.totalorder 1, %s21
      %p150 = scmp.lt.s32.totalorder %s21, 3
      %p151 = pnand %p149, %p150
      %p152 = pneg %p151
      // Predicated region
      $region9: #{_lambda_.9} parent=5 // pred_check
        _
      $region10: #{_lambda_.9} parent=5 // pred_check_branch
        %154 = sbr.rel (%p151) target = $region12
      $region11: #{_lambda_.9} parent=5 // pred_region
        %s155 = ssub.s32 %s21, 1
        // Predicated region
        $region13: #{_lambda_.9} parent=11 // pred_check
          %p156 = pneg %p68
        $region14: #{_lambda_.9} parent=11 // pred_check_branch
          %158 = sbr.rel (%p156) target = $region16
        $region15: #{_lambda_.9} parent=11 // pred_region
          _
        $region16: #{_lambda_.9} parent=11 // pred_fallthru
          _
        // Predicated region
        $region17: #{_lambda_.9} parent=11 // pred_check
          %p159 = pneg %p89
        $region18: #{_lambda_.9} parent=11 // pred_check_branch
          %161 = sbr.rel (%p159) target = $region20
        $region19: #{_lambda_.9} parent=11 // pred_region
          _
        $region20: #{_lambda_.9} parent=11 // pred_fallthru
          _
      $region12: #{_lambda_.9} parent=5 // pred_fallthru
        _
      %p162 = scmp.lt.s32.totalorder %s21, 2
      // Predicated region
      $region21: #{_lambda_.9} parent=5 // pred_check
        %p163 = pneg %p162
      $region22: #{_lambda_.9} parent=5 // pred_check_branch
        %165 = sbr.rel (%p163) target = $region24
      $region23: #{_lambda_.9} parent=5 // pred_region
        // Predicated region
        $region25: #{_lambda_.9} parent=23 // pred_check
          %p166 = pneg %p41
        $region26: #{_lambda_.9} parent=23 // pred_check_branch
          %168 = sbr.rel (%p166) target = $region28
        $region27: #{_lambda_.9} parent=23 // pred_region
          %p169 = scmp.lt.s32.totalorder %s21, 1
          %s170 = scalar_select %p169, %s21, 1
          %s171 = smul.addr %s170, 2
          %s172 = smul.addr %s171, 8
          %s173 = scalar_lea.vmem %s1, %s172
        $region28: #{_lambda_.9} parent=23 // pred_fallthru
          _
      $region24: #{_lambda_.9} parent=5 // pred_fallthru
        _
      %p174 = scmp.le.s32.totalorder 1, %s21
      %p175 = scmp.lt.s32.totalorder %s21, 3
      %p176 = pnand %p174, %p175
      %p177 = pneg %p176
      // Predicated region
      $region29: #{_lambda_.9} parent=5 // pred_check
        _
      $region30: #{_lambda_.9} parent=5 // pred_check_branch
        %179 = sbr.rel (%p176) target = $region32
      $region31: #{_lambda_.9} parent=5 // pred_region
        %s180 = ssub.s32 %s21, 1
        %p181 = scmp.lt.s32.totalorder %s26, 1
        %s182 = scalar_select %p181, %s26, 1
        %s183 = smul.addr %s182, 2
        %s184 = smul.addr %s183, 8
        %s185 = scalar_lea.vmem %s1, %s184
        %p186 = pneg %p47
        %p187 = pneg %p44
        %p188 = pneg %p68
        %p189 = pneg %p65
        %p190 = pneg %p89
        %p191 = pneg %p86
        %p192 = pneg %p115
        %p193 = pneg %p112
        %s194 = sand.u32 %s102, 1
        %s195 = scalar_lea.sflag [#allocation5], %s194
        %s196 = sand.u32 %s102, 1
        %s197 = smul.addr %s196, 16
        %s198 = scalar_lea.vmem [#allocation4], %s197
        %p199 = pneg %p141
        %p200 = pneg %p138
        %p201 = scmp.lt.s32.totalorder %s26, 1
        %s202 = scalar_select %p201, %s26, 1
        %s203 = smul.addr %s202, 2
        %s204 = smul.addr %s203, 8
        %s205 = scalar_lea.vmem %s5, %s204
        %p206 = scmp.lt.s32.totalorder %s26, 1
        %s207 = scalar_select %p206, %s26, 1
        %s208 = smul.addr %s207, 2
        %s209 = smul.addr %s208, 8
        %s210 = scalar_lea.vmem %s1, %s209
        %p211 = scmp.lt.s32.totalorder %s26, 1
        %s212 = scalar_select %p211, %s26, 1
        %s213 = smul.addr %s212, 2
        %s214 = smul.addr %s213, 8
        %s215 = scalar_lea.vmem %s5, %s214
        %s217 = sld [smem:[#allocation3 + %s26]]
        %v218 = vlaneseq
        %v219 = vshrl.u32 %v218, 7
        %v220 = vadd.s32 %v219, 8
        %v221 = vstv %s217
        %vm222 = vcmp.lt.s32.totalorder %v219, %v221
        %vm223 = vcmp.lt.s32.totalorder %v220, %v221
        %v224 = vsel %vm222, 1, 0
        %v225 = vsel %vm223, 1, 0
        %v226 = vcvt.s32.f32 %v224
        %v227 = vcvt.s32.f32 %v225
        %v228 = vld [vmem:[%s210] sm:$0xff]
        %v229 = vld [vmem:[%s210 + $0x8] sm:$0xff]
        %v230 = vmul.f32 %v228, %v226
        %v231 = vmul.f32 %v229, %v227
        %vm232 = vcmask 261120
        %233 = vst.msk [vmem:[%s198] sm:$0xff] %vm232, %v230
        %234 = vst.msk [vmem:[%s198 + $0x8] sm:$0xff] %vm232, %v231
        %v235 = vpack.c.bf16 %v231, %v230
        %v236 = vld [vmem:[%s2] sm:$0xf]
        %v237 = vld [vmem:[%s2 + $0x4] sm:$0xf]
        %v238 = vld [vmem:[%s2 + $0x8] sm:$0xf]
        %v239 = vld [vmem:[%s2 + $0xc] sm:$0xf]
        %v240 = vld [vmem:[%s3] sm:$0x1]
        %v242 = vlaneseq
        %v243 = vshrl.u32 %v242, 7
        %v244 = vsub.s32 0, %v243
        %v245 = vrot.slane %v240, %v244
        %v251 = vunpack.c.l.b16 %v236
        %v252 = vunpack.c.l.b16 %v237
        %v253 = vunpack.c.l.b16 %v238
        %v254 = vunpack.c.l.b16 %v239
        %v255 = vpack.c.b16 %v252, %v251
        %v256 = vpack.c.b16 %v254, %v253
        %v260 = vsel %vm232, %v235, 0
        %262 = vmatprep.subr.bf16.mxu0 0
        %263 = vmatpush1.bf16.msra.mxu0 %v255
        %264 = vmatprep.subr.bf16.mxu0 0
        %265 = vmatpush1.bf16.msra.mxu0 %v256
        %266 = vmatprep.subr.bf16.mxu0 0
        %267 = vmatpush1.bf16.msra.mxu0 0
        %268 = vmatprep.subr.bf16.mxu0 0
        %269 = vmatpush1.bf16.msra.mxu0 0
        %270 = vmatprep.subr.bf16.mxu0 0
        %271 = vmatpush1.bf16.msra.mxu0 0
        %272 = vmatprep.subr.bf16.mxu0 0
        %273 = vmatpush1.bf16.msra.mxu0 0
        %274 = vmatprep.subr.bf16.mxu0 0
        %275 = vmatpush1.bf16.msra.mxu0 0
        %276 = vmatprep.subr.bf16.mxu0 0
        %277 = vmatpush1.bf16.msra.mxu0 0
        %278 = vmatprep.subr.bf16.mxu0 0
        %279 = vmatpush1.bf16.msra.mxu0 0
        %280 = vmatprep.subr.bf16.mxu0 0
        %281 = vmatpush1.bf16.msra.mxu0 0
        %282 = vmatprep.subr.bf16.mxu0 0
        %283 = vmatpush1.bf16.msra.mxu0 0
        %284 = vmatprep.subr.bf16.mxu0 0
        %285 = vmatpush1.bf16.msra.mxu0 0
        %286 = vmatprep.subr.bf16.mxu0 0
        %287 = vmatpush1.bf16.msra.mxu0 0
        %288 = vmatprep.subr.bf16.mxu0 0
        %289 = vmatpush1.bf16.msra.mxu0 0
        %290 = vmatprep.subr.bf16.mxu0 0
        %291 = vmatpush1.bf16.msra.mxu0 0
        %292 = vmatprep.subr.bf16.mxu0 0
        %293 = vmatpush1.bf16.msra.mxu0 0
        %294 = vmatprep.mubr.bf16.mxu0 0
        %295 = vmatmul.mubr.bf16.gmra.mrb[0].mxu0 %v260
        %v296 = vpop.f32.mrb[0].mxu0
        %v297 = vadd.f32 %v245, %v296
        %v298 = vpop.f32.mrb[0].mxu0
        %v299 = vpop.f32.mrb[0].mxu0
        %v300 = vadd.f32 %v245, %v299
        %v301 = vpop.f32.mrb[0].mxu0
        %302 = vdwg.mxu0
        %v303 = vmul.f32 %v297, %v226
        %v304 = vmul.f32 %v300, %v227
        %305 = vst.msk [vmem:[%s215] sm:$0xff] %vm232, %v303
        %306 = vst.msk [vmem:[%s215 + $0x8] sm:$0xff] %vm232, %v304
        %s307 = sand.u32 %s102, 1
        %s308 = scalar_lea.sflag [#allocation5], %s307
        %s309 = sand.u32 %s102, 1
        %s310 = smul.addr %s309, 16
        %s311 = scalar_lea.vmem [#allocation4], %s310
        %p312 = scmp.lt.s32.totalorder %s26, 1
        %s313 = scalar_select %p312, %s26, 1
        %s314 = smul.addr %s313, 2
        %s315 = smul.addr %s314, 8
        %s316 = scalar_lea.vmem %s5, %s315
        // Predicated region
        $region33: #{_lambda_.9} parent=31 // pred_check
          %p317 = pneg %p112
        $region34: #{_lambda_.9} parent=31 // pred_check_branch
          %319 = sbr.rel (%p317) target = $region36
        $region35: #{_lambda_.9} parent=31 // pred_region
          %s321 = ssub.s32 256, 256
          %322 = vsyncadd %s308, %s321
          %s323 = smul.addr %s26, 2
          %s324 = smul.addr %s323, 128
          %s325 = scalar_lea.hbm %s4, %s324
          %s326 = sshll.u32 %s311, 4
          %s327 = int_to_ptr.vmem [resolvable:$true] %s326
          %332 = dma.vmem_to_hbm [thread:$0]  %s327, 256, %s325, %s308, 128, 128, 8
        $region36: #{_lambda_.9} parent=31 // pred_fallthru
          _
        // Predicated region
        $region37: #{_lambda_.9} parent=31 // pred_check
          %p333 = pneg %p138
        $region38: #{_lambda_.9} parent=31 // pred_check_branch
          %335 = sbr.rel (%p333) target = $region40
        $region39: #{_lambda_.9} parent=31 // pred_region
          _
        $region40: #{_lambda_.9} parent=31 // pred_fallthru
          _
      $region32: #{_lambda_.9} parent=5 // pred_fallthru
        _
      %p336 = scmp.le.s32.totalorder 2, %s21
      // Predicated region
      $region41: #{_lambda_.9} parent=5 // pred_check
        %p337 = pneg %p336
      $region42: #{_lambda_.9} parent=5 // pred_check_branch
        %339 = sbr.rel (%p337) target = $region44
      $region43: #{_lambda_.9} parent=5 // pred_region
        %s340 = ssub.s32 %s21, 2
        // Predicated region
        $region45: #{_lambda_.9} parent=43 // pred_check
          %p341 = pneg %p118
        $region46: #{_lambda_.9} parent=43 // pred_check_branch
          %343 = sbr.rel (%p341) target = $region48
        $region47: #{_lambda_.9} parent=43 // pred_region
          %s344 = sand.u32 %s103, 1
          %s345 = scalar_lea.sflag [#allocation5], %s344
          %s346 = sand.u32 %s103, 1
          %s347 = smul.addr %s346, 16
          %s348 = scalar_lea.vmem [#allocation4], %s347
          %349 = dma.done %s345, 256
        $region48: #{_lambda_.9} parent=43 // pred_fallthru
          _
        // Predicated region
        $region49: #{_lambda_.9} parent=43 // pred_check
          %p350 = pneg %p144
        $region50: #{_lambda_.9} parent=43 // pred_check_branch
          %352 = sbr.rel (%p350) target = $region52
        $region51: #{_lambda_.9} parent=43 // pred_region
          %p353 = scmp.lt.s32.totalorder %s27, 1
          %s354 = scalar_select %p353, %s27, 1
          %s355 = smul.addr %s354, 2
          %s356 = smul.addr %s355, 8
          %s357 = scalar_lea.vmem %s5, %s356
        $region52: #{_lambda_.9} parent=43 // pred_fallthru
          _
      $region44: #{_lambda_.9} parent=5 // pred_fallthru
        _
    $region6: #{_lambda_.9} parent=1 // loop_footer
      %s25 = sadd.s32 1, %s21
    $region7: #{_lambda_.9} parent=1 // loop_footer_branch
      %20 = sbr.rel target = $region3
    $region8: #{_lambda_.9} parent=1 // loop_exit
      _
    %358 = vsyncpa [#allocation5], 1
    %s359 = scalar_lea.sflag [#allocation5], 1
    %360 = vsyncpa %s359, 1

// kernel: _lambda_.6
$region0: #{_lambda_.6}
  #allocation0 [shape = 'u32[]', space=smem, size = 0x4, offset = 0x4, fixed_abs, tag = 'smem constant byte address 0x4 - core index']
  #allocation1 [shape = 'u32[144,128]{1,0:T(1,128)}', space=vmem, size = 0x12000, scoped, tag = 'internal scratch']
  #allocation2 [shape = 'f32[18,32]{1,0:T(8,128)}', space=vmem, size = 0x3000, scoped, tag = 'scratch operand']
  #allocation3 [shape = 'f32[18,64]{1,0:T(8,128)}', space=vmem, size = 0x3000, scoped, tag = 'scratch operand']
  #allocation4 [shape = 's32[1]{0}', space=sflag, size = 0x4, scoped, tag = 'scoped memory for _lambda_.6']
  #allocation5 [shape = 'u8[512]{0}', space=smem, size = 0x200, scoped, tag = 'prefetched SMEM operand 0']
  %s0 = inlined_call_operand.vmem [shape: s32[2], index: 0, kind: input, shape index: {}]
  %s1 = inlined_call_operand.vmem [shape: f32[2,16,32], index: 1, kind: input, shape index: {}]
  %s2 = inlined_call_operand.vmem [shape: bf16[3,32,64], index: 2, kind: input, shape index: {}]
  %s3 = inlined_call_operand.vmem [shape: f32[1,64], index: 3, kind: input, shape index: {}]
  %s4 = inlined_call_operand.vmem [shape: bf16[3,64,32], index: 4, kind: input, shape index: {}]
  %s5 = inlined_call_operand.vmem [shape: f32[1,32], index: 5, kind: input, shape index: {}]
  %s6 = inlined_call_operand.vmem [shape: f32[1,32], index: 6, kind: input, shape index: {}]
  %s7 = inlined_call_operand.vmem [shape: f32[1,32], index: 7, kind: input, shape index: {}]
  %s8 = inlined_call_operand.vmem [shape: f32[2,16,32], index: 8, kind: output, shape index: {}]
  %s9 = sld [smem:[#allocation0]]
  $region61: #{_lambda_.6} parent=0
    _
  %s11 = ssub.s32 1, %s9
  %s12 = scalar_select 0, %s11, %s9
  %s13 = sshll.u32 %s0, 4
  %s14 = int_to_ptr.vmem [resolvable:$true] %s13
  %16 = dma.vmem_to_smem %s14, 16, [#allocation5], [#allocation4]
  %17 = dma.done [#allocation4], 16
  %18 = sfence
  loop: start=0, step=1, limit=4
  $region2: #{_lambda_.6} parent=0 // loop_pre_header
    _
  $region3: #{_lambda_.6} parent=0 // loop_header
    %s20 = sphi 0, %s24
    %p21 = scmp.ge.s32.totalorder %s20, 4
    %s30 = sphi 0, %s32
    %s33 = sphi 0, %s30
    %s34 = sphi 0, %s33
    %s50 = sphi 0, %s34
    %s54 = sphi 0, %s54
    %s56 = sphi 0, %s54
    %s57 = sphi 0, %s56
    %s71 = sphi 0, %s57
    %s75 = sphi 0, %s75
    %s77 = sphi 0, %s75
    %s78 = sphi 0, %s77
    %s92 = sphi 0, %s78
    %s96 = sphi 0, %s96
    %s98 = sphi 0, %s96
    %s99 = sphi 0, %s98
    %s113 = sphi 0, %s99
    %s117 = sphi 0, %s117
    %s119 = sphi 0, %s117
    %s120 = sphi 0, %s119
    %s134 = sphi 0, %s120
    %s138 = sphi 0, %s138
    %s140 = sphi 0, %s138
    %s141 = sphi 0, %s140
    %s155 = sphi 0, %s141
    %s159 = sphi 0, %s159
    %s161 = sphi 0, %s159
    %s162 = sphi 0, %s161
    %s176 = sphi 0, %s162
    %s182 = sphi 0, %s184
    %s185 = sphi 0, %s182
    %s186 = sphi 0, %s185
    %s202 = sphi 0, %s186
  $region4: #{_lambda_.6} parent=0 // loop_header_branch
    %23 = sbr.rel (%p21) target = $region8
  $region5: #{_lambda_.6} parent=0 // loop_body
    %s25 = ssub.s32 %s20, 1
    %s26 = ssub.s32 %s20, 2
    %s27 = sadd.s32 %s20, 1
    %s28 = ssub.s32 %s20, %s27
    %p29 = scmp.eq.s32.totalorder %s28, 0
    %s31 = sadd.s32 %s30, 1
    %s32 = scalar_select %p29, %s30, %s31
    %p35 = pneg %p29
    %p36 = scmp.eq.s32.totalorder %s20, 1
    %p37 = por %p35, %p36
    %p38 = scmp.ne.s32.totalorder %s30, %s33
    %p39 = scmp.eq.s32.totalorder %s20, 0
    %p40 = por %p38, %p39
    %p41 = scmp.ne.s32.totalorder %s30, %s33
    %p42 = scmp.eq.s32.totalorder %s25, 1
    %p43 = por %p41, %p42
    %p44 = scmp.ne.s32.totalorder %s33, %s34
    %p45 = scmp.eq.s32.totalorder %s25, 0
    %p46 = por %p44, %p45
    %p47 = scmp.ne.s32.totalorder %s33, %s34
    %p48 = scmp.eq.s32.totalorder %s26, 1
    %p49 = por %p47, %p48
    %p51 = scmp.ne.s32.totalorder %s34, %s50
    %p52 = scmp.eq.s32.totalorder %s26, 0
    %p53 = por %p51, %p52
    %s55 = sadd.s32 %s54, 1
    %p58 = scmp.eq.s32.totalorder %s20, 1
    %p59 = scmp.ne.s32.totalorder %s54, %s56
    %p60 = scmp.eq.s32.totalorder %s20, 0
    %p61 = por %p59, %p60
    %p62 = scmp.ne.s32.totalorder %s54, %s56
    %p63 = scmp.eq.s32.totalorder %s25, 1
    %p64 = por %p62, %p63
    %p65 = scmp.ne.s32.totalorder %s56, %s57
    %p66 = scmp.eq.s32.totalorder %s25, 0
    %p67 = por %p65, %p66
    %p68 = scmp.ne.s32.totalorder %s56, %s57
    %p69 = scmp.eq.s32.totalorder %s26, 1
    %p70 = por %p68, %p69
    %p72 = scmp.ne.s32.totalorder %s57, %s71
    %p73 = scmp.eq.s32.totalorder %s26, 0
    %p74 = por %p72, %p73
    %s76 = sadd.s32 %s75, 1
    %p79 = scmp.eq.s32.totalorder %s20, 1
    %p80 = scmp.ne.s32.totalorder %s75, %s77
    %p81 = scmp.eq.s32.totalorder %s20, 0
    %p82 = por %p80, %p81
    %p83 = scmp.ne.s32.totalorder %s75, %s77
    %p84 = scmp.eq.s32.totalorder %s25, 1
    %p85 = por %p83, %p84
    %p86 = scmp.ne.s32.totalorder %s77, %s78
    %p87 = scmp.eq.s32.totalorder %s25, 0
    %p88 = por %p86, %p87
    %p89 = scmp.ne.s32.totalorder %s77, %s78
    %p90 = scmp.eq.s32.totalorder %s26, 1
    %p91 = por %p89, %p90
    %p93 = scmp.ne.s32.totalorder %s78, %s92
    %p94 = scmp.eq.s32.totalorder %s26, 0
    %p95 = por %p93, %p94
    %s97 = sadd.s32 %s96, 1
    %p100 = scmp.eq.s32.totalorder %s20, 1
    %p101 = scmp.ne.s32.totalorder %s96, %s98
    %p102 = scmp.eq.s32.totalorder %s20, 0
    %p103 = por %p101, %p102
    %p104 = scmp.ne.s32.totalorder %s96, %s98
    %p105 = scmp.eq.s32.totalorder %s25, 1
    %p106 = por %p104, %p105
    %p107 = scmp.ne.s32.totalorder %s98, %s99
    %p108 = scmp.eq.s32.totalorder %s25, 0
    %p109 = por %p107, %p108
    %p110 = scmp.ne.s32.totalorder %s98, %s99
    %p111 = scmp.eq.s32.totalorder %s26, 1
    %p112 = por %p110, %p111
    %p114 = scmp.ne.s32.totalorder %s99, %s113
    %p115 = scmp.eq.s32.totalorder %s26, 0
    %p116 = por %p114, %p115
    %s118 = sadd.s32 %s117, 1
    %p121 = scmp.eq.s32.totalorder %s20, 1
    %p122 = scmp.ne.s32.totalorder %s117, %s119
    %p123 = scmp.eq.s32.totalorder %s20, 0
    %p124 = por %p122, %p123
    %p125 = scmp.ne.s32.totalorder %s117, %s119
    %p126 = scmp.eq.s32.totalorder %s25, 1
    %p127 = por %p125, %p126
    %p128 = scmp.ne.s32.totalorder %s119, %s120
    %p129 = scmp.eq.s32.totalorder %s25, 0
    %p130 = por %p128, %p129
    %p131 = scmp.ne.s32.totalorder %s119, %s120
    %p132 = scmp.eq.s32.totalorder %s26, 1
    %p133 = por %p131, %p132
    %p135 = scmp.ne.s32.totalorder %s120, %s134
    %p136 = scmp.eq.s32.totalorder %s26, 0
    %p137 = por %p135, %p136
    %s139 = sadd.s32 %s138, 1
    %p142 = scmp.eq.s32.totalorder %s20, 1
    %p143 = scmp.ne.s32.totalorder %s138, %s140
    %p144 = scmp.eq.s32.totalorder %s20, 0
    %p145 = por %p143, %p144
    %p146 = scmp.ne.s32.totalorder %s138, %s140
    %p147 = scmp.eq.s32.totalorder %s25, 1
    %p148 = por %p146, %p147
    %p149 = scmp.ne.s32.totalorder %s140, %s141
    %p150 = scmp.eq.s32.totalorder %s25, 0
    %p151 = por %p149, %p150
    %p152 = scmp.ne.s32.totalorder %s140, %s141
    %p153 = scmp.eq.s32.totalorder %s26, 1
    %p154 = por %p152, %p153
    %p156 = scmp.ne.s32.totalorder %s141, %s155
    %p157 = scmp.eq.s32.totalorder %s26, 0
    %p158 = por %p156, %p157
    %s160 = sadd.s32 %s159, 1
    %p163 = scmp.eq.s32.totalorder %s20, 1
    %p164 = scmp.ne.s32.totalorder %s159, %s161
    %p165 = scmp.eq.s32.totalorder %s20, 0
    %p166 = por %p164, %p165
    %p167 = scmp.ne.s32.totalorder %s159, %s161
    %p168 = scmp.eq.s32.totalorder %s25, 1
    %p169 = por %p167, %p168
    %p170 = scmp.ne.s32.totalorder %s161, %s162
    %p171 = scmp.eq.s32.totalorder %s25, 0
    %p172 = por %p170, %p171
    %p173 = scmp.ne.s32.totalorder %s161, %s162
    %p174 = scmp.eq.s32.totalorder %s26, 1
    %p175 = por %p173, %p174
    %p177 = scmp.ne.s32.totalorder %s162, %s176
    %p178 = scmp.eq.s32.totalorder %s26, 0
    %p179 = por %p177, %p178
    %s180 = ssub.s32 %s20, %s27
    %p181 = scmp.eq.s32.totalorder %s180, 0
    %s183 = sadd.s32 %s182, 1
    %s184 = scalar_select %p181, %s182, %s183
    %p187 = pneg %p181
    %p188 = scmp.eq.s32.totalorder %s20, 1
    %p189 = por %p187, %p188
    %p190 = scmp.ne.s32.totalorder %s182, %s185
    %p191 = scmp.eq.s32.totalorder %s20, 0
    %p192 = por %p190, %p191
    %p193 = scmp.ne.s32.totalorder %s182, %s185
    %p194 = scmp.eq.s32.totalorder %s25, 1
    %p195 = por %p193, %p194
    %p196 = scmp.ne.s32.totalorder %s185, %s186
    %p197 = scmp.eq.s32.totalorder %s25, 0
    %p198 = por %p196, %p197
    %p199 = scmp.ne.s32.totalorder %s185, %s186
    %p200 = scmp.eq.s32.totalorder %s26, 1
    %p201 = por %p199, %p200
    %p203 = scmp.ne.s32.totalorder %s186, %s202
    %p204 = scmp.eq.s32.totalorder %s26, 0
    %p205 = por %p203, %p204
    %p206 = scmp.le.s32.totalorder 1, %s20
    %p207 = scmp.lt.s32.totalorder %s20, 3
    %p208 = pnand %p206, %p207
    %p209 = pneg %p208
    // Predicated region
    $region9: #{_lambda_.6} parent=5 // pred_check
      _
    $region10: #{_lambda_.6} parent=5 // pred_check_branch
      %211 = sbr.rel (%p208) target = $region12
    $region11: #{_lambda_.6} parent=5 // pred_region
      %s212 = ssub.s32 %s20, 1
      // Predicated region
      $region13: #{_lambda_.6} parent=11 // pred_check
        %p213 = pneg %p67
      $region14: #{_lambda_.6} parent=11 // pred_check_branch
        %215 = sbr.rel (%p213) target = $region16
      $region15: #{_lambda_.6} parent=11 // pred_region
        _
      $region16: #{_lambda_.6} parent=11 // pred_fallthru
        _
      // Predicated region
      $region17: #{_lambda_.6} parent=11 // pred_check
        %p216 = pneg %p88
      $region18: #{_lambda_.6} parent=11 // pred_check_branch
        %218 = sbr.rel (%p216) target = $region20
      $region19: #{_lambda_.6} parent=11 // pred_region
        _
      $region20: #{_lambda_.6} parent=11 // pred_fallthru
        _
      // Predicated region
      $region21: #{_lambda_.6} parent=11 // pred_check
        %p219 = pneg %p109
      $region22: #{_lambda_.6} parent=11 // pred_check_branch
        %221 = sbr.rel (%p219) target = $region24
      $region23: #{_lambda_.6} parent=11 // pred_region
        _
      $region24: #{_lambda_.6} parent=11 // pred_fallthru
        _
      // Predicated region
      $region25: #{_lambda_.6} parent=11 // pred_check
        %p222 = pneg %p130
      $region26: #{_lambda_.6} parent=11 // pred_check_branch
        %224 = sbr.rel (%p222) target = $region28
      $region27: #{_lambda_.6} parent=11 // pred_region
        _
      $region28: #{_lambda_.6} parent=11 // pred_fallthru
        _
      // Predicated region
      $region29: #{_lambda_.6} parent=11 // pred_check
        %p225 = pneg %p151
      $region30: #{_lambda_.6} parent=11 // pred_check_branch
        %227 = sbr.rel (%p225) target = $region32
      $region31: #{_lambda_.6} parent=11 // pred_region
        _
      $region32: #{_lambda_.6} parent=11 // pred_fallthru
        _
      // Predicated region
      $region33: #{_lambda_.6} parent=11 // pred_check
        %p228 = pneg %p172
      $region34: #{_lambda_.6} parent=11 // pred_check_branch
        %230 = sbr.rel (%p228) target = $region36
      $region35: #{_lambda_.6} parent=11 // pred_region
        _
      $region36: #{_lambda_.6} parent=11 // pred_fallthru
        _
    $region12: #{_lambda_.6} parent=5 // pred_fallthru
      _
    %p231 = scmp.lt.s32.totalorder %s20, 2
    // Predicated region
    $region37: #{_lambda_.6} parent=5 // pred_check
      %p232 = pneg %p231
    $region38: #{_lambda_.6} parent=5 // pred_check_branch
      %234 = sbr.rel (%p232) target = $region40
    $region39: #{_lambda_.6} parent=5 // pred_region
      // Predicated region
      $region41: #{_lambda_.6} parent=39 // pred_check
        %p235 = pneg %p40
      $region42: #{_lambda_.6} parent=39 // pred_check_branch
        %237 = sbr.rel (%p235) target = $region44
      $region43: #{_lambda_.6} parent=39 // pred_region
        %p238 = scmp.lt.s32.totalorder %s20, 1
        %s239 = scalar_select %p238, %s20, 1
        %s240 = smul.addr %s239, 2
        %s241 = smul.addr %s240, 8
        %s242 = scalar_lea.vmem %s1, %s241
      $region44: #{_lambda_.6} parent=39 // pred_fallthru
        _
    $region40: #{_lambda_.6} parent=5 // pred_fallthru
      _
    %p243 = scmp.le.s32.totalorder 1, %s20
    %p244 = scmp.lt.s32.totalorder %s20, 3
    %p245 = pnand %p243, %p244
    %p246 = pneg %p245
    // Predicated region
    $region45: #{_lambda_.6} parent=5 // pred_check
      _
    $region46: #{_lambda_.6} parent=5 // pred_check_branch
      %248 = sbr.rel (%p245) target = $region48
    $region47: #{_lambda_.6} parent=5 // pred_region
      %s249 = ssub.s32 %s20, 1
      %p250 = scmp.lt.s32.totalorder %s25, 1
      %s251 = scalar_select %p250, %s25, 1
      %s252 = smul.addr %s251, 2
      %s253 = smul.addr %s252, 8
      %s254 = scalar_lea.vmem %s1, %s253
      %p255 = pneg %p46
      %p256 = pneg %p43
      %p257 = pneg %p67
      %p258 = pneg %p64
      %p259 = pneg %p88
      %p260 = pneg %p85
      %p261 = pneg %p109
      %p262 = pneg %p106
      %p263 = pneg %p130
      %p264 = pneg %p127
      %p265 = pneg %p151
      %p266 = pneg %p148
      %p267 = pneg %p172
      %p268 = pneg %p169
      %p269 = pneg %p198
      %p270 = pneg %p195
      %p271 = scmp.lt.s32.totalorder %s25, 1
      %s272 = scalar_select %p271, %s25, 1
      %s273 = smul.addr %s272, 2
      %s274 = smul.addr %s273, 8
      %s275 = scalar_lea.vmem %s8, %s274
      %p276 = scmp.lt.s32.totalorder %s25, 1
      %s277 = scalar_select %p276, %s25, 1
      %s278 = smul.addr %s277, 2
      %s279 = smul.addr %s278, 8
      %s280 = scalar_lea.vmem %s1, %s279
      %p281 = scmp.lt.s32.totalorder %s25, 1
      %s282 = scalar_select %p281, %s25, 1
      %s283 = smul.addr %s282, 2
      %s284 = smul.addr %s283, 8
      %s285 = scalar_lea.vmem %s8, %s284
      %s287 = sld [smem:[#allocation5 + %s25]]
      %v288 = vld [vmem:[%s280] sm:$0xff]
      %v289 = vld [vmem:[%s280 + $0x8] sm:$0xff]
      %v290 = vlaneseq
      %v291 = vshrl.u32 %v290, 7
      %v292 = vadd.s32 %v291, 8
      %v293 = vstv %s287
      %vm294 = vcmp.lt.s32.totalorder %v291, %v293
      %vm295 = vcmp.lt.s32.totalorder %v292, %v293
      %v296 = vsel %vm294, 1, 0
      %v297 = vsel %vm295, 1, 0
      %v298 = vcvt.s32.f32 %v296
      %v299 = vcvt.s32.f32 %v297
      %v300 = vmul.f32 %v288, %v298
      %v301 = vmul.f32 %v289, %v299
      %vm302 = vcmask 253952
      %303 = vst.msk [vmem:[#allocation2] sm:$0x1] %vm302, 0.0
      %304 = vst.msk [vmem:[#allocation2 + $0x11] sm:$0x1] %vm302, 0.0
      %vm305 = vcmask 261120
      %306 = vst.msk [vmem:[#allocation2 + $0x1] sm:$0xff] %vm305, %v300
      %307 = vst.msk [vmem:[#allocation2 + $0x9] sm:$0xff] %vm305, %v301
      %v308 = vld [vmem:[#allocation2] sm:$0xff]
      %v309 = vld [vmem:[#allocation2 + $0x8] sm:$0xff]
      %v310 = vpack.c.bf16 %v309, %v308
      %v311 = vld [vmem:[%s2] sm:$0xf]
      %v312 = vld [vmem:[%s2 + $0x4] sm:$0xf]
      %v313 = vld [vmem:[%s2 + $0x8] sm:$0xf]
      %v314 = vld [vmem:[%s2 + $0xc] sm:$0xf]
      %v315 = vld [vmem:[#allocation2 + $0x1] sm:$0xff]
      %v316 = vld [vmem:[#allocation2 + $0x9] sm:$0xff]
      %v317 = vpack.c.bf16 %v316, %v315
      %s318 = scalar_lea.vmem %s2, 16
      %v319 = vld [vmem:[%s318] sm:$0xf]
      %v320 = vld [vmem:[%s318 + $0x4] sm:$0xf]
      %v321 = vld [vmem:[%s318 + $0x8] sm:$0xf]
      %v322 = vld [vmem:[%s318 + $0xc] sm:$0xf]
      %v327 = vunpack.c.l.b16 %v319
      %v328 = vunpack.c.l.b16 %v320
      %v329 = vunpack.c.l.b16 %v321
      %v330 = vunpack.c.l.b16 %v322
      %v331 = vpack.c.b16 %v328, %v327
      %v332 = vpack.c.b16 %v330, %v329
      %v336 = vsel %vm305, %v317, 0
      %338 = vmatprep.subr.bf16.mxu0 0
      %339 = vmatpush1.bf16.msra.mxu0 %v331
      %340 = vmatprep.subr.bf16.mxu0 0
      %341 = vmatpush1.bf16.msra.mxu0 %v332
      %342 = vmatprep.subr.bf16.mxu0 0
      %343 = vmatpush1.bf16.msra.mxu0 0
      %344 = vmatprep.subr.bf16.mxu0 0
      %345 = vmatpush1.bf16.msra.mxu0 0
      %346 = vmatprep.subr.bf16.mxu0 0
      %347 = vmatpush1.bf16.msra.mxu0 0
      %348 = vmatprep.subr.bf16.mxu0 0
      %349 = vmatpush1.bf16.msra.mxu0 0
      %350 = vmatprep.subr.bf16.mxu0 0
      %351 = vmatpush1.bf16.msra.mxu0 0
      %352 = vmatprep.subr.bf16.mxu0 0
      %353 = vmatpush1.bf16.msra.mxu0 0
      %354 = vmatprep.subr.bf16.mxu0 0
      %355 = vmatpush1.bf16.msra.mxu0 0
      %356 = vmatprep.subr.bf16.mxu0 0
      %357 = vmatpush1.bf16.msra.mxu0 0
      %358 = vmatprep.subr.bf16.mxu0 0
      %359 = vmatpush1.bf16.msra.mxu0 0
      %360 = vmatprep.subr.bf16.mxu0 0
      %361 = vmatpush1.bf16.msra.mxu0 0
      %362 = vmatprep.subr.bf16.mxu0 0
      %363 = vmatpush1.bf16.msra.mxu0 0
      %364 = vmatprep.subr.bf16.mxu0 0
      %365 = vmatpush1.bf16.msra.mxu0 0
      %366 = vmatprep.subr.bf16.mxu0 0
      %367 = vmatpush1.bf16.msra.mxu0 0
      %368 = vmatprep.subr.bf16.mxu0 0
      %369 = vmatpush1.bf16.msra.mxu0 0
      %370 = vmatprep.mubr.bf16.mxu0 0
      %371 = vmatmul.mubr.bf16.gmra.mrb[0].mxu0 %v336
      %v372 = vpop.f32.mrb[0].mxu0
      %v373 = vadd.f32 0.0, %v372
      %v374 = vpop.f32.mrb[0].mxu0
      %v375 = vpop.f32.mrb[0].mxu0
      %v376 = vadd.f32 0.0, %v375
      %v377 = vpop.f32.mrb[0].mxu0
      %378 = vdwg.mxu0
      %v383 = vunpack.c.l.b16 %v311
      %v384 = vunpack.c.l.b16 %v312
      %v385 = vunpack.c.l.b16 %v313
      %v386 = vunpack.c.l.b16 %v314
      %v387 = vpack.c.b16 %v384, %v383
      %v388 = vpack.c.b16 %v386, %v385
      %v392 = vsel %vm305, %v310, 0
      %394 = vmatprep.subr.bf16.mxu0 0
      %395 = vmatpush1.bf16.msra.mxu0 %v387
      %396 = vmatprep.subr.bf16.mxu0 0
      %397 = vmatpush1.bf16.msra.mxu0 %v388
      %398 = vmatprep.subr.bf16.mxu0 0
      %399 = vmatpush1.bf16.msra.mxu0 0
      %400 = vmatprep.subr.bf16.mxu0 0
      %401 = vmatpush1.bf16.msra.mxu0 0
      %402 = vmatprep.subr.bf16.mxu0 0
      %403 = vmatpush1.bf16.msra.mxu0 0
      %404 = vmatprep.subr.bf16.mxu0 0
      %405 = vmatpush1.bf16.msra.mxu0 0
      %406 = vmatprep.subr.bf16.mxu0 0
      %407 = vmatpush1.bf16.msra.mxu0 0
      %408 = vmatprep.subr.bf16.mxu0 0
      %409 = vmatpush1.bf16.msra.mxu0 0
      %410 = vmatprep.subr.bf16.mxu0 0
      %411 = vmatpush1.bf16.msra.mxu0 0
      %412 = vmatprep.subr.bf16.mxu0 0
      %413 = vmatpush1.bf16.msra.mxu0 0
      %414 = vmatprep.subr.bf16.mxu0 0
      %415 = vmatpush1.bf16.msra.mxu0 0
      %416 = vmatprep.subr.bf16.mxu0 0
      %417 = vmatpush1.bf16.msra.mxu0 0
      %418 = vmatprep.subr.bf16.mxu0 0
      %419 = vmatpush1.bf16.msra.mxu0 0
      %420 = vmatprep.subr.bf16.mxu0 0
      %421 = vmatpush1.bf16.msra.mxu0 0
      %422 = vmatprep.subr.bf16.mxu0 0
      %423 = vmatpush1.bf16.msra.mxu0 0
      %424 = vmatprep.subr.bf16.mxu0 0
      %425 = vmatpush1.bf16.msra.mxu0 0
      %426 = vmatprep.mubr.bf16.mxu0 0
      %427 = vmatmul.mubr.bf16.gmra.mrb[0].mxu0 %v392
      %v428 = vpop.f32.mrb[0].mxu0
      %v429 = vadd.f32 %v373, %v428
      %v430 = vpop.f32.mrb[0].mxu0
      %v431 = vpop.f32.mrb[0].mxu0
      %v432 = vadd.f32 %v376, %v431
      %v433 = vpop.f32.mrb[0].mxu0
      %434 = vdwg.mxu0
      %v435 = vld [vmem:[#allocation2 + $0x2] sm:$0xff]
      %v436 = vld [vmem:[#allocation2 + $0xa] sm:$0xff]
      %v437 = vpack.c.bf16 %v436, %v435
      %s438 = scalar_lea.vmem %s2, 32
      %v439 = vld [vmem:[%s438] sm:$0xf]
      %v440 = vld [vmem:[%s438 + $0x4] sm:$0xf]
      %v441 = vld [vmem:[%s438 + $0x8] sm:$0xf]
      %v442 = vld [vmem:[%s438 + $0xc] sm:$0xf]
      %v447 = vunpack.c.l.b16 %v439
      %v448 = vunpack.c.l.b16 %v440
      %v449 = vunpack.c.l.b16 %v441
      %v450 = vunpack.c.l.b16 %v442
      %v451 = vpack.c.b16 %v448, %v447
      %v452 = vpack.c.b16 %v450, %v449
      %v456 = vsel %vm305, %v437, 0
      %458 = vmatprep.subr.bf16.mxu0 0
      %459 = vmatpush1.bf16.msra.mxu0 %v451
      %460 = vmatprep.subr.bf16.mxu0 0
      %461 = vmatpush1.bf16.msra.mxu0 %v452
      %462 = vmatprep.subr.bf16.mxu0 0
      %463 = vmatpush1.bf16.msra.mxu0 0
      %464 = vmatprep.subr.bf16.mxu0 0
      %465 = vmatpush1.bf16.msra.mxu0 0
      %466 = vmatprep.subr.bf16.mxu0 0
      %467 = vmatpush1.bf16.msra.mxu0 0
      %468 = vmatprep.subr.bf16.mxu0 0
      %469 = vmatpush1.bf16.msra.mxu0 0
      %470 = vmatprep.subr.bf16.mxu0 0
      %471 = vmatpush1.bf16.msra.mxu0 0
      %472 = vmatprep.subr.bf16.mxu0 0
      %473 = vmatpush1.bf16.msra.mxu0 0
      %474 = vmatprep.subr.bf16.mxu0 0
      %475 = vmatpush1.bf16.msra.mxu0 0
      %476 = vmatprep.subr.bf16.mxu0 0
      %477 = vmatpush1.bf16.msra.mxu0 0
      %478 = vmatprep.subr.bf16.mxu0 0
      %479 = vmatpush1.bf16.msra.mxu0 0
      %480 = vmatprep.subr.bf16.mxu0 0
      %481 = vmatpush1.bf16.msra.mxu0 0
      %482 = vmatprep.subr.bf16.mxu0 0
      %483 = vmatpush1.bf16.msra.mxu0 0
      %484 = vmatprep.subr.bf16.mxu0 0
      %485 = vmatpush1.bf16.msra.mxu0 0
      %486 = vmatprep.subr.bf16.mxu0 0
      %487 = vmatpush1.bf16.msra.mxu0 0
      %488 = vmatprep.subr.bf16.mxu0 0
      %489 = vmatpush1.bf16.msra.mxu0 0
      %490 = vmatprep.mubr.bf16.mxu0 0
      %491 = vmatmul.mubr.bf16.gmra.mrb[0].mxu0 %v456
      %v492 = vpop.f32.mrb[0].mxu0
      %v493 = vadd.f32 0.0, %v492
      %v494 = vpop.f32.mrb[0].mxu0
      %v495 = vpop.f32.mrb[0].mxu0
      %v496 = vadd.f32 0.0, %v495
      %v497 = vpop.f32.mrb[0].mxu0
      %498 = vdwg.mxu0
      %v499 = vadd.f32 %v429, %v493
      %v500 = vadd.f32 %v432, %v496
      %v501 = vld [vmem:[%s3] sm:$0x1]
      %v503 = vlaneseq
      %v504 = vshrl.u32 %v503, 7
      %v505 = vsub.s32 0, %v504
      %v506 = vrot.slane %v501, %v505
      %v508 = vadd.f32 %v499, %v506
      %v509 = vadd.f32 %v500, %v506
      %v510 = vmax.f32 %v508, 0.0
      %v511 = vmax.f32 %v509, 0.0
      %v512 = vmul.f32 %v510, %v298
      %v513 = vmul.f32 %v511, %v299
      %vm514 = vcmask 516096
      %515 = vst.msk [vmem:[#allocation3] sm:$0x1] %vm514, 0.0
      %516 = vst.msk [vmem:[#allocation3 + $0x11] sm:$0x1] %vm514, 0.0
      %vm517 = vcmask 523264
      %518 = vst.msk [vmem:[#allocation3 + $0x1] sm:$0xff] %vm517, %v512
      %519 = vst.msk [vmem:[#allocation3 + $0x9] sm:$0xff] %vm517, %v513
      %v520 = vld [vmem:[#allocation3] sm:$0xff]
      %v521 = vld [vmem:[#allocation3 + $0x8] sm:$0xff]
      %v522 = vpack.c.bf16 %v521, %v520
      %v523 = vld [vmem:[%s4] sm:$0xf]
      %v524 = vld [vmem:[%s4 + $0x4] sm:$0xf]
      %v525 = vld [vmem:[%s4 + $0x8] sm:$0xf]
      %v526 = vld [vmem:[%s4 + $0xc] sm:$0xf]
      %v527 = vld [vmem:[%s4 + $0x10] sm:$0xf]
      %v528 = vld [vmem:[%s4 + $0x14] sm:$0xf]
      %v529 = vld [vmem:[%s4 + $0x18] sm:$0xf]
      %v530 = vld [vmem:[%s4 + $0x1c] sm:$0xf]
      %v531 = vld [vmem:[#allocation3 + $0x1] sm:$0xff]
      %v532 = vld [vmem:[#allocation3 + $0x9] sm:$0xff]
      %v533 = vpack.c.bf16 %v532, %v531
      %s534 = scalar_lea.vmem %s4, 32
      %v535 = vld [vmem:[%s534] sm:$0xf]
      %v536 = vld [vmem:[%s534 + $0x4] sm:$0xf]
      %v537 = vld [vmem:[%s534 + $0x8] sm:$0xf]
      %v538 = vld [vmem:[%s534 + $0xc] sm:$0xf]
      %v539 = vld [vmem:[%s534 + $0x10] sm:$0xf]
      %v540 = vld [vmem:[%s534 + $0x14] sm:$0xf]
      %v541 = vld [vmem:[%s534 + $0x18] sm:$0xf]
      %v542 = vld [vmem:[%s534 + $0x1c] sm:$0xf]
      %v551 = vunpack.c.l.b16 %v535
      %v552 = vunpack.c.l.b16 %v536
      %v553 = vunpack.c.l.b16 %v537
      %v554 = vunpack.c.l.b16 %v538
      %v555 = vunpack.c.l.b16 %v539
      %v556 = vunpack.c.l.b16 %v540
      %v557 = vunpack.c.l.b16 %v541
      %v558 = vunpack.c.l.b16 %v542
      %v559 = vpack.c.b16 %v552, %v551
      %v560 = vpack.c.b16 %v554, %v553
      %v561 = vpack.c.b16 %v556, %v555
      %v562 = vpack.c.b16 %v558, %v557
      %v568 = vsel %vm517, %v533, 0
      %570 = vmatprep.subr.bf16.mxu0 0
      %571 = vmatpush1.bf16.msra.mxu0 %v559
      %572 = vmatprep.subr.bf16.mxu0 0
      %573 = vmatpush1.bf16.msra.mxu0 %v560
      %574 = vmatprep.subr.bf16.mxu0 0
      %575 = vmatpush1.bf16.msra.mxu0 %v561
      %576 = vmatprep.subr.bf16.mxu0 0
      %577 = vmatpush1.bf16.msra.mxu0 %v562
      %578 = vmatprep.subr.bf16.mxu0 0
      %579 = vmatpush1.bf16.msra.mxu0 0
      %580 = vmatprep.subr.bf16.mxu0 0
      %581 = vmatpush1.bf16.msra.mxu0 0
      %582 = vmatprep.subr.bf16.mxu0 0
      %583 = vmatpush1.bf16.msra.mxu0 0
      %584 = vmatprep.subr.bf16.mxu0 0
      %585 = vmatpush1.bf16.msra.mxu0 0
      %586 = vmatprep.subr.bf16.mxu0 0
      %587 = vmatpush1.bf16.msra.mxu0 0
      %588 = vmatprep.subr.bf16.mxu0 0
      %589 = vmatpush1.bf16.msra.mxu0 0
      %590 = vmatprep.subr.bf16.mxu0 0
      %591 = vmatpush1.bf16.msra.mxu0 0
      %592 = vmatprep.subr.bf16.mxu0 0
      %593 = vmatpush1.bf16.msra.mxu0 0
      %594 = vmatprep.subr.bf16.mxu0 0
      %595 = vmatpush1.bf16.msra.mxu0 0
      %596 = vmatprep.subr.bf16.mxu0 0
      %597 = vmatpush1.bf16.msra.mxu0 0
      %598 = vmatprep.subr.bf16.mxu0 0
      %599 = vmatpush1.bf16.msra.mxu0 0
      %600 = vmatprep.subr.bf16.mxu0 0
      %601 = vmatpush1.bf16.msra.mxu0 0
      %602 = vmatprep.mubr.bf16.mxu0 0
      %603 = vmatmul.mubr.bf16.gmra.mrb[0].mxu0 %v568
      %v604 = vpop.f32.mrb[0].mxu0
      %v605 = vadd.f32 0.0, %v604
      %v606 = vpop.f32.mrb[0].mxu0
      %v607 = vpop.f32.mrb[0].mxu0
      %v608 = vadd.f32 0.0, %v607
      %v609 = vpop.f32.mrb[0].mxu0
      %610 = vdwg.mxu0
      %v619 = vunpack.c.l.b16 %v523
      %v620 = vunpack.c.l.b16 %v524
      %v621 = vunpack.c.l.b16 %v525
      %v622 = vunpack.c.l.b16 %v526
      %v623 = vunpack.c.l.b16 %v527
      %v624 = vunpack.c.l.b16 %v528
      %v625 = vunpack.c.l.b16 %v529
      %v626 = vunpack.c.l.b16 %v530
      %v627 = vpack.c.b16 %v620, %v619
      %v628 = vpack.c.b16 %v622, %v621
      %v629 = vpack.c.b16 %v624, %v623
      %v630 = vpack.c.b16 %v626, %v625
      %v636 = vsel %vm517, %v522, 0
      %638 = vmatprep.subr.bf16.mxu0 0
      %639 = vmatpush1.bf16.msra.mxu0 %v627
      %640 = vmatprep.subr.bf16.mxu0 0
      %641 = vmatpush1.bf16.msra.mxu0 %v628
      %642 = vmatprep.subr.bf16.mxu0 0
      %643 = vmatpush1.bf16.msra.mxu0 %v629
      %644 = vmatprep.subr.bf16.mxu0 0
      %645 = vmatpush1.bf16.msra.mxu0 %v630
      %646 = vmatprep.subr.bf16.mxu0 0
      %647 = vmatpush1.bf16.msra.mxu0 0
      %648 = vmatprep.subr.bf16.mxu0 0
      %649 = vmatpush1.bf16.msra.mxu0 0
      %650 = vmatprep.subr.bf16.mxu0 0
      %651 = vmatpush1.bf16.msra.mxu0 0
      %652 = vmatprep.subr.bf16.mxu0 0
      %653 = vmatpush1.bf16.msra.mxu0 0
      %654 = vmatprep.subr.bf16.mxu0 0
      %655 = vmatpush1.bf16.msra.mxu0 0
      %656 = vmatprep.subr.bf16.mxu0 0
      %657 = vmatpush1.bf16.msra.mxu0 0
      %658 = vmatprep.subr.bf16.mxu0 0
      %659 = vmatpush1.bf16.msra.mxu0 0
      %660 = vmatprep.subr.bf16.mxu0 0
      %661 = vmatpush1.bf16.msra.mxu0 0
      %662 = vmatprep.subr.bf16.mxu0 0
      %663 = vmatpush1.bf16.msra.mxu0 0
      %664 = vmatprep.subr.bf16.mxu0 0
      %665 = vmatpush1.bf16.msra.mxu0 0
      %666 = vmatprep.subr.bf16.mxu0 0
      %667 = vmatpush1.bf16.msra.mxu0 0
      %668 = vmatprep.subr.bf16.mxu0 0
      %669 = vmatpush1.bf16.msra.mxu0 0
      %670 = vmatprep.mubr.bf16.mxu0 0
      %671 = vmatmul.mubr.bf16.gmra.mrb[0].mxu0 %v636
      %v672 = vpop.f32.mrb[0].mxu0
      %v673 = vadd.f32 %v605, %v672
      %v674 = vpop.f32.mrb[0].mxu0
      %v675 = vpop.f32.mrb[0].mxu0
      %v676 = vadd.f32 %v608, %v675
      %v677 = vpop.f32.mrb[0].mxu0
      %678 = vdwg.mxu0
      %v679 = vld [vmem:[#allocation3 + $0x2] sm:$0xff]
      %v680 = vld [vmem:[#allocation3 + $0xa] sm:$0xff]
      %v681 = vpack.c.bf16 %v680, %v679
      %s682 = scalar_lea.vmem %s4, 64
      %v683 = vld [vmem:[%s682] sm:$0xf]
      %v684 = vld [vmem:[%s682 + $0x4] sm:$0xf]
      %v685 = vld [vmem:[%s682 + $0x8] sm:$0xf]
      %v686 = vld [vmem:[%s682 + $0xc] sm:$0xf]
      %v687 = vld [vmem:[%s682 + $0x10] sm:$0xf]
      %v688 = vld [vmem:[%s682 + $0x14] sm:$0xf]
      %v689 = vld [vmem:[%s682 + $0x18] sm:$0xf]
      %v690 = vld [vmem:[%s682 + $0x1c] sm:$0xf]
      %v699 = vunpack.c.l.b16 %v683
      %v700 = vunpack.c.l.b16 %v684
      %v701 = vunpack.c.l.b16 %v685
      %v702 = vunpack.c.l.b16 %v686
      %v703 = vunpack.c.l.b16 %v687
      %v704 = vunpack.c.l.b16 %v688
      %v705 = vunpack.c.l.b16 %v689
      %v706 = vunpack.c.l.b16 %v690
      %v707 = vpack.c.b16 %v700, %v699
      %v708 = vpack.c.b16 %v702, %v701
      %v709 = vpack.c.b16 %v704, %v703
      %v710 = vpack.c.b16 %v706, %v705
      %v716 = vsel %vm517, %v681, 0
      %718 = vmatprep.subr.bf16.mxu0 0
      %719 = vmatpush1.bf16.msra.mxu0 %v707
      %720 = vmatprep.subr.bf16.mxu0 0
      %721 = vmatpush1.bf16.msra.mxu0 %v708
      %722 = vmatprep.subr.bf16.mxu0 0
      %723 = vmatpush1.bf16.msra.mxu0 %v709
      %724 = vmatprep.subr.bf16.mxu0 0
      %725 = vmatpush1.bf16.msra.mxu0 %v710
      %726 = vmatprep.subr.bf16.mxu0 0
      %727 = vmatpush1.bf16.msra.mxu0 0
      %728 = vmatprep.subr.bf16.mxu0 0
      %729 = vmatpush1.bf16.msra.mxu0 0
      %730 = vmatprep.subr.bf16.mxu0 0
      %731 = vmatpush1.bf16.msra.mxu0 0
      %732 = vmatprep.subr.bf16.mxu0 0
      %733 = vmatpush1.bf16.msra.mxu0 0
      %734 = vmatprep.subr.bf16.mxu0 0
      %735 = vmatpush1.bf16.msra.mxu0 0
      %736 = vmatprep.subr.bf16.mxu0 0
      %737 = vmatpush1.bf16.msra.mxu0 0
      %738 = vmatprep.subr.bf16.mxu0 0
      %739 = vmatpush1.bf16.msra.mxu0 0
      %740 = vmatprep.subr.bf16.mxu0 0
      %741 = vmatpush1.bf16.msra.mxu0 0
      %742 = vmatprep.subr.bf16.mxu0 0
      %743 = vmatpush1.bf16.msra.mxu0 0
      %744 = vmatprep.subr.bf16.mxu0 0
      %745 = vmatpush1.bf16.msra.mxu0 0
      %746 = vmatprep.subr.bf16.mxu0 0
      %747 = vmatpush1.bf16.msra.mxu0 0
      %748 = vmatprep.subr.bf16.mxu0 0
      %749 = vmatpush1.bf16.msra.mxu0 0
      %750 = vmatprep.mubr.bf16.mxu0 0
      %751 = vmatmul.mubr.bf16.gmra.mrb[0].mxu0 %v716
      %v752 = vpop.f32.mrb[0].mxu0
      %v753 = vadd.f32 0.0, %v752
      %v754 = vpop.f32.mrb[0].mxu0
      %v755 = vpop.f32.mrb[0].mxu0
      %v756 = vadd.f32 0.0, %v755
      %v757 = vpop.f32.mrb[0].mxu0
      %758 = vdwg.mxu0
      %v759 = vadd.f32 %v673, %v753
      %v760 = vadd.f32 %v676, %v756
      %v761 = vld [vmem:[%s5] sm:$0x1]
      %v763 = vlaneseq
      %v764 = vshrl.u32 %v763, 7
      %v765 = vsub.s32 0, %v764
      %v766 = vrot.slane %v761, %v765
      %v768 = vadd.f32 %v759, %v766
      %v769 = vadd.f32 %v760, %v766
      %v770 = vmul.f32 %v768, %v298
      %v771 = vmul.f32 %v769, %v299
      %v772 = vadd.f32 %v288, %v770
      %v773 = vadd.f32 %v289, %v771
      %v774 = vsel %vm305, %v772, 0.0
      %775 = vadd.xlane.f32.xlu0 %v774
      %v776 = vpop.xlane.xlu0 %775
      %v777 = vsel %vm305, %v773, 0.0
      %778 = vadd.xlane.f32.xlu0 %v777
      %v779 = vpop.xlane.xlu0 %778
      %v780 = vrcp.pop 32.0
      %v781 = vmul.f32 %v776, %v780
      %v782 = vmul.f32 %v779, %v780
      %v783 = vsub.f32 %v772, %v781
      %v784 = vsub.f32 %v773, %v782
      %v785 = vmul.f32 %v783, %v783
      %v786 = vmul.f32 %v784, %v784
      %v787 = vsel %vm305, %v785, 0.0
      %788 = vadd.xlane.f32.xlu0 %v787
      %v789 = vpop.xlane.xlu0 %788
      %v790 = vsel %vm305, %v786, 0.0
      %791 = vadd.xlane.f32.xlu0 %v790
      %v792 = vpop.xlane.xlu0 %791
      %v793 = vmul.f32 %v789, %v780
      %v794 = vmul.f32 %v792, %v780
      %v795 = vadd.f32 %v793, 1e-05
      %v796 = vadd.f32 %v794, 1e-05
      %v797 = vrsqrt.pop %v795
      %v798 = vrsqrt.pop %v796
      %v799 = vmul.f32 %v783, %v797
      %v800 = vmul.f32 %v784, %v798
      %v801 = vld [vmem:[%s6] sm:$0x1]
      %v803 = vlaneseq
      %v804 = vshrl.u32 %v803, 7
      %v805 = vsub.s32 0, %v804
      %v806 = vrot.slane %v801, %v805
      %v808 = vmul.f32 %v799, %v806
      %v809 = vmul.f32 %v800, %v806
      %v810 = vld [vmem:[%s7] sm:$0x1]
      %v812 = vlaneseq
      %v813 = vshrl.u32 %v812, 7
      %v814 = vsub.s32 0, %v813
      %v815 = vrot.slane %v810, %v814
      %v817 = vadd.f32 %v808, %v815
      %v818 = vadd.f32 %v809, %v815
      %819 = vst.msk [vmem:[%s285] sm:$0xff] %vm305, %v817
      %820 = vst.msk [vmem:[%s285 + $0x8] sm:$0xff] %vm305, %v818
      %p821 = scmp.lt.s32.totalorder %s25, 1
      %s822 = scalar_select %p821, %s25, 1
      %s823 = smul.addr %s822, 2
      %s824 = smul.addr %s823, 8
      %s825 = scalar_lea.vmem %s8, %s824
      // Predicated region
      $region49: #{_lambda_.6} parent=47 // pred_check
        %p826 = pneg %p195
      $region50: #{_lambda_.6} parent=47 // pred_check_branch
        %828 = sbr.rel (%p826) target = $region52
      $region51: #{_lambda_.6} parent=47 // pred_region
        _
      $region52: #{_lambda_.6} parent=47 // pred_fallthru
        _
    $region48: #{_lambda_.6} parent=5 // pred_fallthru
      _
    %p829 = scmp.le.s32.totalorder 2, %s20
    // Predicated region
    $region53: #{_lambda_.6} parent=5 // pred_check
      %p830 = pneg %p829
    $region54: #{_lambda_.6} parent=5 // pred_check_branch
      %832 = sbr.rel (%p830) target = $region56
    $region55: #{_lambda_.6} parent=5 // pred_region
      %s833 = ssub.s32 %s20, 2
      // Predicated region
      $region57: #{_lambda_.6} parent=55 // pred_check
        %p834 = pneg %p201
      $region58: #{_lambda_.6} parent=55 // pred_check_branch
        %836 = sbr.rel (%p834) target = $region60
      $region59: #{_lambda_.6} parent=55 // pred_region
        %p837 = scmp.lt.s32.totalorder %s26, 1
        %s838 = scalar_select %p837, %s26, 1
        %s839 = smul.addr %s838, 2
        %s840 = smul.addr %s839, 8
        %s841 = scalar_lea.vmem %s8, %s840
      $region60: #{_lambda_.6} parent=55 // pred_fallthru
        _
    $region56: #{_lambda_.6} parent=5 // pred_fallthru
      _
  $region6: #{_lambda_.6} parent=0 // loop_footer
    %s24 = sadd.s32 1, %s20
  $region7: #{_lambda_.6} parent=0 // loop_footer_branch
    %19 = sbr.rel target = $region3
  $region8: #{_lambda_.6} parent=0 // loop_exit
    _

// kernel: _lambda_.5
$region0: #{_lambda_.5}
  #allocation0 [shape = 'u32[]', space=smem, size = 0x4, offset = 0x4, fixed_abs, tag = 'smem constant byte address 0x4 - core index']
  #allocation1 [shape = 'u32[144,128]{1,0:T(1,128)}', space=vmem, size = 0x12000, scoped, tag = 'internal scratch']
  #allocation2 [shape = 's32[1]{0}', space=sflag, size = 0x4, scoped, tag = 'scoped memory for _lambda_.5']
  #allocation3 [shape = 'u8[512]{0}', space=smem, size = 0x200, scoped, tag = 'prefetched SMEM operand 0']
  %s0 = inlined_call_operand.hbm [shape: s32[2], index: 0, kind: input, shape index: {}]
  %s1 = inlined_call_operand.hbm [shape: f32[2,16,32], index: 1, kind: input, shape index: {}]
  %s2 = inlined_call_operand.vmem [shape: bf16[2,32,16], index: 2, kind: input, shape index: {}]
  %s3 = inlined_call_operand.vmem [shape: bf16[2,32,16], index: 3, kind: input, shape index: {}]
  %s4 = inlined_call_operand.vmem [shape: bf16[2,32,16], index: 4, kind: input, shape index: {}]
  %s5 = inlined_call_operand.vmem [shape: bf16[2,16,32], index: 5, kind: input, shape index: {}]
  %s6 = inlined_call_operand.vmem [shape: f32[2,1,16], index: 6, kind: input, shape index: {}]
  %s7 = inlined_call_operand.vmem [shape: f32[2,1,16], index: 7, kind: input, shape index: {}]
  %s8 = inlined_call_operand.vmem [shape: f32[2,1,16], index: 8, kind: input, shape index: {}]
  %s9 = inlined_call_operand.vmem [shape: f32[1,32], index: 9, kind: input, shape index: {}]
  %s10 = inlined_call_operand.hbm [shape: f32[9,16], index: 10, kind: input, shape index: {}]
  %s11 = inlined_call_operand.hbm [shape: f32[9,16], index: 11, kind: input, shape index: {}]
  %s12 = inlined_call_operand.vmem [shape: f32[1,32], index: 12, kind: input, shape index: {}]
  %s13 = inlined_call_operand.vmem [shape: f32[1,32], index: 13, kind: input, shape index: {}]
  %s14 = inlined_call_operand.vmem [shape: f32[2,16,32], index: 14, kind: output, shape index: {}]
  %s15 = sld [smem:[#allocation0]]
  $region97: #{_lambda_.5} parent=0
    _
  %s17 = ssub.s32 1, %s15
  %s18 = scalar_select 0, %s17, %s15
  %20 = dma.hbm_to_smem %s0, 16, [#allocation3], [#allocation2]
  %21 = dma.done [#allocation2], 16
  %22 = sfence
  $region1: #{_lambda_.5} parent=0
    #allocation4 [shape = 'u8[16384]{0}', space=vmem, size = 0x4000, scoped, tag = 'input window, operand 1']
    #allocation5 [shape = 's32[2]{0}', space=sflag, size = 0x8, scoped, tag = 'scoped memory for _lambda_.5']
    #allocation6 [shape = 'u8[8192]{0}', space=vmem, size = 0x2000, scoped, tag = 'input window, operand 10, single buffered']
    #allocation7 [shape = 's32[1]{0}', space=sflag, size = 0x4, scoped, tag = 'scoped memory for _lambda_.5']
    #allocation8 [shape = 'u8[8192]{0}', space=vmem, size = 0x2000, scoped, tag = 'input window, operand 11, single buffered']
    %23 = vsyncpa [#allocation5], 0
    %s24 = scalar_lea.sflag [#allocation5], 1
    %25 = vsyncpa %s24, 0
    %26 = vsyncpa [#allocation7], 0
    loop: start=0, step=1, limit=4
    $region2: #{_lambda_.5} parent=1 // loop_pre_header
      _
    $region3: #{_lambda_.5} parent=1 // loop_header
      %s28 = sphi 0, %s32
      %p29 = scmp.ge.s32.totalorder %s28, 4
      %s38 = sphi 0, %s40
      %s41 = sphi 0, %s38
      %s42 = sphi 0, %s41
      %s58 = sphi 0, %s42
      %s62 = sphi 0, %s62
      %s64 = sphi 0, %s62
      %s65 = sphi 0, %s64
      %s79 = sphi 0, %s65
      %s83 = sphi 0, %s83
      %s85 = sphi 0, %s83
      %s86 = sphi 0, %s85
      %s100 = sphi 0, %s86
      %s104 = sphi 0, %s104
      %s106 = sphi 0, %s104
      %s107 = sphi 0, %s106
      %s121 = sphi 0, %s107
      %s125 = sphi 0, %s125
      %s127 = sphi 0, %s125
      %s128 = sphi 0, %s127
      %s142 = sphi 0, %s128
      %s146 = sphi 0, %s146
      %s148 = sphi 0, %s146
      %s149 = sphi 0, %s148
      %s163 = sphi 0, %s149
      %s167 = sphi 0, %s167
      %s169 = sphi 0, %s167
      %s170 = sphi 0, %s169
      %s184 = sphi 0, %s170
      %s188 = sphi 0, %s188
      %s190 = sphi 0, %s188
      %s191 = sphi 0, %s190
      %s205 = sphi 0, %s191
      %s209 = sphi 0, %s209
      %s211 = sphi 0, %s209
      %s212 = sphi 0, %s211
      %s226 = sphi 0, %s212
      %s230 = sphi 0, %s230
      %s232 = sphi 0, %s230
      %s233 = sphi 0, %s232
      %s247 = sphi 0, %s233
      %s251 = sphi 0, %s251
      %s253 = sphi 0, %s251
      %s254 = sphi 0, %s253
      %s268 = sphi 0, %s254
      %s272 = sphi 0, %s272
      %s274 = sphi 0, %s272
      %s275 = sphi 0, %s274
      %s289 = sphi 0, %s275
      %s293 = sphi 0, %s293
      %s295 = sphi 0, %s293
      %s296 = sphi 0, %s295
      %s310 = sphi 0, %s296
      %s316 = sphi 0, %s318
      %s319 = sphi 0, %s316
      %s320 = sphi 0, %s319
      %s336 = sphi 0, %s320
    $region4: #{_lambda_.5} parent=1 // loop_header_branch
      %31 = sbr.rel (%p29) target = $region8
    $region5: #{_lambda_.5} parent=1 // loop_body
      %s33 = ssub.s32 %s28, 1
      %s34 = ssub.s32 %s28, 2
      %s35 = sadd.s32 %s28, 1
      %s36 = ssub.s32 %s28, %s35
      %p37 = scmp.eq.s32.totalorder %s36, 0
      %s39 = sadd.s32 %s38, 1
      %s40 = scalar_select %p37, %s38, %s39
      %p43 = pneg %p37
      %p44 = scmp.eq.s32.totalorder %s28, 1
      %p45 = por %p43, %p44
      %p46 = scmp.ne.s32.totalorder %s38, %s41
      %p47 = scmp.eq.s32.totalorder %s28, 0
      %p48 = por %p46, %p47
      %p49 = scmp.ne.s32.totalorder %s38, %s41
      %p50 = scmp.eq.s32.totalorder %s33, 1
      %p51 = por %p49, %p50
      %p52 = scmp.ne.s32.totalorder %s41, %s42
      %p53 = scmp.eq.s32.totalorder %s33, 0
      %p54 = por %p52, %p53
      %p55 = scmp.ne.s32.totalorder %s41, %s42
      %p56 = scmp.eq.s32.totalorder %s34, 1
      %p57 = por %p55, %p56
      %p59 = scmp.ne.s32.totalorder %s42, %s58
      %p60 = scmp.eq.s32.totalorder %s34, 0
      %p61 = por %p59, %p60
      %s63 = sadd.s32 %s62, 1
      %p66 = scmp.eq.s32.totalorder %s28, 1
      %p67 = scmp.ne.s32.totalorder %s62, %s64
      %p68 = scmp.eq.s32.totalorder %s28, 0
      %p69 = por %p67, %p68
      %p70 = scmp.ne.s32.totalorder %s62, %s64
      %p71 = scmp.eq.s32.totalorder %s33, 1
      %p72 = por %p70, %p71
      %p73 = scmp.ne.s32.totalorder %s64, %s65
      %p74 = scmp.eq.s32.totalorder %s33, 0
      %p75 = por %p73, %p74
      %p76 = scmp.ne.s32.totalorder %s64, %s65
      %p77 = scmp.eq.s32.totalorder %s34, 1
      %p78 = por %p76, %p77
      %p80 = scmp.ne.s32.totalorder %s65, %s79
      %p81 = scmp.eq.s32.totalorder %s34, 0
      %p82 = por %p80, %p81
      %s84 = sadd.s32 %s83, 1
      %p87 = scmp.eq.s32.totalorder %s28, 1
      %p88 = scmp.ne.s32.totalorder %s83, %s85
      %p89 = scmp.eq.s32.totalorder %s28, 0
      %p90 = por %p88, %p89
      %p91 = scmp.ne.s32.totalorder %s83, %s85
      %p92 = scmp.eq.s32.totalorder %s33, 1
      %p93 = por %p91, %p92
      %p94 = scmp.ne.s32.totalorder %s85, %s86
      %p95 = scmp.eq.s32.totalorder %s33, 0
      %p96 = por %p94, %p95
      %p97 = scmp.ne.s32.totalorder %s85, %s86
      %p98 = scmp.eq.s32.totalorder %s34, 1
      %p99 = por %p97, %p98
      %p101 = scmp.ne.s32.totalorder %s86, %s100
      %p102 = scmp.eq.s32.totalorder %s34, 0
      %p103 = por %p101, %p102
      %s105 = sadd.s32 %s104, 1
      %p108 = scmp.eq.s32.totalorder %s28, 1
      %p109 = scmp.ne.s32.totalorder %s104, %s106
      %p110 = scmp.eq.s32.totalorder %s28, 0
      %p111 = por %p109, %p110
      %p112 = scmp.ne.s32.totalorder %s104, %s106
      %p113 = scmp.eq.s32.totalorder %s33, 1
      %p114 = por %p112, %p113
      %p115 = scmp.ne.s32.totalorder %s106, %s107
      %p116 = scmp.eq.s32.totalorder %s33, 0
      %p117 = por %p115, %p116
      %p118 = scmp.ne.s32.totalorder %s106, %s107
      %p119 = scmp.eq.s32.totalorder %s34, 1
      %p120 = por %p118, %p119
      %p122 = scmp.ne.s32.totalorder %s107, %s121
      %p123 = scmp.eq.s32.totalorder %s34, 0
      %p124 = por %p122, %p123
      %s126 = sadd.s32 %s125, 1
      %p129 = scmp.eq.s32.totalorder %s28, 1
      %p130 = scmp.ne.s32.totalorder %s125, %s127
      %p131 = scmp.eq.s32.totalorder %s28, 0
      %p132 = por %p130, %p131
      %p133 = scmp.ne.s32.totalorder %s125, %s127
      %p134 = scmp.eq.s32.totalorder %s33, 1
      %p135 = por %p133, %p134
      %p136 = scmp.ne.s32.totalorder %s127, %s128
      %p137 = scmp.eq.s32.totalorder %s33, 0
      %p138 = por %p136, %p137
      %p139 = scmp.ne.s32.totalorder %s127, %s128
      %p140 = scmp.eq.s32.totalorder %s34, 1
      %p141 = por %p139, %p140
      %p143 = scmp.ne.s32.totalorder %s128, %s142
      %p144 = scmp.eq.s32.totalorder %s34, 0
      %p145 = por %p143, %p144
      %s147 = sadd.s32 %s146, 1
      %p150 = scmp.eq.s32.totalorder %s28, 1
      %p151 = scmp.ne.s32.totalorder %s146, %s148
      %p152 = scmp.eq.s32.totalorder %s28, 0
      %p153 = por %p151, %p152
      %p154 = scmp.ne.s32.totalorder %s146, %s148
      %p155 = scmp.eq.s32.totalorder %s33, 1
      %p156 = por %p154, %p155
      %p157 = scmp.ne.s32.totalorder %s148, %s149
      %p158 = scmp.eq.s32.totalorder %s33, 0
      %p159 = por %p157, %p158
      %p160 = scmp.ne.s32.totalorder %s148, %s149
      %p161 = scmp.eq.s32.totalorder %s34, 1
      %p162 = por %p160, %p161
      %p164 = scmp.ne.s32.totalorder %s149, %s163
      %p165 = scmp.eq.s32.totalorder %s34, 0
      %p166 = por %p164, %p165
      %s168 = sadd.s32 %s167, 1
      %p171 = scmp.eq.s32.totalorder %s28, 1
      %p172 = scmp.ne.s32.totalorder %s167, %s169
      %p173 = scmp.eq.s32.totalorder %s28, 0
      %p174 = por %p172, %p173
      %p175 = scmp.ne.s32.totalorder %s167, %s169
      %p176 = scmp.eq.s32.totalorder %s33, 1
      %p177 = por %p175, %p176
      %p178 = scmp.ne.s32.totalorder %s169, %s170
      %p179 = scmp.eq.s32.totalorder %s33, 0
      %p180 = por %p178, %p179
      %p181 = scmp.ne.s32.totalorder %s169, %s170
      %p182 = scmp.eq.s32.totalorder %s34, 1
      %p183 = por %p181, %p182
      %p185 = scmp.ne.s32.totalorder %s170, %s184
      %p186 = scmp.eq.s32.totalorder %s34, 0
      %p187 = por %p185, %p186
      %s189 = sadd.s32 %s188, 1
      %p192 = scmp.eq.s32.totalorder %s28, 1
      %p193 = scmp.ne.s32.totalorder %s188, %s190
      %p194 = scmp.eq.s32.totalorder %s28, 0
      %p195 = por %p193, %p194
      %p196 = scmp.ne.s32.totalorder %s188, %s190
      %p197 = scmp.eq.s32.totalorder %s33, 1
      %p198 = por %p196, %p197
      %p199 = scmp.ne.s32.totalorder %s190, %s191
      %p200 = scmp.eq.s32.totalorder %s33, 0
      %p201 = por %p199, %p200
      %p202 = scmp.ne.s32.totalorder %s190, %s191
      %p203 = scmp.eq.s32.totalorder %s34, 1
      %p204 = por %p202, %p203
      %p206 = scmp.ne.s32.totalorder %s191, %s205
      %p207 = scmp.eq.s32.totalorder %s34, 0
      %p208 = por %p206, %p207
      %s210 = sadd.s32 %s209, 1
      %p213 = scmp.eq.s32.totalorder %s28, 1
      %p214 = scmp.ne.s32.totalorder %s209, %s211
      %p215 = scmp.eq.s32.totalorder %s28, 0
      %p216 = por %p214, %p215
      %p217 = scmp.ne.s32.totalorder %s209, %s211
      %p218 = scmp.eq.s32.totalorder %s33, 1
      %p219 = por %p217, %p218
      %p220 = scmp.ne.s32.totalorder %s211, %s212
      %p221 = scmp.eq.s32.totalorder %s33, 0
      %p222 = por %p220, %p221
      %p223 = scmp.ne.s32.totalorder %s211, %s212
      %p224 = scmp.eq.s32.totalorder %s34, 1
      %p225 = por %p223, %p224
      %p227 = scmp.ne.s32.totalorder %s212, %s226
      %p228 = scmp.eq.s32.totalorder %s34, 0
      %p229 = por %p227, %p228
      %s231 = sadd.s32 %s230, 1
      %p234 = scmp.eq.s32.totalorder %s28, 1
      %p235 = scmp.ne.s32.totalorder %s230, %s232
      %p236 = scmp.eq.s32.totalorder %s28, 0
      %p237 = por %p235, %p236
      %p238 = scmp.ne.s32.totalorder %s230, %s232
      %p239 = scmp.eq.s32.totalorder %s33, 1
      %p240 = por %p238, %p239
      %p241 = scmp.ne.s32.totalorder %s232, %s233
      %p242 = scmp.eq.s32.totalorder %s33, 0
      %p243 = por %p241, %p242
      %p244 = scmp.ne.s32.totalorder %s232, %s233
      %p245 = scmp.eq.s32.totalorder %s34, 1
      %p246 = por %p244, %p245
      %p248 = scmp.ne.s32.totalorder %s233, %s247
      %p249 = scmp.eq.s32.totalorder %s34, 0
      %p250 = por %p248, %p249
      %s252 = sadd.s32 %s251, 1
      %p255 = scmp.eq.s32.totalorder %s28, 1
      %p256 = scmp.ne.s32.totalorder %s251, %s253
      %p257 = scmp.eq.s32.totalorder %s28, 0
      %p258 = por %p256, %p257
      %p259 = scmp.ne.s32.totalorder %s251, %s253
      %p260 = scmp.eq.s32.totalorder %s33, 1
      %p261 = por %p259, %p260
      %p262 = scmp.ne.s32.totalorder %s253, %s254
      %p263 = scmp.eq.s32.totalorder %s33, 0
      %p264 = por %p262, %p263
      %p265 = scmp.ne.s32.totalorder %s253, %s254
      %p266 = scmp.eq.s32.totalorder %s34, 1
      %p267 = por %p265, %p266
      %p269 = scmp.ne.s32.totalorder %s254, %s268
      %p270 = scmp.eq.s32.totalorder %s34, 0
      %p271 = por %p269, %p270
      %s273 = sadd.s32 %s272, 1
      %p276 = scmp.eq.s32.totalorder %s28, 1
      %p277 = scmp.ne.s32.totalorder %s272, %s274
      %p278 = scmp.eq.s32.totalorder %s28, 0
      %p279 = por %p277, %p278
      %p280 = scmp.ne.s32.totalorder %s272, %s274
      %p281 = scmp.eq.s32.totalorder %s33, 1
      %p282 = por %p280, %p281
      %p283 = scmp.ne.s32.totalorder %s274, %s275
      %p284 = scmp.eq.s32.totalorder %s33, 0
      %p285 = por %p283, %p284
      %p286 = scmp.ne.s32.totalorder %s274, %s275
      %p287 = scmp.eq.s32.totalorder %s34, 1
      %p288 = por %p286, %p287
      %p290 = scmp.ne.s32.totalorder %s275, %s289
      %p291 = scmp.eq.s32.totalorder %s34, 0
      %p292 = por %p290, %p291
      %s294 = sadd.s32 %s293, 1
      %p297 = scmp.eq.s32.totalorder %s28, 1
      %p298 = scmp.ne.s32.totalorder %s293, %s295
      %p299 = scmp.eq.s32.totalorder %s28, 0
      %p300 = por %p298, %p299
      %p301 = scmp.ne.s32.totalorder %s293, %s295
      %p302 = scmp.eq.s32.totalorder %s33, 1
      %p303 = por %p301, %p302
      %p304 = scmp.ne.s32.totalorder %s295, %s296
      %p305 = scmp.eq.s32.totalorder %s33, 0
      %p306 = por %p304, %p305
      %p307 = scmp.ne.s32.totalorder %s295, %s296
      %p308 = scmp.eq.s32.totalorder %s34, 1
      %p309 = por %p307, %p308
      %p311 = scmp.ne.s32.totalorder %s296, %s310
      %p312 = scmp.eq.s32.totalorder %s34, 0
      %p313 = por %p311, %p312
      %s314 = ssub.s32 %s28, %s35
      %p315 = scmp.eq.s32.totalorder %s314, 0
      %s317 = sadd.s32 %s316, 1
      %s318 = scalar_select %p315, %s316, %s317
      %p321 = pneg %p315
      %p322 = scmp.eq.s32.totalorder %s28, 1
      %p323 = por %p321, %p322
      %p324 = scmp.ne.s32.totalorder %s316, %s319
      %p325 = scmp.eq.s32.totalorder %s28, 0
      %p326 = por %p324, %p325
      %p327 = scmp.ne.s32.totalorder %s316, %s319
      %p328 = scmp.eq.s32.totalorder %s33, 1
      %p329 = por %p327, %p328
      %p330 = scmp.ne.s32.totalorder %s319, %s320
      %p331 = scmp.eq.s32.totalorder %s33, 0
      %p332 = por %p330, %p331
      %p333 = scmp.ne.s32.totalorder %s319, %s320
      %p334 = scmp.eq.s32.totalorder %s34, 1
      %p335 = por %p333, %p334
      %p337 = scmp.ne.s32.totalorder %s320, %s336
      %p338 = scmp.eq.s32.totalorder %s34, 0
      %p339 = por %p337, %p338
      %p340 = scmp.le.s32.totalorder 1, %s28
      %p341 = scmp.lt.s32.totalorder %s28, 3
      %p342 = pnand %p340, %p341
      %p343 = pneg %p342
      // Predicated region
      $region9: #{_lambda_.5} parent=5 // pred_check
        _
      $region10: #{_lambda_.5} parent=5 // pred_check_branch
        %345 = sbr.rel (%p342) target = $region12
      $region11: #{_lambda_.5} parent=5 // pred_region
        %s346 = ssub.s32 %s28, 1
        // Predicated region
        $region13: #{_lambda_.5} parent=11 // pred_check
          %p347 = pneg %p75
        $region14: #{_lambda_.5} parent=11 // pred_check_branch
          %349 = sbr.rel (%p347) target = $region16
        $region15: #{_lambda_.5} parent=11 // pred_region
          _
        $region16: #{_lambda_.5} parent=11 // pred_fallthru
          _
        // Predicated region
        $region17: #{_lambda_.5} parent=11 // pred_check
          %p350 = pneg %p96
        $region18: #{_lambda_.5} parent=11 // pred_check_branch
          %352 = sbr.rel (%p350) target = $region20
        $region19: #{_lambda_.5} parent=11 // pred_region
          _
        $region20: #{_lambda_.5} parent=11 // pred_fallthru
          _
        // Predicated region
        $region21: #{_lambda_.5} parent=11 // pred_check
          %p353 = pneg %p117
        $region22: #{_lambda_.5} parent=11 // pred_check_branch
          %355 = sbr.rel (%p353) target = $region24
        $region23: #{_lambda_.5} parent=11 // pred_region
          _
        $region24: #{_lambda_.5} parent=11 // pred_fallthru
          _
        // Predicated region
        $region25: #{_lambda_.5} parent=11 // pred_check
          %p356 = pneg %p138
        $region26: #{_lambda_.5} parent=11 // pred_check_branch
          %358 = sbr.rel (%p356) target = $region28
        $region27: #{_lambda_.5} parent=11 // pred_region
          _
        $region28: #{_lambda_.5} parent=11 // pred_fallthru
          _
        // Predicated region
        $region29: #{_lambda_.5} parent=11 // pred_check
          %p359 = pneg %p159
        $region30: #{_lambda_.5} parent=11 // pred_check_branch
          %361 = sbr.rel (%p359) target = $region32
        $region31: #{_lambda_.5} parent=11 // pred_region
          _
        $region32: #{_lambda_.5} parent=11 // pred_fallthru
          _
        // Predicated region
        $region33: #{_lambda_.5} parent=11 // pred_check
          %p362 = pneg %p180
        $region34: #{_lambda_.5} parent=11 // pred_check_branch
          %364 = sbr.rel (%p362) target = $region36
        $region35: #{_lambda_.5} parent=11 // pred_region
          _
        $region36: #{_lambda_.5} parent=11 // pred_fallthru
          _
        // Predicated region
        $region37: #{_lambda_.5} parent=11 // pred_check
          %p365 = pneg %p201
        $region38: #{_lambda_.5} parent=11 // pred_check_branch
          %367 = sbr.rel (%p365) target = $region40
        $region39: #{_lambda_.5} parent=11 // pred_region
          _
        $region40: #{_lambda_.5} parent=11 // pred_fallthru
          _
        // Predicated region
        $region41: #{_lambda_.5} parent=11 // pred_check
          %p368 = pneg %p222
        $region42: #{_lambda_.5} parent=11 // pred_check_branch
          %370 = sbr.rel (%p368) target = $region44
        $region43: #{_lambda_.5} parent=11 // pred_region
          _
        $region44: #{_lambda_.5} parent=11 // pred_fallthru
          _
        // Predicated region
        $region45: #{_lambda_.5} parent=11 // pred_check
          %p371 = pneg %p243
        $region46: #{_lambda_.5} parent=11 // pred_check_branch
          %373 = sbr.rel (%p371) target = $region48
        $region47: #{_lambda_.5} parent=11 // pred_region
          %s375 = ssub.s32 256, 256
          %376 = vsyncadd [#allocation7], %s375
          %s377 = sshll.u32 [#allocation6], 4
          %s378 = int_to_ptr.vmem [resolvable:$true] %s377
          %383 = dma.hbm_to_vmem [thread:$0]  %s10, 256, %s378, [#allocation7], 128, 128, 8
        $region48: #{_lambda_.5} parent=11 // pred_fallthru
          _
        // Predicated region
        $region49: #{_lambda_.5} parent=11 // pred_check
          %p384 = pneg %p264
        $region50: #{_lambda_.5} parent=11 // pred_check_branch
          %386 = sbr.rel (%p384) target = $region52
        $region51: #{_lambda_.5} parent=11 // pred_region
          %s388 = ssub.s32 256, 256
          %389 = vsyncadd [#allocation7], %s388
          %s390 = sshll.u32 [#allocation8], 4
          %s391 = int_to_ptr.vmem [resolvable:$true] %s390
          %396 = dma.hbm_to_vmem [thread:$0]  %s11, 256, %s391, [#allocation7], 128, 128, 8
        $region52: #{_lambda_.5} parent=11 // pred_fallthru
          _
        // Predicated region
        $region53: #{_lambda_.5} parent=11 // pred_check
          %p397 = pneg %p285
        $region54: #{_lambda_.5} parent=11 // pred_check_branch
          %399 = sbr.rel (%p397) target = $region56
        $region55: #{_lambda_.5} parent=11 // pred_region
          _
        $region56: #{_lambda_.5} parent=11 // pred_fallthru
          _
        // Predicated region
        $region57: #{_lambda_.5} parent=11 // pred_check
          %p400 = pneg %p306
        $region58: #{_lambda_.5} parent=11 // pred_check_branch
          %402 = sbr.rel (%p400) target = $region60
        $region59: #{_lambda_.5} parent=11 // pred_region
          _
        $region60: #{_lambda_.5} parent=11 // pred_fallthru
          _
      $region12: #{_lambda_.5} parent=5 // pred_fallthru
        _
      %p403 = scmp.lt.s32.totalorder %s28, 2
      // Predicated region
      $region61: #{_lambda_.5} parent=5 // pred_check
        %p404 = pneg %p403
      $region62: #{_lambda_.5} parent=5 // pred_check_branch
        %406 = sbr.rel (%p404) target = $region64
      $region63: #{_lambda_.5} parent=5 // pred_region
        // Predicated region
        $region65: #{_lambda_.5} parent=63 // pred_check
          %p407 = pneg %p48
        $region66: #{_lambda_.5} parent=63 // pred_check_branch
          %409 = sbr.rel (%p407) target = $region68
        $region67: #{_lambda_.5} parent=63 // pred_region
          %s410 = sand.u32 %s38, 1
          %s411 = scalar_lea.sflag [#allocation5], %s410
          %s412 = sand.u32 %s38, 1
          %s413 = smul.addr %s412, 16
          %s414 = scalar_lea.vmem [#allocation4], %s413
          %s416 = ssub.s32 256, 256
          %417 = vsyncadd %s411, %s416
          %s418 = smul.addr %s28, 2
          %s419 = smul.addr %s418, 128
          %s420 = scalar_lea.hbm %s1, %s419
          %s421 = sshll.u32 %s414, 4
          %s422 = int_to_ptr.vmem [resolvable:$true] %s421
          %427 = dma.hbm_to_vmem [thread:$0]  %s420, 256, %s422, %s411, 128, 128, 8
        $region68: #{_lambda_.5} parent=63 // pred_fallthru
          _
      $region64: #{_lambda_.5} parent=5 // pred_fallthru
        _
      %p428 = scmp.le.s32.totalorder 1, %s28
      %p429 = scmp.lt.s32.totalorder %s28, 3
      %p430 = pnand %p428, %p429
      %p431 = pneg %p430
      // Predicated region
      $region69: #{_lambda_.5} parent=5 // pred_check
        _
      $region70: #{_lambda_.5} parent=5 // pred_check_branch
        %433 = sbr.rel (%p430) target = $region72
      $region71: #{_lambda_.5} parent=5 // pred_region
        %s434 = ssub.s32 %s28, 1
        %s435 = sand.u32 %s41, 1
        %s436 = scalar_lea.sflag [#allocation5], %s435
        %s437 = sand.u32 %s41, 1
        %s438 = smul.addr %s437, 16
        %s439 = scalar_lea.vmem [#allocation4], %s438
        // Predicated region
        $region73: #{_lambda_.5} parent=71 // pred_check
          %p440 = pneg %p54
        $region74: #{_lambda_.5} parent=71 // pred_check_branch
          %442 = sbr.rel (%p440) target = $region76
        $region75: #{_lambda_.5} parent=71 // pred_region
          %443 = dma.done %s436, 256
        $region76: #{_lambda_.5} parent=71 // pred_fallthru
          _
        // Predicated region
        $region77: #{_lambda_.5} parent=71 // pred_check
          %p444 = pneg %p243
        $region78: #{_lambda_.5} parent=71 // pred_check_branch
          %446 = sbr.rel (%p444) target = $region80
        $region79: #{_lambda_.5} parent=71 // pred_region
          %447 = dma.done [#allocation7], 256
        $region80: #{_lambda_.5} parent=71 // pred_fallthru
          _
        // Predicated region
        $region81: #{_lambda_.5} parent=71 // pred_check
          %p448 = pneg %p264
        $region82: #{_lambda_.5} parent=71 // pred_check_branch
          %450 = sbr.rel (%p448) target = $region84
        $region83: #{_lambda_.5} parent=71 // pred_region
          %451 = dma.done [#allocation7], 256
        $region84: #{_lambda_.5} parent=71 // pred_fallthru
          _
        %s452 = sand.u32 %s41, 1
        %s453 = scalar_lea.sflag [#allocation5], %s452
        %s454 = sand.u32 %s41, 1
        %s455 = smul.addr %s454, 16
        %s456 = scalar_lea.vmem [#allocation4], %s455
        %p457 = pneg %p54
        %p458 = pneg %p51
        %p459 = pneg %p75
        %p460 = pneg %p72
        %p461 = pneg %p96
        %p462 = pneg %p93
        %p463 = pneg %p117
        %p464 = pneg %p114
        %p465 = pneg %p138
        %p466 = pneg %p135
        %p467 = pneg %p159
        %p468 = pneg %p156
        %p469 = pneg %p180
        %p470 = pneg %p177
        %p471 = pneg %p201
        %p472 = pneg %p198
        %p473 = pneg %p222
        %p474 = pneg %p219
        %p475 = pneg %p243
        %p476 = pneg %p240
        %p477 = pneg %p264
        %p478 = pneg %p261
        %p479 = pneg %p285
        %p480 = pneg %p282
        %p481 = pneg %p306
        %p482 = pneg %p303
        %p483 = pneg %p332
        %p484 = pneg %p329
        %p485 = scmp.lt.s32.totalorder %s33, 1
        %s486 = scalar_select %p485, %s33, 1
        %s487 = smul.addr %s486, 2
        %s488 = smul.addr %s487, 8
        %s489 = scalar_lea.vmem %s14, %s488
        %p490 = scmp.lt.s32.totalorder %s33, 1
        %s491 = scalar_select %p490, %s33, 1
        %s492 = smul.addr %s491, 2
        %s493 = smul.addr %s492, 8
        %s494 = scalar_lea.vmem %s14, %s493
        %s496 = sld [smem:[#allocation3 + %s33]]
        %v497 = vld [vmem:[%s439] sm:$0xff]
        %v498 = vld [vmem:[%s439 + $0x8] sm:$0xff]
        %v499 = vlaneseq
        %v500 = vshrl.u32 %v499, 7
        %v501 = vadd.s32 %v500, 8
        %v502 = vstv %s496
        %vm503 = vcmp.lt.s32.totalorder %v500, %v502
        %vm504 = vcmp.lt.s32.totalorder %v501, %v502
        %v505 = vsel %vm503, 1, 0
        %v506 = vsel %vm504, 1, 0
        %v507 = vcvt.s32.f32 %v505
        %v508 = vcvt.s32.f32 %v506
        %v509 = vmul.f32 %v497, %v507
        %v510 = vmul.f32 %v498, %v508
        %v511 = vpack.c.bf16 %v510, %v509
        %v512 = vlaneseq
        %v513 = vand.u32 %v512, 127
        %vm514 = vcmp.lt.s32.totalorder %v513, %v502
        %vm515 = vmand %vm503, %vm514
        %vm516 = vmand %vm504, %vm514
        %v517 = vsub.s32 %v513, %v500
        %v518 = vsub.s32 %v513, %v501
        %vm519 = vcmp.eq.s32.totalorder %v517, 4294967292
        %vm520 = vcmp.eq.s32.totalorder %v518, 4294967292
        %v521 = vsel %vm519, 1, 0
        %v522 = vsel %vm520, 1, 0
        %v523 = vcvt.s32.f32 %v521
        %v524 = vcvt.s32.f32 %v522
        %vm525 = vcmp.eq.s32.totalorder %v517, 4294967293
        %vm526 = vcmp.eq.s32.totalorder %v518, 4294967293
        %v527 = vsel %vm525, 1, 0
        %v528 = vsel %vm526, 1, 0
        %v529 = vcvt.s32.f32 %v527
        %v530 = vcvt.s32.f32 %v528
        %vm531 = vcmp.eq.s32.totalorder %v517, 4294967294
        %vm532 = vcmp.eq.s32.totalorder %v518, 4294967294
        %v533 = vsel %vm531, 1, 0
        %v534 = vsel %vm532, 1, 0
        %v535 = vcvt.s32.f32 %v533
        %v536 = vcvt.s32.f32 %v534
        %vm537 = vcmp.eq.s32.totalorder %v517, 4294967295
        %vm538 = vcmp.eq.s32.totalorder %v518, 4294967295
        %v539 = vsel %vm537, 1, 0
        %v540 = vsel %vm538, 1, 0
        %v541 = vcvt.s32.f32 %v539
        %v542 = vcvt.s32.f32 %v540
        %vm543 = vcmp.eq.s32.totalorder %v517, 0
        %vm544 = vcmp.eq.s32.totalorder %v518, 0
        %v545 = vsel %vm543, 1, 0
        %v546 = vsel %vm544, 1, 0
        %v547 = vcvt.s32.f32 %v545
        %v548 = vcvt.s32.f32 %v546
        %vm549 = vcmp.eq.s32.totalorder %v517, 1
        %vm550 = vcmp.eq.s32.totalorder %v518, 1
        %v551 = vsel %vm549, 1, 0
        %v552 = vsel %vm550, 1, 0
        %v553 = vcvt.s32.f32 %v551
        %v554 = vcvt.s32.f32 %v552
        %vm555 = vcmp.eq.s32.totalorder %v517, 2
        %vm556 = vcmp.eq.s32.totalorder %v518, 2
        %v557 = vsel %vm555, 1, 0
        %v558 = vsel %vm556, 1, 0
        %v559 = vcvt.s32.f32 %v557
        %v560 = vcvt.s32.f32 %v558
        %vm561 = vcmp.eq.s32.totalorder %v517, 3
        %vm562 = vcmp.eq.s32.totalorder %v518, 3
        %v563 = vsel %vm561, 1, 0
        %v564 = vsel %vm562, 1, 0
        %v565 = vcvt.s32.f32 %v563
        %v566 = vcvt.s32.f32 %v564
        %vm567 = vcmp.eq.s32.totalorder %v517, 4
        %vm568 = vcmp.eq.s32.totalorder %v518, 4
        %v569 = vsel %vm567, 1, 0
        %v570 = vsel %vm568, 1, 0
        %v571 = vcvt.s32.f32 %v569
        %v572 = vcvt.s32.f32 %v570
        %v573 = vld [vmem:[#allocation6] sm:$0xff]
        %v574 = vld [vmem:[#allocation6 + $0x8] sm:$0x1]
        %v575 = vpack.c.bf16 %v574, %v573
        %v576 = vld [vmem:[#allocation8] sm:$0xff]
        %v577 = vld [vmem:[#allocation8 + $0x8] sm:$0x1]
        %v578 = vld [vmem:[%s2] sm:$0xf]
        %v579 = vld [vmem:[%s2 + $0x4] sm:$0xf]
        %v580 = vld [vmem:[%s2 + $0x8] sm:$0xf]
        %v581 = vld [vmem:[%s2 + $0xc] sm:$0xf]
        %v582 = vld [vmem:[%s6] sm:$0x1]
        %v584 = vlaneseq
        %v585 = vshrl.u32 %v584, 7
        %v586 = vsub.s32 0, %v585
        %v587 = vrot.slane %v582, %v586
        %v593 = vunpack.c.l.b16 %v578
        %v594 = vunpack.c.l.b16 %v579
        %v595 = vunpack.c.l.b16 %v580
        %v596 = vunpack.c.l.b16 %v581
        %v597 = vpack.c.b16 %v594, %v593
        %v598 = vpack.c.b16 %v596, %v595
        %vm601 = vcmask 261120
        %v603 = vsel %vm601, %v511, 0
        %605 = vmatprep.subr.bf16.mxu0 0
        %606 = vmatpush1.bf16.msra.mxu0 %v597
        %607 = vmatprep.subr.bf16.mxu0 0
        %608 = vmatpush1.bf16.msra.mxu0 %v598
        %609 = vmatprep.subr.bf16.mxu0 0
        %610 = vmatpush1.bf16.msra.mxu0 0
        %611 = vmatprep.subr.bf16.mxu0 0
        %612 = vmatpush1.bf16.msra.mxu0 0
        %613 = vmatprep.subr.bf16.mxu0 0
        %614 = vmatpush1.bf16.msra.mxu0 0
        %615 = vmatprep.subr.bf16.mxu0 0
        %616 = vmatpush1.bf16.msra.mxu0 0
        %617 = vmatprep.subr.bf16.mxu0 0
        %618 = vmatpush1.bf16.msra.mxu0 0
        %619 = vmatprep.subr.bf16.mxu0 0
        %620 = vmatpush1.bf16.msra.mxu0 0
        %621 = vmatprep.subr.bf16.mxu0 0
        %622 = vmatpush1.bf16.msra.mxu0 0
        %623 = vmatprep.subr.bf16.mxu0 0
        %624 = vmatpush1.bf16.msra.mxu0 0
        %625 = vmatprep.subr.bf16.mxu0 0
        %626 = vmatpush1.bf16.msra.mxu0 0
        %627 = vmatprep.subr.bf16.mxu0 0
        %628 = vmatpush1.bf16.msra.mxu0 0
        %629 = vmatprep.subr.bf16.mxu0 0
        %630 = vmatpush1.bf16.msra.mxu0 0
        %631 = vmatprep.subr.bf16.mxu0 0
        %632 = vmatpush1.bf16.msra.mxu0 0
        %633 = vmatprep.subr.bf16.mxu0 0
        %634 = vmatpush1.bf16.msra.mxu0 0
        %635 = vmatprep.subr.bf16.mxu0 0
        %636 = vmatpush1.bf16.msra.mxu0 0
        %637 = vmatprep.mubr.bf16.mxu0 0
        %638 = vmatmul.mubr.bf16.gmra.mrb[0].mxu0 %v603
        %v639 = vpop.f32.mrb[0].mxu0
        %v640 = vadd.f32 %v587, %v639
        %v641 = vpop.f32.mrb[0].mxu0
        %v642 = vpop.f32.mrb[0].mxu0
        %v643 = vadd.f32 %v587, %v642
        %v644 = vpop.f32.mrb[0].mxu0
        %645 = vdwg.mxu0
        %v646 = vld [vmem:[%s3] sm:$0xf]
        %v647 = vld [vmem:[%s3 + $0x4] sm:$0xf]
        %v648 = vld [vmem:[%s3 + $0x8] sm:$0xf]
        %v649 = vld [vmem:[%s3 + $0xc] sm:$0xf]
        %v650 = vld [vmem:[%s7] sm:$0x1]
        %v652 = vlaneseq
        %v653 = vshrl.u32 %v652, 7
        %v654 = vsub.s32 0, %v653
        %v655 = vrot.slane %v650, %v654
        %v661 = vunpack.c.l.b16 %v646
        %v662 = vunpack.c.l.b16 %v647
        %v663 = vunpack.c.l.b16 %v648
        %v664 = vunpack.c.l.b16 %v649
        %v665 = vpack.c.b16 %v662, %v661
        %v666 = vpack.c.b16 %v664, %v663
        %669 = vmatprep.subr.bf16.mxu0 0
        %670 = vmatpush1.bf16.msra.mxu0 %v665
        %671 = vmatprep.subr.bf16.mxu0 0
        %672 = vmatpush1.bf16.msra.mxu0 %v666
        %673 = vmatprep.subr.bf16.mxu0 0
        %674 = vmatpush1.bf16.msra.mxu0 0
        %675 = vmatprep.subr.bf16.mxu0 0
        %676 = vmatpush1.bf16.msra.mxu0 0
        %677 = vmatprep.subr.bf16.mxu0 0
        %678 = vmatpush1.bf16.msra.mxu0 0
        %679 = vmatprep.subr.bf16.mxu0 0
        %680 = vmatpush1.bf16.msra.mxu0 0
        %681 = vmatprep.subr.bf16.mxu0 0
        %682 = vmatpush1.bf16.msra.mxu0 0
        %683 = vmatprep.subr.bf16.mxu0 0
        %684 = vmatpush1.bf16.msra.mxu0 0
        %685 = vmatprep.subr.bf16.mxu0 0
        %686 = vmatpush1.bf16.msra.mxu0 0
        %687 = vmatprep.subr.bf16.mxu0 0
        %688 = vmatpush1.bf16.msra.mxu0 0
        %689 = vmatprep.subr.bf16.mxu0 0
        %690 = vmatpush1.bf16.msra.mxu0 0
        %691 = vmatprep.subr.bf16.mxu0 0
        %692 = vmatpush1.bf16.msra.mxu0 0
        %693 = vmatprep.subr.bf16.mxu0 0
        %694 = vmatpush1.bf16.msra.mxu0 0
        %695 = vmatprep.subr.bf16.mxu0 0
        %696 = vmatpush1.bf16.msra.mxu0 0
        %697 = vmatprep.subr.bf16.mxu0 0
        %698 = vmatpush1.bf16.msra.mxu0 0
        %699 = vmatprep.subr.bf16.mxu0 0
        %700 = vmatpush1.bf16.msra.mxu0 0
        %701 = vmatprep.mubr.bf16.mxu0 0
        %702 = vmatmul.mubr.bf16.gmra.mrb[0].mxu0 %v603
        %v703 = vpop.f32.mrb[0].mxu0
        %v704 = vadd.f32 %v655, %v703
        %v705 = vpop.f32.mrb[0].mxu0
        %v706 = vpop.f32.mrb[0].mxu0
        %v707 = vadd.f32 %v655, %v706
        %v708 = vpop.f32.mrb[0].mxu0
        %709 = vdwg.mxu0
        %v710 = vld [vmem:[%s4] sm:$0xf]
        %v711 = vld [vmem:[%s4 + $0x4] sm:$0xf]
        %v712 = vld [vmem:[%s4 + $0x8] sm:$0xf]
        %v713 = vld [vmem:[%s4 + $0xc] sm:$0xf]
        %v714 = vld [vmem:[%s8] sm:$0x1]
        %v716 = vlaneseq
        %v717 = vshrl.u32 %v716, 7
        %v718 = vsub.s32 0, %v717
        %v719 = vrot.slane %v714, %v718
        %v725 = vunpack.c.l.b16 %v710
        %v726 = vunpack.c.l.b16 %v711
        %v727 = vunpack.c.l.b16 %v712
        %v728 = vunpack.c.l.b16 %v713
        %v729 = vpack.c.b16 %v726, %v725
        %v730 = vpack.c.b16 %v728, %v727
        %733 = vmatprep.subr.bf16.mxu0 0
        %734 = vmatpush1.bf16.msra.mxu0 %v729
        %735 = vmatprep.subr.bf16.mxu0 0
        %736 = vmatpush1.bf16.msra.mxu0 %v730
        %737 = vmatprep.subr.bf16.mxu0 0
        %738 = vmatpush1.bf16.msra.mxu0 0
        %739 = vmatprep.subr.bf16.mxu0 0
        %740 = vmatpush1.bf16.msra.mxu0 0
        %741 = vmatprep.subr.bf16.mxu0 0
        %742 = vmatpush1.bf16.msra.mxu0 0
        %743 = vmatprep.subr.bf16.mxu0 0
        %744 = vmatpush1.bf16.msra.mxu0 0
        %745 = vmatprep.subr.bf16.mxu0 0
        %746 = vmatpush1.bf16.msra.mxu0 0
        %747 = vmatprep.subr.bf16.mxu0 0
        %748 = vmatpush1.bf16.msra.mxu0 0
        %749 = vmatprep.subr.bf16.mxu0 0
        %750 = vmatpush1.bf16.msra.mxu0 0
        %751 = vmatprep.subr.bf16.mxu0 0
        %752 = vmatpush1.bf16.msra.mxu0 0
        %753 = vmatprep.subr.bf16.mxu0 0
        %754 = vmatpush1.bf16.msra.mxu0 0
        %755 = vmatprep.subr.bf16.mxu0 0
        %756 = vmatpush1.bf16.msra.mxu0 0
        %757 = vmatprep.subr.bf16.mxu0 0
        %758 = vmatpush1.bf16.msra.mxu0 0
        %759 = vmatprep.subr.bf16.mxu0 0
        %760 = vmatpush1.bf16.msra.mxu0 0
        %761 = vmatprep.subr.bf16.mxu0 0
        %762 = vmatpush1.bf16.msra.mxu0 0
        %763 = vmatprep.subr.bf16.mxu0 0
        %764 = vmatpush1.bf16.msra.mxu0 0
        %765 = vmatprep.mubr.bf16.mxu0 0
        %766 = vmatmul.mubr.bf16.gmra.mrb[0].mxu0 %v603
        %v767 = vpop.f32.mrb[0].mxu0
        %v768 = vadd.f32 %v719, %v767
        %v769 = vpop.f32.mrb[0].mxu0
        %v770 = vpop.f32.mrb[0].mxu0
        %v771 = vadd.f32 %v719, %v770
        %v772 = vpop.f32.mrb[0].mxu0
        %773 = vdwg.mxu0
        %v774 = vmul.f32 %v640, 0.25
        %v775 = vmul.f32 %v643, 0.25
        %v776 = vpack.c.bf16 %v775, %v774
        %v777 = vpack.c.bf16 %v707, %v704
        %vm778 = vcmask 130048
        %v780 = vsel %vm778, %v776, 0
        %v783 = vsel %vm778, %v575, 0
        %785 = vmatprep.subr.bf16.mxu0 0
        %786 = vmatpush1.bf16.xpose.msra.mxu0 %v783
        %787 = vmatprep.subr.bf16.mxu0 0
        %788 = vmatpush1.bf16.xpose.msra.mxu0 0
        %789 = vmatprep.subr.bf16.mxu0 0
        %790 = vmatpush1.bf16.xpose.msra.mxu0 0
        %791 = vmatprep.subr.bf16.mxu0 0
        %792 = vmatpush1.bf16.xpose.msra.mxu0 0
        %793 = vmatprep.subr.bf16.mxu0 0
        %794 = vmatpush1.bf16.xpose.msra.mxu0 0
        %795 = vmatprep.subr.bf16.mxu0 0
        %796 = vmatpush1.bf16.xpose.msra.mxu0 0
        %797 = vmatprep.subr.bf16.mxu0 0
        %798 = vmatpush1.bf16.xpose.msra.mxu0 0
        %799 = vmatprep.subr.bf16.mxu0 0
        %800 = vmatpush1.bf16.xpose.msra.mxu0 0
        %801 = vmatprep.subr.bf16.mxu0 0
        %802 = vmatpush1.bf16.xpose.msra.mxu0 0
        %803 = vmatprep.subr.bf16.mxu0 0
        %804 = vmatpush1.bf16.xpose.msra.mxu0 0
        %805 = vmatprep.subr.bf16.mxu0 0
        %806 = vmatpush1.bf16.xpose.msra.mxu0 0
        %807 = vmatprep.subr.bf16.mxu0 0
        %808 = vmatpush1.bf16.xpose.msra.mxu0 0
        %809 = vmatprep.subr.bf16.mxu0 0
        %810 = vmatpush1.bf16.xpose.msra.mxu0 0
        %811 = vmatprep.subr.bf16.mxu0 0
        %812 = vmatpush1.bf16.xpose.msra.mxu0 0
        %813 = vmatprep.subr.bf16.mxu0 0
        %814 = vmatpush1.bf16.xpose.msra.mxu0 0
        %815 = vmatprep.subr.bf16.mxu0 0
        %816 = vmatpush1.bf16.xpose.msra.mxu0 0
        %817 = vmatprep.mubr.bf16.mxu0 0
        %818 = vmatmul.mubr.bf16.gmra.mrb[0].mxu0 %v780
        %v819 = vpop.f32.mrb[0].mxu0
        %v820 = vadd.f32 0.0, %v819
        %v821 = vpop.f32.mrb[0].mxu0
        %v822 = vpop.f32.mrb[0].mxu0
        %v823 = vadd.f32 0.0, %v822
        %v824 = vpop.f32.mrb[0].mxu0
        %825 = vdwg.mxu0
        %827 = vset.pattern.permute.xlu0 0
        %828 = vperm.xlu0 %827, %v820
        %v829 = vpop.permute.xlu0 %828
        %832 = vset.pattern.permute.xlu0 0
        %833 = vperm.xlu0 %832, %v823
        %v834 = vpop.permute.xlu0 %833
        %v836 = vmul.f32 %v829, %v523
        %v837 = vmul.f32 %v834, %v524
        %v839 = vsel %vm778, %v777, 0
        %841 = vmatprep.subr.bf16.mxu0 0
        %842 = vmatpush1.bf16.xpose.msra.mxu0 %v839
        %843 = vmatprep.subr.bf16.mxu0 0
        %844 = vmatpush1.bf16.xpose.msra.mxu0 0
        %845 = vmatprep.subr.bf16.mxu0 0
        %846 = vmatpush1.bf16.xpose.msra.mxu0 0
        %847 = vmatprep.subr.bf16.mxu0 0
        %848 = vmatpush1.bf16.xpose.msra.mxu0 0
        %849 = vmatprep.subr.bf16.mxu0 0
        %850 = vmatpush1.bf16.xpose.msra.mxu0 0
        %851 = vmatprep.subr.bf16.mxu0 0
        %852 = vmatpush1.bf16.xpose.msra.mxu0 0
        %853 = vmatprep.subr.bf16.mxu0 0
        %854 = vmatpush1.bf16.xpose.msra.mxu0 0
        %855 = vmatprep.subr.bf16.mxu0 0
        %856 = vmatpush1.bf16.xpose.msra.mxu0 0
        %857 = vmatprep.subr.bf16.mxu0 0
        %858 = vmatpush1.bf16.xpose.msra.mxu0 0
        %859 = vmatprep.subr.bf16.mxu0 0
        %860 = vmatpush1.bf16.xpose.msra.mxu0 0
        %861 = vmatprep.subr.bf16.mxu0 0
        %862 = vmatpush1.bf16.xpose.msra.mxu0 0
        %863 = vmatprep.subr.bf16.mxu0 0
        %864 = vmatpush1.bf16.xpose.msra.mxu0 0
        %865 = vmatprep.subr.bf16.mxu0 0
        %866 = vmatpush1.bf16.xpose.msra.mxu0 0
        %867 = vmatprep.subr.bf16.mxu0 0
        %868 = vmatpush1.bf16.xpose.msra.mxu0 0
        %869 = vmatprep.subr.bf16.mxu0 0
        %870 = vmatpush1.bf16.xpose.msra.mxu0 0
        %871 = vmatprep.subr.bf16.mxu0 0
        %872 = vmatpush1.bf16.xpose.msra.mxu0 0
        %873 = vmatprep.mubr.bf16.mxu0 0
        %874 = vmatmul.mubr.bf16.gmra.mrb[0].mxu0 %v780
        %v875 = vpop.f32.mrb[0].mxu0
        %v876 = vadd.f32 %v836, %v875
        %v877 = vpop.f32.mrb[0].mxu0
        %v878 = vpop.f32.mrb[0].mxu0
        %v879 = vadd.f32 %v837, %v878
        %v880 = vpop.f32.mrb[0].mxu0
        %881 = vdwg.mxu0
        %882 = vset.pattern.permute.xlu0 1
        %883 = vperm.xlu0 %882, %v820
        %v884 = vpop.permute.xlu0 %883
        %886 = vset.pattern.permute.xlu0 1
        %887 = vperm.xlu0 %886, %v823
        %v888 = vpop.permute.xlu0 %887
        %v890 = vmul.f32 %v884, %v529
        %v891 = vmul.f32 %v888, %v530
        %v892 = vadd.f32 %v876, %v890
        %v893 = vadd.f32 %v879, %v891
        %894 = vset.pattern.permute.xlu0 2
        %895 = vperm.xlu0 %894, %v820
        %v896 = vpop.permute.xlu0 %895
        %898 = vset.pattern.permute.xlu0 2
        %899 = vperm.xlu0 %898, %v823
        %v900 = vpop.permute.xlu0 %899
        %v902 = vmul.f32 %v896, %v535
        %v903 = vmul.f32 %v900, %v536
        %v904 = vadd.f32 %v892, %v902
        %v905 = vadd.f32 %v893, %v903
        %906 = vset.pattern.permute.xlu0 3
        %907 = vperm.xlu0 %906, %v820
        %v908 = vpop.permute.xlu0 %907
        %910 = vset.pattern.permute.xlu0 3
        %911 = vperm.xlu0 %910, %v823
        %v912 = vpop.permute.xlu0 %911
        %v914 = vmul.f32 %v908, %v541
        %v915 = vmul.f32 %v912, %v542
        %v916 = vadd.f32 %v904, %v914
        %v917 = vadd.f32 %v905, %v915
        %918 = vset.pattern.permute.xlu0 4
        %919 = vperm.xlu0 %918, %v820
        %v920 = vpop.permute.xlu0 %919
        %922 = vset.pattern.permute.xlu0 4
        %923 = vperm.xlu0 %922, %v823
        %v924 = vpop.permute.xlu0 %923
        %v926 = vmul.f32 %v920, %v547
        %v927 = vmul.f32 %v924, %v548
        %v928 = vadd.f32 %v916, %v926
        %v929 = vadd.f32 %v917, %v927
        %930 = vset.pattern.permute.xlu0 5
        %931 = vperm.xlu0 %930, %v820
        %v932 = vpop.permute.xlu0 %931
        %934 = vset.pattern.permute.xlu0 5
        %935 = vperm.xlu0 %934, %v823
        %v936 = vpop.permute.xlu0 %935
        %v938 = vmul.f32 %v932, %v553
        %v939 = vmul.f32 %v936, %v554
        %v940 = vadd.f32 %v928, %v938
        %v941 = vadd.f32 %v929, %v939
        %942 = vset.pattern.permute.xlu0 6
        %943 = vperm.xlu0 %942, %v820
        %v944 = vpop.permute.xlu0 %943
        %946 = vset.pattern.permute.xlu0 6
        %947 = vperm.xlu0 %946, %v823
        %v948 = vpop.permute.xlu0 %947
        %v950 = vmul.f32 %v944, %v559
        %v951 = vmul.f32 %v948, %v560
        %v952 = vadd.f32 %v940, %v950
        %v953 = vadd.f32 %v941, %v951
        %954 = vset.pattern.permute.xlu0 7
        %955 = vperm.xlu0 %954, %v820
        %v956 = vpop.permute.xlu0 %955
        %958 = vset.pattern.permute.xlu0 7
        %959 = vperm.xlu0 %958, %v823
        %v960 = vpop.permute.xlu0 %959
        %v962 = vmul.f32 %v956, %v565
        %v963 = vmul.f32 %v960, %v566
        %v964 = vadd.f32 %v952, %v962
        %v965 = vadd.f32 %v953, %v963
        %966 = vset.pattern.permute.xlu0 8
        %967 = vperm.xlu0 %966, %v820
        %v968 = vpop.permute.xlu0 %967
        %970 = vset.pattern.permute.xlu0 8
        %971 = vperm.xlu0 %970, %v823
        %v972 = vpop.permute.xlu0 %971
        %v974 = vmul.f32 %v968, %v571
        %v975 = vmul.f32 %v972, %v572
        %v976 = vadd.f32 %v964, %v974
        %v977 = vadd.f32 %v965, %v975
        %v978 = vsel %vm515, %v976, -10000.0
        %v979 = vsel %vm516, %v977, -10000.0
        %v980 = vsel %vm778, %v978, -inf
        %981 = vmax.xlane.f32.xlu0 %v980
        %v982 = vpop.xlane.xlu0 %981
        %v983 = vsel %vm778, %v979, -inf
        %984 = vmax.xlane.f32.xlu0 %v983
        %v985 = vpop.xlane.xlu0 %984
        %v986 = vsub.f32 %v978, %v982
        %v987 = vsub.f32 %v979, %v985
        %v988 = vmul.f32 %v986, 1.442695
        %v989 = vpow.pop %v988
        %v990 = vmul.f32 %v987, 1.442695
        %v991 = vpow.pop %v990
        %v992 = vsel %vm778, %v989, 0.0
        %993 = vadd.xlane.f32.xlu0 %v992
        %v994 = vpop.xlane.xlu0 %993
        %v995 = vsel %vm778, %v991, 0.0
        %996 = vadd.xlane.f32.xlu0 %v995
        %v997 = vpop.xlane.xlu0 %996
        %v998 = vrcp.pop %v994
        %v999 = vrcp.pop %v997
        %v1000 = vmul.f32 %v989, %v998
        %v1001 = vmul.f32 %v991, %v999
        %v1002 = vpack.c.bf16 %v1001, %v1000
        %v1003 = vpack.c.bf16 %v771, %v768
        %v1004 = vmul.f32 %v1000, %v523
        %v1005 = vmul.f32 %v1001, %v524
        %v1006 = vsel %vm778, %v1004, 0.0
        %1007 = vadd.xlane.f32.xlu0 %v1006
        %v1008 = vpop.xlane.xlu0 %1007
        %v1009 = vsel %vm778, %v1005, 0.0
        %1010 = vadd.xlane.f32.xlu0 %v1009
        %v1011 = vpop.xlane.xlu0 %1010
        %v1012 = vlaneseq
        %v1013 = vshrl.u32 %v1012, 7
        %v1014 = vsub.s32 0, %v1013
        %v1015 = vrot.slane %v576, %v1014
        %v1016 = vmul.f32 %v1008, %v1015
        %v1017 = vmul.f32 %v1011, %v1015
        %v1019 = vsel %vm778, %v1002, 0
        %1021 = vmatprep.subr.bf16.mxu0 0
        %1022 = vmatpush1.bf16.msra.mxu0 %v1003
        %1023 = vmatprep.subr.bf16.mxu0 0
        %1024 = vmatpush1.bf16.msra.mxu0 0
        %1025 = vmatprep.subr.bf16.mxu0 0
        %1026 = vmatpush1.bf16.msra.mxu0 0
        %1027 = vmatprep.subr.bf16.mxu0 0
        %1028 = vmatpush1.bf16.msra.mxu0 0
        %1029 = vmatprep.subr.bf16.mxu0 0
        %1030 = vmatpush1.bf16.msra.mxu0 0
        %1031 = vmatprep.subr.bf16.mxu0 0
        %1032 = vmatpush1.bf16.msra.mxu0 0
        %1033 = vmatprep.subr.bf16.mxu0 0
        %1034 = vmatpush1.bf16.msra.mxu0 0
        %1035 = vmatprep.subr.bf16.mxu0 0
        %1036 = vmatpush1.bf16.msra.mxu0 0
        %1037 = vmatprep.subr.bf16.mxu0 0
        %1038 = vmatpush1.bf16.msra.mxu0 0
        %1039 = vmatprep.subr.bf16.mxu0 0
        %1040 = vmatpush1.bf16.msra.mxu0 0
        %1041 = vmatprep.subr.bf16.mxu0 0
        %1042 = vmatpush1.bf16.msra.mxu0 0
        %1043 = vmatprep.subr.bf16.mxu0 0
        %1044 = vmatpush1.bf16.msra.mxu0 0
        %1045 = vmatprep.subr.bf16.mxu0 0
        %1046 = vmatpush1.bf16.msra.mxu0 0
        %1047 = vmatprep.subr.bf16.mxu0 0
        %1048 = vmatpush1.bf16.msra.mxu0 0
        %1049 = vmatprep.subr.bf16.mxu0 0
        %1050 = vmatpush1.bf16.msra.mxu0 0
        %1051 = vmatprep.subr.bf16.mxu0 0
        %1052 = vmatpush1.bf16.msra.mxu0 0
        %1053 = vmatprep.mubr.bf16.mxu0 0
        %1054 = vmatmul.mubr.bf16.gmra.mrb[0].mxu0 %v1019
        %v1055 = vpop.f32.mrb[0].mxu0
        %v1056 = vadd.f32 %v1016, %v1055
        %v1057 = vpop.f32.mrb[0].mxu0
        %v1058 = vpop.f32.mrb[0].mxu0
        %v1059 = vadd.f32 %v1017, %v1058
        %v1060 = vpop.f32.mrb[0].mxu0
        %1061 = vdwg.mxu0
        %v1062 = vmul.f32 %v1000, %v529
        %v1063 = vmul.f32 %v1001, %v530
        %v1064 = vsel %vm778, %v1062, 0.0
        %1065 = vadd.xlane.f32.xlu0 %v1064
        %v1066 = vpop.xlane.xlu0 %1065
        %v1067 = vsel %vm778, %v1063, 0.0
        %1068 = vadd.xlane.f32.xlu0 %v1067
        %v1069 = vpop.xlane.xlu0 %1068
        %v1070 = vlaneseq
        %v1071 = vshrl.u32 %v1070, 7
        %v1072 = vsub.s32 1, %v1071
        %v1073 = vrot.slane %v576, %v1072
        %v1074 = vmul.f32 %v1066, %v1073
        %v1075 = vmul.f32 %v1069, %v1073
        %v1076 = vadd.f32 %v1056, %v1074
        %v1077 = vadd.f32 %v1059, %v1075
        %v1078 = vmul.f32 %v1000, %v535
        %v1079 = vmul.f32 %v1001, %v536
        %v1080 = vsel %vm778, %v1078, 0.0
        %1081 = vadd.xlane.f32.xlu0 %v1080
        %v1082 = vpop.xlane.xlu0 %1081
        %v1083 = vsel %vm778, %v1079, 0.0
        %1084 = vadd.xlane.f32.xlu0 %v1083
        %v1085 = vpop.xlane.xlu0 %1084
        %v1086 = vlaneseq
        %v1087 = vshrl.u32 %v1086, 7
        %v1088 = vsub.s32 2, %v1087
        %v1089 = vrot.slane %v576, %v1088
        %v1090 = vmul.f32 %v1082, %v1089
        %v1091 = vmul.f32 %v1085, %v1089
        %v1092 = vadd.f32 %v1076, %v1090
        %v1093 = vadd.f32 %v1077, %v1091
        %v1094 = vmul.f32 %v1000, %v541
        %v1095 = vmul.f32 %v1001, %v542
        %v1096 = vsel %vm778, %v1094, 0.0
        %1097 = vadd.xlane.f32.xlu0 %v1096
        %v1098 = vpop.xlane.xlu0 %1097
        %v1099 = vsel %vm778, %v1095, 0.0
        %1100 = vadd.xlane.f32.xlu0 %v1099
        %v1101 = vpop.xlane.xlu0 %1100
        %v1102 = vlaneseq
        %v1103 = vshrl.u32 %v1102, 7
        %v1104 = vsub.s32 3, %v1103
        %v1105 = vrot.slane %v576, %v1104
        %v1106 = vmul.f32 %v1098, %v1105
        %v1107 = vmul.f32 %v1101, %v1105
        %v1108 = vadd.f32 %v1092, %v1106
        %v1109 = vadd.f32 %v1093, %v1107
        %v1110 = vmul.f32 %v1000, %v547
        %v1111 = vmul.f32 %v1001, %v548
        %v1112 = vsel %vm778, %v1110, 0.0
        %1113 = vadd.xlane.f32.xlu0 %v1112
        %v1114 = vpop.xlane.xlu0 %1113
        %v1115 = vsel %vm778, %v1111, 0.0
        %1116 = vadd.xlane.f32.xlu0 %v1115
        %v1117 = vpop.xlane.xlu0 %1116
        %v1118 = vlaneseq
        %v1119 = vshrl.u32 %v1118, 7
        %v1120 = vsub.s32 4, %v1119
        %v1121 = vrot.slane %v576, %v1120
        %v1122 = vmul.f32 %v1114, %v1121
        %v1123 = vmul.f32 %v1117, %v1121
        %v1124 = vadd.f32 %v1108, %v1122
        %v1125 = vadd.f32 %v1109, %v1123
        %v1126 = vmul.f32 %v1000, %v553
        %v1127 = vmul.f32 %v1001, %v554
        %v1128 = vsel %vm778, %v1126, 0.0
        %1129 = vadd.xlane.f32.xlu0 %v1128
        %v1130 = vpop.xlane.xlu0 %1129
        %v1131 = vsel %vm778, %v1127, 0.0
        %1132 = vadd.xlane.f32.xlu0 %v1131
        %v1133 = vpop.xlane.xlu0 %1132
        %v1134 = vlaneseq
        %v1135 = vshrl.u32 %v1134, 7
        %v1136 = vsub.s32 5, %v1135
        %v1137 = vrot.slane %v576, %v1136
        %v1138 = vmul.f32 %v1130, %v1137
        %v1139 = vmul.f32 %v1133, %v1137
        %v1140 = vadd.f32 %v1124, %v1138
        %v1141 = vadd.f32 %v1125, %v1139
        %v1142 = vmul.f32 %v1000, %v559
        %v1143 = vmul.f32 %v1001, %v560
        %v1144 = vsel %vm778, %v1142, 0.0
        %1145 = vadd.xlane.f32.xlu0 %v1144
        %v1146 = vpop.xlane.xlu0 %1145
        %v1147 = vsel %vm778, %v1143, 0.0
        %1148 = vadd.xlane.f32.xlu0 %v1147
        %v1149 = vpop.xlane.xlu0 %1148
        %v1150 = vlaneseq
        %v1151 = vshrl.u32 %v1150, 7
        %v1152 = vsub.s32 6, %v1151
        %v1153 = vrot.slane %v576, %v1152
        %v1154 = vmul.f32 %v1146, %v1153
        %v1155 = vmul.f32 %v1149, %v1153
        %v1156 = vadd.f32 %v1140, %v1154
        %v1157 = vadd.f32 %v1141, %v1155
        %v1158 = vmul.f32 %v1000, %v565
        %v1159 = vmul.f32 %v1001, %v566
        %v1160 = vsel %vm778, %v1158, 0.0
        %1161 = vadd.xlane.f32.xlu0 %v1160
        %v1162 = vpop.xlane.xlu0 %1161
        %v1163 = vsel %vm778, %v1159, 0.0
        %1164 = vadd.xlane.f32.xlu0 %v1163
        %v1165 = vpop.xlane.xlu0 %1164
        %v1166 = vlaneseq
        %v1167 = vshrl.u32 %v1166, 7
        %v1168 = vsub.s32 7, %v1167
        %v1169 = vrot.slane %v576, %v1168
        %v1170 = vmul.f32 %v1162, %v1169
        %v1171 = vmul.f32 %v1165, %v1169
        %v1172 = vadd.f32 %v1156, %v1170
        %v1173 = vadd.f32 %v1157, %v1171
        %v1174 = vmul.f32 %v1000, %v571
        %v1175 = vmul.f32 %v1001, %v572
        %v1176 = vsel %vm778, %v1174, 0.0
        %1177 = vadd.xlane.f32.xlu0 %v1176
        %v1178 = vpop.xlane.xlu0 %1177
        %v1179 = vsel %vm778, %v1175, 0.0
        %1180 = vadd.xlane.f32.xlu0 %v1179
        %v1181 = vpop.xlane.xlu0 %1180
        %v1182 = vlaneseq
        %v1183 = vshrl.u32 %v1182, 7
        %v1184 = vsub.s32 0, %v1183
        %v1185 = vrot.slane %v577, %v1184
        %v1186 = vmul.f32 %v1178, %v1185
        %v1187 = vmul.f32 %v1181, %v1185
        %v1188 = vadd.f32 %v1172, %v1186
        %v1189 = vadd.f32 %v1173, %v1187
        %v1190 = vpack.c.bf16 %v1189, %v1188
        %v1191 = vld [vmem:[%s5] sm:$0xf]
        %v1192 = vld [vmem:[%s5 + $0x4] sm:$0xf]
        %s1193 = scalar_lea.vmem %s2, 16
        %v1194 = vld [vmem:[%s1193] sm:$0xf]
        %v1195 = vld [vmem:[%s1193 + $0x4] sm:$0xf]
        %v1196 = vld [vmem:[%s1193 + $0x8] sm:$0xf]
        %v1197 = vld [vmem:[%s1193 + $0xc] sm:$0xf]
        %s1198 = scalar_lea.vmem %s6, 1
        %v1199 = vld [vmem:[%s1198] sm:$0x1]
        %v1201 = vlaneseq
        %v1202 = vshrl.u32 %v1201, 7
        %v1203 = vsub.s32 0, %v1202
        %v1204 = vrot.slane %v1199, %v1203
        %v1210 = vunpack.c.l.b16 %v1194
        %v1211 = vunpack.c.l.b16 %v1195
        %v1212 = vunpack.c.l.b16 %v1196
        %v1213 = vunpack.c.l.b16 %v1197
        %v1214 = vpack.c.b16 %v1211, %v1210
        %v1215 = vpack.c.b16 %v1213, %v1212
        %1218 = vmatprep.subr.bf16.mxu0 0
        %1219 = vmatpush1.bf16.msra.mxu0 %v1214
        %1220 = vmatprep.subr.bf16.mxu0 0
        %1221 = vmatpush1.bf16.msra.mxu0 %v1215
        %1222 = vmatprep.subr.bf16.mxu0 0
        %1223 = vmatpush1.bf16.msra.mxu0 0
        %1224 = vmatprep.subr.bf16.mxu0 0
        %1225 = vmatpush1.bf16.msra.mxu0 0
        %1226 = vmatprep.subr.bf16.mxu0 0
        %1227 = vmatpush1.bf16.msra.mxu0 0
        %1228 = vmatprep.subr.bf16.mxu0 0
        %1229 = vmatpush1.bf16.msra.mxu0 0
        %1230 = vmatprep.subr.bf16.mxu0 0
        %1231 = vmatpush1.bf16.msra.mxu0 0
        %1232 = vmatprep.subr.bf16.mxu0 0
        %1233 = vmatpush1.bf16.msra.mxu0 0
        %1234 = vmatprep.subr.bf16.mxu0 0
        %1235 = vmatpush1.bf16.msra.mxu0 0
        %1236 = vmatprep.subr.bf16.mxu0 0
        %1237 = vmatpush1.bf16.msra.mxu0 0
        %1238 = vmatprep.subr.bf16.mxu0 0
        %1239 = vmatpush1.bf16.msra.mxu0 0
        %1240 = vmatprep.subr.bf16.mxu0 0
        %1241 = vmatpush1.bf16.msra.mxu0 0
        %1242 = vmatprep.subr.bf16.mxu0 0
        %1243 = vmatpush1.bf16.msra.mxu0 0
        %1244 = vmatprep.subr.bf16.mxu0 0
        %1245 = vmatpush1.bf16.msra.mxu0 0
        %1246 = vmatprep.subr.bf16.mxu0 0
        %1247 = vmatpush1.bf16.msra.mxu0 0
        %1248 = vmatprep.subr.bf16.mxu0 0
        %1249 = vmatpush1.bf16.msra.mxu0 0
        %1250 = vmatprep.mubr.bf16.mxu0 0
        %1251 = vmatmul.mubr.bf16.gmra.mrb[0].mxu0 %v603
        %v1252 = vpop.f32.mrb[0].mxu0
        %v1253 = vadd.f32 %v1204, %v1252
        %v1254 = vpop.f32.mrb[0].mxu0
        %v1255 = vpop.f32.mrb[0].mxu0
        %v1256 = vadd.f32 %v1204, %v1255
        %v1257 = vpop.f32.mrb[0].mxu0
        %1258 = vdwg.mxu0
        %s1259 = scalar_lea.vmem %s3, 16
        %v1260 = vld [vmem:[%s1259] sm:$0xf]
        %v1261 = vld [vmem:[%s1259 + $0x4] sm:$0xf]
        %v1262 = vld [vmem:[%s1259 + $0x8] sm:$0xf]
        %v1263 = vld [vmem:[%s1259 + $0xc] sm:$0xf]
        %s1264 = scalar_lea.vmem %s7, 1
        %v1265 = vld [vmem:[%s1264] sm:$0x1]
        %v1267 = vlaneseq
        %v1268 = vshrl.u32 %v1267, 7
        %v1269 = vsub.s32 0, %v1268
        %v1270 = vrot.slane %v1265, %v1269
        %v1276 = vunpack.c.l.b16 %v1260
        %v1277 = vunpack.c.l.b16 %v1261
        %v1278 = vunpack.c.l.b16 %v1262
        %v1279 = vunpack.c.l.b16 %v1263
        %v1280 = vpack.c.b16 %v1277, %v1276
        %v1281 = vpack.c.b16 %v1279, %v1278
        %1284 = vmatprep.subr.bf16.mxu0 0
        %1285 = vmatpush1.bf16.msra.mxu0 %v1280
        %1286 = vmatprep.subr.bf16.mxu0 0
        %1287 = vmatpush1.bf16.msra.mxu0 %v1281
        %1288 = vmatprep.subr.bf16.mxu0 0
        %1289 = vmatpush1.bf16.msra.mxu0 0
        %1290 = vmatprep.subr.bf16.mxu0 0
        %1291 = vmatpush1.bf16.msra.mxu0 0
        %1292 = vmatprep.subr.bf16.mxu0 0
        %1293 = vmatpush1.bf16.msra.mxu0 0
        %1294 = vmatprep.subr.bf16.mxu0 0
        %1295 = vmatpush1.bf16.msra.mxu0 0
        %1296 = vmatprep.subr.bf16.mxu0 0
        %1297 = vmatpush1.bf16.msra.mxu0 0
        %1298 = vmatprep.subr.bf16.mxu0 0
        %1299 = vmatpush1.bf16.msra.mxu0 0
        %1300 = vmatprep.subr.bf16.mxu0 0
        %1301 = vmatpush1.bf16.msra.mxu0 0
        %1302 = vmatprep.subr.bf16.mxu0 0
        %1303 = vmatpush1.bf16.msra.mxu0 0
        %1304 = vmatprep.subr.bf16.mxu0 0
        %1305 = vmatpush1.bf16.msra.mxu0 0
        %1306 = vmatprep.subr.bf16.mxu0 0
        %1307 = vmatpush1.bf16.msra.mxu0 0
        %1308 = vmatprep.subr.bf16.mxu0 0
        %1309 = vmatpush1.bf16.msra.mxu0 0
        %1310 = vmatprep.subr.bf16.mxu0 0
        %1311 = vmatpush1.bf16.msra.mxu0 0
        %1312 = vmatprep.subr.bf16.mxu0 0
        %1313 = vmatpush1.bf16.msra.mxu0 0
        %1314 = vmatprep.subr.bf16.mxu0 0
        %1315 = vmatpush1.bf16.msra.mxu0 0
        %1316 = vmatprep.mubr.bf16.mxu0 0
        %1317 = vmatmul.mubr.bf16.gmra.mrb[0].mxu0 %v603
        %v1318 = vpop.f32.mrb[0].mxu0
        %v1319 = vadd.f32 %v1270, %v1318
        %v1320 = vpop.f32.mrb[0].mxu0
        %v1321 = vpop.f32.mrb[0].mxu0
        %v1322 = vadd.f32 %v1270, %v1321
        %v1323 = vpop.f32.mrb[0].mxu0
        %1324 = vdwg.mxu0
        %s1325 = scalar_lea.vmem %s4, 16
        %v1326 = vld [vmem:[%s1325] sm:$0xf]
        %v1327 = vld [vmem:[%s1325 + $0x4] sm:$0xf]
        %v1328 = vld [vmem:[%s1325 + $0x8] sm:$0xf]
        %v1329 = vld [vmem:[%s1325 + $0xc] sm:$0xf]
        %s1330 = scalar_lea.vmem %s8, 1
        %v1331 = vld [vmem:[%s1330] sm:$0x1]
        %v1333 = vlaneseq
        %v1334 = vshrl.u32 %v1333, 7
        %v1335 = vsub.s32 0, %v1334
        %v1336 = vrot.slane %v1331, %v1335
        %v1342 = vunpack.c.l.b16 %v1326
        %v1343 = vunpack.c.l.b16 %v1327
        %v1344 = vunpack.c.l.b16 %v1328
        %v1345 = vunpack.c.l.b16 %v1329
        %v1346 = vpack.c.b16 %v1343, %v1342
        %v1347 = vpack.c.b16 %v1345, %v1344
        %1350 = vmatprep.subr.bf16.mxu0 0
        %1351 = vmatpush1.bf16.msra.mxu0 %v1346
        %1352 = vmatprep.subr.bf16.mxu0 0
        %1353 = vmatpush1.bf16.msra.mxu0 %v1347
        %1354 = vmatprep.subr.bf16.mxu0 0
        %1355 = vmatpush1.bf16.msra.mxu0 0
        %1356 = vmatprep.subr.bf16.mxu0 0
        %1357 = vmatpush1.bf16.msra.mxu0 0
        %1358 = vmatprep.subr.bf16.mxu0 0
        %1359 = vmatpush1.bf16.msra.mxu0 0
        %1360 = vmatprep.subr.bf16.mxu0 0
        %1361 = vmatpush1.bf16.msra.mxu0 0
        %1362 = vmatprep.subr.bf16.mxu0 0
        %1363 = vmatpush1.bf16.msra.mxu0 0
        %1364 = vmatprep.subr.bf16.mxu0 0
        %1365 = vmatpush1.bf16.msra.mxu0 0
        %1366 = vmatprep.subr.bf16.mxu0 0
        %1367 = vmatpush1.bf16.msra.mxu0 0
        %1368 = vmatprep.subr.bf16.mxu0 0
        %1369 = vmatpush1.bf16.msra.mxu0 0
        %1370 = vmatprep.subr.bf16.mxu0 0
        %1371 = vmatpush1.bf16.msra.mxu0 0
        %1372 = vmatprep.subr.bf16.mxu0 0
        %1373 = vmatpush1.bf16.msra.mxu0 0
        %1374 = vmatprep.subr.bf16.mxu0 0
        %1375 = vmatpush1.bf16.msra.mxu0 0
        %1376 = vmatprep.subr.bf16.mxu0 0
        %1377 = vmatpush1.bf16.msra.mxu0 0
        %1378 = vmatprep.subr.bf16.mxu0 0
        %1379 = vmatpush1.bf16.msra.mxu0 0
        %1380 = vmatprep.subr.bf16.mxu0 0
        %1381 = vmatpush1.bf16.msra.mxu0 0
        %1382 = vmatprep.mubr.bf16.mxu0 0
        %1383 = vmatmul.mubr.bf16.gmra.mrb[0].mxu0 %v603
        %v1384 = vpop.f32.mrb[0].mxu0
        %v1385 = vadd.f32 %v1336, %v1384
        %v1386 = vpop.f32.mrb[0].mxu0
        %v1387 = vpop.f32.mrb[0].mxu0
        %v1388 = vadd.f32 %v1336, %v1387
        %v1389 = vpop.f32.mrb[0].mxu0
        %1390 = vdwg.mxu0
        %v1391 = vmul.f32 %v1253, 0.25
        %v1392 = vmul.f32 %v1256, 0.25
        %v1393 = vpack.c.bf16 %v1392, %v1391
        %v1394 = vpack.c.bf16 %v1322, %v1319
        %v1396 = vsel %vm778, %v1393, 0
        %1398 = vmatprep.subr.bf16.mxu0 0
        %1399 = vmatpush1.bf16.xpose.msra.mxu0 %v783
        %1400 = vmatprep.subr.bf16.mxu0 0
        %1401 = vmatpush1.bf16.xpose.msra.mxu0 0
        %1402 = vmatprep.subr.bf16.mxu0 0
        %1403 = vmatpush1.bf16.xpose.msra.mxu0 0
        %1404 = vmatprep.subr.bf16.mxu0 0
        %1405 = vmatpush1.bf16.xpose.msra.mxu0 0
        %1406 = vmatprep.subr.bf16.mxu0 0
        %1407 = vmatpush1.bf16.xpose.msra.mxu0 0
        %1408 = vmatprep.subr.bf16.mxu0 0
        %1409 = vmatpush1.bf16.xpose.msra.mxu0 0
        %1410 = vmatprep.subr.bf16.mxu0 0
        %1411 = vmatpush1.bf16.xpose.msra.mxu0 0
        %1412 = vmatprep.subr.bf16.mxu0 0
        %1413 = vmatpush1.bf16.xpose.msra.mxu0 0
        %1414 = vmatprep.subr.bf16.mxu0 0
        %1415 = vmatpush1.bf16.xpose.msra.mxu0 0
        %1416 = vmatprep.subr.bf16.mxu0 0
        %1417 = vmatpush1.bf16.xpose.msra.mxu0 0
        %1418 = vmatprep.subr.bf16.mxu0 0
        %1419 = vmatpush1.bf16.xpose.msra.mxu0 0
        %1420 = vmatprep.subr.bf16.mxu0 0
        %1421 = vmatpush1.bf16.xpose.msra.mxu0 0
        %1422 = vmatprep.subr.bf16.mxu0 0
        %1423 = vmatpush1.bf16.xpose.msra.mxu0 0
        %1424 = vmatprep.subr.bf16.mxu0 0
        %1425 = vmatpush1.bf16.xpose.msra.mxu0 0
        %1426 = vmatprep.subr.bf16.mxu0 0
        %1427 = vmatpush1.bf16.xpose.msra.mxu0 0
        %1428 = vmatprep.subr.bf16.mxu0 0
        %1429 = vmatpush1.bf16.xpose.msra.mxu0 0
        %1430 = vmatprep.mubr.bf16.mxu0 0
        %1431 = vmatmul.mubr.bf16.gmra.mrb[0].mxu0 %v1396
        %v1432 = vpop.f32.mrb[0].mxu0
        %v1433 = vadd.f32 0.0, %v1432
        %v1434 = vpop.f32.mrb[0].mxu0
        %v1435 = vpop.f32.mrb[0].mxu0
        %v1436 = vadd.f32 0.0, %v1435
        %v1437 = vpop.f32.mrb[0].mxu0
        %1438 = vdwg.mxu0
        %1440 = vset.pattern.permute.xlu0 0
        %1441 = vperm.xlu0 %1440, %v1433
        %v1442 = vpop.permute.xlu0 %1441
        %1445 = vset.pattern.permute.xlu0 0
        %1446 = vperm.xlu0 %1445, %v1436
        %v1447 = vpop.permute.xlu0 %1446
        %v1449 = vmul.f32 %v1442, %v523
        %v1450 = vmul.f32 %v1447, %v524
        %v1452 = vsel %vm778, %v1394, 0
        %1454 = vmatprep.subr.bf16.mxu0 0
        %1455 = vmatpush1.bf16.xpose.msra.mxu0 %v1452
        %1456 = vmatprep.subr.bf16.mxu0 0
        %1457 = vmatpush1.bf16.xpose.msra.mxu0 0
        %1458 = vmatprep.subr.bf16.mxu0 0
        %1459 = vmatpush1.bf16.xpose.msra.mxu0 0
        %1460 = vmatprep.subr.bf16.mxu0 0
        %1461 = vmatpush1.bf16.xpose.msra.mxu0 0
        %1462 = vmatprep.subr.bf16.mxu0 0
        %1463 = vmatpush1.bf16.xpose.msra.mxu0 0
        %1464 = vmatprep.subr.bf16.mxu0 0
        %1465 = vmatpush1.bf16.xpose.msra.mxu0 0
        %1466 = vmatprep.subr.bf16.mxu0 0
        %1467 = vmatpush1.bf16.xpose.msra.mxu0 0
        %1468 = vmatprep.subr.bf16.mxu0 0
        %1469 = vmatpush1.bf16.xpose.msra.mxu0 0
        %1470 = vmatprep.subr.bf16.mxu0 0
        %1471 = vmatpush1.bf16.xpose.msra.mxu0 0
        %1472 = vmatprep.subr.bf16.mxu0 0
        %1473 = vmatpush1.bf16.xpose.msra.mxu0 0
        %1474 = vmatprep.subr.bf16.mxu0 0
        %1475 = vmatpush1.bf16.xpose.msra.mxu0 0
        %1476 = vmatprep.subr.bf16.mxu0 0
        %1477 = vmatpush1.bf16.xpose.msra.mxu0 0
        %1478 = vmatprep.subr.bf16.mxu0 0
        %1479 = vmatpush1.bf16.xpose.msra.mxu0 0
        %1480 = vmatprep.subr.bf16.mxu0 0
        %1481 = vmatpush1.bf16.xpose.msra.mxu0 0
        %1482 = vmatprep.subr.bf16.mxu0 0
        %1483 = vmatpush1.bf16.xpose.msra.mxu0 0
        %1484 = vmatprep.subr.bf16.mxu0 0
        %1485 = vmatpush1.bf16.xpose.msra.mxu0 0
        %1486 = vmatprep.mubr.bf16.mxu0 0
        %1487 = vmatmul.mubr.bf16.gmra.mrb[0].mxu0 %v1396
        %v1488 = vpop.f32.mrb[0].mxu0
        %v1489 = vadd.f32 %v1449, %v1488
        %v1490 = vpop.f32.mrb[0].mxu0
        %v1491 = vpop.f32.mrb[0].mxu0
        %v1492 = vadd.f32 %v1450, %v1491
        %v1493 = vpop.f32.mrb[0].mxu0
        %1494 = vdwg.mxu0
        %1495 = vset.pattern.permute.xlu0 1
        %1496 = vperm.xlu0 %1495, %v1433
        %v1497 = vpop.permute.xlu0 %1496
        %1499 = vset.pattern.permute.xlu0 1
        %1500 = vperm.xlu0 %1499, %v1436
        %v1501 = vpop.permute.xlu0 %1500
        %v1503 = vmul.f32 %v1497, %v529
        %v1504 = vmul.f32 %v1501, %v530
        %v1505 = vadd.f32 %v1489, %v1503
        %v1506 = vadd.f32 %v1492, %v1504
        %1507 = vset.pattern.permute.xlu0 2
        %1508 = vperm.xlu0 %1507, %v1433
        %v1509 = vpop.permute.xlu0 %1508
        %1511 = vset.pattern.permute.xlu0 2
        %1512 = vperm.xlu0 %1511, %v1436
        %v1513 = vpop.permute.xlu0 %1512
        %v1515 = vmul.f32 %v1509, %v535
        %v1516 = vmul.f32 %v1513, %v536
        %v1517 = vadd.f32 %v1505, %v1515
        %v1518 = vadd.f32 %v1506, %v1516
        %1519 = vset.pattern.permute.xlu0 3
        %1520 = vperm.xlu0 %1519, %v1433
        %v1521 = vpop.permute.xlu0 %1520
        %1523 = vset.pattern.permute.xlu0 3
        %1524 = vperm.xlu0 %1523, %v1436
        %v1525 = vpop.permute.xlu0 %1524
        %v1527 = vmul.f32 %v1521, %v541
        %v1528 = vmul.f32 %v1525, %v542
        %v1529 = vadd.f32 %v1517, %v1527
        %v1530 = vadd.f32 %v1518, %v1528
        %1531 = vset.pattern.permute.xlu0 4
        %1532 = vperm.xlu0 %1531, %v1433
        %v1533 = vpop.permute.xlu0 %1532
        %1535 = vset.pattern.permute.xlu0 4
        %1536 = vperm.xlu0 %1535, %v1436
        %v1537 = vpop.permute.xlu0 %1536
        %v1539 = vmul.f32 %v1533, %v547
        %v1540 = vmul.f32 %v1537, %v548
        %v1541 = vadd.f32 %v1529, %v1539
        %v1542 = vadd.f32 %v1530, %v1540
        %1543 = vset.pattern.permute.xlu0 5
        %1544 = vperm.xlu0 %1543, %v1433
        %v1545 = vpop.permute.xlu0 %1544
        %1547 = vset.pattern.permute.xlu0 5
        %1548 = vperm.xlu0 %1547, %v1436
        %v1549 = vpop.permute.xlu0 %1548
        %v1551 = vmul.f32 %v1545, %v553
        %v1552 = vmul.f32 %v1549, %v554
        %v1553 = vadd.f32 %v1541, %v1551
        %v1554 = vadd.f32 %v1542, %v1552
        %1555 = vset.pattern.permute.xlu0 6
        %1556 = vperm.xlu0 %1555, %v1433
        %v1557 = vpop.permute.xlu0 %1556
        %1559 = vset.pattern.permute.xlu0 6
        %1560 = vperm.xlu0 %1559, %v1436
        %v1561 = vpop.permute.xlu0 %1560
        %v1563 = vmul.f32 %v1557, %v559
        %v1564 = vmul.f32 %v1561, %v560
        %v1565 = vadd.f32 %v1553, %v1563
        %v1566 = vadd.f32 %v1554, %v1564
        %1567 = vset.pattern.permute.xlu0 7
        %1568 = vperm.xlu0 %1567, %v1433
        %v1569 = vpop.permute.xlu0 %1568
        %1571 = vset.pattern.permute.xlu0 7
        %1572 = vperm.xlu0 %1571, %v1436
        %v1573 = vpop.permute.xlu0 %1572
        %v1575 = vmul.f32 %v1569, %v565
        %v1576 = vmul.f32 %v1573, %v566
        %v1577 = vadd.f32 %v1565, %v1575
        %v1578 = vadd.f32 %v1566, %v1576
        %1579 = vset.pattern.permute.xlu0 8
        %1580 = vperm.xlu0 %1579, %v1433
        %v1581 = vpop.permute.xlu0 %1580
        %1583 = vset.pattern.permute.xlu0 8
        %1584 = vperm.xlu0 %1583, %v1436
        %v1585 = vpop.permute.xlu0 %1584
        %v1587 = vmul.f32 %v1581, %v571
        %v1588 = vmul.f32 %v1585, %v572
        %v1589 = vadd.f32 %v1577, %v1587
        %v1590 = vadd.f32 %v1578, %v1588
        %v1591 = vsel %vm515, %v1589, -10000.0
        %v1592 = vsel %vm516, %v1590, -10000.0
        %v1593 = vsel %vm778, %v1591, -inf
        %1594 = vmax.xlane.f32.xlu0 %v1593
        %v1595 = vpop.xlane.xlu0 %1594
        %v1596 = vsel %vm778, %v1592, -inf
        %1597 = vmax.xlane.f32.xlu0 %v1596
        %v1598 = vpop.xlane.xlu0 %1597
        %v1599 = vsub.f32 %v1591, %v1595
        %v1600 = vsub.f32 %v1592, %v1598
        %v1601 = vmul.f32 %v1599, 1.442695
        %v1602 = vpow.pop %v1601
        %v1603 = vmul.f32 %v1600, 1.442695
        %v1604 = vpow.pop %v1603
        %v1605 = vsel %vm778, %v1602, 0.0
        %1606 = vadd.xlane.f32.xlu0 %v1605
        %v1607 = vpop.xlane.xlu0 %1606
        %v1608 = vsel %vm778, %v1604, 0.0
        %1609 = vadd.xlane.f32.xlu0 %v1608
        %v1610 = vpop.xlane.xlu0 %1609
        %v1611 = vrcp.pop %v1607
        %v1612 = vrcp.pop %v1610
        %v1613 = vmul.f32 %v1602, %v1611
        %v1614 = vmul.f32 %v1604, %v1612
        %v1615 = vpack.c.bf16 %v1614, %v1613
        %v1616 = vpack.c.bf16 %v1388, %v1385
        %v1617 = vmul.f32 %v1613, %v523
        %v1618 = vmul.f32 %v1614, %v524
        %v1619 = vsel %vm778, %v1617, 0.0
        %1620 = vadd.xlane.f32.xlu0 %v1619
        %v1621 = vpop.xlane.xlu0 %1620
        %v1622 = vsel %vm778, %v1618, 0.0
        %1623 = vadd.xlane.f32.xlu0 %v1622
        %v1624 = vpop.xlane.xlu0 %1623
        %v1625 = vmul.f32 %v1621, %v1015
        %v1626 = vmul.f32 %v1624, %v1015
        %v1628 = vsel %vm778, %v1615, 0
        %1630 = vmatprep.subr.bf16.mxu0 0
        %1631 = vmatpush1.bf16.msra.mxu0 %v1616
        %1632 = vmatprep.subr.bf16.mxu0 0
        %1633 = vmatpush1.bf16.msra.mxu0 0
        %1634 = vmatprep.subr.bf16.mxu0 0
        %1635 = vmatpush1.bf16.msra.mxu0 0
        %1636 = vmatprep.subr.bf16.mxu0 0
        %1637 = vmatpush1.bf16.msra.mxu0 0
        %1638 = vmatprep.subr.bf16.mxu0 0
        %1639 = vmatpush1.bf16.msra.mxu0 0
        %1640 = vmatprep.subr.bf16.mxu0 0
        %1641 = vmatpush1.bf16.msra.mxu0 0
        %1642 = vmatprep.subr.bf16.mxu0 0
        %1643 = vmatpush1.bf16.msra.mxu0 0
        %1644 = vmatprep.subr.bf16.mxu0 0
        %1645 = vmatpush1.bf16.msra.mxu0 0
        %1646 = vmatprep.subr.bf16.mxu0 0
        %1647 = vmatpush1.bf16.msra.mxu0 0
        %1648 = vmatprep.subr.bf16.mxu0 0
        %1649 = vmatpush1.bf16.msra.mxu0 0
        %1650 = vmatprep.subr.bf16.mxu0 0
        %1651 = vmatpush1.bf16.msra.mxu0 0
        %1652 = vmatprep.subr.bf16.mxu0 0
        %1653 = vmatpush1.bf16.msra.mxu0 0
        %1654 = vmatprep.subr.bf16.mxu0 0
        %1655 = vmatpush1.bf16.msra.mxu0 0
        %1656 = vmatprep.subr.bf16.mxu0 0
        %1657 = vmatpush1.bf16.msra.mxu0 0
        %1658 = vmatprep.subr.bf16.mxu0 0
        %1659 = vmatpush1.bf16.msra.mxu0 0
        %1660 = vmatprep.subr.bf16.mxu0 0
        %1661 = vmatpush1.bf16.msra.mxu0 0
        %1662 = vmatprep.mubr.bf16.mxu0 0
        %1663 = vmatmul.mubr.bf16.gmra.mrb[0].mxu0 %v1628
        %v1664 = vpop.f32.mrb[0].mxu0
        %v1665 = vadd.f32 %v1625, %v1664
        %v1666 = vpop.f32.mrb[0].mxu0
        %v1667 = vpop.f32.mrb[0].mxu0
        %v1668 = vadd.f32 %v1626, %v1667
        %v1669 = vpop.f32.mrb[0].mxu0
        %1670 = vdwg.mxu0
        %v1671 = vmul.f32 %v1613, %v529
        %v1672 = vmul.f32 %v1614, %v530
        %v1673 = vsel %vm778, %v1671, 0.0
        %1674 = vadd.xlane.f32.xlu0 %v1673
        %v1675 = vpop.xlane.xlu0 %1674
        %v1676 = vsel %vm778, %v1672, 0.0
        %1677 = vadd.xlane.f32.xlu0 %v1676
        %v1678 = vpop.xlane.xlu0 %1677
        %v1679 = vmul.f32 %v1675, %v1073
        %v1680 = vmul.f32 %v1678, %v1073
        %v1681 = vadd.f32 %v1665, %v1679
        %v1682 = vadd.f32 %v1668, %v1680
        %v1683 = vmul.f32 %v1613, %v535
        %v1684 = vmul.f32 %v1614, %v536
        %v1685 = vsel %vm778, %v1683, 0.0
        %1686 = vadd.xlane.f32.xlu0 %v1685
        %v1687 = vpop.xlane.xlu0 %1686
        %v1688 = vsel %vm778, %v1684, 0.0
        %1689 = vadd.xlane.f32.xlu0 %v1688
        %v1690 = vpop.xlane.xlu0 %1689
        %v1691 = vmul.f32 %v1687, %v1089
        %v1692 = vmul.f32 %v1690, %v1089
        %v1693 = vadd.f32 %v1681, %v1691
        %v1694 = vadd.f32 %v1682, %v1692
        %v1695 = vmul.f32 %v1613, %v541
        %v1696 = vmul.f32 %v1614, %v542
        %v1697 = vsel %vm778, %v1695, 0.0
        %1698 = vadd.xlane.f32.xlu0 %v1697
        %v1699 = vpop.xlane.xlu0 %1698
        %v1700 = vsel %vm778, %v1696, 0.0
        %1701 = vadd.xlane.f32.xlu0 %v1700
        %v1702 = vpop.xlane.xlu0 %1701
        %v1703 = vmul.f32 %v1699, %v1105
        %v1704 = vmul.f32 %v1702, %v1105
        %v1705 = vadd.f32 %v1693, %v1703
        %v1706 = vadd.f32 %v1694, %v1704
        %v1707 = vmul.f32 %v1613, %v547
        %v1708 = vmul.f32 %v1614, %v548
        %v1709 = vsel %vm778, %v1707, 0.0
        %1710 = vadd.xlane.f32.xlu0 %v1709
        %v1711 = vpop.xlane.xlu0 %1710
        %v1712 = vsel %vm778, %v1708, 0.0
        %1713 = vadd.xlane.f32.xlu0 %v1712
        %v1714 = vpop.xlane.xlu0 %1713
        %v1715 = vmul.f32 %v1711, %v1121
        %v1716 = vmul.f32 %v1714, %v1121
        %v1717 = vadd.f32 %v1705, %v1715
        %v1718 = vadd.f32 %v1706, %v1716
        %v1719 = vmul.f32 %v1613, %v553
        %v1720 = vmul.f32 %v1614, %v554
        %v1721 = vsel %vm778, %v1719, 0.0
        %1722 = vadd.xlane.f32.xlu0 %v1721
        %v1723 = vpop.xlane.xlu0 %1722
        %v1724 = vsel %vm778, %v1720, 0.0
        %1725 = vadd.xlane.f32.xlu0 %v1724
        %v1726 = vpop.xlane.xlu0 %1725
        %v1727 = vmul.f32 %v1723, %v1137
        %v1728 = vmul.f32 %v1726, %v1137
        %v1729 = vadd.f32 %v1717, %v1727
        %v1730 = vadd.f32 %v1718, %v1728
        %v1731 = vmul.f32 %v1613, %v559
        %v1732 = vmul.f32 %v1614, %v560
        %v1733 = vsel %vm778, %v1731, 0.0
        %1734 = vadd.xlane.f32.xlu0 %v1733
        %v1735 = vpop.xlane.xlu0 %1734
        %v1736 = vsel %vm778, %v1732, 0.0
        %1737 = vadd.xlane.f32.xlu0 %v1736
        %v1738 = vpop.xlane.xlu0 %1737
        %v1739 = vmul.f32 %v1735, %v1153
        %v1740 = vmul.f32 %v1738, %v1153
        %v1741 = vadd.f32 %v1729, %v1739
        %v1742 = vadd.f32 %v1730, %v1740
        %v1743 = vmul.f32 %v1613, %v565
        %v1744 = vmul.f32 %v1614, %v566
        %v1745 = vsel %vm778, %v1743, 0.0
        %1746 = vadd.xlane.f32.xlu0 %v1745
        %v1747 = vpop.xlane.xlu0 %1746
        %v1748 = vsel %vm778, %v1744, 0.0
        %1749 = vadd.xlane.f32.xlu0 %v1748
        %v1750 = vpop.xlane.xlu0 %1749
        %v1751 = vmul.f32 %v1747, %v1169
        %v1752 = vmul.f32 %v1750, %v1169
        %v1753 = vadd.f32 %v1741, %v1751
        %v1754 = vadd.f32 %v1742, %v1752
        %v1755 = vmul.f32 %v1613, %v571
        %v1756 = vmul.f32 %v1614, %v572
        %v1757 = vsel %vm778, %v1755, 0.0
        %1758 = vadd.xlane.f32.xlu0 %v1757
        %v1759 = vpop.xlane.xlu0 %1758
        %v1760 = vsel %vm778, %v1756, 0.0
        %1761 = vadd.xlane.f32.xlu0 %v1760
        %v1762 = vpop.xlane.xlu0 %1761
        %v1763 = vmul.f32 %v1759, %v1185
        %v1764 = vmul.f32 %v1762, %v1185
        %v1765 = vadd.f32 %v1753, %v1763
        %v1766 = vadd.f32 %v1754, %v1764
        %v1767 = vpack.c.bf16 %v1766, %v1765
        %s1768 = scalar_lea.vmem %s5, 8
        %v1769 = vld [vmem:[%s1768] sm:$0xf]
        %v1770 = vld [vmem:[%s1768 + $0x4] sm:$0xf]
        %v1773 = vunpack.c.l.b16 %v1769
        %v1774 = vunpack.c.l.b16 %v1770
        %v1775 = vpack.c.b16 %v1774, %v1773
        %v1778 = vsel %vm778, %v1767, 0
        %1780 = vmatprep.subr.bf16.mxu0 0
        %1781 = vmatpush1.bf16.msra.mxu0 %v1775
        %1782 = vmatprep.subr.bf16.mxu0 0
        %1783 = vmatpush1.bf16.msra.mxu0 0
        %1784 = vmatprep.subr.bf16.mxu0 0
        %1785 = vmatpush1.bf16.msra.mxu0 0
        %1786 = vmatprep.subr.bf16.mxu0 0
        %1787 = vmatpush1.bf16.msra.mxu0 0
        %1788 = vmatprep.subr.bf16.mxu0 0
        %1789 = vmatpush1.bf16.msra.mxu0 0
        %1790 = vmatprep.subr.bf16.mxu0 0
        %1791 = vmatpush1.bf16.msra.mxu0 0
        %1792 = vmatprep.subr.bf16.mxu0 0
        %1793 = vmatpush1.bf16.msra.mxu0 0
        %1794 = vmatprep.subr.bf16.mxu0 0
        %1795 = vmatpush1.bf16.msra.mxu0 0
        %1796 = vmatprep.subr.bf16.mxu0 0
        %1797 = vmatpush1.bf16.msra.mxu0 0
        %1798 = vmatprep.subr.bf16.mxu0 0
        %1799 = vmatpush1.bf16.msra.mxu0 0
        %1800 = vmatprep.subr.bf16.mxu0 0
        %1801 = vmatpush1.bf16.msra.mxu0 0
        %1802 = vmatprep.subr.bf16.mxu0 0
        %1803 = vmatpush1.bf16.msra.mxu0 0
        %1804 = vmatprep.subr.bf16.mxu0 0
        %1805 = vmatpush1.bf16.msra.mxu0 0
        %1806 = vmatprep.subr.bf16.mxu0 0
        %1807 = vmatpush1.bf16.msra.mxu0 0
        %1808 = vmatprep.subr.bf16.mxu0 0
        %1809 = vmatpush1.bf16.msra.mxu0 0
        %1810 = vmatprep.subr.bf16.mxu0 0
        %1811 = vmatpush1.bf16.msra.mxu0 0
        %1812 = vmatprep.mubr.bf16.mxu0 0
        %1813 = vmatmul.mubr.bf16.gmra.mrb[0].mxu0 %v1778
        %v1814 = vpop.f32.mrb[0].mxu0
        %v1815 = vadd.f32 0.0, %v1814
        %v1816 = vpop.f32.mrb[0].mxu0
        %v1817 = vpop.f32.mrb[0].mxu0
        %v1818 = vadd.f32 0.0, %v1817
        %v1819 = vpop.f32.mrb[0].mxu0
        %1820 = vdwg.mxu0
        %v1823 = vunpack.c.l.b16 %v1191
        %v1824 = vunpack.c.l.b16 %v1192
        %v1825 = vpack.c.b16 %v1824, %v1823
        %v1828 = vsel %vm778, %v1190, 0
        %1830 = vmatprep.subr.bf16.mxu0 0
        %1831 = vmatpush1.bf16.msra.mxu0 %v1825
        %1832 = vmatprep.subr.bf16.mxu0 0
        %1833 = vmatpush1.bf16.msra.mxu0 0
        %1834 = vmatprep.subr.bf16.mxu0 0
        %1835 = vmatpush1.bf16.msra.mxu0 0
        %1836 = vmatprep.subr.bf16.mxu0 0
        %1837 = vmatpush1.bf16.msra.mxu0 0
        %1838 = vmatprep.subr.bf16.mxu0 0
        %1839 = vmatpush1.bf16.msra.mxu0 0
        %1840 = vmatprep.subr.bf16.mxu0 0
        %1841 = vmatpush1.bf16.msra.mxu0 0
        %1842 = vmatprep.subr.bf16.mxu0 0
        %1843 = vmatpush1.bf16.msra.mxu0 0
        %1844 = vmatprep.subr.bf16.mxu0 0
        %1845 = vmatpush1.bf16.msra.mxu0 0
        %1846 = vmatprep.subr.bf16.mxu0 0
        %1847 = vmatpush1.bf16.msra.mxu0 0
        %1848 = vmatprep.subr.bf16.mxu0 0
        %1849 = vmatpush1.bf16.msra.mxu0 0
        %1850 = vmatprep.subr.bf16.mxu0 0
        %1851 = vmatpush1.bf16.msra.mxu0 0
        %1852 = vmatprep.subr.bf16.mxu0 0
        %1853 = vmatpush1.bf16.msra.mxu0 0
        %1854 = vmatprep.subr.bf16.mxu0 0
        %1855 = vmatpush1.bf16.msra.mxu0 0
        %1856 = vmatprep.subr.bf16.mxu0 0
        %1857 = vmatpush1.bf16.msra.mxu0 0
        %1858 = vmatprep.subr.bf16.mxu0 0
        %1859 = vmatpush1.bf16.msra.mxu0 0
        %1860 = vmatprep.subr.bf16.mxu0 0
        %1861 = vmatpush1.bf16.msra.mxu0 0
        %1862 = vmatprep.mubr.bf16.mxu0 0
        %1863 = vmatmul.mubr.bf16.gmra.mrb[0].mxu0 %v1828
        %v1864 = vpop.f32.mrb[0].mxu0
        %v1865 = vadd.f32 %v1815, %v1864
        %v1866 = vpop.f32.mrb[0].mxu0
        %v1867 = vpop.f32.mrb[0].mxu0
        %v1868 = vadd.f32 %v1818, %v1867
        %v1869 = vpop.f32.mrb[0].mxu0
        %1870 = vdwg.mxu0
        %v1871 = vld [vmem:[%s9] sm:$0x1]
        %v1873 = vlaneseq
        %v1874 = vshrl.u32 %v1873, 7
        %v1875 = vsub.s32 0, %v1874
        %v1876 = vrot.slane %v1871, %v1875
        %v1878 = vadd.f32 %v1865, %v1876
        %v1879 = vadd.f32 %v1868, %v1876
        %v1880 = vadd.f32 %v509, %v1878
        %v1881 = vadd.f32 %v510, %v1879
        %v1882 = vsel %vm601, %v1880, 0.0
        %1883 = vadd.xlane.f32.xlu0 %v1882
        %v1884 = vpop.xlane.xlu0 %1883
        %v1885 = vsel %vm601, %v1881, 0.0
        %1886 = vadd.xlane.f32.xlu0 %v1885
        %v1887 = vpop.xlane.xlu0 %1886
        %v1888 = vrcp.pop 32.0
        %v1889 = vmul.f32 %v1884, %v1888
        %v1890 = vmul.f32 %v1887, %v1888
        %v1891 = vsub.f32 %v1880, %v1889
        %v1892 = vsub.f32 %v1881, %v1890
        %v1893 = vmul.f32 %v1891, %v1891
        %v1894 = vmul.f32 %v1892, %v1892
        %v1895 = vsel %vm601, %v1893, 0.0
        %1896 = vadd.xlane.f32.xlu0 %v1895
        %v1897 = vpop.xlane.xlu0 %1896
        %v1898 = vsel %vm601, %v1894, 0.0
        %1899 = vadd.xlane.f32.xlu0 %v1898
        %v1900 = vpop.xlane.xlu0 %1899
        %v1901 = vmul.f32 %v1897, %v1888
        %v1902 = vmul.f32 %v1900, %v1888
        %v1903 = vadd.f32 %v1901, 1e-05
        %v1904 = vadd.f32 %v1902, 1e-05
        %v1905 = vrsqrt.pop %v1903
        %v1906 = vrsqrt.pop %v1904
        %v1907 = vmul.f32 %v1891, %v1905
        %v1908 = vmul.f32 %v1892, %v1906
        %v1909 = vld [vmem:[%s12] sm:$0x1]
        %v1911 = vlaneseq
        %v1912 = vshrl.u32 %v1911, 7
        %v1913 = vsub.s32 0, %v1912
        %v1914 = vrot.slane %v1909, %v1913
        %v1916 = vmul.f32 %v1907, %v1914
        %v1917 = vmul.f32 %v1908, %v1914
        %v1918 = vld [vmem:[%s13] sm:$0x1]
        %v1920 = vlaneseq
        %v1921 = vshrl.u32 %v1920, 7
        %v1922 = vsub.s32 0, %v1921
        %v1923 = vrot.slane %v1918, %v1922
        %v1925 = vadd.f32 %v1916, %v1923
        %v1926 = vadd.f32 %v1917, %v1923
        %1927 = vst.msk [vmem:[%s494] sm:$0xff] %vm601, %v1925
        %1928 = vst.msk [vmem:[%s494 + $0x8] sm:$0xff] %vm601, %v1926
        %p1929 = scmp.lt.s32.totalorder %s33, 1
        %s1930 = scalar_select %p1929, %s33, 1
        %s1931 = smul.addr %s1930, 2
        %s1932 = smul.addr %s1931, 8
        %s1933 = scalar_lea.vmem %s14, %s1932
        // Predicated region
        $region85: #{_lambda_.5} parent=71 // pred_check
          %p1934 = pneg %p329
        $region86: #{_lambda_.5} parent=71 // pred_check_branch
          %1936 = sbr.rel (%p1934) target = $region88
        $region87: #{_lambda_.5} parent=71 // pred_region
          _
        $region88: #{_lambda_.5} parent=71 // pred_fallthru
          _
      $region72: #{_lambda_.5} parent=5 // pred_fallthru
        _
      %p1937 = scmp.le.s32.totalorder 2, %s28
      // Predicated region
      $region89: #{_lambda_.5} parent=5 // pred_check
        %p1938 = pneg %p1937
      $region90: #{_lambda_.5} parent=5 // pred_check_branch
        %1940 = sbr.rel (%p1938) target = $region92
      $region91: #{_lambda_.5} parent=5 // pred_region
        %s1941 = ssub.s32 %s28, 2
        // Predicated region
        $region93: #{_lambda_.5} parent=91 // pred_check
          %p1942 = pneg %p335
        $region94: #{_lambda_.5} parent=91 // pred_check_branch
          %1944 = sbr.rel (%p1942) target = $region96
        $region95: #{_lambda_.5} parent=91 // pred_region
          %p1945 = scmp.lt.s32.totalorder %s34, 1
          %s1946 = scalar_select %p1945, %s34, 1
          %s1947 = smul.addr %s1946, 2
          %s1948 = smul.addr %s1947, 8
          %s1949 = scalar_lea.vmem %s14, %s1948
        $region96: #{_lambda_.5} parent=91 // pred_fallthru
          _
      $region92: #{_lambda_.5} parent=5 // pred_fallthru
        _
    $region6: #{_lambda_.5} parent=1 // loop_footer
      %s32 = sadd.s32 1, %s28
    $region7: #{_lambda_.5} parent=1 // loop_footer_branch
      %27 = sbr.rel target = $region3
    $region8: #{_lambda_.5} parent=1 // loop_exit
      _
    %1950 = vsyncpa [#allocation5], 1
    %s1951 = scalar_lea.sflag [#allocation5], 1
    %1952 = vsyncpa %s1951, 1
    %1953 = vsyncpa [#allocation7], 1

// kernel: _lambda_.7
$region0: #{_lambda_.7}
  #allocation0 [shape = 'u32[]', space=smem, size = 0x4, offset = 0x4, fixed_abs, tag = 'smem constant byte address 0x4 - core index']
  #allocation1 [shape = 'u32[144,128]{1,0:T(1,128)}', space=vmem, size = 0x12000, scoped, tag = 'internal scratch']
  #allocation2 [shape = 's32[1]{0}', space=sflag, size = 0x4, scoped, tag = 'scoped memory for _lambda_.7']
  #allocation3 [shape = 'u8[512]{0}', space=smem, size = 0x200, scoped, tag = 'prefetched SMEM operand 0']
  %s0 = inlined_call_operand.vmem [shape: s32[2], index: 0, kind: input, shape index: {}]
  %s1 = inlined_call_operand.vmem [shape: f32[2,16,32], index: 1, kind: input, shape index: {}]
  %s2 = inlined_call_operand.vmem [shape: bf16[2,32,16], index: 2, kind: input, shape index: {}]
  %s3 = inlined_call_operand.vmem [shape: bf16[2,32,16], index: 3, kind: input, shape index: {}]
  %s4 = inlined_call_operand.vmem [shape: bf16[2,32,16], index: 4, kind: input, shape index: {}]
  %s5 = inlined_call_operand.vmem [shape: bf16[2,16,32], index: 5, kind: input, shape index: {}]
  %s6 = inlined_call_operand.vmem [shape: f32[2,1,16], index: 6, kind: input, shape index: {}]
  %s7 = inlined_call_operand.vmem [shape: f32[2,1,16], index: 7, kind: input, shape index: {}]
  %s8 = inlined_call_operand.vmem [shape: f32[2,1,16], index: 8, kind: input, shape index: {}]
  %s9 = inlined_call_operand.vmem [shape: f32[1,32], index: 9, kind: input, shape index: {}]
  %s10 = inlined_call_operand.vmem [shape: f32[9,16], index: 10, kind: input, shape index: {}]
  %s11 = inlined_call_operand.vmem [shape: f32[9,16], index: 11, kind: input, shape index: {}]
  %s12 = inlined_call_operand.vmem [shape: f32[1,32], index: 12, kind: input, shape index: {}]
  %s13 = inlined_call_operand.vmem [shape: f32[1,32], index: 13, kind: input, shape index: {}]
  %s14 = inlined_call_operand.vmem [shape: f32[2,16,32], index: 14, kind: output, shape index: {}]
  %s15 = sld [smem:[#allocation0]]
  $region85: #{_lambda_.7} parent=0
    _
  %s17 = ssub.s32 1, %s15
  %s18 = scalar_select 0, %s17, %s15
  %s19 = sshll.u32 %s0, 4
  %s20 = int_to_ptr.vmem [resolvable:$true] %s19
  %22 = dma.vmem_to_smem %s20, 16, [#allocation3], [#allocation2]
  %23 = dma.done [#allocation2], 16
  %24 = sfence
  loop: start=0, step=1, limit=4
  $region2: #{_lambda_.7} parent=0 // loop_pre_header
    _
  $region3: #{_lambda_.7} parent=0 // loop_header
    %s26 = sphi 0, %s30
    %p27 = scmp.ge.s32.totalorder %s26, 4
    %s36 = sphi 0, %s38
    %s39 = sphi 0, %s36
    %s40 = sphi 0, %s39
    %s56 = sphi 0, %s40
    %s60 = sphi 0, %s60
    %s62 = sphi 0, %s60
    %s63 = sphi 0, %s62
    %s77 = sphi 0, %s63
    %s81 = sphi 0, %s81
    %s83 = sphi 0, %s81
    %s84 = sphi 0, %s83
    %s98 = sphi 0, %s84
    %s102 = sphi 0, %s102
    %s104 = sphi 0, %s102
    %s105 = sphi 0, %s104
    %s119 = sphi 0, %s105
    %s123 = sphi 0, %s123
    %s125 = sphi 0, %s123
    %s126 = sphi 0, %s125
    %s140 = sphi 0, %s126
    %s144 = sphi 0, %s144
    %s146 = sphi 0, %s144
    %s147 = sphi 0, %s146
    %s161 = sphi 0, %s147
    %s165 = sphi 0, %s165
    %s167 = sphi 0, %s165
    %s168 = sphi 0, %s167
    %s182 = sphi 0, %s168
    %s186 = sphi 0, %s186
    %s188 = sphi 0, %s186
    %s189 = sphi 0, %s188
    %s203 = sphi 0, %s189
    %s207 = sphi 0, %s207
    %s209 = sphi 0, %s207
    %s210 = sphi 0, %s209
    %s224 = sphi 0, %s210
    %s228 = sphi 0, %s228
    %s230 = sphi 0, %s228
    %s231 = sphi 0, %s230
    %s245 = sphi 0, %s231
    %s249 = sphi 0, %s249
    %s251 = sphi 0, %s249
    %s252 = sphi 0, %s251
    %s266 = sphi 0, %s252
    %s270 = sphi 0, %s270
    %s272 = sphi 0, %s270
    %s273 = sphi 0, %s272
    %s287 = sphi 0, %s273
    %s291 = sphi 0, %s291
    %s293 = sphi 0, %s291
    %s294 = sphi 0, %s293
    %s308 = sphi 0, %s294
    %s314 = sphi 0, %s316
    %s317 = sphi 0, %s314
    %s318 = sphi 0, %s317
    %s334 = sphi 0, %s318
  $region4: #{_lambda_.7} parent=0 // loop_header_branch
    %29 = sbr.rel (%p27) target = $region8
  $region5: #{_lambda_.7} parent=0 // loop_body
    %s31 = ssub.s32 %s26, 1
    %s32 = ssub.s32 %s26, 2
    %s33 = sadd.s32 %s26, 1
    %s34 = ssub.s32 %s26, %s33
    %p35 = scmp.eq.s32.totalorder %s34, 0
    %s37 = sadd.s32 %s36, 1
    %s38 = scalar_select %p35, %s36, %s37
    %p41 = pneg %p35
    %p42 = scmp.eq.s32.totalorder %s26, 1
    %p43 = por %p41, %p42
    %p44 = scmp.ne.s32.totalorder %s36, %s39
    %p45 = scmp.eq.s32.totalorder %s26, 0
    %p46 = por %p44, %p45
    %p47 = scmp.ne.s32.totalorder %s36, %s39
    %p48 = scmp.eq.s32.totalorder %s31, 1
    %p49 = por %p47, %p48
    %p50 = scmp.ne.s32.totalorder %s39, %s40
    %p51 = scmp.eq.s32.totalorder %s31, 0
    %p52 = por %p50, %p51
    %p53 = scmp.ne.s32.totalorder %s39, %s40
    %p54 = scmp.eq.s32.totalorder %s32, 1
    %p55 = por %p53, %p54
    %p57 = scmp.ne.s32.totalorder %s40, %s56
    %p58 = scmp.eq.s32.totalorder %s32, 0
    %p59 = por %p57, %p58
    %s61 = sadd.s32 %s60, 1
    %p64 = scmp.eq.s32.totalorder %s26, 1
    %p65 = scmp.ne.s32.totalorder %s60, %s62
    %p66 = scmp.eq.s32.totalorder %s26, 0
    %p67 = por %p65, %p66
    %p68 = scmp.ne.s32.totalorder %s60, %s62
    %p69 = scmp.eq.s32.totalorder %s31, 1
    %p70 = por %p68, %p69
    %p71 = scmp.ne.s32.totalorder %s62, %s63
    %p72 = scmp.eq.s32.totalorder %s31, 0
    %p73 = por %p71, %p72
    %p74 = scmp.ne.s32.totalorder %s62, %s63
    %p75 = scmp.eq.s32.totalorder %s32, 1
    %p76 = por %p74, %p75
    %p78 = scmp.ne.s32.totalorder %s63, %s77
    %p79 = scmp.eq.s32.totalorder %s32, 0
    %p80 = por %p78, %p79
    %s82 = sadd.s32 %s81, 1
    %p85 = scmp.eq.s32.totalorder %s26, 1
    %p86 = scmp.ne.s32.totalorder %s81, %s83
    %p87 = scmp.eq.s32.totalorder %s26, 0
    %p88 = por %p86, %p87
    %p89 = scmp.ne.s32.totalorder %s81, %s83
    %p90 = scmp.eq.s32.totalorder %s31, 1
    %p91 = por %p89, %p90
    %p92 = scmp.ne.s32.totalorder %s83, %s84
    %p93 = scmp.eq.s32.totalorder %s31, 0
    %p94 = por %p92, %p93
    %p95 = scmp.ne.s32.totalorder %s83, %s84
    %p96 = scmp.eq.s32.totalorder %s32, 1
    %p97 = por %p95, %p96
    %p99 = scmp.ne.s32.totalorder %s84, %s98
    %p100 = scmp.eq.s32.totalorder %s32, 0
    %p101 = por %p99, %p100
    %s103 = sadd.s32 %s102, 1
    %p106 = scmp.eq.s32.totalorder %s26, 1
    %p107 = scmp.ne.s32.totalorder %s102, %s104
    %p108 = scmp.eq.s32.totalorder %s26, 0
    %p109 = por %p107, %p108
    %p110 = scmp.ne.s32.totalorder %s102, %s104
    %p111 = scmp.eq.s32.totalorder %s31, 1
    %p112 = por %p110, %p111
    %p113 = scmp.ne.s32.totalorder %s104, %s105
    %p114 = scmp.eq.s32.totalorder %s31, 0
    %p115 = por %p113, %p114
    %p116 = scmp.ne.s32.totalorder %s104, %s105
    %p117 = scmp.eq.s32.totalorder %s32, 1
    %p118 = por %p116, %p117
    %p120 = scmp.ne.s32.totalorder %s105, %s119
    %p121 = scmp.eq.s32.totalorder %s32, 0
    %p122 = por %p120, %p121
    %s124 = sadd.s32 %s123, 1
    %p127 = scmp.eq.s32.totalorder %s26, 1
    %p128 = scmp.ne.s32.totalorder %s123, %s125
    %p129 = scmp.eq.s32.totalorder %s26, 0
    %p130 = por %p128, %p129
    %p131 = scmp.ne.s32.totalorder %s123, %s125
    %p132 = scmp.eq.s32.totalorder %s31, 1
    %p133 = por %p131, %p132
    %p134 = scmp.ne.s32.totalorder %s125, %s126
    %p135 = scmp.eq.s32.totalorder %s31, 0
    %p136 = por %p134, %p135
    %p137 = scmp.ne.s32.totalorder %s125, %s126
    %p138 = scmp.eq.s32.totalorder %s32, 1
    %p139 = por %p137, %p138
    %p141 = scmp.ne.s32.totalorder %s126, %s140
    %p142 = scmp.eq.s32.totalorder %s32, 0
    %p143 = por %p141, %p142
    %s145 = sadd.s32 %s144, 1
    %p148 = scmp.eq.s32.totalorder %s26, 1
    %p149 = scmp.ne.s32.totalorder %s144, %s146
    %p150 = scmp.eq.s32.totalorder %s26, 0
    %p151 = por %p149, %p150
    %p152 = scmp.ne.s32.totalorder %s144, %s146
    %p153 = scmp.eq.s32.totalorder %s31, 1
    %p154 = por %p152, %p153
    %p155 = scmp.ne.s32.totalorder %s146, %s147
    %p156 = scmp.eq.s32.totalorder %s31, 0
    %p157 = por %p155, %p156
    %p158 = scmp.ne.s32.totalorder %s146, %s147
    %p159 = scmp.eq.s32.totalorder %s32, 1
    %p160 = por %p158, %p159
    %p162 = scmp.ne.s32.totalorder %s147, %s161
    %p163 = scmp.eq.s32.totalorder %s32, 0
    %p164 = por %p162, %p163
    %s166 = sadd.s32 %s165, 1
    %p169 = scmp.eq.s32.totalorder %s26, 1
    %p170 = scmp.ne.s32.totalorder %s165, %s167
    %p171 = scmp.eq.s32.totalorder %s26, 0
    %p172 = por %p170, %p171
    %p173 = scmp.ne.s32.totalorder %s165, %s167
    %p174 = scmp.eq.s32.totalorder %s31, 1
    %p175 = por %p173, %p174
    %p176 = scmp.ne.s32.totalorder %s167, %s168
    %p177 = scmp.eq.s32.totalorder %s31, 0
    %p178 = por %p176, %p177
    %p179 = scmp.ne.s32.totalorder %s167, %s168
    %p180 = scmp.eq.s32.totalorder %s32, 1
    %p181 = por %p179, %p180
    %p183 = scmp.ne.s32.totalorder %s168, %s182
    %p184 = scmp.eq.s32.totalorder %s32, 0
    %p185 = por %p183, %p184
    %s187 = sadd.s32 %s186, 1
    %p190 = scmp.eq.s32.totalorder %s26, 1
    %p191 = scmp.ne.s32.totalorder %s186, %s188
    %p192 = scmp.eq.s32.totalorder %s26, 0
    %p193 = por %p191, %p192
    %p194 = scmp.ne.s32.totalorder %s186, %s188
    %p195 = scmp.eq.s32.totalorder %s31, 1
    %p196 = por %p194, %p195
    %p197 = scmp.ne.s32.totalorder %s188, %s189
    %p198 = scmp.eq.s32.totalorder %s31, 0
    %p199 = por %p197, %p198
    %p200 = scmp.ne.s32.totalorder %s188, %s189
    %p201 = scmp.eq.s32.totalorder %s32, 1
    %p202 = por %p200, %p201
    %p204 = scmp.ne.s32.totalorder %s189, %s203
    %p205 = scmp.eq.s32.totalorder %s32, 0
    %p206 = por %p204, %p205
    %s208 = sadd.s32 %s207, 1
    %p211 = scmp.eq.s32.totalorder %s26, 1
    %p212 = scmp.ne.s32.totalorder %s207, %s209
    %p213 = scmp.eq.s32.totalorder %s26, 0
    %p214 = por %p212, %p213
    %p215 = scmp.ne.s32.totalorder %s207, %s209
    %p216 = scmp.eq.s32.totalorder %s31, 1
    %p217 = por %p215, %p216
    %p218 = scmp.ne.s32.totalorder %s209, %s210
    %p219 = scmp.eq.s32.totalorder %s31, 0
    %p220 = por %p218, %p219
    %p221 = scmp.ne.s32.totalorder %s209, %s210
    %p222 = scmp.eq.s32.totalorder %s32, 1
    %p223 = por %p221, %p222
    %p225 = scmp.ne.s32.totalorder %s210, %s224
    %p226 = scmp.eq.s32.totalorder %s32, 0
    %p227 = por %p225, %p226
    %s229 = sadd.s32 %s228, 1
    %p232 = scmp.eq.s32.totalorder %s26, 1
    %p233 = scmp.ne.s32.totalorder %s228, %s230
    %p234 = scmp.eq.s32.totalorder %s26, 0
    %p235 = por %p233, %p234
    %p236 = scmp.ne.s32.totalorder %s228, %s230
    %p237 = scmp.eq.s32.totalorder %s31, 1
    %p238 = por %p236, %p237
    %p239 = scmp.ne.s32.totalorder %s230, %s231
    %p240 = scmp.eq.s32.totalorder %s31, 0
    %p241 = por %p239, %p240
    %p242 = scmp.ne.s32.totalorder %s230, %s231
    %p243 = scmp.eq.s32.totalorder %s32, 1
    %p244 = por %p242, %p243
    %p246 = scmp.ne.s32.totalorder %s231, %s245
    %p247 = scmp.eq.s32.totalorder %s32, 0
    %p248 = por %p246, %p247
    %s250 = sadd.s32 %s249, 1
    %p253 = scmp.eq.s32.totalorder %s26, 1
    %p254 = scmp.ne.s32.totalorder %s249, %s251
    %p255 = scmp.eq.s32.totalorder %s26, 0
    %p256 = por %p254, %p255
    %p257 = scmp.ne.s32.totalorder %s249, %s251
    %p258 = scmp.eq.s32.totalorder %s31, 1
    %p259 = por %p257, %p258
    %p260 = scmp.ne.s32.totalorder %s251, %s252
    %p261 = scmp.eq.s32.totalorder %s31, 0
    %p262 = por %p260, %p261
    %p263 = scmp.ne.s32.totalorder %s251, %s252
    %p264 = scmp.eq.s32.totalorder %s32, 1
    %p265 = por %p263, %p264
    %p267 = scmp.ne.s32.totalorder %s252, %s266
    %p268 = scmp.eq.s32.totalorder %s32, 0
    %p269 = por %p267, %p268
    %s271 = sadd.s32 %s270, 1
    %p274 = scmp.eq.s32.totalorder %s26, 1
    %p275 = scmp.ne.s32.totalorder %s270, %s272
    %p276 = scmp.eq.s32.totalorder %s26, 0
    %p277 = por %p275, %p276
    %p278 = scmp.ne.s32.totalorder %s270, %s272
    %p279 = scmp.eq.s32.totalorder %s31, 1
    %p280 = por %p278, %p279
    %p281 = scmp.ne.s32.totalorder %s272, %s273
    %p282 = scmp.eq.s32.totalorder %s31, 0
    %p283 = por %p281, %p282
    %p284 = scmp.ne.s32.totalorder %s272, %s273
    %p285 = scmp.eq.s32.totalorder %s32, 1
    %p286 = por %p284, %p285
    %p288 = scmp.ne.s32.totalorder %s273, %s287
    %p289 = scmp.eq.s32.totalorder %s32, 0
    %p290 = por %p288, %p289
    %s292 = sadd.s32 %s291, 1
    %p295 = scmp.eq.s32.totalorder %s26, 1
    %p296 = scmp.ne.s32.totalorder %s291, %s293
    %p297 = scmp.eq.s32.totalorder %s26, 0
    %p298 = por %p296, %p297
    %p299 = scmp.ne.s32.totalorder %s291, %s293
    %p300 = scmp.eq.s32.totalorder %s31, 1
    %p301 = por %p299, %p300
    %p302 = scmp.ne.s32.totalorder %s293, %s294
    %p303 = scmp.eq.s32.totalorder %s31, 0
    %p304 = por %p302, %p303
    %p305 = scmp.ne.s32.totalorder %s293, %s294
    %p306 = scmp.eq.s32.totalorder %s32, 1
    %p307 = por %p305, %p306
    %p309 = scmp.ne.s32.totalorder %s294, %s308
    %p310 = scmp.eq.s32.totalorder %s32, 0
    %p311 = por %p309, %p310
    %s312 = ssub.s32 %s26, %s33
    %p313 = scmp.eq.s32.totalorder %s312, 0
    %s315 = sadd.s32 %s314, 1
    %s316 = scalar_select %p313, %s314, %s315
    %p319 = pneg %p313
    %p320 = scmp.eq.s32.totalorder %s26, 1
    %p321 = por %p319, %p320
    %p322 = scmp.ne.s32.totalorder %s314, %s317
    %p323 = scmp.eq.s32.totalorder %s26, 0
    %p324 = por %p322, %p323
    %p325 = scmp.ne.s32.totalorder %s314, %s317
    %p326 = scmp.eq.s32.totalorder %s31, 1
    %p327 = por %p325, %p326
    %p328 = scmp.ne.s32.totalorder %s317, %s318
    %p329 = scmp.eq.s32.totalorder %s31, 0
    %p330 = por %p328, %p329
    %p331 = scmp.ne.s32.totalorder %s317, %s318
    %p332 = scmp.eq.s32.totalorder %s32, 1
    %p333 = por %p331, %p332
    %p335 = scmp.ne.s32.totalorder %s318, %s334
    %p336 = scmp.eq.s32.totalorder %s32, 0
    %p337 = por %p335, %p336
    %p338 = scmp.le.s32.totalorder 1, %s26
    %p339 = scmp.lt.s32.totalorder %s26, 3
    %p340 = pnand %p338, %p339
    %p341 = pneg %p340
    // Predicated region
    $region9: #{_lambda_.7} parent=5 // pred_check
      _
    $region10: #{_lambda_.7} parent=5 // pred_check_branch
      %343 = sbr.rel (%p340) target = $region12
    $region11: #{_lambda_.7} parent=5 // pred_region
      %s344 = ssub.s32 %s26, 1
      // Predicated region
      $region13: #{_lambda_.7} parent=11 // pred_check
        %p345 = pneg %p73
      $region14: #{_lambda_.7} parent=11 // pred_check_branch
        %347 = sbr.rel (%p345) target = $region16
      $region15: #{_lambda_.7} parent=11 // pred_region
        _
      $region16: #{_lambda_.7} parent=11 // pred_fallthru
        _
      // Predicated region
      $region17: #{_lambda_.7} parent=11 // pred_check
        %p348 = pneg %p94
      $region18: #{_lambda_.7} parent=11 // pred_check_branch
        %350 = sbr.rel (%p348) target = $region20
      $region19: #{_lambda_.7} parent=11 // pred_region
        _
      $region20: #{_lambda_.7} parent=11 // pred_fallthru
        _
      // Predicated region
      $region21: #{_lambda_.7} parent=11 // pred_check
        %p351 = pneg %p115
      $region22: #{_lambda_.7} parent=11 // pred_check_branch
        %353 = sbr.rel (%p351) target = $region24
      $region23: #{_lambda_.7} parent=11 // pred_region
        _
      $region24: #{_lambda_.7} parent=11 // pred_fallthru
        _
      // Predicated region
      $region25: #{_lambda_.7} parent=11 // pred_check
        %p354 = pneg %p136
      $region26: #{_lambda_.7} parent=11 // pred_check_branch
        %356 = sbr.rel (%p354) target = $region28
      $region27: #{_lambda_.7} parent=11 // pred_region
        _
      $region28: #{_lambda_.7} parent=11 // pred_fallthru
        _
      // Predicated region
      $region29: #{_lambda_.7} parent=11 // pred_check
        %p357 = pneg %p157
      $region30: #{_lambda_.7} parent=11 // pred_check_branch
        %359 = sbr.rel (%p357) target = $region32
      $region31: #{_lambda_.7} parent=11 // pred_region
        _
      $region32: #{_lambda_.7} parent=11 // pred_fallthru
        _
      // Predicated region
      $region33: #{_lambda_.7} parent=11 // pred_check
        %p360 = pneg %p178
      $region34: #{_lambda_.7} parent=11 // pred_check_branch
        %362 = sbr.rel (%p360) target = $region36
      $region35: #{_lambda_.7} parent=11 // pred_region
        _
      $region36: #{_lambda_.7} parent=11 // pred_fallthru
        _
      // Predicated region
      $region37: #{_lambda_.7} parent=11 // pred_check
        %p363 = pneg %p199
      $region38: #{_lambda_.7} parent=11 // pred_check_branch
        %365 = sbr.rel (%p363) target = $region40
      $region39: #{_lambda_.7} parent=11 // pred_region
        _
      $region40: #{_lambda_.7} parent=11 // pred_fallthru
        _
      // Predicated region
      $region41: #{_lambda_.7} parent=11 // pred_check
        %p366 = pneg %p220
      $region42: #{_lambda_.7} parent=11 // pred_check_branch
        %368 = sbr.rel (%p366) target = $region44
      $region43: #{_lambda_.7} parent=11 // pred_region
        _
      $region44: #{_lambda_.7} parent=11 // pred_fallthru
        _
      // Predicated region
      $region45: #{_lambda_.7} parent=11 // pred_check
        %p369 = pneg %p241
      $region46: #{_lambda_.7} parent=11 // pred_check_branch
        %371 = sbr.rel (%p369) target = $region48
      $region47: #{_lambda_.7} parent=11 // pred_region
        _
      $region48: #{_lambda_.7} parent=11 // pred_fallthru
        _
      // Predicated region
      $region49: #{_lambda_.7} parent=11 // pred_check
        %p372 = pneg %p262
      $region50: #{_lambda_.7} parent=11 // pred_check_branch
        %374 = sbr.rel (%p372) target = $region52
      $region51: #{_lambda_.7} parent=11 // pred_region
        _
      $region52: #{_lambda_.7} parent=11 // pred_fallthru
        _
      // Predicated region
      $region53: #{_lambda_.7} parent=11 // pred_check
        %p375 = pneg %p283
      $region54: #{_lambda_.7} parent=11 // pred_check_branch
        %377 = sbr.rel (%p375) target = $region56
      $region55: #{_lambda_.7} parent=11 // pred_region
        _
      $region56: #{_lambda_.7} parent=11 // pred_fallthru
        _
      // Predicated region
      $region57: #{_lambda_.7} parent=11 // pred_check
        %p378 = pneg %p304
      $region58: #{_lambda_.7} parent=11 // pred_check_branch
        %380 = sbr.rel (%p378) target = $region60
      $region59: #{_lambda_.7} parent=11 // pred_region
        _
      $region60: #{_lambda_.7} parent=11 // pred_fallthru
        _
    $region12: #{_lambda_.7} parent=5 // pred_fallthru
      _
    %p381 = scmp.lt.s32.totalorder %s26, 2
    // Predicated region
    $region61: #{_lambda_.7} parent=5 // pred_check
      %p382 = pneg %p381
    $region62: #{_lambda_.7} parent=5 // pred_check_branch
      %384 = sbr.rel (%p382) target = $region64
    $region63: #{_lambda_.7} parent=5 // pred_region
      // Predicated region
      $region65: #{_lambda_.7} parent=63 // pred_check
        %p385 = pneg %p46
      $region66: #{_lambda_.7} parent=63 // pred_check_branch
        %387 = sbr.rel (%p385) target = $region68
      $region67: #{_lambda_.7} parent=63 // pred_region
        %p388 = scmp.lt.s32.totalorder %s26, 1
        %s389 = scalar_select %p388, %s26, 1
        %s390 = smul.addr %s389, 2
        %s391 = smul.addr %s390, 8
        %s392 = scalar_lea.vmem %s1, %s391
      $region68: #{_lambda_.7} parent=63 // pred_fallthru
        _
    $region64: #{_lambda_.7} parent=5 // pred_fallthru
      _
    %p393 = scmp.le.s32.totalorder 1, %s26
    %p394 = scmp.lt.s32.totalorder %s26, 3
    %p395 = pnand %p393, %p394
    %p396 = pneg %p395
    // Predicated region
    $region69: #{_lambda_.7} parent=5 // pred_check
      _
    $region70: #{_lambda_.7} parent=5 // pred_check_branch
      %398 = sbr.rel (%p395) target = $region72
    $region71: #{_lambda_.7} parent=5 // pred_region
      %s399 = ssub.s32 %s26, 1
      %p400 = scmp.lt.s32.totalorder %s31, 1
      %s401 = scalar_select %p400, %s31, 1
      %s402 = smul.addr %s401, 2
      %s403 = smul.addr %s402, 8
      %s404 = scalar_lea.vmem %s1, %s403
      %p405 = pneg %p52
      %p406 = pneg %p49
      %p407 = pneg %p73
      %p408 = pneg %p70
      %p409 = pneg %p94
      %p410 = pneg %p91
      %p411 = pneg %p115
      %p412 = pneg %p112
      %p413 = pneg %p136
      %p414 = pneg %p133
      %p415 = pneg %p157
      %p416 = pneg %p154
      %p417 = pneg %p178
      %p418 = pneg %p175
      %p419 = pneg %p199
      %p420 = pneg %p196
      %p421 = pneg %p220
      %p422 = pneg %p217
      %p423 = pneg %p241
      %p424 = pneg %p238
      %p425 = pneg %p262
      %p426 = pneg %p259
      %p427 = pneg %p283
      %p428 = pneg %p280
      %p429 = pneg %p304
      %p430 = pneg %p301
      %p431 = pneg %p330
      %p432 = pneg %p327
      %p433 = scmp.lt.s32.totalorder %s31, 1
      %s434 = scalar_select %p433, %s31, 1
      %s435 = smul.addr %s434, 2
      %s436 = smul.addr %s435, 8
      %s437 = scalar_lea.vmem %s14, %s436
      %p438 = scmp.lt.s32.totalorder %s31, 1
      %s439 = scalar_select %p438, %s31, 1
      %s440 = smul.addr %s439, 2
      %s441 = smul.addr %s440, 8
      %s442 = scalar_lea.vmem %s1, %s441
      %p443 = scmp.lt.s32.totalorder %s31, 1
      %s444 = scalar_select %p443, %s31, 1
      %s445 = smul.addr %s444, 2
      %s446 = smul.addr %s445, 8
      %s447 = scalar_lea.vmem %s14, %s446
      %s449 = sld [smem:[#allocation3 + %s31]]
      %v450 = vld [vmem:[%s442] sm:$0xff]
      %v451 = vld [vmem:[%s442 + $0x8] sm:$0xff]
      %v452 = vlaneseq
      %v453 = vshrl.u32 %v452, 7
      %v454 = vadd.s32 %v453, 8
      %v455 = vstv %s449
      %vm456 = vcmp.lt.s32.totalorder %v453, %v455
      %vm457 = vcmp.lt.s32.totalorder %v454, %v455
      %v458 = vsel %vm456, 1, 0
      %v459 = vsel %vm457, 1, 0
      %v460 = vcvt.s32.f32 %v458
      %v461 = vcvt.s32.f32 %v459
      %v462 = vmul.f32 %v450, %v460
      %v463 = vmul.f32 %v451, %v461
      %v464 = vpack.c.bf16 %v463, %v462
      %v465 = vlaneseq
      %v466 = vand.u32 %v465, 127
      %vm467 = vcmp.lt.s32.totalorder %v466, %v455
      %vm468 = vmand %vm456, %vm467
      %vm469 = vmand %vm457, %vm467
      %v470 = vsub.s32 %v466, %v453
      %v471 = vsub.s32 %v466, %v454
      %vm472 = vcmp.eq.s32.totalorder %v470, 4294967292
      %vm473 = vcmp.eq.s32.totalorder %v471, 4294967292
      %v474 = vsel %vm472, 1, 0
      %v475 = vsel %vm473, 1, 0
      %v476 = vcvt.s32.f32 %v474
      %v477 = vcvt.s32.f32 %v475
      %vm478 = vcmp.eq.s32.totalorder %v470, 4294967293
      %vm479 = vcmp.eq.s32.totalorder %v471, 4294967293
      %v480 = vsel %vm478, 1, 0
      %v481 = vsel %vm479, 1, 0
      %v482 = vcvt.s32.f32 %v480
      %v483 = vcvt.s32.f32 %v481
      %vm484 = vcmp.eq.s32.totalorder %v470, 4294967294
      %vm485 = vcmp.eq.s32.totalorder %v471, 4294967294
      %v486 = vsel %vm484, 1, 0
      %v487 = vsel %vm485, 1, 0
      %v488 = vcvt.s32.f32 %v486
      %v489 = vcvt.s32.f32 %v487
      %vm490 = vcmp.eq.s32.totalorder %v470, 4294967295
      %vm491 = vcmp.eq.s32.totalorder %v471, 4294967295
      %v492 = vsel %vm490, 1, 0
      %v493 = vsel %vm491, 1, 0
      %v494 = vcvt.s32.f32 %v492
      %v495 = vcvt.s32.f32 %v493
      %vm496 = vcmp.eq.s32.totalorder %v470, 0
      %vm497 = vcmp.eq.s32.totalorder %v471, 0
      %v498 = vsel %vm496, 1, 0
      %v499 = vsel %vm497, 1, 0
      %v500 = vcvt.s32.f32 %v498
      %v501 = vcvt.s32.f32 %v499
      %vm502 = vcmp.eq.s32.totalorder %v470, 1
      %vm503 = vcmp.eq.s32.totalorder %v471, 1
      %v504 = vsel %vm502, 1, 0
      %v505 = vsel %vm503, 1, 0
      %v506 = vcvt.s32.f32 %v504
      %v507 = vcvt.s32.f32 %v505
      %vm508 = vcmp.eq.s32.totalorder %v470, 2
      %vm509 = vcmp.eq.s32.totalorder %v471, 2
      %v510 = vsel %vm508, 1, 0
      %v511 = vsel %vm509, 1, 0
      %v512 = vcvt.s32.f32 %v510
      %v513 = vcvt.s32.f32 %v511
      %vm514 = vcmp.eq.s32.totalorder %v470, 3
      %vm515 = vcmp.eq.s32.totalorder %v471, 3
      %v516 = vsel %vm514, 1, 0
      %v517 = vsel %vm515, 1, 0
      %v518 = vcvt.s32.f32 %v516
      %v519 = vcvt.s32.f32 %v517
      %vm520 = vcmp.eq.s32.totalorder %v470, 4
      %vm521 = vcmp.eq.s32.totalorder %v471, 4
      %v522 = vsel %vm520, 1, 0
      %v523 = vsel %vm521, 1, 0
      %v524 = vcvt.s32.f32 %v522
      %v525 = vcvt.s32.f32 %v523
      %v526 = vld [vmem:[%s10] sm:$0xff]
      %v527 = vld [vmem:[%s10 + $0x8] sm:$0x1]
      %v528 = vpack.c.bf16 %v527, %v526
      %v529 = vld [vmem:[%s11] sm:$0xff]
      %v530 = vld [vmem:[%s11 + $0x8] sm:$0x1]
      %v531 = vld [vmem:[%s2] sm:$0xf]
      %v532 = vld [vmem:[%s2 + $0x4] sm:$0xf]
      %v533 = vld [vmem:[%s2 + $0x8] sm:$0xf]
      %v534 = vld [vmem:[%s2 + $0xc] sm:$0xf]
      %v535 = vld [vmem:[%s6] sm:$0x1]
      %v537 = vlaneseq
      %v538 = vshrl.u32 %v537, 7
      %v539 = vsub.s32 0, %v538
      %v540 = vrot.slane %v535, %v539
      %v546 = vunpack.c.l.b16 %v531
      %v547 = vunpack.c.l.b16 %v532
      %v548 = vunpack.c.l.b16 %v533
      %v549 = vunpack.c.l.b16 %v534
      %v550 = vpack.c.b16 %v547, %v546
      %v551 = vpack.c.b16 %v549, %v548
      %vm554 = vcmask 261120
      %v556 = vsel %vm554, %v464, 0
      %558 = vmatprep.subr.bf16.mxu0 0
      %559 = vmatpush1.bf16.msra.mxu0 %v550
      %560 = vmatprep.subr.bf16.mxu0 0
      %561 = vmatpush1.bf16.msra.mxu0 %v551
      %562 = vmatprep.subr.bf16.mxu0 0
      %563 = vmatpush1.bf16.msra.mxu0 0
      %564 = vmatprep.subr.bf16.mxu0 0
      %565 = vmatpush1.bf16.msra.mxu0 0
      %566 = vmatprep.subr.bf16.mxu0 0
      %567 = vmatpush1.bf16.msra.mxu0 0
      %568 = vmatprep.subr.bf16.mxu0 0
      %569 = vmatpush1.bf16.msra.mxu0 0
      %570 = vmatprep.subr.bf16.mxu0 0
      %571 = vmatpush1.bf16.msra.mxu0 0
      %572 = vmatprep.subr.bf16.mxu0 0
      %573 = vmatpush1.bf16.msra.mxu0 0
      %574 = vmatprep.subr.bf16.mxu0 0
      %575 = vmatpush1.bf16.msra.mxu0 0
      %576 = vmatprep.subr.bf16.mxu0 0
      %577 = vmatpush1.bf16.msra.mxu0 0
      %578 = vmatprep.subr.bf16.mxu0 0
      %579 = vmatpush1.bf16.msra.mxu0 0
      %580 = vmatprep.subr.bf16.mxu0 0
      %581 = vmatpush1.bf16.msra.mxu0 0
      %582 = vmatprep.subr.bf16.mxu0 0
      %583 = vmatpush1.bf16.msra.mxu0 0
      %584 = vmatprep.subr.bf16.mxu0 0
      %585 = vmatpush1.bf16.msra.mxu0 0
      %586 = vmatprep.subr.bf16.mxu0 0
      %587 = vmatpush1.bf16.msra.mxu0 0
      %588 = vmatprep.subr.bf16.mxu0 0
      %589 = vmatpush1.bf16.msra.mxu0 0
      %590 = vmatprep.mubr.bf16.mxu0 0
      %591 = vmatmul.mubr.bf16.gmra.mrb[0].mxu0 %v556
      %v592 = vpop.f32.mrb[0].mxu0
      %v593 = vadd.f32 %v540, %v592
      %v594 = vpop.f32.mrb[0].mxu0
      %v595 = vpop.f32.mrb[0].mxu0
      %v596 = vadd.f32 %v540, %v595
      %v597 = vpop.f32.mrb[0].mxu0
      %598 = vdwg.mxu0
      %v599 = vld [vmem:[%s3] sm:$0xf]
      %v600 = vld [vmem:[%s3 + $0x4] sm:$0xf]
      %v601 = vld [vmem:[%s3 + $0x8] sm:$0xf]
      %v602 = vld [vmem:[%s3 + $0xc] sm:$0xf]
      %v603 = vld [vmem:[%s7] sm:$0x1]
      %v605 = vlaneseq
      %v606 = vshrl.u32 %v605, 7
      %v607 = vsub.s32 0, %v606
      %v608 = vrot.slane %v603, %v607
      %v614 = vunpack.c.l.b16 %v599
      %v615 = vunpack.c.l.b16 %v600
      %v616 = vunpack.c.l.b16 %v601
      %v617 = vunpack.c.l.b16 %v602
      %v618 = vpack.c.b16 %v615, %v614
      %v619 = vpack.c.b16 %v617, %v616
      %622 = vmatprep.subr.bf16.mxu0 0
      %623 = vmatpush1.bf16.msra.mxu0 %v618
      %624 = vmatprep.subr.bf16.mxu0 0
      %625 = vmatpush1.bf16.msra.mxu0 %v619
      %626 = vmatprep.subr.bf16.mxu0 0
      %627 = vmatpush1.bf16.msra.mxu0 0
      %628 = vmatprep.subr.bf16.mxu0 0
      %629 = vmatpush1.bf16.msra.mxu0 0
      %630 = vmatprep.subr.bf16.mxu0 0
      %631 = vmatpush1.bf16.msra.mxu0 0
      %632 = vmatprep.subr.bf16.mxu0 0
      %633 = vmatpush1.bf16.msra.mxu0 0
      %634 = vmatprep.subr.bf16.mxu0 0
      %635 = vmatpush1.bf16.msra.mxu0 0
      %636 = vmatprep.subr.bf16.mxu0 0
      %637 = vmatpush1.bf16.msra.mxu0 0
      %638 = vmatprep.subr.bf16.mxu0 0
      %639 = vmatpush1.bf16.msra.mxu0 0
      %640 = vmatprep.subr.bf16.mxu0 0
      %641 = vmatpush1.bf16.msra.mxu0 0
      %642 = vmatprep.subr.bf16.mxu0 0
      %643 = vmatpush1.bf16.msra.mxu0 0
      %644 = vmatprep.subr.bf16.mxu0 0
      %645 = vmatpush1.bf16.msra.mxu0 0
      %646 = vmatprep.subr.bf16.mxu0 0
      %647 = vmatpush1.bf16.msra.mxu0 0
      %648 = vmatprep.subr.bf16.mxu0 0
      %649 = vmatpush1.bf16.msra.mxu0 0
      %650 = vmatprep.subr.bf16.mxu0 0
      %651 = vmatpush1.bf16.msra.mxu0 0
      %652 = vmatprep.subr.bf16.mxu0 0
      %653 = vmatpush1.bf16.msra.mxu0 0
      %654 = vmatprep.mubr.bf16.mxu0 0
      %655 = vmatmul.mubr.bf16.gmra.mrb[0].mxu0 %v556
      %v656 = vpop.f32.mrb[0].mxu0
      %v657 = vadd.f32 %v608, %v656
      %v658 = vpop.f32.mrb[0].mxu0
      %v659 = vpop.f32.mrb[0].mxu0
      %v660 = vadd.f32 %v608, %v659
      %v661 = vpop.f32.mrb[0].mxu0
      %662 = vdwg.mxu0
      %v663 = vld [vmem:[%s4] sm:$0xf]
      %v664 = vld [vmem:[%s4 + $0x4] sm:$0xf]
      %v665 = vld [vmem:[%s4 + $0x8] sm:$0xf]
      %v666 = vld [vmem:[%s4 + $0xc] sm:$0xf]
      %v667 = vld [vmem:[%s8] sm:$0x1]
      %v669 = vlaneseq
      %v670 = vshrl.u32 %v669, 7
      %v671 = vsub.s32 0, %v670
      %v672 = vrot.slane %v667, %v671
      %v678 = vunpack.c.l.b16 %v663
      %v679 = vunpack.c.l.b16 %v664
      %v680 = vunpack.c.l.b16 %v665
      %v681 = vunpack.c.l.b16 %v666
      %v682 = vpack.c.b16 %v679, %v678
      %v683 = vpack.c.b16 %v681, %v680
      %686 = vmatprep.subr.bf16.mxu0 0
      %687 = vmatpush1.bf16.msra.mxu0 %v682
      %688 = vmatprep.subr.bf16.mxu0 0
      %689 = vmatpush1.bf16.msra.mxu0 %v683
      %690 = vmatprep.subr.bf16.mxu0 0
      %691 = vmatpush1.bf16.msra.mxu0 0
      %692 = vmatprep.subr.bf16.mxu0 0
      %693 = vmatpush1.bf16.msra.mxu0 0
      %694 = vmatprep.subr.bf16.mxu0 0
      %695 = vmatpush1.bf16.msra.mxu0 0
      %696 = vmatprep.subr.bf16.mxu0 0
      %697 = vmatpush1.bf16.msra.mxu0 0
      %698 = vmatprep.subr.bf16.mxu0 0
      %699 = vmatpush1.bf16.msra.mxu0 0
      %700 = vmatprep.subr.bf16.mxu0 0
      %701 = vmatpush1.bf16.msra.mxu0 0
      %702 = vmatprep.subr.bf16.mxu0 0
      %703 = vmatpush1.bf16.msra.mxu0 0
      %704 = vmatprep.subr.bf16.mxu0 0
      %705 = vmatpush1.bf16.msra.mxu0 0
      %706 = vmatprep.subr.bf16.mxu0 0
      %707 = vmatpush1.bf16.msra.mxu0 0
      %708 = vmatprep.subr.bf16.mxu0 0
      %709 = vmatpush1.bf16.msra.mxu0 0
      %710 = vmatprep.subr.bf16.mxu0 0
      %711 = vmatpush1.bf16.msra.mxu0 0
      %712 = vmatprep.subr.bf16.mxu0 0
      %713 = vmatpush1.bf16.msra.mxu0 0
      %714 = vmatprep.subr.bf16.mxu0 0
      %715 = vmatpush1.bf16.msra.mxu0 0
      %716 = vmatprep.subr.bf16.mxu0 0
      %717 = vmatpush1.bf16.msra.mxu0 0
      %718 = vmatprep.mubr.bf16.mxu0 0
      %719 = vmatmul.mubr.bf16.gmra.mrb[0].mxu0 %v556
      %v720 = vpop.f32.mrb[0].mxu0
      %v721 = vadd.f32 %v672, %v720
      %v722 = vpop.f32.mrb[0].mxu0
      %v723 = vpop.f32.mrb[0].mxu0
      %v724 = vadd.f32 %v672, %v723
      %v725 = vpop.f32.mrb[0].mxu0
      %726 = vdwg.mxu0
      %v727 = vmul.f32 %v593, 0.25
      %v728 = vmul.f32 %v596, 0.25
      %v729 = vpack.c.bf16 %v728, %v727
      %v730 = vpack.c.bf16 %v660, %v657
      %vm731 = vcmask 130048
      %v733 = vsel %vm731, %v729, 0
      %v736 = vsel %vm731, %v528, 0
      %738 = vmatprep.subr.bf16.mxu0 0
      %739 = vmatpush1.bf16.xpose.msra.mxu0 %v736
      %740 = vmatprep.subr.bf16.mxu0 0
      %741 = vmatpush1.bf16.xpose.msra.mxu0 0
      %742 = vmatprep.subr.bf16.mxu0 0
      %743 = vmatpush1.bf16.xpose.msra.mxu0 0
      %744 = vmatprep.subr.bf16.mxu0 0
      %745 = vmatpush1.bf16.xpose.msra.mxu0 0
      %746 = vmatprep.subr.bf16.mxu0 0
      %747 = vmatpush1.bf16.xpose.msra.mxu0 0
      %748 = vmatprep.subr.bf16.mxu0 0
      %749 = vmatpush1.bf16.xpose.msra.mxu0 0
      %750 = vmatprep.subr.bf16.mxu0 0
      %751 = vmatpush1.bf16.xpose.msra.mxu0 0
      %752 = vmatprep.subr.bf16.mxu0 0
      %753 = vmatpush1.bf16.xpose.msra.mxu0 0
      %754 = vmatprep.subr.bf16.mxu0 0
      %755 = vmatpush1.bf16.xpose.msra.mxu0 0
      %756 = vmatprep.subr.bf16.mxu0 0
      %757 = vmatpush1.bf16.xpose.msra.mxu0 0
      %758 = vmatprep.subr.bf16.mxu0 0
      %759 = vmatpush1.bf16.xpose.msra.mxu0 0
      %760 = vmatprep.subr.bf16.mxu0 0
      %761 = vmatpush1.bf16.xpose.msra.mxu0 0
      %762 = vmatprep.subr.bf16.mxu0 0
      %763 = vmatpush1.bf16.xpose.msra.mxu0 0
      %764 = vmatprep.subr.bf16.mxu0 0
      %765 = vmatpush1.bf16.xpose.msra.mxu0 0
      %766 = vmatprep.subr.bf16.mxu0 0
      %767 = vmatpush1.bf16.xpose.msra.mxu0 0
      %768 = vmatprep.subr.bf16.mxu0 0
      %769 = vmatpush1.bf16.xpose.msra.mxu0 0
      %770 = vmatprep.mubr.bf16.mxu0 0
      %771 = vmatmul.mubr.bf16.gmra.mrb[0].mxu0 %v733
      %v772 = vpop.f32.mrb[0].mxu0
      %v773 = vadd.f32 0.0, %v772
      %v774 = vpop.f32.mrb[0].mxu0
      %v775 = vpop.f32.mrb[0].mxu0
      %v776 = vadd.f32 0.0, %v775
      %v777 = vpop.f32.mrb[0].mxu0
      %778 = vdwg.mxu0
      %780 = vset.pattern.permute.xlu0 0
      %781 = vperm.xlu0 %780, %v773
      %v782 = vpop.permute.xlu0 %781
      %785 = vset.pattern.permute.xlu0 0
      %786 = vperm.xlu0 %785, %v776
      %v787 = vpop.permute.xlu0 %786
      %v789 = vmul.f32 %v782, %v476
      %v790 = vmul.f32 %v787, %v477
      %v792 = vsel %vm731, %v730, 0
      %794 = vmatprep.subr.bf16.mxu0 0
      %795 = vmatpush1.bf16.xpose.msra.mxu0 %v792
      %796 = vmatprep.subr.bf16.mxu0 0
      %797 = vmatpush1.bf16.xpose.msra.mxu0 0
      %798 = vmatprep.subr.bf16.mxu0 0
      %799 = vmatpush1.bf16.xpose.msra.mxu0 0
      %800 = vmatprep.subr.bf16.mxu0 0
      %801 = vmatpush1.bf16.xpose.msra.mxu0 0
      %802 = vmatprep.subr.bf16.mxu0 0
      %803 = vmatpush1.bf16.xpose.msra.mxu0 0
      %804 = vmatprep.subr.bf16.mxu0 0
      %805 = vmatpush1.bf16.xpose.msra.mxu0 0
      %806 = vmatprep.subr.bf16.mxu0 0
      %807 = vmatpush1.bf16.xpose.msra.mxu0 0
      %808 = vmatprep.subr.bf16.mxu0 0
      %809 = vmatpush1.bf16.xpose.msra.mxu0 0
      %810 = vmatprep.subr.bf16.mxu0 0
      %811 = vmatpush1.bf16.xpose.msra.mxu0 0
      %812 = vmatprep.subr.bf16.mxu0 0
      %813 = vmatpush1.bf16.xpose.msra.mxu0 0
      %814 = vmatprep.subr.bf16.mxu0 0
      %815 = vmatpush1.bf16.xpose.msra.mxu0 0
      %816 = vmatprep.subr.bf16.mxu0 0
      %817 = vmatpush1.bf16.xpose.msra.mxu0 0
      %818 = vmatprep.subr.bf16.mxu0 0
      %819 = vmatpush1.bf16.xpose.msra.mxu0 0
      %820 = vmatprep.subr.bf16.mxu0 0
      %821 = vmatpush1.bf16.xpose.msra.mxu0 0
      %822 = vmatprep.subr.bf16.mxu0 0
      %823 = vmatpush1.bf16.xpose.msra.mxu0 0
      %824 = vmatprep.subr.bf16.mxu0 0
      %825 = vmatpush1.bf16.xpose.msra.mxu0 0
      %826 = vmatprep.mubr.bf16.mxu0 0
      %827 = vmatmul.mubr.bf16.gmra.mrb[0].mxu0 %v733
      %v828 = vpop.f32.mrb[0].mxu0
      %v829 = vadd.f32 %v789, %v828
      %v830 = vpop.f32.mrb[0].mxu0
      %v831 = vpop.f32.mrb[0].mxu0
      %v832 = vadd.f32 %v790, %v831
      %v833 = vpop.f32.mrb[0].mxu0
      %834 = vdwg.mxu0
      %835 = vset.pattern.permute.xlu0 1
      %836 = vperm.xlu0 %835, %v773
      %v837 = vpop.permute.xlu0 %836
      %839 = vset.pattern.permute.xlu0 1
      %840 = vperm.xlu0 %839, %v776
      %v841 = vpop.permute.xlu0 %840
      %v843 = vmul.f32 %v837, %v482
      %v844 = vmul.f32 %v841, %v483
      %v845 = vadd.f32 %v829, %v843
      %v846 = vadd.f32 %v832, %v844
      %847 = vset.pattern.permute.xlu0 2
      %848 = vperm.xlu0 %847, %v773
      %v849 = vpop.permute.xlu0 %848
      %851 = vset.pattern.permute.xlu0 2
      %852 = vperm.xlu0 %851, %v776
      %v853 = vpop.permute.xlu0 %852
      %v855 = vmul.f32 %v849, %v488
      %v856 = vmul.f32 %v853, %v489
      %v857 = vadd.f32 %v845, %v855
      %v858 = vadd.f32 %v846, %v856
      %859 = vset.pattern.permute.xlu0 3
      %860 = vperm.xlu0 %859, %v773
      %v861 = vpop.permute.xlu0 %860
      %863 = vset.pattern.permute.xlu0 3
      %864 = vperm.xlu0 %863, %v776
      %v865 = vpop.permute.xlu0 %864
      %v867 = vmul.f32 %v861, %v494
      %v868 = vmul.f32 %v865, %v495
      %v869 = vadd.f32 %v857, %v867
      %v870 = vadd.f32 %v858, %v868
      %871 = vset.pattern.permute.xlu0 4
      %872 = vperm.xlu0 %871, %v773
      %v873 = vpop.permute.xlu0 %872
      %875 = vset.pattern.permute.xlu0 4
      %876 = vperm.xlu0 %875, %v776
      %v877 = vpop.permute.xlu0 %876
      %v879 = vmul.f32 %v873, %v500
      %v880 = vmul.f32 %v877, %v501
      %v881 = vadd.f32 %v869, %v879
      %v882 = vadd.f32 %v870, %v880
      %883 = vset.pattern.permute.xlu0 5
      %884 = vperm.xlu0 %883, %v773
      %v885 = vpop.permute.xlu0 %884
      %887 = vset.pattern.permute.xlu0 5
      %888 = vperm.xlu0 %887, %v776
      %v889 = vpop.permute.xlu0 %888
      %v891 = vmul.f32 %v885, %v506
      %v892 = vmul.f32 %v889, %v507
      %v893 = vadd.f32 %v881, %v891
      %v894 = vadd.f32 %v882, %v892
      %895 = vset.pattern.permute.xlu0 6
      %896 = vperm.xlu0 %895, %v773
      %v897 = vpop.permute.xlu0 %896
      %899 = vset.pattern.permute.xlu0 6
      %900 = vperm.xlu0 %899, %v776
      %v901 = vpop.permute.xlu0 %900
      %v903 = vmul.f32 %v897, %v512
      %v904 = vmul.f32 %v901, %v513
      %v905 = vadd.f32 %v893, %v903
      %v906 = vadd.f32 %v894, %v904
      %907 = vset.pattern.permute.xlu0 7
      %908 = vperm.xlu0 %907, %v773
      %v909 = vpop.permute.xlu0 %908
      %911 = vset.pattern.permute.xlu0 7
      %912 = vperm.xlu0 %911, %v776
      %v913 = vpop.permute.xlu0 %912
      %v915 = vmul.f32 %v909, %v518
      %v916 = vmul.f32 %v913, %v519
      %v917 = vadd.f32 %v905, %v915
      %v918 = vadd.f32 %v906, %v916
      %919 = vset.pattern.permute.xlu0 8
      %920 = vperm.xlu0 %919, %v773
      %v921 = vpop.permute.xlu0 %920
      %923 = vset.pattern.permute.xlu0 8
      %924 = vperm.xlu0 %923, %v776
      %v925 = vpop.permute.xlu0 %924
      %v927 = vmul.f32 %v921, %v524
      %v928 = vmul.f32 %v925, %v525
      %v929 = vadd.f32 %v917, %v927
      %v930 = vadd.f32 %v918, %v928
      %v931 = vsel %vm468, %v929, -10000.0
      %v932 = vsel %vm469, %v930, -10000.0
      %v933 = vsel %vm731, %v931, -inf
      %934 = vmax.xlane.f32.xlu0 %v933
      %v935 = vpop.xlane.xlu0 %934
      %v936 = vsel %vm731, %v932, -inf
      %937 = vmax.xlane.f32.xlu0 %v936
      %v938 = vpop.xlane.xlu0 %937
      %v939 = vsub.f32 %v931, %v935
      %v940 = vsub.f32 %v932, %v938
      %v941 = vmul.f32 %v939, 1.442695
      %v942 = vpow.pop %v941
      %v943 = vmul.f32 %v940, 1.442695
      %v944 = vpow.pop %v943
      %v945 = vsel %vm731, %v942, 0.0
      %946 = vadd.xlane.f32.xlu0 %v945
      %v947 = vpop.xlane.xlu0 %946
      %v948 = vsel %vm731, %v944, 0.0
      %949 = vadd.xlane.f32.xlu0 %v948
      %v950 = vpop.xlane.xlu0 %949
      %v951 = vrcp.pop %v947
      %v952 = vrcp.pop %v950
      %v953 = vmul.f32 %v942, %v951
      %v954 = vmul.f32 %v944, %v952
      %v955 = vpack.c.bf16 %v954, %v953
      %v956 = vpack.c.bf16 %v724, %v721
      %v957 = vmul.f32 %v953, %v476
      %v958 = vmul.f32 %v954, %v477
      %v959 = vsel %vm731, %v957, 0.0
      %960 = vadd.xlane.f32.xlu0 %v959
      %v961 = vpop.xlane.xlu0 %960
      %v962 = vsel %vm731, %v958, 0.0
      %963 = vadd.xlane.f32.xlu0 %v962
      %v964 = vpop.xlane.xlu0 %963
      %v965 = vlaneseq
      %v966 = vshrl.u32 %v965, 7
      %v967 = vsub.s32 0, %v966
      %v968 = vrot.slane %v529, %v967
      %v969 = vmul.f32 %v961, %v968
      %v970 = vmul.f32 %v964, %v968
      %v972 = vsel %vm731, %v955, 0
      %974 = vmatprep.subr.bf16.mxu0 0
      %975 = vmatpush1.bf16.msra.mxu0 %v956
      %976 = vmatprep.subr.bf16.mxu0 0
      %977 = vmatpush1.bf16.msra.mxu0 0
      %978 = vmatprep.subr.bf16.mxu0 0
      %979 = vmatpush1.bf16.msra.mxu0 0
      %980 = vmatprep.subr.bf16.mxu0 0
      %981 = vmatpush1.bf16.msra.mxu0 0
      %982 = vmatprep.subr.bf16.mxu0 0
      %983 = vmatpush1.bf16.msra.mxu0 0
      %984 = vmatprep.subr.bf16.mxu0 0
      %985 = vmatpush1.bf16.msra.mxu0 0
      %986 = vmatprep.subr.bf16.mxu0 0
      %987 = vmatpush1.bf16.msra.mxu0 0
      %988 = vmatprep.subr.bf16.mxu0 0
      %989 = vmatpush1.bf16.msra.mxu0 0
      %990 = vmatprep.subr.bf16.mxu0 0
      %991 = vmatpush1.bf16.msra.mxu0 0
      %992 = vmatprep.subr.bf16.mxu0 0
      %993 = vmatpush1.bf16.msra.mxu0 0
      %994 = vmatprep.subr.bf16.mxu0 0
      %995 = vmatpush1.bf16.msra.mxu0 0
      %996 = vmatprep.subr.bf16.mxu0 0
      %997 = vmatpush1.bf16.msra.mxu0 0
      %998 = vmatprep.subr.bf16.mxu0 0
      %999 = vmatpush1.bf16.msra.mxu0 0
      %1000 = vmatprep.subr.bf16.mxu0 0
      %1001 = vmatpush1.bf16.msra.mxu0 0
      %1002 = vmatprep.subr.bf16.mxu0 0
      %1003 = vmatpush1.bf16.msra.mxu0 0
      %1004 = vmatprep.subr.bf16.mxu0 0
      %1005 = vmatpush1.bf16.msra.mxu0 0
      %1006 = vmatprep.mubr.bf16.mxu0 0
      %1007 = vmatmul.mubr.bf16.gmra.mrb[0].mxu0 %v972
      %v1008 = vpop.f32.mrb[0].mxu0
      %v1009 = vadd.f32 %v969, %v1008
      %v1010 = vpop.f32.mrb[0].mxu0
      %v1011 = vpop.f32.mrb[0].mxu0
      %v1012 = vadd.f32 %v970, %v1011
      %v1013 = vpop.f32.mrb[0].mxu0
      %1014 = vdwg.mxu0
      %v1015 = vmul.f32 %v953, %v482
      %v1016 = vmul.f32 %v954, %v483
      %v1017 = vsel %vm731, %v1015, 0.0
      %1018 = vadd.xlane.f32.xlu0 %v1017
      %v1019 = vpop.xlane.xlu0 %1018
      %v1020 = vsel %vm731, %v1016, 0.0
      %1021 = vadd.xlane.f32.xlu0 %v1020
      %v1022 = vpop.xlane.xlu0 %1021
      %v1023 = vlaneseq
      %v1024 = vshrl.u32 %v1023, 7
      %v1025 = vsub.s32 1, %v1024
      %v1026 = vrot.slane %v529, %v1025
      %v1027 = vmul.f32 %v1019, %v1026
      %v1028 = vmul.f32 %v1022, %v1026
      %v1029 = vadd.f32 %v1009, %v1027
      %v1030 = vadd.f32 %v1012, %v1028
      %v1031 = vmul.f32 %v953, %v488
      %v1032 = vmul.f32 %v954, %v489
      %v1033 = vsel %vm731, %v1031, 0.0
      %1034 = vadd.xlane.f32.xlu0 %v1033
      %v1035 = vpop.xlane.xlu0 %1034
      %v1036 = vsel %vm731, %v1032, 0.0
      %1037 = vadd.xlane.f32.xlu0 %v1036
      %v1038 = vpop.xlane.xlu0 %1037
      %v1039 = vlaneseq
      %v1040 = vshrl.u32 %v1039, 7
      %v1041 = vsub.s32 2, %v1040
      %v1042 = vrot.slane %v529, %v1041
      %v1043 = vmul.f32 %v1035, %v1042
      %v1044 = vmul.f32 %v1038, %v1042
      %v1045 = vadd.f32 %v1029, %v1043
      %v1046 = vadd.f32 %v1030, %v1044
      %v1047 = vmul.f32 %v953, %v494
      %v1048 = vmul.f32 %v954, %v495
      %v1049 = vsel %vm731, %v1047, 0.0
      %1050 = vadd.xlane.f32.xlu0 %v1049
      %v1051 = vpop.xlane.xlu0 %1050
      %v1052 = vsel %vm731, %v1048, 0.0
      %1053 = vadd.xlane.f32.xlu0 %v1052
      %v1054 = vpop.xlane.xlu0 %1053
      %v1055 = vlaneseq
      %v1056 = vshrl.u32 %v1055, 7
      %v1057 = vsub.s32 3, %v1056
      %v1058 = vrot.slane %v529, %v1057
      %v1059 = vmul.f32 %v1051, %v1058
      %v1060 = vmul.f32 %v1054, %v1058
      %v1061 = vadd.f32 %v1045, %v1059
      %v1062 = vadd.f32 %v1046, %v1060
      %v1063 = vmul.f32 %v953, %v500
      %v1064 = vmul.f32 %v954, %v501
      %v1065 = vsel %vm731, %v1063, 0.0
      %1066 = vadd.xlane.f32.xlu0 %v1065
      %v1067 = vpop.xlane.xlu0 %1066
      %v1068 = vsel %vm731, %v1064, 0.0
      %1069 = vadd.xlane.f32.xlu0 %v1068
      %v1070 = vpop.xlane.xlu0 %1069
      %v1071 = vlaneseq
      %v1072 = vshrl.u32 %v1071, 7
      %v1073 = vsub.s32 4, %v1072
      %v1074 = vrot.slane %v529, %v1073
      %v1075 = vmul.f32 %v1067, %v1074
      %v1076 = vmul.f32 %v1070, %v1074
      %v1077 = vadd.f32 %v1061, %v1075
      %v1078 = vadd.f32 %v1062, %v1076
      %v1079 = vmul.f32 %v953, %v506
      %v1080 = vmul.f32 %v954, %v507
      %v1081 = vsel %vm731, %v1079, 0.0
      %1082 = vadd.xlane.f32.xlu0 %v1081
      %v1083 = vpop.xlane.xlu0 %1082
      %v1084 = vsel %vm731, %v1080, 0.0
      %1085 = vadd.xlane.f32.xlu0 %v1084
      %v1086 = vpop.xlane.xlu0 %1085
      %v1087 = vlaneseq
      %v1088 = vshrl.u32 %v1087, 7
      %v1089 = vsub.s32 5, %v1088
      %v1090 = vrot.slane %v529, %v1089
      %v1091 = vmul.f32 %v1083, %v1090
      %v1092 = vmul.f32 %v1086, %v1090
      %v1093 = vadd.f32 %v1077, %v1091
      %v1094 = vadd.f32 %v1078, %v1092
      %v1095 = vmul.f32 %v953, %v512
      %v1096 = vmul.f32 %v954, %v513
      %v1097 = vsel %vm731, %v1095, 0.0
      %1098 = vadd.xlane.f32.xlu0 %v1097
      %v1099 = vpop.xlane.xlu0 %1098
      %v1100 = vsel %vm731, %v1096, 0.0
      %1101 = vadd.xlane.f32.xlu0 %v1100
      %v1102 = vpop.xlane.xlu0 %1101
      %v1103 = vlaneseq
      %v1104 = vshrl.u32 %v1103, 7
      %v1105 = vsub.s32 6, %v1104
      %v1106 = vrot.slane %v529, %v1105
      %v1107 = vmul.f32 %v1099, %v1106
      %v1108 = vmul.f32 %v1102, %v1106
      %v1109 = vadd.f32 %v1093, %v1107
      %v1110 = vadd.f32 %v1094, %v1108
      %v1111 = vmul.f32 %v953, %v518
      %v1112 = vmul.f32 %v954, %v519
      %v1113 = vsel %vm731, %v1111, 0.0
      %1114 = vadd.xlane.f32.xlu0 %v1113
      %v1115 = vpop.xlane.xlu0 %1114
      %v1116 = vsel %vm731, %v1112, 0.0
      %1117 = vadd.xlane.f32.xlu0 %v1116
      %v1118 = vpop.xlane.xlu0 %1117
      %v1119 = vlaneseq
      %v1120 = vshrl.u32 %v1119, 7
      %v1121 = vsub.s32 7, %v1120
      %v1122 = vrot.slane %v529, %v1121
      %v1123 = vmul.f32 %v1115, %v1122
      %v1124 = vmul.f32 %v1118, %v1122
      %v1125 = vadd.f32 %v1109, %v1123
      %v1126 = vadd.f32 %v1110, %v1124
      %v1127 = vmul.f32 %v953, %v524
      %v1128 = vmul.f32 %v954, %v525
      %v1129 = vsel %vm731, %v1127, 0.0
      %1130 = vadd.xlane.f32.xlu0 %v1129
      %v1131 = vpop.xlane.xlu0 %1130
      %v1132 = vsel %vm731, %v1128, 0.0
      %1133 = vadd.xlane.f32.xlu0 %v1132
      %v1134 = vpop.xlane.xlu0 %1133
      %v1135 = vlaneseq
      %v1136 = vshrl.u32 %v1135, 7
      %v1137 = vsub.s32 0, %v1136
      %v1138 = vrot.slane %v530, %v1137
      %v1139 = vmul.f32 %v1131, %v1138
      %v1140 = vmul.f32 %v1134, %v1138
      %v1141 = vadd.f32 %v1125, %v1139
      %v1142 = vadd.f32 %v1126, %v1140
      %v1143 = vpack.c.bf16 %v1142, %v1141
      %v1144 = vld [vmem:[%s5] sm:$0xf]
      %v1145 = vld [vmem:[%s5 + $0x4] sm:$0xf]
      %s1146 = scalar_lea.vmem %s2, 16
      %v1147 = vld [vmem:[%s1146] sm:$0xf]
      %v1148 = vld [vmem:[%s1146 + $0x4] sm:$0xf]
      %v1149 = vld [vmem:[%s1146 + $0x8] sm:$0xf]
      %v1150 = vld [vmem:[%s1146 + $0xc] sm:$0xf]
      %s1151 = scalar_lea.vmem %s6, 1
      %v1152 = vld [vmem:[%s1151] sm:$0x1]
      %v1154 = vlaneseq
      %v1155 = vshrl.u32 %v1154, 7
      %v1156 = vsub.s32 0, %v1155
      %v1157 = vrot.slane %v1152, %v1156
      %v1163 = vunpack.c.l.b16 %v1147
      %v1164 = vunpack.c.l.b16 %v1148
      %v1165 = vunpack.c.l.b16 %v1149
      %v1166 = vunpack.c.l.b16 %v1150
      %v1167 = vpack.c.b16 %v1164, %v1163
      %v1168 = vpack.c.b16 %v1166, %v1165
      %1171 = vmatprep.subr.bf16.mxu0 0
      %1172 = vmatpush1.bf16.msra.mxu0 %v1167
      %1173 = vmatprep.subr.bf16.mxu0 0
      %1174 = vmatpush1.bf16.msra.mxu0 %v1168
      %1175 = vmatprep.subr.bf16.mxu0 0
      %1176 = vmatpush1.bf16.msra.mxu0 0
      %1177 = vmatprep.subr.bf16.mxu0 0
      %1178 = vmatpush1.bf16.msra.mxu0 0
      %1179 = vmatprep.subr.bf16.mxu0 0
      %1180 = vmatpush1.bf16.msra.mxu0 0
      %1181 = vmatprep.subr.bf16.mxu0 0
      %1182 = vmatpush1.bf16.msra.mxu0 0
      %1183 = vmatprep.subr.bf16.mxu0 0
      %1184 = vmatpush1.bf16.msra.mxu0 0
      %1185 = vmatprep.subr.bf16.mxu0 0
      %1186 = vmatpush1.bf16.msra.mxu0 0
      %1187 = vmatprep.subr.bf16.mxu0 0
      %1188 = vmatpush1.bf16.msra.mxu0 0
      %1189 = vmatprep.subr.bf16.mxu0 0
      %1190 = vmatpush1.bf16.msra.mxu0 0
      %1191 = vmatprep.subr.bf16.mxu0 0
      %1192 = vmatpush1.bf16.msra.mxu0 0
      %1193 = vmatprep.subr.bf16.mxu0 0
      %1194 = vmatpush1.bf16.msra.mxu0 0
      %1195 = vmatprep.subr.bf16.mxu0 0
      %1196 = vmatpush1.bf16.msra.mxu0 0
      %1197 = vmatprep.subr.bf16.mxu0 0
      %1198 = vmatpush1.bf16.msra.mxu0 0
      %1199 = vmatprep.subr.bf16.mxu0 0
      %1200 = vmatpush1.bf16.msra.mxu0 0
      %1201 = vmatprep.subr.bf16.mxu0 0
      %1202 = vmatpush1.bf16.msra.mxu0 0
      %1203 = vmatprep.mubr.bf16.mxu0 0
      %1204 = vmatmul.mubr.bf16.gmra.mrb[0].mxu0 %v556
      %v1205 = vpop.f32.mrb[0].mxu0
      %v1206 = vadd.f32 %v1157, %v1205
      %v1207 = vpop.f32.mrb[0].mxu0
      %v1208 = vpop.f32.mrb[0].mxu0
      %v1209 = vadd.f32 %v1157, %v1208
      %v1210 = vpop.f32.mrb[0].mxu0
      %1211 = vdwg.mxu0
      %s1212 = scalar_lea.vmem %s3, 16
      %v1213 = vld [vmem:[%s1212] sm:$0xf]
      %v1214 = vld [vmem:[%s1212 + $0x4] sm:$0xf]
      %v1215 = vld [vmem:[%s1212 + $0x8] sm:$0xf]
      %v1216 = vld [vmem:[%s1212 + $0xc] sm:$0xf]
      %s1217 = scalar_lea.vmem %s7, 1
      %v1218 = vld [vmem:[%s1217] sm:$0x1]
      %v1220 = vlaneseq
      %v1221 = vshrl.u32 %v1220, 7
      %v1222 = vsub.s32 0, %v1221
      %v1223 = vrot.slane %v1218, %v1222
      %v1229 = vunpack.c.l.b16 %v1213
      %v1230 = vunpack.c.l.b16 %v1214
      %v1231 = vunpack.c.l.b16 %v1215
      %v1232 = vunpack.c.l.b16 %v1216
      %v1233 = vpack.c.b16 %v1230, %v1229
      %v1234 = vpack.c.b16 %v1232, %v1231
      %1237 = vmatprep.subr.bf16.mxu0 0
      %1238 = vmatpush1.bf16.msra.mxu0 %v1233
      %1239 = vmatprep.subr.bf16.mxu0 0
      %1240 = vmatpush1.bf16.msra.mxu0 %v1234
      %1241 = vmatprep.subr.bf16.mxu0 0
      %1242 = vmatpush1.bf16.msra.mxu0 0
      %1243 = vmatprep.subr.bf16.mxu0 0
      %1244 = vmatpush1.bf16.msra.mxu0 0
      %1245 = vmatprep.subr.bf16.mxu0 0
      %1246 = vmatpush1.bf16.msra.mxu0 0
      %1247 = vmatprep.subr.bf16.mxu0 0
      %1248 = vmatpush1.bf16.msra.mxu0 0
      %1249 = vmatprep.subr.bf16.mxu0 0
      %1250 = vmatpush1.bf16.msra.mxu0 0
      %1251 = vmatprep.subr.bf16.mxu0 0
      %1252 = vmatpush1.bf16.msra.mxu0 0
      %1253 = vmatprep.subr.bf16.mxu0 0
      %1254 = vmatpush1.bf16.msra.mxu0 0
      %1255 = vmatprep.subr.bf16.mxu0 0
      %1256 = vmatpush1.bf16.msra.mxu0 0
      %1257 = vmatprep.subr.bf16.mxu0 0
      %1258 = vmatpush1.bf16.msra.mxu0 0
      %1259 = vmatprep.subr.bf16.mxu0 0
      %1260 = vmatpush1.bf16.msra.mxu0 0
      %1261 = vmatprep.subr.bf16.mxu0 0
      %1262 = vmatpush1.bf16.msra.mxu0 0
      %1263 = vmatprep.subr.bf16.mxu0 0
      %1264 = vmatpush1.bf16.msra.mxu0 0
      %1265 = vmatprep.subr.bf16.mxu0 0
      %1266 = vmatpush1.bf16.msra.mxu0 0
      %1267 = vmatprep.subr.bf16.mxu0 0
      %1268 = vmatpush1.bf16.msra.mxu0 0
      %1269 = vmatprep.mubr.bf16.mxu0 0
      %1270 = vmatmul.mubr.bf16.gmra.mrb[0].mxu0 %v556
      %v1271 = vpop.f32.mrb[0].mxu0
      %v1272 = vadd.f32 %v1223, %v1271
      %v1273 = vpop.f32.mrb[0].mxu0
      %v1274 = vpop.f32.mrb[0].mxu0
      %v1275 = vadd.f32 %v1223, %v1274
      %v1276 = vpop.f32.mrb[0].mxu0
      %1277 = vdwg.mxu0
      %s1278 = scalar_lea.vmem %s4, 16
      %v1279 = vld [vmem:[%s1278] sm:$0xf]
      %v1280 = vld [vmem:[%s1278 + $0x4] sm:$0xf]
      %v1281 = vld [vmem:[%s1278 + $0x8] sm:$0xf]
      %v1282 = vld [vmem:[%s1278 + $0xc] sm:$0xf]
      %s1283 = scalar_lea.vmem %s8, 1
      %v1284 = vld [vmem:[%s1283] sm:$0x1]
      %v1286 = vlaneseq
      %v1287 = vshrl.u32 %v1286, 7
      %v1288 = vsub.s32 0, %v1287
      %v1289 = vrot.slane %v1284, %v1288
      %v1295 = vunpack.c.l.b16 %v1279
      %v1296 = vunpack.c.l.b16 %v1280
      %v1297 = vunpack.c.l.b16 %v1281
      %v1298 = vunpack.c.l.b16 %v1282
      %v1299 = vpack.c.b16 %v1296, %v1295
      %v1300 = vpack.c.b16 %v1298, %v1297
      %1303 = vmatprep.subr.bf16.mxu0 0
      %1304 = vmatpush1.bf16.msra.mxu0 %v1299
      %1305 = vmatprep.subr.bf16.mxu0 0
      %1306 = vmatpush1.bf16.msra.mxu0 %v1300
      %1307 = vmatprep.subr.bf16.mxu0 0
      %1308 = vmatpush1.bf16.msra.mxu0 0
      %1309 = vmatprep.subr.bf16.mxu0 0
      %1310 = vmatpush1.bf16.msra.mxu0 0
      %1311 = vmatprep.subr.bf16.mxu0 0
      %1312 = vmatpush1.bf16.msra.mxu0 0
      %1313 = vmatprep.subr.bf16.mxu0 0
      %1314 = vmatpush1.bf16.msra.mxu0 0
      %1315 = vmatprep.subr.bf16.mxu0 0
      %1316 = vmatpush1.bf16.msra.mxu0 0
      %1317 = vmatprep.subr.bf16.mxu0 0
      %1318 = vmatpush1.bf16.msra.mxu0 0
      %1319 = vmatprep.subr.bf16.mxu0 0
      %1320 = vmatpush1.bf16.msra.mxu0 0
      %1321 = vmatprep.subr.bf16.mxu0 0
      %1322 = vmatpush1.bf16.msra.mxu0 0
      %1323 = vmatprep.subr.bf16.mxu0 0
      %1324 = vmatpush1.bf16.msra.mxu0 0
      %1325 = vmatprep.subr.bf16.mxu0 0
      %1326 = vmatpush1.bf16.msra.mxu0 0
      %1327 = vmatprep.subr.bf16.mxu0 0
      %1328 = vmatpush1.bf16.msra.mxu0 0
      %1329 = vmatprep.subr.bf16.mxu0 0
      %1330 = vmatpush1.bf16.msra.mxu0 0
      %1331 = vmatprep.subr.bf16.mxu0 0
      %1332 = vmatpush1.bf16.msra.mxu0 0
      %1333 = vmatprep.subr.bf16.mxu0 0
      %1334 = vmatpush1.bf16.msra.mxu0 0
      %1335 = vmatprep.mubr.bf16.mxu0 0
      %1336 = vmatmul.mubr.bf16.gmra.mrb[0].mxu0 %v556
      %v1337 = vpop.f32.mrb[0].mxu0
      %v1338 = vadd.f32 %v1289, %v1337
      %v1339 = vpop.f32.mrb[0].mxu0
      %v1340 = vpop.f32.mrb[0].mxu0
      %v1341 = vadd.f32 %v1289, %v1340
      %v1342 = vpop.f32.mrb[0].mxu0
      %1343 = vdwg.mxu0
      %v1344 = vmul.f32 %v1206, 0.25
      %v1345 = vmul.f32 %v1209, 0.25
      %v1346 = vpack.c.bf16 %v1345, %v1344
      %v1347 = vpack.c.bf16 %v1275, %v1272
      %v1349 = vsel %vm731, %v1346, 0
      %1351 = vmatprep.subr.bf16.mxu0 0
      %1352 = vmatpush1.bf16.xpose.msra.mxu0 %v736
      %1353 = vmatprep.subr.bf16.mxu0 0
      %1354 = vmatpush1.bf16.xpose.msra.mxu0 0
      %1355 = vmatprep.subr.bf16.mxu0 0
      %1356 = vmatpush1.bf16.xpose.msra.mxu0 0
      %1357 = vmatprep.subr.bf16.mxu0 0
      %1358 = vmatpush1.bf16.xpose.msra.mxu0 0
      %1359 = vmatprep.subr.bf16.mxu0 0
      %1360 = vmatpush1.bf16.xpose.msra.mxu0 0
      %1361 = vmatprep.subr.bf16.mxu0 0
      %1362 = vmatpush1.bf16.xpose.msra.mxu0 0
      %1363 = vmatprep.subr.bf16.mxu0 0
      %1364 = vmatpush1.bf16.xpose.msra.mxu0 0
      %1365 = vmatprep.subr.bf16.mxu0 0
      %1366 = vmatpush1.bf16.xpose.msra.mxu0 0
      %1367 = vmatprep.subr.bf16.mxu0 0
      %1368 = vmatpush1.bf16.xpose.msra.mxu0 0
      %1369 = vmatprep.subr.bf16.mxu0 0
      %1370 = vmatpush1.bf16.xpose.msra.mxu0 0
      %1371 = vmatprep.subr.bf16.mxu0 0
      %1372 = vmatpush1.bf16.xpose.msra.mxu0 0
      %1373 = vmatprep.subr.bf16.mxu0 0
      %1374 = vmatpush1.bf16.xpose.msra.mxu0 0
      %1375 = vmatprep.subr.bf16.mxu0 0
      %1376 = vmatpush1.bf16.xpose.msra.mxu0 0
      %1377 = vmatprep.subr.bf16.mxu0 0
      %1378 = vmatpush1.bf16.xpose.msra.mxu0 0
      %1379 = vmatprep.subr.bf16.mxu0 0
      %1380 = vmatpush1.bf16.xpose.msra.mxu0 0
      %1381 = vmatprep.subr.bf16.mxu0 0
      %1382 = vmatpush1.bf16.xpose.msra.mxu0 0
      %1383 = vmatprep.mubr.bf16.mxu0 0
      %1384 = vmatmul.mubr.bf16.gmra.mrb[0].mxu0 %v1349
      %v1385 = vpop.f32.mrb[0].mxu0
      %v1386 = vadd.f32 0.0, %v1385
      %v1387 = vpop.f32.mrb[0].mxu0
      %v1388 = vpop.f32.mrb[0].mxu0
      %v1389 = vadd.f32 0.0, %v1388
      %v1390 = vpop.f32.mrb[0].mxu0
      %1391 = vdwg.mxu0
      %1393 = vset.pattern.permute.xlu0 0
      %1394 = vperm.xlu0 %1393, %v1386
      %v1395 = vpop.permute.xlu0 %1394
      %1398 = vset.pattern.permute.xlu0 0
      %1399 = vperm.xlu0 %1398, %v1389
      %v1400 = vpop.permute.xlu0 %1399
      %v1402 = vmul.f32 %v1395, %v476
      %v1403 = vmul.f32 %v1400, %v477
      %v1405 = vsel %vm731, %v1347, 0
      %1407 = vmatprep.subr.bf16.mxu0 0
      %1408 = vmatpush1.bf16.xpose.msra.mxu0 %v1405
      %1409 = vmatprep.subr.bf16.mxu0 0
      %1410 = vmatpush1.bf16.xpose.msra.mxu0 0
      %1411 = vmatprep.subr.bf16.mxu0 0
      %1412 = vmatpush1.bf16.xpose.msra.mxu0 0
      %1413 = vmatprep.subr.bf16.mxu0 0
      %1414 = vmatpush1.bf16.xpose.msra.mxu0 0
      %1415 = vmatprep.subr.bf16.mxu0 0
      %1416 = vmatpush1.bf16.xpose.msra.mxu0 0
      %1417 = vmatprep.subr.bf16.mxu0 0
      %1418 = vmatpush1.bf16.xpose.msra.mxu0 0
      %1419 = vmatprep.subr.bf16.mxu0 0
      %1420 = vmatpush1.bf16.xpose.msra.mxu0 0
      %1421 = vmatprep.subr.bf16.mxu0 0
      %1422 = vmatpush1.bf16.xpose.msra.mxu0 0
      %1423 = vmatprep.subr.bf16.mxu0 0
      %1424 = vmatpush1.bf16.xpose.msra.mxu0 0
      %1425 = vmatprep.subr.bf16.mxu0 0
      %1426 = vmatpush1.bf16.xpose.msra.mxu0 0
      %1427 = vmatprep.subr.bf16.mxu0 0
      %1428 = vmatpush1.bf16.xpose.msra.mxu0 0
      %1429 = vmatprep.subr.bf16.mxu0 0
      %1430 = vmatpush1.bf16.xpose.msra.mxu0 0
      %1431 = vmatprep.subr.bf16.mxu0 0
      %1432 = vmatpush1.bf16.xpose.msra.mxu0 0
      %1433 = vmatprep.subr.bf16.mxu0 0
      %1434 = vmatpush1.bf16.xpose.msra.mxu0 0
      %1435 = vmatprep.subr.bf16.mxu0 0
      %1436 = vmatpush1.bf16.xpose.msra.mxu0 0
      %1437 = vmatprep.subr.bf16.mxu0 0
      %1438 = vmatpush1.bf16.xpose.msra.mxu0 0
      %1439 = vmatprep.mubr.bf16.mxu0 0
      %1440 = vmatmul.mubr.bf16.gmra.mrb[0].mxu0 %v1349
      %v1441 = vpop.f32.mrb[0].mxu0
      %v1442 = vadd.f32 %v1402, %v1441
      %v1443 = vpop.f32.mrb[0].mxu0
      %v1444 = vpop.f32.mrb[0].mxu0
      %v1445 = vadd.f32 %v1403, %v1444
      %v1446 = vpop.f32.mrb[0].mxu0
      %1447 = vdwg.mxu0
      %1448 = vset.pattern.permute.xlu0 1
      %1449 = vperm.xlu0 %1448, %v1386
      %v1450 = vpop.permute.xlu0 %1449
      %1452 = vset.pattern.permute.xlu0 1
      %1453 = vperm.xlu0 %1452, %v1389
      %v1454 = vpop.permute.xlu0 %1453
      %v1456 = vmul.f32 %v1450, %v482
      %v1457 = vmul.f32 %v1454, %v483
      %v1458 = vadd.f32 %v1442, %v1456
      %v1459 = vadd.f32 %v1445, %v1457
      %1460 = vset.pattern.permute.xlu0 2
      %1461 = vperm.xlu0 %1460, %v1386
      %v1462 = vpop.permute.xlu0 %1461
      %1464 = vset.pattern.permute.xlu0 2
      %1465 = vperm.xlu0 %1464, %v1389
      %v1466 = vpop.permute.xlu0 %1465
      %v1468 = vmul.f32 %v1462, %v488
      %v1469 = vmul.f32 %v1466, %v489
      %v1470 = vadd.f32 %v1458, %v1468
      %v1471 = vadd.f32 %v1459, %v1469
      %1472 = vset.pattern.permute.xlu0 3
      %1473 = vperm.xlu0 %1472, %v1386
      %v1474 = vpop.permute.xlu0 %1473
      %1476 = vset.pattern.permute.xlu0 3
      %1477 = vperm.xlu0 %1476, %v1389
      %v1478 = vpop.permute.xlu0 %1477
      %v1480 = vmul.f32 %v1474, %v494
      %v1481 = vmul.f32 %v1478, %v495
      %v1482 = vadd.f32 %v1470, %v1480
      %v1483 = vadd.f32 %v1471, %v1481
      %1484 = vset.pattern.permute.xlu0 4
      %1485 = vperm.xlu0 %1484, %v1386
      %v1486 = vpop.permute.xlu0 %1485
      %1488 = vset.pattern.permute.xlu0 4
      %1489 = vperm.xlu0 %1488, %v1389
      %v1490 = vpop.permute.xlu0 %1489
      %v1492 = vmul.f32 %v1486, %v500
      %v1493 = vmul.f32 %v1490, %v501
      %v1494 = vadd.f32 %v1482, %v1492
      %v1495 = vadd.f32 %v1483, %v1493
      %1496 = vset.pattern.permute.xlu0 5
      %1497 = vperm.xlu0 %1496, %v1386
      %v1498 = vpop.permute.xlu0 %1497
      %1500 = vset.pattern.permute.xlu0 5
      %1501 = vperm.xlu0 %1500, %v1389
      %v1502 = vpop.permute.xlu0 %1501
      %v1504 = vmul.f32 %v1498, %v506
      %v1505 = vmul.f32 %v1502, %v507
      %v1506 = vadd.f32 %v1494, %v1504
      %v1507 = vadd.f32 %v1495, %v1505
      %1508 = vset.pattern.permute.xlu0 6
      %1509 = vperm.xlu0 %1508, %v1386
      %v1510 = vpop.permute.xlu0 %1509
      %1512 = vset.pattern.permute.xlu0 6
      %1513 = vperm.xlu0 %1512, %v1389
      %v1514 = vpop.permute.xlu0 %1513
      %v1516 = vmul.f32 %v1510, %v512
      %v1517 = vmul.f32 %v1514, %v513
      %v1518 = vadd.f32 %v1506, %v1516
      %v1519 = vadd.f32 %v1507, %v1517
      %1520 = vset.pattern.permute.xlu0 7
      %1521 = vperm.xlu0 %1520, %v1386
      %v1522 = vpop.permute.xlu0 %1521
      %1524 = vset.pattern.permute.xlu0 7
      %1525 = vperm.xlu0 %1524, %v1389
      %v1526 = vpop.permute.xlu0 %1525
      %v1528 = vmul.f32 %v1522, %v518
      %v1529 = vmul.f32 %v1526, %v519
      %v1530 = vadd.f32 %v1518, %v1528
      %v1531 = vadd.f32 %v1519, %v1529
      %1532 = vset.pattern.permute.xlu0 8
      %1533 = vperm.xlu0 %1532, %v1386
      %v1534 = vpop.permute.xlu0 %1533
      %1536 = vset.pattern.permute.xlu0 8
      %1537 = vperm.xlu0 %1536, %v1389
      %v1538 = vpop.permute.xlu0 %1537
      %v1540 = vmul.f32 %v1534, %v524
      %v1541 = vmul.f32 %v1538, %v525
      %v1542 = vadd.f32 %v1530, %v1540
      %v1543 = vadd.f32 %v1531, %v1541
      %v1544 = vsel %vm468, %v1542, -10000.0
      %v1545 = vsel %vm469, %v1543, -10000.0
      %v1546 = vsel %vm731, %v1544, -inf
      %1547 = vmax.xlane.f32.xlu0 %v1546
      %v1548 = vpop.xlane.xlu0 %1547
      %v1549 = vsel %vm731, %v1545, -inf
      %1550 = vmax.xlane.f32.xlu0 %v1549
      %v1551 = vpop.xlane.xlu0 %1550
      %v1552 = vsub.f32 %v1544, %v1548
      %v1553 = vsub.f32 %v1545, %v1551
      %v1554 = vmul.f32 %v1552, 1.442695
      %v1555 = vpow.pop %v1554
      %v1556 = vmul.f32 %v1553, 1.442695
      %v1557 = vpow.pop %v1556
      %v1558 = vsel %vm731, %v1555, 0.0
      %1559 = vadd.xlane.f32.xlu0 %v1558
      %v1560 = vpop.xlane.xlu0 %1559
      %v1561 = vsel %vm731, %v1557, 0.0
      %1562 = vadd.xlane.f32.xlu0 %v1561
      %v1563 = vpop.xlane.xlu0 %1562
      %v1564 = vrcp.pop %v1560
      %v1565 = vrcp.pop %v1563
      %v1566 = vmul.f32 %v1555, %v1564
      %v1567 = vmul.f32 %v1557, %v1565
      %v1568 = vpack.c.bf16 %v1567, %v1566
      %v1569 = vpack.c.bf16 %v1341, %v1338
      %v1570 = vmul.f32 %v1566, %v476
      %v1571 = vmul.f32 %v1567, %v477
      %v1572 = vsel %vm731, %v1570, 0.0
      %1573 = vadd.xlane.f32.xlu0 %v1572
      %v1574 = vpop.xlane.xlu0 %1573
      %v1575 = vsel %vm731, %v1571, 0.0
      %1576 = vadd.xlane.f32.xlu0 %v1575
      %v1577 = vpop.xlane.xlu0 %1576
      %v1578 = vmul.f32 %v1574, %v968
      %v1579 = vmul.f32 %v1577, %v968
      %v1581 = vsel %vm731, %v1568, 0
      %1583 = vmatprep.subr.bf16.mxu0 0
      %1584 = vmatpush1.bf16.msra.mxu0 %v1569
      %1585 = vmatprep.subr.bf16.mxu0 0
      %1586 = vmatpush1.bf16.msra.mxu0 0
      %1587 = vmatprep.subr.bf16.mxu0 0
      %1588 = vmatpush1.bf16.msra.mxu0 0
      %1589 = vmatprep.subr.bf16.mxu0 0
      %1590 = vmatpush1.bf16.msra.mxu0 0
      %1591 = vmatprep.subr.bf16.mxu0 0
      %1592 = vmatpush1.bf16.msra.mxu0 0
      %1593 = vmatprep.subr.bf16.mxu0 0
      %1594 = vmatpush1.bf16.msra.mxu0 0
      %1595 = vmatprep.subr.bf16.mxu0 0
      %1596 = vmatpush1.bf16.msra.mxu0 0
      %1597 = vmatprep.subr.bf16.mxu0 0
      %1598 = vmatpush1.bf16.msra.mxu0 0
      %1599 = vmatprep.subr.bf16.mxu0 0
      %1600 = vmatpush1.bf16.msra.mxu0 0
      %1601 = vmatprep.subr.bf16.mxu0 0
      %1602 = vmatpush1.bf16.msra.mxu0 0
      %1603 = vmatprep.subr.bf16.mxu0 0
      %1604 = vmatpush1.bf16.msra.mxu0 0
      %1605 = vmatprep.subr.bf16.mxu0 0
      %1606 = vmatpush1.bf16.msra.mxu0 0
      %1607 = vmatprep.subr.bf16.mxu0 0
      %1608 = vmatpush1.bf16.msra.mxu0 0
      %1609 = vmatprep.subr.bf16.mxu0 0
      %1610 = vmatpush1.bf16.msra.mxu0 0
      %1611 = vmatprep.subr.bf16.mxu0 0
      %1612 = vmatpush1.bf16.msra.mxu0 0
      %1613 = vmatprep.subr.bf16.mxu0 0
      %1614 = vmatpush1.bf16.msra.mxu0 0
      %1615 = vmatprep.mubr.bf16.mxu0 0
      %1616 = vmatmul.mubr.bf16.gmra.mrb[0].mxu0 %v1581
      %v1617 = vpop.f32.mrb[0].mxu0
      %v1618 = vadd.f32 %v1578, %v1617
      %v1619 = vpop.f32.mrb[0].mxu0
      %v1620 = vpop.f32.mrb[0].mxu0
      %v1621 = vadd.f32 %v1579, %v1620
      %v1622 = vpop.f32.mrb[0].mxu0
      %1623 = vdwg.mxu0
      %v1624 = vmul.f32 %v1566, %v482
      %v1625 = vmul.f32 %v1567, %v483
      %v1626 = vsel %vm731, %v1624, 0.0
      %1627 = vadd.xlane.f32.xlu0 %v1626
      %v1628 = vpop.xlane.xlu0 %1627
      %v1629 = vsel %vm731, %v1625, 0.0
      %1630 = vadd.xlane.f32.xlu0 %v1629
      %v1631 = vpop.xlane.xlu0 %1630
      %v1632 = vmul.f32 %v1628, %v1026
      %v1633 = vmul.f32 %v1631, %v1026
      %v1634 = vadd.f32 %v1618, %v1632
      %v1635 = vadd.f32 %v1621, %v1633
      %v1636 = vmul.f32 %v1566, %v488
      %v1637 = vmul.f32 %v1567, %v489
      %v1638 = vsel %vm731, %v1636, 0.0
      %1639 = vadd.xlane.f32.xlu0 %v1638
      %v1640 = vpop.xlane.xlu0 %1639
      %v1641 = vsel %vm731, %v1637, 0.0
      %1642 = vadd.xlane.f32.xlu0 %v1641
      %v1643 = vpop.xlane.xlu0 %1642
      %v1644 = vmul.f32 %v1640, %v1042
      %v1645 = vmul.f32 %v1643, %v1042
      %v1646 = vadd.f32 %v1634, %v1644
      %v1647 = vadd.f32 %v1635, %v1645
      %v1648 = vmul.f32 %v1566, %v494
      %v1649 = vmul.f32 %v1567, %v495
      %v1650 = vsel %vm731, %v1648, 0.0
      %1651 = vadd.xlane.f32.xlu0 %v1650
      %v1652 = vpop.xlane.xlu0 %1651
      %v1653 = vsel %vm731, %v1649, 0.0
      %1654 = vadd.xlane.f32.xlu0 %v1653
      %v1655 = vpop.xlane.xlu0 %1654
      %v1656 = vmul.f32 %v1652, %v1058
      %v1657 = vmul.f32 %v1655, %v1058
      %v1658 = vadd.f32 %v1646, %v1656
      %v1659 = vadd.f32 %v1647, %v1657
      %v1660 = vmul.f32 %v1566, %v500
      %v1661 = vmul.f32 %v1567, %v501
      %v1662 = vsel %vm731, %v1660, 0.0
      %1663 = vadd.xlane.f32.xlu0 %v1662
      %v1664 = vpop.xlane.xlu0 %1663
      %v1665 = vsel %vm731, %v1661, 0.0
      %1666 = vadd.xlane.f32.xlu0 %v1665
      %v1667 = vpop.xlane.xlu0 %1666
      %v1668 = vmul.f32 %v1664, %v1074
      %v1669 = vmul.f32 %v1667, %v1074
      %v1670 = vadd.f32 %v1658, %v1668
      %v1671 = vadd.f32 %v1659, %v1669
      %v1672 = vmul.f32 %v1566, %v506
      %v1673 = vmul.f32 %v1567, %v507
      %v1674 = vsel %vm731, %v1672, 0.0
      %1675 = vadd.xlane.f32.xlu0 %v1674
      %v1676 = vpop.xlane.xlu0 %1675
      %v1677 = vsel %vm731, %v1673, 0.0
      %1678 = vadd.xlane.f32.xlu0 %v1677
      %v1679 = vpop.xlane.xlu0 %1678
      %v1680 = vmul.f32 %v1676, %v1090
      %v1681 = vmul.f32 %v1679, %v1090
      %v1682 = vadd.f32 %v1670, %v1680
      %v1683 = vadd.f32 %v1671, %v1681
      %v1684 = vmul.f32 %v1566, %v512
      %v1685 = vmul.f32 %v1567, %v513
      %v1686 = vsel %vm731, %v1684, 0.0
      %1687 = vadd.xlane.f32.xlu0 %v1686
      %v1688 = vpop.xlane.xlu0 %1687
      %v1689 = vsel %vm731, %v1685, 0.0
      %1690 = vadd.xlane.f32.xlu0 %v1689
      %v1691 = vpop.xlane.xlu0 %1690
      %v1692 = vmul.f32 %v1688, %v1106
      %v1693 = vmul.f32 %v1691, %v1106
      %v1694 = vadd.f32 %v1682, %v1692
      %v1695 = vadd.f32 %v1683, %v1693
      %v1696 = vmul.f32 %v1566, %v518
      %v1697 = vmul.f32 %v1567, %v519
      %v1698 = vsel %vm731, %v1696, 0.0
      %1699 = vadd.xlane.f32.xlu0 %v1698
      %v1700 = vpop.xlane.xlu0 %1699
      %v1701 = vsel %vm731, %v1697, 0.0
      %1702 = vadd.xlane.f32.xlu0 %v1701
      %v1703 = vpop.xlane.xlu0 %1702
      %v1704 = vmul.f32 %v1700, %v1122
      %v1705 = vmul.f32 %v1703, %v1122
      %v1706 = vadd.f32 %v1694, %v1704
      %v1707 = vadd.f32 %v1695, %v1705
      %v1708 = vmul.f32 %v1566, %v524
      %v1709 = vmul.f32 %v1567, %v525
      %v1710 = vsel %vm731, %v1708, 0.0
      %1711 = vadd.xlane.f32.xlu0 %v1710
      %v1712 = vpop.xlane.xlu0 %1711
      %v1713 = vsel %vm731, %v1709, 0.0
      %1714 = vadd.xlane.f32.xlu0 %v1713
      %v1715 = vpop.xlane.xlu0 %1714
      %v1716 = vmul.f32 %v1712, %v1138
      %v1717 = vmul.f32 %v1715, %v1138
      %v1718 = vadd.f32 %v1706, %v1716
      %v1719 = vadd.f32 %v1707, %v1717
      %v1720 = vpack.c.bf16 %v1719, %v1718
      %s1721 = scalar_lea.vmem %s5, 8
      %v1722 = vld [vmem:[%s1721] sm:$0xf]
      %v1723 = vld [vmem:[%s1721 + $0x4] sm:$0xf]
      %v1726 = vunpack.c.l.b16 %v1722
      %v1727 = vunpack.c.l.b16 %v1723
      %v1728 = vpack.c.b16 %v1727, %v1726
      %v1731 = vsel %vm731, %v1720, 0
      %1733 = vmatprep.subr.bf16.mxu0 0
      %1734 = vmatpush1.bf16.msra.mxu0 %v1728
      %1735 = vmatprep.subr.bf16.mxu0 0
      %1736 = vmatpush1.bf16.msra.mxu0 0
      %1737 = vmatprep.subr.bf16.mxu0 0
      %1738 = vmatpush1.bf16.msra.mxu0 0
      %1739 = vmatprep.subr.bf16.mxu0 0
      %1740 = vmatpush1.bf16.msra.mxu0 0
      %1741 = vmatprep.subr.bf16.mxu0 0
      %1742 = vmatpush1.bf16.msra.mxu0 0
      %1743 = vmatprep.subr.bf16.mxu0 0
      %1744 = vmatpush1.bf16.msra.mxu0 0
      %1745 = vmatprep.subr.bf16.mxu0 0
      %1746 = vmatpush1.bf16.msra.mxu0 0
      %1747 = vmatprep.subr.bf16.mxu0 0
      %1748 = vmatpush1.bf16.msra.mxu0 0
      %1749 = vmatprep.subr.bf16.mxu0 0
      %1750 = vmatpush1.bf16.msra.mxu0 0
      %1751 = vmatprep.subr.bf16.mxu0 0
      %1752 = vmatpush1.bf16.msra.mxu0 0
      %1753 = vmatprep.subr.bf16.mxu0 0
      %1754 = vmatpush1.bf16.msra.mxu0 0
      %1755 = vmatprep.subr.bf16.mxu0 0
      %1756 = vmatpush1.bf16.msra.mxu0 0
      %1757 = vmatprep.subr.bf16.mxu0 0
      %1758 = vmatpush1.bf16.msra.mxu0 0
      %1759 = vmatprep.subr.bf16.mxu0 0
      %1760 = vmatpush1.bf16.msra.mxu0 0
      %1761 = vmatprep.subr.bf16.mxu0 0
      %1762 = vmatpush1.bf16.msra.mxu0 0
      %1763 = vmatprep.subr.bf16.mxu0 0
      %1764 = vmatpush1.bf16.msra.mxu0 0
      %1765 = vmatprep.mubr.bf16.mxu0 0
      %1766 = vmatmul.mubr.bf16.gmra.mrb[0].mxu0 %v1731
      %v1767 = vpop.f32.mrb[0].mxu0
      %v1768 = vadd.f32 0.0, %v1767
      %v1769 = vpop.f32.mrb[0].mxu0
      %v1770 = vpop.f32.mrb[0].mxu0
      %v1771 = vadd.f32 0.0, %v1770
      %v1772 = vpop.f32.mrb[0].mxu0
      %1773 = vdwg.mxu0
      %v1776 = vunpack.c.l.b16 %v1144
      %v1777 = vunpack.c.l.b16 %v1145
      %v1778 = vpack.c.b16 %v1777, %v1776
      %v1781 = vsel %vm731, %v1143, 0
      %1783 = vmatprep.subr.bf16.mxu0 0
      %1784 = vmatpush1.bf16.msra.mxu0 %v1778
      %1785 = vmatprep.subr.bf16.mxu0 0
      %1786 = vmatpush1.bf16.msra.mxu0 0
      %1787 = vmatprep.subr.bf16.mxu0 0
      %1788 = vmatpush1.bf16.msra.mxu0 0
      %1789 = vmatprep.subr.bf16.mxu0 0
      %1790 = vmatpush1.bf16.msra.mxu0 0
      %1791 = vmatprep.subr.bf16.mxu0 0
      %1792 = vmatpush1.bf16.msra.mxu0 0
      %1793 = vmatprep.subr.bf16.mxu0 0
      %1794 = vmatpush1.bf16.msra.mxu0 0
      %1795 = vmatprep.subr.bf16.mxu0 0
      %1796 = vmatpush1.bf16.msra.mxu0 0
      %1797 = vmatprep.subr.bf16.mxu0 0
      %1798 = vmatpush1.bf16.msra.mxu0 0
      %1799 = vmatprep.subr.bf16.mxu0 0
      %1800 = vmatpush1.bf16.msra.mxu0 0
      %1801 = vmatprep.subr.bf16.mxu0 0
      %1802 = vmatpush1.bf16.msra.mxu0 0
      %1803 = vmatprep.subr.bf16.mxu0 0
      %1804 = vmatpush1.bf16.msra.mxu0 0
      %1805 = vmatprep.subr.bf16.mxu0 0
      %1806 = vmatpush1.bf16.msra.mxu0 0
      %1807 = vmatprep.subr.bf16.mxu0 0
      %1808 = vmatpush1.bf16.msra.mxu0 0
      %1809 = vmatprep.subr.bf16.mxu0 0
      %1810 = vmatpush1.bf16.msra.mxu0 0
      %1811 = vmatprep.subr.bf16.mxu0 0
      %1812 = vmatpush1.bf16.msra.mxu0 0
      %1813 = vmatprep.subr.bf16.mxu0 0
      %1814 = vmatpush1.bf16.msra.mxu0 0
      %1815 = vmatprep.mubr.bf16.mxu0 0
      %1816 = vmatmul.mubr.bf16.gmra.mrb[0].mxu0 %v1781
      %v1817 = vpop.f32.mrb[0].mxu0
      %v1818 = vadd.f32 %v1768, %v1817
      %v1819 = vpop.f32.mrb[0].mxu0
      %v1820 = vpop.f32.mrb[0].mxu0
      %v1821 = vadd.f32 %v1771, %v1820
      %v1822 = vpop.f32.mrb[0].mxu0
      %1823 = vdwg.mxu0
      %v1824 = vld [vmem:[%s9] sm:$0x1]
      %v1826 = vlaneseq
      %v1827 = vshrl.u32 %v1826, 7
      %v1828 = vsub.s32 0, %v1827
      %v1829 = vrot.slane %v1824, %v1828
      %v1831 = vadd.f32 %v1818, %v1829
      %v1832 = vadd.f32 %v1821, %v1829
      %v1833 = vadd.f32 %v462, %v1831
      %v1834 = vadd.f32 %v463, %v1832
      %v1835 = vsel %vm554, %v1833, 0.0
      %1836 = vadd.xlane.f32.xlu0 %v1835
      %v1837 = vpop.xlane.xlu0 %1836
      %v1838 = vsel %vm554, %v1834, 0.0
      %1839 = vadd.xlane.f32.xlu0 %v1838
      %v1840 = vpop.xlane.xlu0 %1839
      %v1841 = vrcp.pop 32.0
      %v1842 = vmul.f32 %v1837, %v1841
      %v1843 = vmul.f32 %v1840, %v1841
      %v1844 = vsub.f32 %v1833, %v1842
      %v1845 = vsub.f32 %v1834, %v1843
      %v1846 = vmul.f32 %v1844, %v1844
      %v1847 = vmul.f32 %v1845, %v1845
      %v1848 = vsel %vm554, %v1846, 0.0
      %1849 = vadd.xlane.f32.xlu0 %v1848
      %v1850 = vpop.xlane.xlu0 %1849
      %v1851 = vsel %vm554, %v1847, 0.0
      %1852 = vadd.xlane.f32.xlu0 %v1851
      %v1853 = vpop.xlane.xlu0 %1852
      %v1854 = vmul.f32 %v1850, %v1841
      %v1855 = vmul.f32 %v1853, %v1841
      %v1856 = vadd.f32 %v1854, 1e-05
      %v1857 = vadd.f32 %v1855, 1e-05
      %v1858 = vrsqrt.pop %v1856
      %v1859 = vrsqrt.pop %v1857
      %v1860 = vmul.f32 %v1844, %v1858
      %v1861 = vmul.f32 %v1845, %v1859
      %v1862 = vld [vmem:[%s12] sm:$0x1]
      %v1864 = vlaneseq
      %v1865 = vshrl.u32 %v1864, 7
      %v1866 = vsub.s32 0, %v1865
      %v1867 = vrot.slane %v1862, %v1866
      %v1869 = vmul.f32 %v1860, %v1867
      %v1870 = vmul.f32 %v1861, %v1867
      %v1871 = vld [vmem:[%s13] sm:$0x1]
      %v1873 = vlaneseq
      %v1874 = vshrl.u32 %v1873, 7
      %v1875 = vsub.s32 0, %v1874
      %v1876 = vrot.slane %v1871, %v1875
      %v1878 = vadd.f32 %v1869, %v1876
      %v1879 = vadd.f32 %v1870, %v1876
      %1880 = vst.msk [vmem:[%s447] sm:$0xff] %vm554, %v1878
      %1881 = vst.msk [vmem:[%s447 + $0x8] sm:$0xff] %vm554, %v1879
      %p1882 = scmp.lt.s32.totalorder %s31, 1
      %s1883 = scalar_select %p1882, %s31, 1
      %s1884 = smul.addr %s1883, 2
      %s1885 = smul.addr %s1884, 8
      %s1886 = scalar_lea.vmem %s14, %s1885
      // Predicated region
      $region73: #{_lambda_.7} parent=71 // pred_check
        %p1887 = pneg %p327
      $region74: #{_lambda_.7} parent=71 // pred_check_branch
        %1889 = sbr.rel (%p1887) target = $region76
      $region75: #{_lambda_.7} parent=71 // pred_region
        _
      $region76: #{_lambda_.7} parent=71 // pred_fallthru
        _
    $region72: #{_lambda_.7} parent=5 // pred_fallthru
      _
    %p1890 = scmp.le.s32.totalorder 2, %s26
    // Predicated region
    $region77: #{_lambda_.7} parent=5 // pred_check
      %p1891 = pneg %p1890
    $region78: #{_lambda_.7} parent=5 // pred_check_branch
      %1893 = sbr.rel (%p1891) target = $region80
    $region79: #{_lambda_.7} parent=5 // pred_region
      %s1894 = ssub.s32 %s26, 2
      // Predicated region
      $region81: #{_lambda_.7} parent=79 // pred_check
        %p1895 = pneg %p333
      $region82: #{_lambda_.7} parent=79 // pred_check_branch
        %1897 = sbr.rel (%p1895) target = $region84
      $region83: #{_lambda_.7} parent=79 // pred_region
        %p1898 = scmp.lt.s32.totalorder %s32, 1
        %s1899 = scalar_select %p1898, %s32, 1
        %s1900 = smul.addr %s1899, 2
        %s1901 = smul.addr %s1900, 8
        %s1902 = scalar_lea.vmem %s14, %s1901
      $region84: #{_lambda_.7} parent=79 // pred_fallthru
        _
    $region80: #{_lambda_.7} parent=5 // pred_fallthru
      _
  $region6: #{_lambda_.7} parent=0 // loop_footer
    %s30 = sadd.s32 1, %s26
  $region7: #{_lambda_.7} parent=0 // loop_footer_branch
    %25 = sbr.rel target = $region3
  $region8: #{_lambda_.7} parent=0 // loop_exit
    _

</llo_original>
